<compile_context>
chip_gen: v7x
topology: tpu7x:2x2x1
jax: 0.10.0
libtpu: 0.0.40
codegen_flags: <defaults>
</compile_context>

<pallas_src>
import math
import functools

import jax
import jax.numpy as jnp
from jax.experimental import pallas as pl
from jax.experimental.pallas import tpu as pltpu


def _round_up(x, m):
    return ((x + m - 1) // m) * m


# ---------------------- fused SamePadConv3d (stride 1) ----------------------

def _conv3d_s1_kernel(x_ref, w_ref, b_ref, o_ref, acc_ref, *, kh, kw, Wp, C, M, kd):
    # x_ref : (1, 1, Hp*Wp, C)  bf16   flattened padded plane for depth d+z
    # w_ref : (1, kh*kw*C, Coutp) bf16 weights for depth-tap z
    # b_ref : (1, Coutp) f32
    # o_ref : (1, 1, Ho*Wp, Coutp) f32 (first M rows valid)
    # acc   : (M, Coutp) f32 scratch, persistent across the depth-tap grid axis
    dz = pl.program_id(2)

    @pl.when(dz == 0)
    def _():
        acc_ref[...] = jnp.zeros_like(acc_ref)

    for dy in range(kh):
        for dx in range(kw):
            off = dy * Wp + dx                       # static shift into the plane
            t = dy * kw + dx
            a = x_ref[0, 0, pl.ds(off, M), :]        # (M, C) bf16
            w = w_ref[0, pl.ds(t * C, C), :]         # (C, Coutp) bf16
            acc_ref[...] += jnp.dot(a, w, preferred_element_type=jnp.float32)

    @pl.when(dz == kd - 1)
    def _():
        o_ref[0, 0, pl.ds(0, M), :] = acc_ref[...] + b_ref[...]


def same_pad_conv3d(x, weight, bias, stride):
    """SamePadConv3d (replicate padding), channels-last.

    x:      (N, D, H, W, Cin) f32
    weight: (Cout, Cin, kd, kh, kw)   (PyTorch layout)
    bias:   (Cout,)
    """
    N, D, H, W, Cin = x.shape
    Cout, _, kd, kh, kw = weight.shape
    sd, sh, sw = stride

    pads = []
    for k, s in zip((kd, kh, kw), (sd, sh, sw)):
        p = k - s
        pads.append((p // 2 + p % 2, p // 2))
    xp = jnp.pad(x, ((0, 0), pads[0], pads[1], pads[2], (0, 0)), mode='edge')
    Dp, Hp, Wp = xp.shape[1:4]

    # stride-1 output extents on the padded volume
    Do1, Ho1, Wo1 = Dp - kd + 1, Hp - kh + 1, Wp - kw + 1
    M = (Ho1 - 1) * Wp + Wo1          # valid rows of the shifted-plane output
    M_out = Ho1 * Wp                  # stored rows (tail rows garbage, sliced off)
    Coutp = _round_up(Cout, 128)      # lane-dense output / MXU N dim

    xf = xp.reshape(N, Dp, Hp * Wp, Cin).astype(jnp.bfloat16)
    wt = jnp.transpose(weight, (2, 3, 4, 1, 0)).reshape(kd, kh * kw * Cin, Cout)
    wt = jnp.pad(wt, ((0, 0), (0, 0), (0, Coutp - Cout))).astype(jnp.bfloat16)
    bt = jnp.pad(bias, (0, Coutp - Cout)).reshape(1, Coutp).astype(jnp.float32)

    kern = functools.partial(_conv3d_s1_kernel, kh=kh, kw=kw, Wp=Wp, C=Cin, M=M, kd=kd)
    out = pl.pallas_call(
        kern,
        out_shape=jax.ShapeDtypeStruct((N, Do1, M_out, Coutp), jnp.float32),
        grid=(N, Do1, kd),
        in_specs=[
            pl.BlockSpec((1, 1, Hp * Wp, Cin), lambda n, d, z: (n, d + z, 0, 0)),
            pl.BlockSpec((1, kh * kw * Cin, Coutp), lambda n, d, z: (z, 0, 0)),
            pl.BlockSpec((1, Coutp), lambda n, d, z: (0, 0)),
        ],
        out_specs=pl.BlockSpec((1, 1, M_out, Coutp), lambda n, d, z: (n, d, 0, 0)),
        scratch_shapes=[pltpu.VMEM((M, Coutp), jnp.float32)],
        compiler_params=pltpu.CompilerParams(
            dimension_semantics=("parallel", "parallel", "arbitrary"),
            vmem_limit_bytes=64 * 1024 * 1024),
    )(xf, wt, bt)

    # un-flatten the padded plane; drop pad columns and channel padding
    out = out.reshape(N, Do1, Ho1, Wp, Coutp)[:, :, :, :Wo1, :Cout]
    if (sd, sh, sw) != (1, 1, 1):
        out = out[:, ::sd, ::sh, ::sw, :]
    return out


# -------------------------- fused GroupNorm + SiLU --------------------------

def _gn_silu_kernel(x_ref, g_ref, b_ref, cg_ref, gc_ref, o_ref, *,
                    eps, inv_count, apply_silu):
    x = x_ref[0, :, :].astype(jnp.float32)               # (S, C)
    s1 = jnp.sum(x, axis=0, keepdims=True)               # (1, C)
    s2 = jnp.sum(x * x, axis=0, keepdims=True)           # (1, C)
    gsum = jnp.dot(s1, cg_ref[...], preferred_element_type=jnp.float32)   # (1, G)
    gsq = jnp.dot(s2, cg_ref[...], preferred_element_type=jnp.float32)    # (1, G)
    mean_g = gsum * inv_count
    var_g = jnp.maximum(gsq * inv_count - mean_g * mean_g, 0.0)
    rstd_g = jax.lax.rsqrt(var_g + eps)
    mean_c = jnp.dot(mean_g, gc_ref[...], preferred_element_type=jnp.float32)  # (1, C)
    rstd_c = jnp.dot(rstd_g, gc_ref[...], preferred_element_type=jnp.float32)  # (1, C)
    scale = g_ref[...] * rstd_c
    shift = b_ref[...] - mean_c * scale
    y = x * scale + shift
    if apply_silu:
        y = y * jax.nn.sigmoid(y)                        # silu(x) = x * sigmoid(x)
    o_ref[0, :, :] = y.astype(o_ref.dtype)


def groupnorm_silu(x, gamma, beta, num_groups, eps=1e-6, apply_silu=True):
    """GroupNorm(eps, affine) [+ SiLU] on channels-last x: (N, D, H, W, C)."""
    N, D, H, W, C = x.shape
    G = num_groups
    Cg = C // G
    S = D * H * W
    xf = x.reshape(N, S, C)
    cg = jnp.repeat(jnp.eye(G, dtype=jnp.float32), Cg, axis=0)   # (C, G) one-hot
    gc = cg.T                                                    # (G, C)
    kern = functools.partial(_gn_silu_kernel, eps=eps,
                             inv_count=1.0 / float(S * Cg), apply_silu=apply_silu)
    out = pl.pallas_call(
        kern,
        out_shape=jax.ShapeDtypeStruct((N, S, C), jnp.float32),
        grid=(N,),
        in_specs=[
            pl.BlockSpec((1, S, C), lambda n: (n, 0, 0)),
            pl.BlockSpec((1, C), lambda n: (0, 0)),
            pl.BlockSpec((1, C), lambda n: (0, 0)),
            pl.BlockSpec((C, G), lambda n: (0, 0)),
            pl.BlockSpec((G, C), lambda n: (0, 0)),
        ],
        out_specs=pl.BlockSpec((1, S, C), lambda n: (n, 0, 0)),
        compiler_params=pltpu.CompilerParams(dimension_semantics=("parallel",)),
    )(xf, gamma.reshape(1, C), beta.reshape(1, C), cg, gc)
    return out.reshape(N, D, H, W, C)


# ------------------------------ residual add --------------------------------

def _add_kernel(a_ref, b_ref, o_ref):
    o_ref[...] = a_ref[...] + b_ref[...]


def residual_add(a, b):
    N, D, H, W, C = a.shape
    a3 = a.reshape(N * D, H * W, C)
    b3 = b.reshape(N * D, H * W, C)
    out = pl.pallas_call(
        _add_kernel,
        out_shape=jax.ShapeDtypeStruct(a3.shape, a3.dtype),
        grid=(N * D,),
        in_specs=[pl.BlockSpec((1, H * W, C), lambda i: (i, 0, 0)),
                  pl.BlockSpec((1, H * W, C), lambda i: (i, 0, 0))],
        out_specs=pl.BlockSpec((1, H * W, C), lambda i: (i, 0, 0)),
        compiler_params=pltpu.CompilerParams(dimension_semantics=("parallel",)),
    )(a3, b3)
    return out.reshape(N, D, H, W, C)


# --------------------------- Parameter building -----------------------------

def init_conv_params(key, cin, cout, k):
    kw_, kb_ = jax.random.split(key)
    fan_in = cin * k * k * k
    bound = 1.0 / math.sqrt(fan_in)
    w = jax.random.uniform(kw_, (cout, cin, k, k, k), jnp.float32, -bound, bound)
    b = jax.random.uniform(kb_, (cout,), jnp.float32, -bound, bound)
    return w, b


def init_norm_params(key, c):
    kg, kb = jax.random.split(key)
    gamma = 1.0 + 0.1 * jax.random.normal(kg, (c,), jnp.float32)
    beta = 0.1 * jax.random.normal(kb, (c,), jnp.float32)
    return gamma, beta


def build_encoder_params(key, n_hiddens, downsample, image_channel):
    n_ds = [int(math.log2(d)) for d in downsample]
    max_ds = max(n_ds)
    keys = iter(jax.random.split(key, 2 + 8 * max(max_ds, 1)))
    params = {'conv_first': init_conv_params(next(keys), image_channel, n_hiddens, 3)}
    blocks = []
    ntd = list(n_ds)
    out_c = n_hiddens
    for i in range(max_ds):
        in_c = n_hiddens * 2 ** i
        out_c = n_hiddens * 2 ** (i + 1)
        stride = tuple(2 if d > 0 else 1 for d in ntd)
        blocks.append({
            'stride': stride,
            'down': init_conv_params(next(keys), in_c, out_c, 4),
            'norm1': init_norm_params(next(keys), out_c),
            'conv1': init_conv_params(next(keys), out_c, out_c, 3),
            'norm2': init_norm_params(next(keys), out_c),
            'conv2': init_conv_params(next(keys), out_c, out_c, 3),
        })
        ntd = [d - 1 for d in ntd]
    params['blocks'] = blocks
    params['final_norm'] = init_norm_params(next(keys), out_c)
    params['out_channels'] = out_c
    return params


# ------------------------------ Forward pass --------------------------------

def resblock_forward(x, blk, num_groups):
    # ResBlock(out_c, out_c): in == out -> identity shortcut; dropout(p=0) = id.
    h = groupnorm_silu(x, *blk['norm1'], num_groups)
    h = same_pad_conv3d(h, *blk['conv1'], (1, 1, 1))
    h = groupnorm_silu(h, *blk['norm2'], num_groups)
    h = same_pad_conv3d(h, *blk['conv2'], (1, 1, 1))
    return residual_add(x, h)


def encoder_forward(x_ncdhw, params, num_groups):
    # channels-last across the whole encoder; one transpose in, one out.
    h = jnp.transpose(x_ncdhw, (0, 2, 3, 4, 1))
    h = same_pad_conv3d(h, *params['conv_first'], (1, 1, 1))
    for blk in params['blocks']:
        h = same_pad_conv3d(h, *blk['down'], blk['stride'])
        h = resblock_forward(h, blk, num_groups)
    h = groupnorm_silu(h, *params['final_norm'], num_groups, apply_silu=True)
    return jnp.transpose(h, (0, 4, 1, 2, 3))


# ---------------------------------- Main ------------------------------------

if __name__ == "__main__":
    key = jax.random.PRNGKey(0)
    kx, kp = jax.random.split(key)

    n_hiddens = 8
    downsample = (2, 2, 2)   # -> one downsample block, stride (2,2,2)
    image_channel = 3
    num_groups = 4           # GroupNorm groups (must divide channel counts)

    # NCDHW input, matching the PyTorch module interface.
    x = jax.random.normal(kx, (2, image_channel, 4, 8, 8), dtype=jnp.float32)

    params = build_encoder_params(kp, n_hiddens, downsample, image_channel)

    fwd = jax.jit(lambda inp: encoder_forward(inp, params, num_groups))
    out = jax.block_until_ready(fwd(x))

    # conv_first: (2,8,4,8,8) -> down stride 2: (2,16,2,4,4) -> res/final: same
    assert out.shape == (2, params['out_channels'], 2, 4, 4), out.shape
    assert bool(jnp.all(jnp.isfinite(out)))
    print("KERNEL_OK")
</pallas_src>

<mosaic_0001>
module attributes {stable_mosaic.version = 11 : i64} {
  func.func @_conv3d_s1_kernel(%arg0: i32, %arg1: i32, %arg2: i32, %arg3: memref<1x1x100x3xbf16, #tpu.memory_space<vmem>>, %arg4: memref<1x27x128xbf16, #tpu.memory_space<vmem>>, %arg5: memref<1x128xf32, #tpu.memory_space<vmem>>, %arg6: memref<1x1x80x128xf32, #tpu.memory_space<vmem>>, %arg7: memref<78x128xf32, #tpu.memory_space<vmem>>) attributes {dimension_semantics = [#tpu.dimension_semantics<parallel>, #tpu.dimension_semantics<parallel>, #tpu.dimension_semantics<arbitrary>], iteration_bounds = array<i64: 2, 4, 3>, scalar_prefetch = 0 : i64, scratch_operands = 1 : i64, tpu.core_type = #tpu.core_type<tc>, window_params = [{transform_indices = @transform_0, window_bounds = array<i64: 1, 1, 100, 3>}, {transform_indices = @transform_1, window_bounds = array<i64: 1, 27, 128>}, {pipeline_mode = #tpu.pipeline_mode<synchronous>, transform_indices = @transform_2, window_bounds = array<i64: 1, 128>}, {transform_indices = @transform_3, window_bounds = array<i64: 1, 1, 80, 128>}]} {
    %c0_i32 = arith.constant 0 : i32
    %0 = arith.cmpi eq, %arg2, %c0_i32 : i32
    %1 = arith.extui %0 : i1 to i32
    %c0_i32_0 = arith.constant 0 : i32
    %2 = arith.cmpi ne, %1, %c0_i32_0 : i32
    scf.if %2 {
      %cst_94 = arith.constant 0.000000e+00 : f32
      %78 = vector.broadcast %cst_94 : f32 to vector<78x128xf32>
      %c0_95 = arith.constant 0 : index
      %c0_96 = arith.constant 0 : index
      %79 = vector.load %arg7[%c0_95, %c0_96] : memref<78x128xf32, #tpu.memory_space<vmem>>, vector<78x128xf32>
      tpu.vector_store %arg7[%c0_95, %c0_96], %78 {strides = array<i32>} : memref<78x128xf32, #tpu.memory_space<vmem>>, vector<78x128xf32>,
    } else {
    }
    %c0 = arith.constant 0 : index
    %c0_1 = arith.constant 0 : index
    %c0_2 = arith.constant 0 : index
    %c0_3 = arith.constant 0 : index
    %3 = vector.load %arg3[%c0, %c0_1, %c0_2, %c0_3] : memref<1x1x100x3xbf16, #tpu.memory_space<vmem>>, vector<1x1x78x3xbf16>
    %4 = vector.shape_cast %3 : vector<1x1x78x3xbf16> to vector<78x3xbf16>
    %c0_4 = arith.constant 0 : index
    %c0_5 = arith.constant 0 : index
    %c0_6 = arith.constant 0 : index
    %5 = vector.load %arg4[%c0_4, %c0_5, %c0_6] : memref<1x27x128xbf16, #tpu.memory_space<vmem>>, vector<1x3x128xbf16>
    %6 = vector.shape_cast %5 : vector<1x3x128xbf16> to vector<3x128xbf16>
    %c0_7 = arith.constant 0 : index
    %c0_8 = arith.constant 0 : index
    %7 = vector.load %arg7[%c0_7, %c0_8] : memref<78x128xf32, #tpu.memory_space<vmem>>, vector<78x128xf32>
    %cst = arith.constant dense<0.000000e+00> : vector<78x128xf32>
    %8 = tpu.matmul %4, %6, %cst {dimension_numbers = #tpu.dot_dimension_numbers<[1], [0], [0], [1], [0, 0, 1, 1], [], []>} : vector<78x3xbf16>, vector<3x128xbf16>, vector<78x128xf32> -> vector<78x128xf32>
    %9 = arith.addf %7, %8 : vector<78x128xf32>
    %c0_9 = arith.constant 0 : index
    %c0_10 = arith.constant 0 : index
    %10 = vector.load %arg7[%c0_9, %c0_10] : memref<78x128xf32, #tpu.memory_space<vmem>>, vector<78x128xf32>
    tpu.vector_store %arg7[%c0_9, %c0_10], %9 {strides = array<i32>} : memref<78x128xf32, #tpu.memory_space<vmem>>, vector<78x128xf32>,
    %c0_11 = arith.constant 0 : index
    %c0_12 = arith.constant 0 : index
    %c1 = arith.constant 1 : index
    %c0_13 = arith.constant 0 : index
    %11 = vector.load %arg3[%c0_11, %c0_12, %c1, %c0_13] : memref<1x1x100x3xbf16, #tpu.memory_space<vmem>>, vector<1x1x78x3xbf16>
    %12 = vector.shape_cast %11 : vector<1x1x78x3xbf16> to vector<78x3xbf16>
    %c0_14 = arith.constant 0 : index
    %c3 = arith.constant 3 : index
    %c0_15 = arith.constant 0 : index
    %13 = vector.load %arg4[%c0_14, %c3, %c0_15] : memref<1x27x128xbf16, #tpu.memory_space<vmem>>, vector<1x3x128xbf16>
    %14 = vector.shape_cast %13 : vector<1x3x128xbf16> to vector<3x128xbf16>
    %c0_16 = arith.constant 0 : index
    %c0_17 = arith.constant 0 : index
    %15 = vector.load %arg7[%c0_16, %c0_17] : memref<78x128xf32, #tpu.memory_space<vmem>>, vector<78x128xf32>
    %cst_18 = arith.constant dense<0.000000e+00> : vector<78x128xf32>
    %16 = tpu.matmul %12, %14, %cst_18 {dimension_numbers = #tpu.dot_dimension_numbers<[1], [0], [0], [1], [0, 0, 1, 1], [], []>} : vector<78x3xbf16>, vector<3x128xbf16>, vector<78x128xf32> -> vector<78x128xf32>
    %17 = arith.addf %15, %16 : vector<78x128xf32>
    %c0_19 = arith.constant 0 : index
    %c0_20 = arith.constant 0 : index
    %18 = vector.load %arg7[%c0_19, %c0_20] : memref<78x128xf32, #tpu.memory_space<vmem>>, vector<78x128xf32>
    tpu.vector_store %arg7[%c0_19, %c0_20], %17 {strides = array<i32>} : memref<78x128xf32, #tpu.memory_space<vmem>>, vector<78x128xf32>,
    %c0_21 = arith.constant 0 : index
    %c0_22 = arith.constant 0 : index
    %c2 = arith.constant 2 : index
    %c0_23 = arith.constant 0 : index
    %19 = vector.load %arg3[%c0_21, %c0_22, %c2, %c0_23] : memref<1x1x100x3xbf16, #tpu.memory_space<vmem>>, vector<1x1x78x3xbf16>
    %20 = vector.shape_cast %19 : vector<1x1x78x3xbf16> to vector<78x3xbf16>
    %c0_24 = arith.constant 0 : index
    %c6 = arith.constant 6 : index
    %c0_25 = arith.constant 0 : index
    %21 = vector.load %arg4[%c0_24, %c6, %c0_25] : memref<1x27x128xbf16, #tpu.memory_space<vmem>>, vector<1x3x128xbf16>
    %22 = vector.shape_cast %21 : vector<1x3x128xbf16> to vector<3x128xbf16>
    %c0_26 = arith.constant 0 : index
    %c0_27 = arith.constant 0 : index
    %23 = vector.load %arg7[%c0_26, %c0_27] : memref<78x128xf32, #tpu.memory_space<vmem>>, vector<78x128xf32>
    %cst_28 = arith.constant dense<0.000000e+00> : vector<78x128xf32>
    %24 = tpu.matmul %20, %22, %cst_28 {dimension_numbers = #tpu.dot_dimension_numbers<[1], [0], [0], [1], [0, 0, 1, 1], [], []>} : vector<78x3xbf16>, vector<3x128xbf16>, vector<78x128xf32> -> vector<78x128xf32>
    %25 = arith.addf %23, %24 : vector<78x128xf32>
    %c0_29 = arith.constant 0 : index
    %c0_30 = arith.constant 0 : index
    %26 = vector.load %arg7[%c0_29, %c0_30] : memref<78x128xf32, #tpu.memory_space<vmem>>, vector<78x128xf32>
    tpu.vector_store %arg7[%c0_29, %c0_30], %25 {strides = array<i32>} : memref<78x128xf32, #tpu.memory_space<vmem>>, vector<78x128xf32>,
    %c0_31 = arith.constant 0 : index
    %c0_32 = arith.constant 0 : index
    %c10 = arith.constant 10 : index
    %c0_33 = arith.constant 0 : index
    %27 = vector.load %arg3[%c0_31, %c0_32, %c10, %c0_33] : memref<1x1x100x3xbf16, #tpu.memory_space<vmem>>, vector<1x1x78x3xbf16>
    %28 = vector.shape_cast %27 : vector<1x1x78x3xbf16> to vector<78x3xbf16>
    %c0_34 = arith.constant 0 : index
    %c9 = arith.constant 9 : index
    %c0_35 = arith.constant 0 : index
    %29 = vector.load %arg4[%c0_34, %c9, %c0_35] : memref<1x27x128xbf16, #tpu.memory_space<vmem>>, vector<1x3x128xbf16>
    %30 = vector.shape_cast %29 : vector<1x3x128xbf16> to vector<3x128xbf16>
    %c0_36 = arith.constant 0 : index
    %c0_37 = arith.constant 0 : index
    %31 = vector.load %arg7[%c0_36, %c0_37] : memref<78x128xf32, #tpu.memory_space<vmem>>, vector<78x128xf32>
    %cst_38 = arith.constant dense<0.000000e+00> : vector<78x128xf32>
    %32 = tpu.matmul %28, %30, %cst_38 {dimension_numbers = #tpu.dot_dimension_numbers<[1], [0], [0], [1], [0, 0, 1, 1], [], []>} : vector<78x3xbf16>, vector<3x128xbf16>, vector<78x128xf32> -> vector<78x128xf32>
    %33 = arith.addf %31, %32 : vector<78x128xf32>
    %c0_39 = arith.constant 0 : index
    %c0_40 = arith.constant 0 : index
    %34 = vector.load %arg7[%c0_39, %c0_40] : memref<78x128xf32, #tpu.memory_space<vmem>>, vector<78x128xf32>
    tpu.vector_store %arg7[%c0_39, %c0_40], %33 {strides = array<i32>} : memref<78x128xf32, #tpu.memory_space<vmem>>, vector<78x128xf32>,
    %c0_41 = arith.constant 0 : index
    %c0_42 = arith.constant 0 : index
    %c11 = arith.constant 11 : index
    %c0_43 = arith.constant 0 : index
    %35 = vector.load %arg3[%c0_41, %c0_42, %c11, %c0_43] : memref<1x1x100x3xbf16, #tpu.memory_space<vmem>>, vector<1x1x78x3xbf16>
    %36 = vector.shape_cast %35 : vector<1x1x78x3xbf16> to vector<78x3xbf16>
    %c0_44 = arith.constant 0 : index
    %c12 = arith.constant 12 : index
    %c0_45 = arith.constant 0 : index
    %37 = vector.load %arg4[%c0_44, %c12, %c0_45] : memref<1x27x128xbf16, #tpu.memory_space<vmem>>, vector<1x3x128xbf16>
    %38 = vector.shape_cast %37 : vector<1x3x128xbf16> to vector<3x128xbf16>
    %c0_46 = arith.constant 0 : index
    %c0_47 = arith.constant 0 : index
    %39 = vector.load %arg7[%c0_46, %c0_47] : memref<78x128xf32, #tpu.memory_space<vmem>>, vector<78x128xf32>
    %cst_48 = arith.constant dense<0.000000e+00> : vector<78x128xf32>
    %40 = tpu.matmul %36, %38, %cst_48 {dimension_numbers = #tpu.dot_dimension_numbers<[1], [0], [0], [1], [0, 0, 1, 1], [], []>} : vector<78x3xbf16>, vector<3x128xbf16>, vector<78x128xf32> -> vector<78x128xf32>
    %41 = arith.addf %39, %40 : vector<78x128xf32>
    %c0_49 = arith.constant 0 : index
    %c0_50 = arith.constant 0 : index
    %42 = vector.load %arg7[%c0_49, %c0_50] : memref<78x128xf32, #tpu.memory_space<vmem>>, vector<78x128xf32>
    tpu.vector_store %arg7[%c0_49, %c0_50], %41 {strides = array<i32>} : memref<78x128xf32, #tpu.memory_space<vmem>>, vector<78x128xf32>,
    %c0_51 = arith.constant 0 : index
    %c0_52 = arith.constant 0 : index
    %c12_53 = arith.constant 12 : index
    %c0_54 = arith.constant 0 : index
    %43 = vector.load %arg3[%c0_51, %c0_52, %c12_53, %c0_54] : memref<1x1x100x3xbf16, #tpu.memory_space<vmem>>, vector<1x1x78x3xbf16>
    %44 = vector.shape_cast %43 : vector<1x1x78x3xbf16> to vector<78x3xbf16>
    %c0_55 = arith.constant 0 : index
    %c15 = arith.constant 15 : index
    %c0_56 = arith.constant 0 : index
    %45 = vector.load %arg4[%c0_55, %c15, %c0_56] : memref<1x27x128xbf16, #tpu.memory_space<vmem>>, vector<1x3x128xbf16>
    %46 = vector.shape_cast %45 : vector<1x3x128xbf16> to vector<3x128xbf16>
    %c0_57 = arith.constant 0 : index
    %c0_58 = arith.constant 0 : index
    %47 = vector.load %arg7[%c0_57, %c0_58] : memref<78x128xf32, #tpu.memory_space<vmem>>, vector<78x128xf32>
    %cst_59 = arith.constant dense<0.000000e+00> : vector<78x128xf32>
    %48 = tpu.matmul %44, %46, %cst_59 {dimension_numbers = #tpu.dot_dimension_numbers<[1], [0], [0], [1], [0, 0, 1, 1], [], []>} : vector<78x3xbf16>, vector<3x128xbf16>, vector<78x128xf32> -> vector<78x128xf32>
    %49 = arith.addf %47, %48 : vector<78x128xf32>
    %c0_60 = arith.constant 0 : index
    %c0_61 = arith.constant 0 : index
    %50 = vector.load %arg7[%c0_60, %c0_61] : memref<78x128xf32, #tpu.memory_space<vmem>>, vector<78x128xf32>
    tpu.vector_store %arg7[%c0_60, %c0_61], %49 {strides = array<i32>} : memref<78x128xf32, #tpu.memory_space<vmem>>, vector<78x128xf32>,
    %c0_62 = arith.constant 0 : index
    %c0_63 = arith.constant 0 : index
    %c20 = arith.constant 20 : index
    %c0_64 = arith.constant 0 : index
    %51 = vector.load %arg3[%c0_62, %c0_63, %c20, %c0_64] : memref<1x1x100x3xbf16, #tpu.memory_space<vmem>>, vector<1x1x78x3xbf16>
    %52 = vector.shape_cast %51 : vector<1x1x78x3xbf16> to vector<78x3xbf16>
    %c0_65 = arith.constant 0 : index
    %c18 = arith.constant 18 : index
    %c0_66 = arith.constant 0 : index
    %53 = vector.load %arg4[%c0_65, %c18, %c0_66] : memref<1x27x128xbf16, #tpu.memory_space<vmem>>, vector<1x3x128xbf16>
    %54 = vector.shape_cast %53 : vector<1x3x128xbf16> to vector<3x128xbf16>
    %c0_67 = arith.constant 0 : index
    %c0_68 = arith.constant 0 : index
    %55 = vector.load %arg7[%c0_67, %c0_68] : memref<78x128xf32, #tpu.memory_space<vmem>>, vector<78x128xf32>
    %cst_69 = arith.constant dense<0.000000e+00> : vector<78x128xf32>
    %56 = tpu.matmul %52, %54, %cst_69 {dimension_numbers = #tpu.dot_dimension_numbers<[1], [0], [0], [1], [0, 0, 1, 1], [], []>} : vector<78x3xbf16>, vector<3x128xbf16>, vector<78x128xf32> -> vector<78x128xf32>
    %57 = arith.addf %55, %56 : vector<78x128xf32>
    %c0_70 = arith.constant 0 : index
    %c0_71 = arith.constant 0 : index
    %58 = vector.load %arg7[%c0_70, %c0_71] : memref<78x128xf32, #tpu.memory_space<vmem>>, vector<78x128xf32>
    tpu.vector_store %arg7[%c0_70, %c0_71], %57 {strides = array<i32>} : memref<78x128xf32, #tpu.memory_space<vmem>>, vector<78x128xf32>,
    %c0_72 = arith.constant 0 : index
    %c0_73 = arith.constant 0 : index
    %c21 = arith.constant 21 : index
    %c0_74 = arith.constant 0 : index
    %59 = vector.load %arg3[%c0_72, %c0_73, %c21, %c0_74] : memref<1x1x100x3xbf16, #tpu.memory_space<vmem>>, vector<1x1x78x3xbf16>
    %60 = vector.shape_cast %59 : vector<1x1x78x3xbf16> to vector<78x3xbf16>
    %c0_75 = arith.constant 0 : index
    %c21_76 = arith.constant 21 : index
    %c0_77 = arith.constant 0 : index
    %61 = vector.load %arg4[%c0_75, %c21_76, %c0_77] : memref<1x27x128xbf16, #tpu.memory_space<vmem>>, vector<1x3x128xbf16>
    %62 = vector.shape_cast %61 : vector<1x3x128xbf16> to vector<3x128xbf16>
    %c0_78 = arith.constant 0 : index
    %c0_79 = arith.constant 0 : index
    %63 = vector.load %arg7[%c0_78, %c0_79] : memref<78x128xf32, #tpu.memory_space<vmem>>, vector<78x128xf32>
    %cst_80 = arith.constant dense<0.000000e+00> : vector<78x128xf32>
    %64 = tpu.matmul %60, %62, %cst_80 {dimension_numbers = #tpu.dot_dimension_numbers<[1], [0], [0], [1], [0, 0, 1, 1], [], []>} : vector<78x3xbf16>, vector<3x128xbf16>, vector<78x128xf32> -> vector<78x128xf32>
    %65 = arith.addf %63, %64 : vector<78x128xf32>
    %c0_81 = arith.constant 0 : index
    %c0_82 = arith.constant 0 : index
    %66 = vector.load %arg7[%c0_81, %c0_82] : memref<78x128xf32, #tpu.memory_space<vmem>>, vector<78x128xf32>
    tpu.vector_store %arg7[%c0_81, %c0_82], %65 {strides = array<i32>} : memref<78x128xf32, #tpu.memory_space<vmem>>, vector<78x128xf32>,
    %c0_83 = arith.constant 0 : index
    %c0_84 = arith.constant 0 : index
    %c22 = arith.constant 22 : index
    %c0_85 = arith.constant 0 : index
    %67 = vector.load %arg3[%c0_83, %c0_84, %c22, %c0_85] : memref<1x1x100x3xbf16, #tpu.memory_space<vmem>>, vector<1x1x78x3xbf16>
    %68 = vector.shape_cast %67 : vector<1x1x78x3xbf16> to vector<78x3xbf16>
    %c0_86 = arith.constant 0 : index
    %c24 = arith.constant 24 : index
    %c0_87 = arith.constant 0 : index
    %69 = vector.load %arg4[%c0_86, %c24, %c0_87] : memref<1x27x128xbf16, #tpu.memory_space<vmem>>, vector<1x3x128xbf16>
    %70 = vector.shape_cast %69 : vector<1x3x128xbf16> to vector<3x128xbf16>
    %c0_88 = arith.constant 0 : index
    %c0_89 = arith.constant 0 : index
    %71 = vector.load %arg7[%c0_88, %c0_89] : memref<78x128xf32, #tpu.memory_space<vmem>>, vector<78x128xf32>
    %cst_90 = arith.constant dense<0.000000e+00> : vector<78x128xf32>
    %72 = tpu.matmul %68, %70, %cst_90 {dimension_numbers = #tpu.dot_dimension_numbers<[1], [0], [0], [1], [0, 0, 1, 1], [], []>} : vector<78x3xbf16>, vector<3x128xbf16>, vector<78x128xf32> -> vector<78x128xf32>
    %73 = arith.addf %71, %72 : vector<78x128xf32>
    %c0_91 = arith.constant 0 : index
    %c0_92 = arith.constant 0 : index
    %74 = vector.load %arg7[%c0_91, %c0_92] : memref<78x128xf32, #tpu.memory_space<vmem>>, vector<78x128xf32>
    tpu.vector_store %arg7[%c0_91, %c0_92], %73 {strides = array<i32>} : memref<78x128xf32, #tpu.memory_space<vmem>>, vector<78x128xf32>,
    %c2_i32 = arith.constant 2 : i32
    %75 = arith.cmpi eq, %arg2, %c2_i32 : i32
    %76 = arith.extui %75 : i1 to i32
    %c0_i32_93 = arith.constant 0 : i32
    %77 = arith.cmpi ne, %76, %c0_i32_93 : i32
    scf.if %77 {
      %c0_94 = arith.constant 0 : index
      %c0_95 = arith.constant 0 : index
      %78 = vector.load %arg7[%c0_94, %c0_95] : memref<78x128xf32, #tpu.memory_space<vmem>>, vector<78x128xf32>
      %c0_96 = arith.constant 0 : index
      %c0_97 = arith.constant 0 : index
      %79 = vector.load %arg5[%c0_96, %c0_97] : memref<1x128xf32, #tpu.memory_space<vmem>>, vector<1x128xf32>
      %80 = vector.broadcast %79 : vector<1x128xf32> to vector<78x128xf32>
      %81 = arith.addf %78, %80 : vector<78x128xf32>
      %c0_98 = arith.constant 0 : index
      %c0_99 = arith.constant 0 : index
      %c0_100 = arith.constant 0 : index
      %c0_101 = arith.constant 0 : index
      %82 = vector.load %arg6[%c0_98, %c0_99, %c0_100, %c0_101] : memref<1x1x80x128xf32, #tpu.memory_space<vmem>>, vector<1x1x78x128xf32>
      %83 = vector.shape_cast %82 : vector<1x1x78x128xf32> to vector<78x128xf32>
      %84 = vector.shape_cast %81 : vector<78x128xf32> to vector<1x1x78x128xf32>
      tpu.vector_store %arg6[%c0_98, %c0_99, %c0_100, %c0_101], %84 {strides = array<i32>} : memref<1x1x80x128xf32, #tpu.memory_space<vmem>>, vector<1x1x78x128xf32>,
    } else {
    }
    return
  }
  func.func @transform_0(%arg0: i32, %arg1: i32, %arg2: i32) -> (i32, i32, i32, i32) {
    %0 = arith.addi %arg1, %arg2 : i32
    %c0_i32 = arith.constant 0 : i32
    %c0_i32_0 = arith.constant 0 : i32
    %c0_i32_1 = arith.constant 0 : i32
    return %arg0, %0, %c0_i32, %c0_i32_0 : i32, i32, i32, i32
  }
  func.func @transform_1(%arg0: i32, %arg1: i32, %arg2: i32) -> (i32, i32, i32) {
    %c0_i32 = arith.constant 0 : i32
    %c0_i32_0 = arith.constant 0 : i32
    %c0_i32_1 = arith.constant 0 : i32
    return %arg2, %c0_i32, %c0_i32_0 : i32, i32, i32
  }
  func.func @transform_2(%arg0: i32, %arg1: i32, %arg2: i32) -> (i32, i32) {
    %c0_i32 = arith.constant 0 : i32
    %c0_i32_0 = arith.constant 0 : i32
    %c0_i32_1 = arith.constant 0 : i32
    return %c0_i32, %c0_i32_0 : i32, i32
  }
  func.func @transform_3(%arg0: i32, %arg1: i32, %arg2: i32) -> (i32, i32, i32, i32) {
    %c0_i32 = arith.constant 0 : i32
    %c0_i32_0 = arith.constant 0 : i32
    %c0_i32_1 = arith.constant 0 : i32
    return %arg0, %arg1, %c0_i32, %c0_i32_0 : i32, i32, i32, i32
  }
}

module attributes {stable_mosaic.version = 11 : i64} {
  func.func @_conv3d_s1_kernel(%arg0: i32, %arg1: i32, %arg2: i32, %arg3: memref<1x1x100x8xbf16, #tpu.memory_space<vmem>>, %arg4: memref<1x128x128xbf16, #tpu.memory_space<vmem>>, %arg5: memref<1x128xf32, #tpu.memory_space<vmem>>, %arg6: memref<1x1x70x128xf32, #tpu.memory_space<vmem>>, %arg7: memref<67x128xf32, #tpu.memory_space<vmem>>) attributes {dimension_semantics = [#tpu.dimension_semantics<parallel>, #tpu.dimension_semantics<parallel>, #tpu.dimension_semantics<arbitrary>], iteration_bounds = array<i64: 2, 3, 4>, scalar_prefetch = 0 : i64, scratch_operands = 1 : i64, tpu.core_type = #tpu.core_type<tc>, window_params = [{transform_indices = @transform_0, window_bounds = array<i64: 1, 1, 100, 8>}, {transform_indices = @transform_1, window_bounds = array<i64: 1, 128, 128>}, {pipeline_mode = #tpu.pipeline_mode<synchronous>, transform_indices = @transform_2, window_bounds = array<i64: 1, 128>}, {transform_indices = @transform_3, window_bounds = array<i64: 1, 1, 70, 128>}]} {
    %c0_i32 = arith.constant 0 : i32
    %0 = arith.cmpi eq, %arg2, %c0_i32 : i32
    %1 = arith.extui %0 : i1 to i32
    %c0_i32_0 = arith.constant 0 : i32
    %2 = arith.cmpi ne, %1, %c0_i32_0 : i32
    scf.if %2 {
      %cst_163 = arith.constant 0.000000e+00 : f32
      %134 = vector.broadcast %cst_163 : f32 to vector<67x128xf32>
      %c0_164 = arith.constant 0 : index
      %c0_165 = arith.constant 0 : index
      %135 = vector.load %arg7[%c0_164, %c0_165] : memref<67x128xf32, #tpu.memory_space<vmem>>, vector<67x128xf32>
      tpu.vector_store %arg7[%c0_164, %c0_165], %134 {strides = array<i32>} : memref<67x128xf32, #tpu.memory_space<vmem>>, vector<67x128xf32>,
    } else {
    }
    %c0 = arith.constant 0 : index
    %c0_1 = arith.constant 0 : index
    %c0_2 = arith.constant 0 : index
    %c0_3 = arith.constant 0 : index
    %3 = vector.load %arg3[%c0, %c0_1, %c0_2, %c0_3] : memref<1x1x100x8xbf16, #tpu.memory_space<vmem>>, vector<1x1x67x8xbf16>
    %4 = vector.shape_cast %3 : vector<1x1x67x8xbf16> to vector<67x8xbf16>
    %c0_4 = arith.constant 0 : index
    %c0_5 = arith.constant 0 : index
    %c0_6 = arith.constant 0 : index
    %5 = vector.load %arg4[%c0_4, %c0_5, %c0_6] : memref<1x128x128xbf16, #tpu.memory_space<vmem>>, vector<1x8x128xbf16>
    %6 = vector.shape_cast %5 : vector<1x8x128xbf16> to vector<8x128xbf16>
    %c0_7 = arith.constant 0 : index
    %c0_8 = arith.constant 0 : index
    %7 = vector.load %arg7[%c0_7, %c0_8] : memref<67x128xf32, #tpu.memory_space<vmem>>, vector<67x128xf32>
    %cst = arith.constant dense<0.000000e+00> : vector<67x128xf32>
    %8 = tpu.matmul %4, %6, %cst {dimension_numbers = #tpu.dot_dimension_numbers<[1], [0], [0], [1], [0, 0, 1, 1], [], []>} : vector<67x8xbf16>, vector<8x128xbf16>, vector<67x128xf32> -> vector<67x128xf32>
    %9 = arith.addf %7, %8 : vector<67x128xf32>
    %c0_9 = arith.constant 0 : index
    %c0_10 = arith.constant 0 : index
    %10 = vector.load %arg7[%c0_9, %c0_10] : memref<67x128xf32, #tpu.memory_space<vmem>>, vector<67x128xf32>
    tpu.vector_store %arg7[%c0_9, %c0_10], %9 {strides = array<i32>} : memref<67x128xf32, #tpu.memory_space<vmem>>, vector<67x128xf32>,
    %c0_11 = arith.constant 0 : index
    %c0_12 = arith.constant 0 : index
    %c1 = arith.constant 1 : index
    %c0_13 = arith.constant 0 : index
    %11 = vector.load %arg3[%c0_11, %c0_12, %c1, %c0_13] : memref<1x1x100x8xbf16, #tpu.memory_space<vmem>>, vector<1x1x67x8xbf16>
    %12 = vector.shape_cast %11 : vector<1x1x67x8xbf16> to vector<67x8xbf16>
    %c0_14 = arith.constant 0 : index
    %c8 = arith.constant 8 : index
    %c0_15 = arith.constant 0 : index
    %13 = vector.load %arg4[%c0_14, %c8, %c0_15] : memref<1x128x128xbf16, #tpu.memory_space<vmem>>, vector<1x8x128xbf16>
    %14 = vector.shape_cast %13 : vector<1x8x128xbf16> to vector<8x128xbf16>
    %c0_16 = arith.constant 0 : index
    %c0_17 = arith.constant 0 : index
    %15 = vector.load %arg7[%c0_16, %c0_17] : memref<67x128xf32, #tpu.memory_space<vmem>>, vector<67x128xf32>
    %cst_18 = arith.constant dense<0.000000e+00> : vector<67x128xf32>
    %16 = tpu.matmul %12, %14, %cst_18 {dimension_numbers = #tpu.dot_dimension_numbers<[1], [0], [0], [1], [0, 0, 1, 1], [], []>} : vector<67x8xbf16>, vector<8x128xbf16>, vector<67x128xf32> -> vector<67x128xf32>
    %17 = arith.addf %15, %16 : vector<67x128xf32>
    %c0_19 = arith.constant 0 : index
    %c0_20 = arith.constant 0 : index
    %18 = vector.load %arg7[%c0_19, %c0_20] : memref<67x128xf32, #tpu.memory_space<vmem>>, vector<67x128xf32>
    tpu.vector_store %arg7[%c0_19, %c0_20], %17 {strides = array<i32>} : memref<67x128xf32, #tpu.memory_space<vmem>>, vector<67x128xf32>,
    %c0_21 = arith.constant 0 : index
    %c0_22 = arith.constant 0 : index
    %c2 = arith.constant 2 : index
    %c0_23 = arith.constant 0 : index
    %19 = vector.load %arg3[%c0_21, %c0_22, %c2, %c0_23] : memref<1x1x100x8xbf16, #tpu.memory_space<vmem>>, vector<1x1x67x8xbf16>
    %20 = vector.shape_cast %19 : vector<1x1x67x8xbf16> to vector<67x8xbf16>
    %c0_24 = arith.constant 0 : index
    %c16 = arith.constant 16 : index
    %c0_25 = arith.constant 0 : index
    %21 = vector.load %arg4[%c0_24, %c16, %c0_25] : memref<1x128x128xbf16, #tpu.memory_space<vmem>>, vector<1x8x128xbf16>
    %22 = vector.shape_cast %21 : vector<1x8x128xbf16> to vector<8x128xbf16>
    %c0_26 = arith.constant 0 : index
    %c0_27 = arith.constant 0 : index
    %23 = vector.load %arg7[%c0_26, %c0_27] : memref<67x128xf32, #tpu.memory_space<vmem>>, vector<67x128xf32>
    %cst_28 = arith.constant dense<0.000000e+00> : vector<67x128xf32>
    %24 = tpu.matmul %20, %22, %cst_28 {dimension_numbers = #tpu.dot_dimension_numbers<[1], [0], [0], [1], [0, 0, 1, 1], [], []>} : vector<67x8xbf16>, vector<8x128xbf16>, vector<67x128xf32> -> vector<67x128xf32>
    %25 = arith.addf %23, %24 : vector<67x128xf32>
    %c0_29 = arith.constant 0 : index
    %c0_30 = arith.constant 0 : index
    %26 = vector.load %arg7[%c0_29, %c0_30] : memref<67x128xf32, #tpu.memory_space<vmem>>, vector<67x128xf32>
    tpu.vector_store %arg7[%c0_29, %c0_30], %25 {strides = array<i32>} : memref<67x128xf32, #tpu.memory_space<vmem>>, vector<67x128xf32>,
    %c0_31 = arith.constant 0 : index
    %c0_32 = arith.constant 0 : index
    %c3 = arith.constant 3 : index
    %c0_33 = arith.constant 0 : index
    %27 = vector.load %arg3[%c0_31, %c0_32, %c3, %c0_33] : memref<1x1x100x8xbf16, #tpu.memory_space<vmem>>, vector<1x1x67x8xbf16>
    %28 = vector.shape_cast %27 : vector<1x1x67x8xbf16> to vector<67x8xbf16>
    %c0_34 = arith.constant 0 : index
    %c24 = arith.constant 24 : index
    %c0_35 = arith.constant 0 : index
    %29 = vector.load %arg4[%c0_34, %c24, %c0_35] : memref<1x128x128xbf16, #tpu.memory_space<vmem>>, vector<1x8x128xbf16>
    %30 = vector.shape_cast %29 : vector<1x8x128xbf16> to vector<8x128xbf16>
    %c0_36 = arith.constant 0 : index
    %c0_37 = arith.constant 0 : index
    %31 = vector.load %arg7[%c0_36, %c0_37] : memref<67x128xf32, #tpu.memory_space<vmem>>, vector<67x128xf32>
    %cst_38 = arith.constant dense<0.000000e+00> : vector<67x128xf32>
    %32 = tpu.matmul %28, %30, %cst_38 {dimension_numbers = #tpu.dot_dimension_numbers<[1], [0], [0], [1], [0, 0, 1, 1], [], []>} : vector<67x8xbf16>, vector<8x128xbf16>, vector<67x128xf32> -> vector<67x128xf32>
    %33 = arith.addf %31, %32 : vector<67x128xf32>
    %c0_39 = arith.constant 0 : index
    %c0_40 = arith.constant 0 : index
    %34 = vector.load %arg7[%c0_39, %c0_40] : memref<67x128xf32, #tpu.memory_space<vmem>>, vector<67x128xf32>
    tpu.vector_store %arg7[%c0_39, %c0_40], %33 {strides = array<i32>} : memref<67x128xf32, #tpu.memory_space<vmem>>, vector<67x128xf32>,
    %c0_41 = arith.constant 0 : index
    %c0_42 = arith.constant 0 : index
    %c10 = arith.constant 10 : index
    %c0_43 = arith.constant 0 : index
    %35 = vector.load %arg3[%c0_41, %c0_42, %c10, %c0_43] : memref<1x1x100x8xbf16, #tpu.memory_space<vmem>>, vector<1x1x67x8xbf16>
    %36 = vector.shape_cast %35 : vector<1x1x67x8xbf16> to vector<67x8xbf16>
    %c0_44 = arith.constant 0 : index
    %c32 = arith.constant 32 : index
    %c0_45 = arith.constant 0 : index
    %37 = vector.load %arg4[%c0_44, %c32, %c0_45] : memref<1x128x128xbf16, #tpu.memory_space<vmem>>, vector<1x8x128xbf16>
    %38 = vector.shape_cast %37 : vector<1x8x128xbf16> to vector<8x128xbf16>
    %c0_46 = arith.constant 0 : index
    %c0_47 = arith.constant 0 : index
    %39 = vector.load %arg7[%c0_46, %c0_47] : memref<67x128xf32, #tpu.memory_space<vmem>>, vector<67x128xf32>
    %cst_48 = arith.constant dense<0.000000e+00> : vector<67x128xf32>
    %40 = tpu.matmul %36, %38, %cst_48 {dimension_numbers = #tpu.dot_dimension_numbers<[1], [0], [0], [1], [0, 0, 1, 1], [], []>} : vector<67x8xbf16>, vector<8x128xbf16>, vector<67x128xf32> -> vector<67x128xf32>
    %41 = arith.addf %39, %40 : vector<67x128xf32>
    %c0_49 = arith.constant 0 : index
    %c0_50 = arith.constant 0 : index
    %42 = vector.load %arg7[%c0_49, %c0_50] : memref<67x128xf32, #tpu.memory_space<vmem>>, vector<67x128xf32>
    tpu.vector_store %arg7[%c0_49, %c0_50], %41 {strides = array<i32>} : memref<67x128xf32, #tpu.memory_space<vmem>>, vector<67x128xf32>,
    %c0_51 = arith.constant 0 : index
    %c0_52 = arith.constant 0 : index
    %c11 = arith.constant 11 : index
    %c0_53 = arith.constant 0 : index
    %43 = vector.load %arg3[%c0_51, %c0_52, %c11, %c0_53] : memref<1x1x100x8xbf16, #tpu.memory_space<vmem>>, vector<1x1x67x8xbf16>
    %44 = vector.shape_cast %43 : vector<1x1x67x8xbf16> to vector<67x8xbf16>
    %c0_54 = arith.constant 0 : index
    %c40 = arith.constant 40 : index
    %c0_55 = arith.constant 0 : index
    %45 = vector.load %arg4[%c0_54, %c40, %c0_55] : memref<1x128x128xbf16, #tpu.memory_space<vmem>>, vector<1x8x128xbf16>
    %46 = vector.shape_cast %45 : vector<1x8x128xbf16> to vector<8x128xbf16>
    %c0_56 = arith.constant 0 : index
    %c0_57 = arith.constant 0 : index
    %47 = vector.load %arg7[%c0_56, %c0_57] : memref<67x128xf32, #tpu.memory_space<vmem>>, vector<67x128xf32>
    %cst_58 = arith.constant dense<0.000000e+00> : vector<67x128xf32>
    %48 = tpu.matmul %44, %46, %cst_58 {dimension_numbers = #tpu.dot_dimension_numbers<[1], [0], [0], [1], [0, 0, 1, 1], [], []>} : vector<67x8xbf16>, vector<8x128xbf16>, vector<67x128xf32> -> vector<67x128xf32>
    %49 = arith.addf %47, %48 : vector<67x128xf32>
    %c0_59 = arith.constant 0 : index
    %c0_60 = arith.constant 0 : index
    %50 = vector.load %arg7[%c0_59, %c0_60] : memref<67x128xf32, #tpu.memory_space<vmem>>, vector<67x128xf32>
    tpu.vector_store %arg7[%c0_59, %c0_60], %49 {strides = array<i32>} : memref<67x128xf32, #tpu.memory_space<vmem>>, vector<67x128xf32>,
    %c0_61 = arith.constant 0 : index
    %c0_62 = arith.constant 0 : index
    %c12 = arith.constant 12 : index
    %c0_63 = arith.constant 0 : index
    %51 = vector.load %arg3[%c0_61, %c0_62, %c12, %c0_63] : memref<1x1x100x8xbf16, #tpu.memory_space<vmem>>, vector<1x1x67x8xbf16>
    %52 = vector.shape_cast %51 : vector<1x1x67x8xbf16> to vector<67x8xbf16>
    %c0_64 = arith.constant 0 : index
    %c48 = arith.constant 48 : index
    %c0_65 = arith.constant 0 : index
    %53 = vector.load %arg4[%c0_64, %c48, %c0_65] : memref<1x128x128xbf16, #tpu.memory_space<vmem>>, vector<1x8x128xbf16>
    %54 = vector.shape_cast %53 : vector<1x8x128xbf16> to vector<8x128xbf16>
    %c0_66 = arith.constant 0 : index
    %c0_67 = arith.constant 0 : index
    %55 = vector.load %arg7[%c0_66, %c0_67] : memref<67x128xf32, #tpu.memory_space<vmem>>, vector<67x128xf32>
    %cst_68 = arith.constant dense<0.000000e+00> : vector<67x128xf32>
    %56 = tpu.matmul %52, %54, %cst_68 {dimension_numbers = #tpu.dot_dimension_numbers<[1], [0], [0], [1], [0, 0, 1, 1], [], []>} : vector<67x8xbf16>, vector<8x128xbf16>, vector<67x128xf32> -> vector<67x128xf32>
    %57 = arith.addf %55, %56 : vector<67x128xf32>
    %c0_69 = arith.constant 0 : index
    %c0_70 = arith.constant 0 : index
    %58 = vector.load %arg7[%c0_69, %c0_70] : memref<67x128xf32, #tpu.memory_space<vmem>>, vector<67x128xf32>
    tpu.vector_store %arg7[%c0_69, %c0_70], %57 {strides = array<i32>} : memref<67x128xf32, #tpu.memory_space<vmem>>, vector<67x128xf32>,
    %c0_71 = arith.constant 0 : index
    %c0_72 = arith.constant 0 : index
    %c13 = arith.constant 13 : index
    %c0_73 = arith.constant 0 : index
    %59 = vector.load %arg3[%c0_71, %c0_72, %c13, %c0_73] : memref<1x1x100x8xbf16, #tpu.memory_space<vmem>>, vector<1x1x67x8xbf16>
    %60 = vector.shape_cast %59 : vector<1x1x67x8xbf16> to vector<67x8xbf16>
    %c0_74 = arith.constant 0 : index
    %c56 = arith.constant 56 : index
    %c0_75 = arith.constant 0 : index
    %61 = vector.load %arg4[%c0_74, %c56, %c0_75] : memref<1x128x128xbf16, #tpu.memory_space<vmem>>, vector<1x8x128xbf16>
    %62 = vector.shape_cast %61 : vector<1x8x128xbf16> to vector<8x128xbf16>
    %c0_76 = arith.constant 0 : index
    %c0_77 = arith.constant 0 : index
    %63 = vector.load %arg7[%c0_76, %c0_77] : memref<67x128xf32, #tpu.memory_space<vmem>>, vector<67x128xf32>
    %cst_78 = arith.constant dense<0.000000e+00> : vector<67x128xf32>
    %64 = tpu.matmul %60, %62, %cst_78 {dimension_numbers = #tpu.dot_dimension_numbers<[1], [0], [0], [1], [0, 0, 1, 1], [], []>} : vector<67x8xbf16>, vector<8x128xbf16>, vector<67x128xf32> -> vector<67x128xf32>
    %65 = arith.addf %63, %64 : vector<67x128xf32>
    %c0_79 = arith.constant 0 : index
    %c0_80 = arith.constant 0 : index
    %66 = vector.load %arg7[%c0_79, %c0_80] : memref<67x128xf32, #tpu.memory_space<vmem>>, vector<67x128xf32>
    tpu.vector_store %arg7[%c0_79, %c0_80], %65 {strides = array<i32>} : memref<67x128xf32, #tpu.memory_space<vmem>>, vector<67x128xf32>,
    %c0_81 = arith.constant 0 : index
    %c0_82 = arith.constant 0 : index
    %c20 = arith.constant 20 : index
    %c0_83 = arith.constant 0 : index
    %67 = vector.load %arg3[%c0_81, %c0_82, %c20, %c0_83] : memref<1x1x100x8xbf16, #tpu.memory_space<vmem>>, vector<1x1x67x8xbf16>
    %68 = vector.shape_cast %67 : vector<1x1x67x8xbf16> to vector<67x8xbf16>
    %c0_84 = arith.constant 0 : index
    %c64 = arith.constant 64 : index
    %c0_85 = arith.constant 0 : index
    %69 = vector.load %arg4[%c0_84, %c64, %c0_85] : memref<1x128x128xbf16, #tpu.memory_space<vmem>>, vector<1x8x128xbf16>
    %70 = vector.shape_cast %69 : vector<1x8x128xbf16> to vector<8x128xbf16>
    %c0_86 = arith.constant 0 : index
    %c0_87 = arith.constant 0 : index
    %71 = vector.load %arg7[%c0_86, %c0_87] : memref<67x128xf32, #tpu.memory_space<vmem>>, vector<67x128xf32>
    %cst_88 = arith.constant dense<0.000000e+00> : vector<67x128xf32>
    %72 = tpu.matmul %68, %70, %cst_88 {dimension_numbers = #tpu.dot_dimension_numbers<[1], [0], [0], [1], [0, 0, 1, 1], [], []>} : vector<67x8xbf16>, vector<8x128xbf16>, vector<67x128xf32> -> vector<67x128xf32>
    %73 = arith.addf %71, %72 : vector<67x128xf32>
    %c0_89 = arith.constant 0 : index
    %c0_90 = arith.constant 0 : index
    %74 = vector.load %arg7[%c0_89, %c0_90] : memref<67x128xf32, #tpu.memory_space<vmem>>, vector<67x128xf32>
    tpu.vector_store %arg7[%c0_89, %c0_90], %73 {strides = array<i32>} : memref<67x128xf32, #tpu.memory_space<vmem>>, vector<67x128xf32>,
    %c0_91 = arith.constant 0 : index
    %c0_92 = arith.constant 0 : index
    %c21 = arith.constant 21 : index
    %c0_93 = arith.constant 0 : index
    %75 = vector.load %arg3[%c0_91, %c0_92, %c21, %c0_93] : memref<1x1x100x8xbf16, #tpu.memory_space<vmem>>, vector<1x1x67x8xbf16>
    %76 = vector.shape_cast %75 : vector<1x1x67x8xbf16> to vector<67x8xbf16>
    %c0_94 = arith.constant 0 : index
    %c72 = arith.constant 72 : index
    %c0_95 = arith.constant 0 : index
    %77 = vector.load %arg4[%c0_94, %c72, %c0_95] : memref<1x128x128xbf16, #tpu.memory_space<vmem>>, vector<1x8x128xbf16>
    %78 = vector.shape_cast %77 : vector<1x8x128xbf16> to vector<8x128xbf16>
    %c0_96 = arith.constant 0 : index
    %c0_97 = arith.constant 0 : index
    %79 = vector.load %arg7[%c0_96, %c0_97] : memref<67x128xf32, #tpu.memory_space<vmem>>, vector<67x128xf32>
    %cst_98 = arith.constant dense<0.000000e+00> : vector<67x128xf32>
    %80 = tpu.matmul %76, %78, %cst_98 {dimension_numbers = #tpu.dot_dimension_numbers<[1], [0], [0], [1], [0, 0, 1, 1], [], []>} : vector<67x8xbf16>, vector<8x128xbf16>, vector<67x128xf32> -> vector<67x128xf32>
    %81 = arith.addf %79, %80 : vector<67x128xf32>
    %c0_99 = arith.constant 0 : index
    %c0_100 = arith.constant 0 : index
    %82 = vector.load %arg7[%c0_99, %c0_100] : memref<67x128xf32, #tpu.memory_space<vmem>>, vector<67x128xf32>
    tpu.vector_store %arg7[%c0_99, %c0_100], %81 {strides = array<i32>} : memref<67x128xf32, #tpu.memory_space<vmem>>, vector<67x128xf32>,
    %c0_101 = arith.constant 0 : index
    %c0_102 = arith.constant 0 : index
    %c22 = arith.constant 22 : index
    %c0_103 = arith.constant 0 : index
    %83 = vector.load %arg3[%c0_101, %c0_102, %c22, %c0_103] : memref<1x1x100x8xbf16, #tpu.memory_space<vmem>>, vector<1x1x67x8xbf16>
    %84 = vector.shape_cast %83 : vector<1x1x67x8xbf16> to vector<67x8xbf16>
    %c0_104 = arith.constant 0 : index
    %c80 = arith.constant 80 : index
    %c0_105 = arith.constant 0 : index
    %85 = vector.load %arg4[%c0_104, %c80, %c0_105] : memref<1x128x128xbf16, #tpu.memory_space<vmem>>, vector<1x8x128xbf16>
    %86 = vector.shape_cast %85 : vector<1x8x128xbf16> to vector<8x128xbf16>
    %c0_106 = arith.constant 0 : index
    %c0_107 = arith.constant 0 : index
    %87 = vector.load %arg7[%c0_106, %c0_107] : memref<67x128xf32, #tpu.memory_space<vmem>>, vector<67x128xf32>
    %cst_108 = arith.constant dense<0.000000e+00> : vector<67x128xf32>
    %88 = tpu.matmul %84, %86, %cst_108 {dimension_numbers = #tpu.dot_dimension_numbers<[1], [0], [0], [1], [0, 0, 1, 1], [], []>} : vector<67x8xbf16>, vector<8x128xbf16>, vector<67x128xf32> -> vector<67x128xf32>
    %89 = arith.addf %87, %88 : vector<67x128xf32>
    %c0_109 = arith.constant 0 : index
    %c0_110 = arith.constant 0 : index
    %90 = vector.load %arg7[%c0_109, %c0_110] : memref<67x128xf32, #tpu.memory_space<vmem>>, vector<67x128xf32>
    tpu.vector_store %arg7[%c0_109, %c0_110], %89 {strides = array<i32>} : memref<67x128xf32, #tpu.memory_space<vmem>>, vector<67x128xf32>,
    %c0_111 = arith.constant 0 : index
    %c0_112 = arith.constant 0 : index
    %c23 = arith.constant 23 : index
    %c0_113 = arith.constant 0 : index
    %91 = vector.load %arg3[%c0_111, %c0_112, %c23, %c0_113] : memref<1x1x100x8xbf16, #tpu.memory_space<vmem>>, vector<1x1x67x8xbf16>
    %92 = vector.shape_cast %91 : vector<1x1x67x8xbf16> to vector<67x8xbf16>
    %c0_114 = arith.constant 0 : index
    %c88 = arith.constant 88 : index
    %c0_115 = arith.constant 0 : index
    %93 = vector.load %arg4[%c0_114, %c88, %c0_115] : memref<1x128x128xbf16, #tpu.memory_space<vmem>>, vector<1x8x128xbf16>
    %94 = vector.shape_cast %93 : vector<1x8x128xbf16> to vector<8x128xbf16>
    %c0_116 = arith.constant 0 : index
    %c0_117 = arith.constant 0 : index
    %95 = vector.load %arg7[%c0_116, %c0_117] : memref<67x128xf32, #tpu.memory_space<vmem>>, vector<67x128xf32>
    %cst_118 = arith.constant dense<0.000000e+00> : vector<67x128xf32>
    %96 = tpu.matmul %92, %94, %cst_118 {dimension_numbers = #tpu.dot_dimension_numbers<[1], [0], [0], [1], [0, 0, 1, 1], [], []>} : vector<67x8xbf16>, vector<8x128xbf16>, vector<67x128xf32> -> vector<67x128xf32>
    %97 = arith.addf %95, %96 : vector<67x128xf32>
    %c0_119 = arith.constant 0 : index
    %c0_120 = arith.constant 0 : index
    %98 = vector.load %arg7[%c0_119, %c0_120] : memref<67x128xf32, #tpu.memory_space<vmem>>, vector<67x128xf32>
    tpu.vector_store %arg7[%c0_119, %c0_120], %97 {strides = array<i32>} : memref<67x128xf32, #tpu.memory_space<vmem>>, vector<67x128xf32>,
    %c0_121 = arith.constant 0 : index
    %c0_122 = arith.constant 0 : index
    %c30 = arith.constant 30 : index
    %c0_123 = arith.constant 0 : index
    %99 = vector.load %arg3[%c0_121, %c0_122, %c30, %c0_123] : memref<1x1x100x8xbf16, #tpu.memory_space<vmem>>, vector<1x1x67x8xbf16>
    %100 = vector.shape_cast %99 : vector<1x1x67x8xbf16> to vector<67x8xbf16>
    %c0_124 = arith.constant 0 : index
    %c96 = arith.constant 96 : index
    %c0_125 = arith.constant 0 : index
    %101 = vector.load %arg4[%c0_124, %c96, %c0_125] : memref<1x128x128xbf16, #tpu.memory_space<vmem>>, vector<1x8x128xbf16>
    %102 = vector.shape_cast %101 : vector<1x8x128xbf16> to vector<8x128xbf16>
    %c0_126 = arith.constant 0 : index
    %c0_127 = arith.constant 0 : index
    %103 = vector.load %arg7[%c0_126, %c0_127] : memref<67x128xf32, #tpu.memory_space<vmem>>, vector<67x128xf32>
    %cst_128 = arith.constant dense<0.000000e+00> : vector<67x128xf32>
    %104 = tpu.matmul %100, %102, %cst_128 {dimension_numbers = #tpu.dot_dimension_numbers<[1], [0], [0], [1], [0, 0, 1, 1], [], []>} : vector<67x8xbf16>, vector<8x128xbf16>, vector<67x128xf32> -> vector<67x128xf32>
    %105 = arith.addf %103, %104 : vector<67x128xf32>
    %c0_129 = arith.constant 0 : index
    %c0_130 = arith.constant 0 : index
    %106 = vector.load %arg7[%c0_129, %c0_130] : memref<67x128xf32, #tpu.memory_space<vmem>>, vector<67x128xf32>
    tpu.vector_store %arg7[%c0_129, %c0_130], %105 {strides = array<i32>} : memref<67x128xf32, #tpu.memory_space<vmem>>, vector<67x128xf32>,
    %c0_131 = arith.constant 0 : index
    %c0_132 = arith.constant 0 : index
    %c31 = arith.constant 31 : index
    %c0_133 = arith.constant 0 : index
    %107 = vector.load %arg3[%c0_131, %c0_132, %c31, %c0_133] : memref<1x1x100x8xbf16, #tpu.memory_space<vmem>>, vector<1x1x67x8xbf16>
    %108 = vector.shape_cast %107 : vector<1x1x67x8xbf16> to vector<67x8xbf16>
    %c0_134 = arith.constant 0 : index
    %c104 = arith.constant 104 : index
    %c0_135 = arith.constant 0 : index
    %109 = vector.load %arg4[%c0_134, %c104, %c0_135] : memref<1x128x128xbf16, #tpu.memory_space<vmem>>, vector<1x8x128xbf16>
    %110 = vector.shape_cast %109 : vector<1x8x128xbf16> to vector<8x128xbf16>
    %c0_136 = arith.constant 0 : index
    %c0_137 = arith.constant 0 : index
    %111 = vector.load %arg7[%c0_136, %c0_137] : memref<67x128xf32, #tpu.memory_space<vmem>>, vector<67x128xf32>
    %cst_138 = arith.constant dense<0.000000e+00> : vector<67x128xf32>
    %112 = tpu.matmul %108, %110, %cst_138 {dimension_numbers = #tpu.dot_dimension_numbers<[1], [0], [0], [1], [0, 0, 1, 1], [], []>} : vector<67x8xbf16>, vector<8x128xbf16>, vector<67x128xf32> -> vector<67x128xf32>
    %113 = arith.addf %111, %112 : vector<67x128xf32>
    %c0_139 = arith.constant 0 : index
    %c0_140 = arith.constant 0 : index
    %114 = vector.load %arg7[%c0_139, %c0_140] : memref<67x128xf32, #tpu.memory_space<vmem>>, vector<67x128xf32>
    tpu.vector_store %arg7[%c0_139, %c0_140], %113 {strides = array<i32>} : memref<67x128xf32, #tpu.memory_space<vmem>>, vector<67x128xf32>,
    %c0_141 = arith.constant 0 : index
    %c0_142 = arith.constant 0 : index
    %c32_143 = arith.constant 32 : index
    %c0_144 = arith.constant 0 : index
    %115 = vector.load %arg3[%c0_141, %c0_142, %c32_143, %c0_144] : memref<1x1x100x8xbf16, #tpu.memory_space<vmem>>, vector<1x1x67x8xbf16>
    %116 = vector.shape_cast %115 : vector<1x1x67x8xbf16> to vector<67x8xbf16>
    %c0_145 = arith.constant 0 : index
    %c112 = arith.constant 112 : index
    %c0_146 = arith.constant 0 : index
    %117 = vector.load %arg4[%c0_145, %c112, %c0_146] : memref<1x128x128xbf16, #tpu.memory_space<vmem>>, vector<1x8x128xbf16>
    %118 = vector.shape_cast %117 : vector<1x8x128xbf16> to vector<8x128xbf16>
    %c0_147 = arith.constant 0 : index
    %c0_148 = arith.constant 0 : index
    %119 = vector.load %arg7[%c0_147, %c0_148] : memref<67x128xf32, #tpu.memory_space<vmem>>, vector<67x128xf32>
    %cst_149 = arith.constant dense<0.000000e+00> : vector<67x128xf32>
    %120 = tpu.matmul %116, %118, %cst_149 {dimension_numbers = #tpu.dot_dimension_numbers<[1], [0], [0], [1], [0, 0, 1, 1], [], []>} : vector<67x8xbf16>, vector<8x128xbf16>, vector<67x128xf32> -> vector<67x128xf32>
    %121 = arith.addf %119, %120 : vector<67x128xf32>
    %c0_150 = arith.constant 0 : index
    %c0_151 = arith.constant 0 : index
    %122 = vector.load %arg7[%c0_150, %c0_151] : memref<67x128xf32, #tpu.memory_space<vmem>>, vector<67x128xf32>
    tpu.vector_store %arg7[%c0_150, %c0_151], %121 {strides = array<i32>} : memref<67x128xf32, #tpu.memory_space<vmem>>, vector<67x128xf32>,
    %c0_152 = arith.constant 0 : index
    %c0_153 = arith.constant 0 : index
    %c33 = arith.constant 33 : index
    %c0_154 = arith.constant 0 : index
    %123 = vector.load %arg3[%c0_152, %c0_153, %c33, %c0_154] : memref<1x1x100x8xbf16, #tpu.memory_space<vmem>>, vector<1x1x67x8xbf16>
    %124 = vector.shape_cast %123 : vector<1x1x67x8xbf16> to vector<67x8xbf16>
    %c0_155 = arith.constant 0 : index
    %c120 = arith.constant 120 : index
    %c0_156 = arith.constant 0 : index
    %125 = vector.load %arg4[%c0_155, %c120, %c0_156] : memref<1x128x128xbf16, #tpu.memory_space<vmem>>, vector<1x8x128xbf16>
    %126 = vector.shape_cast %125 : vector<1x8x128xbf16> to vector<8x128xbf16>
    %c0_157 = arith.constant 0 : index
    %c0_158 = arith.constant 0 : index
    %127 = vector.load %arg7[%c0_157, %c0_158] : memref<67x128xf32, #tpu.memory_space<vmem>>, vector<67x128xf32>
    %cst_159 = arith.constant dense<0.000000e+00> : vector<67x128xf32>
    %128 = tpu.matmul %124, %126, %cst_159 {dimension_numbers = #tpu.dot_dimension_numbers<[1], [0], [0], [1], [0, 0, 1, 1], [], []>} : vector<67x8xbf16>, vector<8x128xbf16>, vector<67x128xf32> -> vector<67x128xf32>
    %129 = arith.addf %127, %128 : vector<67x128xf32>
    %c0_160 = arith.constant 0 : index
    %c0_161 = arith.constant 0 : index
    %130 = vector.load %arg7[%c0_160, %c0_161] : memref<67x128xf32, #tpu.memory_space<vmem>>, vector<67x128xf32>
    tpu.vector_store %arg7[%c0_160, %c0_161], %129 {strides = array<i32>} : memref<67x128xf32, #tpu.memory_space<vmem>>, vector<67x128xf32>,
    %c3_i32 = arith.constant 3 : i32
    %131 = arith.cmpi eq, %arg2, %c3_i32 : i32
    %132 = arith.extui %131 : i1 to i32
    %c0_i32_162 = arith.constant 0 : i32
    %133 = arith.cmpi ne, %132, %c0_i32_162 : i32
    scf.if %133 {
      %c0_163 = arith.constant 0 : index
      %c0_164 = arith.constant 0 : index
      %134 = vector.load %arg7[%c0_163, %c0_164] : memref<67x128xf32, #tpu.memory_space<vmem>>, vector<67x128xf32>
      %c0_165 = arith.constant 0 : index
      %c0_166 = arith.constant 0 : index
      %135 = vector.load %arg5[%c0_165, %c0_166] : memref<1x128xf32, #tpu.memory_space<vmem>>, vector<1x128xf32>
      %136 = vector.broadcast %135 : vector<1x128xf32> to vector<67x128xf32>
      %137 = arith.addf %134, %136 : vector<67x128xf32>
      %c0_167 = arith.constant 0 : index
      %c0_168 = arith.constant 0 : index
      %c0_169 = arith.constant 0 : index
      %c0_170 = arith.constant 0 : index
      %138 = vector.load %arg6[%c0_167, %c0_168, %c0_169, %c0_170] : memref<1x1x70x128xf32, #tpu.memory_space<vmem>>, vector<1x1x67x128xf32>
      %139 = vector.shape_cast %138 : vector<1x1x67x128xf32> to vector<67x128xf32>
      %140 = vector.shape_cast %137 : vector<67x128xf32> to vector<1x1x67x128xf32>
      tpu.vector_store %arg6[%c0_167, %c0_168, %c0_169, %c0_170], %140 {strides = array<i32>} : memref<1x1x70x128xf32, #tpu.memory_space<vmem>>, vector<1x1x67x128xf32>,
    } else {
    }
    return
  }
  func.func @transform_0(%arg0: i32, %arg1: i32, %arg2: i32) -> (i32, i32, i32, i32) {
    %0 = arith.addi %arg1, %arg2 : i32
    %c0_i32 = arith.constant 0 : i32
    %c0_i32_0 = arith.constant 0 : i32
    %c0_i32_1 = arith.constant 0 : i32
    return %arg0, %0, %c0_i32, %c0_i32_0 : i32, i32, i32, i32
  }
  func.func @transform_1(%arg0: i32, %arg1: i32, %arg2: i32) -> (i32, i32, i32) {
    %c0_i32 = arith.constant 0 : i32
    %c0_i32_0 = arith.constant 0 : i32
    %c0_i32_1 = arith.constant 0 : i32
    return %arg2, %c0_i32, %c0_i32_0 : i32, i32, i32
  }
  func.func @transform_2(%arg0: i32, %arg1: i32, %arg2: i32) -> (i32, i32) {
    %c0_i32 = arith.constant 0 : i32
    %c0_i32_0 = arith.constant 0 : i32
    %c0_i32_1 = arith.constant 0 : i32
    return %c0_i32, %c0_i32_0 : i32, i32
  }
  func.func @transform_3(%arg0: i32, %arg1: i32, %arg2: i32) -> (i32, i32, i32, i32) {
    %c0_i32 = arith.constant 0 : i32
    %c0_i32_0 = arith.constant 0 : i32
    %c0_i32_1 = arith.constant 0 : i32
    return %arg0, %arg1, %c0_i32, %c0_i32_0 : i32, i32, i32, i32
  }
}

module attributes {stable_mosaic.version = 11 : i64} {
  func.func @_gn_silu_kernel(%arg0: i32, %arg1: memref<1x32x16xf32, #tpu.memory_space<vmem>>, %arg2: memref<1x16xf32, #tpu.memory_space<vmem>>, %arg3: memref<1x16xf32, #tpu.memory_space<vmem>>, %arg4: memref<16x4xf32, #tpu.memory_space<vmem>>, %arg5: memref<4x16xf32, #tpu.memory_space<vmem>>, %arg6: memref<1x32x16xf32, #tpu.memory_space<vmem>>) attributes {dimension_semantics = [#tpu.dimension_semantics<parallel>], iteration_bounds = array<i64: 2>, scalar_prefetch = 0 : i64, scratch_operands = 0 : i64, tpu.core_type = #tpu.core_type<tc>, window_params = [{transform_indices = @transform_0, window_bounds = array<i64: 1, 32, 16>}, {pipeline_mode = #tpu.pipeline_mode<synchronous>, transform_indices = @transform_1, window_bounds = array<i64: 1, 16>}, {pipeline_mode = #tpu.pipeline_mode<synchronous>, transform_indices = @transform_2, window_bounds = array<i64: 1, 16>}, {pipeline_mode = #tpu.pipeline_mode<synchronous>, transform_indices = @transform_3, window_bounds = array<i64: 16, 4>}, {pipeline_mode = #tpu.pipeline_mode<synchronous>, transform_indices = @transform_4, window_bounds = array<i64: 4, 16>}, {transform_indices = @transform_5, window_bounds = array<i64: 1, 32, 16>}]} {
    %c0 = arith.constant 0 : index
    %c0_0 = arith.constant 0 : index
    %c0_1 = arith.constant 0 : index
    %0 = vector.load %arg1[%c0, %c0_0, %c0_1] : memref<1x32x16xf32, #tpu.memory_space<vmem>>, vector<1x32x16xf32>
    %1 = vector.shape_cast %0 : vector<1x32x16xf32> to vector<32x16xf32>
    %cst = arith.constant dense<0.000000e+00> : vector<16xf32>
    %2 = vector.multi_reduction <add>, %1, %cst [0] : vector<32x16xf32> to vector<16xf32>
    %3 = vector.shape_cast %2 : vector<16xf32> to vector<1x16xf32>
    %4 = arith.mulf %1, %1 : vector<32x16xf32>
    %cst_2 = arith.constant dense<0.000000e+00> : vector<16xf32>
    %5 = vector.multi_reduction <add>, %4, %cst_2 [0] : vector<32x16xf32> to vector<16xf32>
    %6 = vector.shape_cast %5 : vector<16xf32> to vector<1x16xf32>
    %c0_3 = arith.constant 0 : index
    %c0_4 = arith.constant 0 : index
    %7 = vector.load %arg4[%c0_3, %c0_4] : memref<16x4xf32, #tpu.memory_space<vmem>>, vector<16x4xf32>
    %cst_5 = arith.constant dense<0.000000e+00> : vector<1x4xf32>
    %8 = tpu.matmul %3, %7, %cst_5 {dimension_numbers = #tpu.dot_dimension_numbers<[1], [0], [0], [1], [0, 0, 1, 1], [], []>} : vector<1x16xf32>, vector<16x4xf32>, vector<1x4xf32> -> vector<1x4xf32>
    %c0_6 = arith.constant 0 : index
    %c0_7 = arith.constant 0 : index
    %9 = vector.load %arg4[%c0_6, %c0_7] : memref<16x4xf32, #tpu.memory_space<vmem>>, vector<16x4xf32>
    %cst_8 = arith.constant dense<0.000000e+00> : vector<1x4xf32>
    %10 = tpu.matmul %6, %9, %cst_8 {dimension_numbers = #tpu.dot_dimension_numbers<[1], [0], [0], [1], [0, 0, 1, 1], [], []>} : vector<1x16xf32>, vector<16x4xf32>, vector<1x4xf32> -> vector<1x4xf32>
    %cst_9 = arith.constant 7.812500e-03 : f32
    %11 = vector.broadcast %cst_9 : f32 to vector<1x4xf32>
    %12 = arith.mulf %8, %11 : vector<1x4xf32>
    %cst_10 = arith.constant 7.812500e-03 : f32
    %13 = vector.broadcast %cst_10 : f32 to vector<1x4xf32>
    %14 = arith.mulf %10, %13 : vector<1x4xf32>
    %15 = arith.mulf %12, %12 : vector<1x4xf32>
    %16 = arith.subf %14, %15 : vector<1x4xf32>
    %cst_11 = arith.constant 0.000000e+00 : f32
    %17 = vector.broadcast %cst_11 : f32 to vector<1x4xf32>
    %18 = arith.maximumf %16, %17 : vector<1x4xf32>
    %cst_12 = arith.constant 9.99999997E-7 : f32
    %19 = vector.broadcast %cst_12 : f32 to vector<1x4xf32>
    %20 = arith.addf %18, %19 : vector<1x4xf32>
    %21 = math.rsqrt %20 : vector<1x4xf32>
    %c0_13 = arith.constant 0 : index
    %c0_14 = arith.constant 0 : index
    %22 = vector.load %arg5[%c0_13, %c0_14] : memref<4x16xf32, #tpu.memory_space<vmem>>, vector<4x16xf32>
    %cst_15 = arith.constant dense<0.000000e+00> : vector<1x16xf32>
    %23 = tpu.matmul %12, %22, %cst_15 {dimension_numbers = #tpu.dot_dimension_numbers<[1], [0], [0], [1], [0, 0, 1, 1], [], []>} : vector<1x4xf32>, vector<4x16xf32>, vector<1x16xf32> -> vector<1x16xf32>
    %c0_16 = arith.constant 0 : index
    %c0_17 = arith.constant 0 : index
    %24 = vector.load %arg5[%c0_16, %c0_17] : memref<4x16xf32, #tpu.memory_space<vmem>>, vector<4x16xf32>
    %cst_18 = arith.constant dense<0.000000e+00> : vector<1x16xf32>
    %25 = tpu.matmul %21, %24, %cst_18 {dimension_numbers = #tpu.dot_dimension_numbers<[1], [0], [0], [1], [0, 0, 1, 1], [], []>} : vector<1x4xf32>, vector<4x16xf32>, vector<1x16xf32> -> vector<1x16xf32>
    %c0_19 = arith.constant 0 : index
    %c0_20 = arith.constant 0 : index
    %26 = vector.load %arg2[%c0_19, %c0_20] : memref<1x16xf32, #tpu.memory_space<vmem>>, vector<1x16xf32>
    %27 = arith.mulf %26, %25 : vector<1x16xf32>
    %c0_21 = arith.constant 0 : index
    %c0_22 = arith.constant 0 : index
    %28 = vector.load %arg3[%c0_21, %c0_22] : memref<1x16xf32, #tpu.memory_space<vmem>>, vector<1x16xf32>
    %29 = arith.mulf %23, %27 : vector<1x16xf32>
    %30 = arith.subf %28, %29 : vector<1x16xf32>
    %31 = vector.broadcast %27 : vector<1x16xf32> to vector<32x16xf32>
    %32 = arith.mulf %1, %31 : vector<32x16xf32>
    %33 = vector.broadcast %30 : vector<1x16xf32> to vector<32x16xf32>
    %34 = arith.addf %32, %33 : vector<32x16xf32>
    %35 = arith.negf %34 : vector<32x16xf32>
    %36 = math.exp %35 : vector<32x16xf32>
    %cst_23 = arith.constant 1.000000e+00 : f32
    %37 = vector.broadcast %cst_23 : f32 to vector<32x16xf32>
    %38 = arith.addf %37, %36 : vector<32x16xf32>
    %39 = arith.divf %37, %38 : vector<32x16xf32>
    %40 = arith.mulf %34, %39 : vector<32x16xf32>
    %c0_24 = arith.constant 0 : index
    %c0_25 = arith.constant 0 : index
    %c0_26 = arith.constant 0 : index
    %41 = vector.load %arg6[%c0_24, %c0_25, %c0_26] : memref<1x32x16xf32, #tpu.memory_space<vmem>>, vector<1x32x16xf32>
    %42 = vector.shape_cast %41 : vector<1x32x16xf32> to vector<32x16xf32>
    %43 = vector.shape_cast %40 : vector<32x16xf32> to vector<1x32x16xf32>
    tpu.vector_store %arg6[%c0_24, %c0_25, %c0_26], %43 {strides = array<i32>} : memref<1x32x16xf32, #tpu.memory_space<vmem>>, vector<1x32x16xf32>,
    return
  }
  func.func @transform_0(%arg0: i32) -> (i32, i32, i32) {
    %c0_i32 = arith.constant 0 : i32
    %c0_i32_0 = arith.constant 0 : i32
    %c0_i32_1 = arith.constant 0 : i32
    return %arg0, %c0_i32, %c0_i32_0 : i32, i32, i32
  }
  func.func @transform_1(%arg0: i32) -> (i32, i32) {
    %c0_i32 = arith.constant 0 : i32
    %c0_i32_0 = arith.constant 0 : i32
    %c0_i32_1 = arith.constant 0 : i32
    return %c0_i32, %c0_i32_0 : i32, i32
  }
  func.func @transform_2(%arg0: i32) -> (i32, i32) {
    %c0_i32 = arith.constant 0 : i32
    %c0_i32_0 = arith.constant 0 : i32
    %c0_i32_1 = arith.constant 0 : i32
    return %c0_i32, %c0_i32_0 : i32, i32
  }
  func.func @transform_3(%arg0: i32) -> (i32, i32) {
    %c0_i32 = arith.constant 0 : i32
    %c0_i32_0 = arith.constant 0 : i32
    %c0_i32_1 = arith.constant 0 : i32
    return %c0_i32, %c0_i32_0 : i32, i32
  }
  func.func @transform_4(%arg0: i32) -> (i32, i32) {
    %c0_i32 = arith.constant 0 : i32
    %c0_i32_0 = arith.constant 0 : i32
    %c0_i32_1 = arith.constant 0 : i32
    return %c0_i32, %c0_i32_0 : i32, i32
  }
  func.func @transform_5(%arg0: i32) -> (i32, i32, i32) {
    %c0_i32 = arith.constant 0 : i32
    %c0_i32_0 = arith.constant 0 : i32
    %c0_i32_1 = arith.constant 0 : i32
    return %arg0, %c0_i32, %c0_i32_0 : i32, i32, i32
  }
}

module attributes {stable_mosaic.version = 11 : i64} {
  func.func @_conv3d_s1_kernel(%arg0: i32, %arg1: i32, %arg2: i32, %arg3: memref<1x1x36x16xbf16, #tpu.memory_space<vmem>>, %arg4: memref<1x144x128xbf16, #tpu.memory_space<vmem>>, %arg5: memref<1x128xf32, #tpu.memory_space<vmem>>, %arg6: memref<1x1x24x128xf32, #tpu.memory_space<vmem>>, %arg7: memref<22x128xf32, #tpu.memory_space<vmem>>) attributes {dimension_semantics = [#tpu.dimension_semantics<parallel>, #tpu.dimension_semantics<parallel>, #tpu.dimension_semantics<arbitrary>], iteration_bounds = array<i64: 2, 2, 3>, scalar_prefetch = 0 : i64, scratch_operands = 1 : i64, tpu.core_type = #tpu.core_type<tc>, window_params = [{transform_indices = @transform_0, window_bounds = array<i64: 1, 1, 36, 16>}, {transform_indices = @transform_1, window_bounds = array<i64: 1, 144, 128>}, {pipeline_mode = #tpu.pipeline_mode<synchronous>, transform_indices = @transform_2, window_bounds = array<i64: 1, 128>}, {transform_indices = @transform_3, window_bounds = array<i64: 1, 1, 24, 128>}]} {
    %c0_i32 = arith.constant 0 : i32
    %0 = arith.cmpi eq, %arg2, %c0_i32 : i32
    %1 = arith.extui %0 : i1 to i32
    %c0_i32_0 = arith.constant 0 : i32
    %2 = arith.cmpi ne, %1, %c0_i32_0 : i32
    scf.if %2 {
      %cst_92 = arith.constant 0.000000e+00 : f32
      %78 = vector.broadcast %cst_92 : f32 to vector<22x128xf32>
      %c0_93 = arith.constant 0 : index
      %c0_94 = arith.constant 0 : index
      %79 = vector.load %arg7[%c0_93, %c0_94] : memref<22x128xf32, #tpu.memory_space<vmem>>, vector<22x128xf32>
      tpu.vector_store %arg7[%c0_93, %c0_94], %78 {strides = array<i32>} : memref<22x128xf32, #tpu.memory_space<vmem>>, vector<22x128xf32>,
    } else {
    }
    %c0 = arith.constant 0 : index
    %c0_1 = arith.constant 0 : index
    %c0_2 = arith.constant 0 : index
    %c0_3 = arith.constant 0 : index
    %3 = vector.load %arg3[%c0, %c0_1, %c0_2, %c0_3] : memref<1x1x36x16xbf16, #tpu.memory_space<vmem>>, vector<1x1x22x16xbf16>
    %4 = vector.shape_cast %3 : vector<1x1x22x16xbf16> to vector<22x16xbf16>
    %c0_4 = arith.constant 0 : index
    %c0_5 = arith.constant 0 : index
    %c0_6 = arith.constant 0 : index
    %5 = vector.load %arg4[%c0_4, %c0_5, %c0_6] : memref<1x144x128xbf16, #tpu.memory_space<vmem>>, vector<1x16x128xbf16>
    %6 = vector.shape_cast %5 : vector<1x16x128xbf16> to vector<16x128xbf16>
    %c0_7 = arith.constant 0 : index
    %c0_8 = arith.constant 0 : index
    %7 = vector.load %arg7[%c0_7, %c0_8] : memref<22x128xf32, #tpu.memory_space<vmem>>, vector<22x128xf32>
    %cst = arith.constant dense<0.000000e+00> : vector<22x128xf32>
    %8 = tpu.matmul %4, %6, %cst {dimension_numbers = #tpu.dot_dimension_numbers<[1], [0], [0], [1], [0, 0, 1, 1], [], []>} : vector<22x16xbf16>, vector<16x128xbf16>, vector<22x128xf32> -> vector<22x128xf32>
    %9 = arith.addf %7, %8 : vector<22x128xf32>
    %c0_9 = arith.constant 0 : index
    %c0_10 = arith.constant 0 : index
    %10 = vector.load %arg7[%c0_9, %c0_10] : memref<22x128xf32, #tpu.memory_space<vmem>>, vector<22x128xf32>
    tpu.vector_store %arg7[%c0_9, %c0_10], %9 {strides = array<i32>} : memref<22x128xf32, #tpu.memory_space<vmem>>, vector<22x128xf32>,
    %c0_11 = arith.constant 0 : index
    %c0_12 = arith.constant 0 : index
    %c1 = arith.constant 1 : index
    %c0_13 = arith.constant 0 : index
    %11 = vector.load %arg3[%c0_11, %c0_12, %c1, %c0_13] : memref<1x1x36x16xbf16, #tpu.memory_space<vmem>>, vector<1x1x22x16xbf16>
    %12 = vector.shape_cast %11 : vector<1x1x22x16xbf16> to vector<22x16xbf16>
    %c0_14 = arith.constant 0 : index
    %c16 = arith.constant 16 : index
    %c0_15 = arith.constant 0 : index
    %13 = vector.load %arg4[%c0_14, %c16, %c0_15] : memref<1x144x128xbf16, #tpu.memory_space<vmem>>, vector<1x16x128xbf16>
    %14 = vector.shape_cast %13 : vector<1x16x128xbf16> to vector<16x128xbf16>
    %c0_16 = arith.constant 0 : index
    %c0_17 = arith.constant 0 : index
    %15 = vector.load %arg7[%c0_16, %c0_17] : memref<22x128xf32, #tpu.memory_space<vmem>>, vector<22x128xf32>
    %cst_18 = arith.constant dense<0.000000e+00> : vector<22x128xf32>
    %16 = tpu.matmul %12, %14, %cst_18 {dimension_numbers = #tpu.dot_dimension_numbers<[1], [0], [0], [1], [0, 0, 1, 1], [], []>} : vector<22x16xbf16>, vector<16x128xbf16>, vector<22x128xf32> -> vector<22x128xf32>
    %17 = arith.addf %15, %16 : vector<22x128xf32>
    %c0_19 = arith.constant 0 : index
    %c0_20 = arith.constant 0 : index
    %18 = vector.load %arg7[%c0_19, %c0_20] : memref<22x128xf32, #tpu.memory_space<vmem>>, vector<22x128xf32>
    tpu.vector_store %arg7[%c0_19, %c0_20], %17 {strides = array<i32>} : memref<22x128xf32, #tpu.memory_space<vmem>>, vector<22x128xf32>,
    %c0_21 = arith.constant 0 : index
    %c0_22 = arith.constant 0 : index
    %c2 = arith.constant 2 : index
    %c0_23 = arith.constant 0 : index
    %19 = vector.load %arg3[%c0_21, %c0_22, %c2, %c0_23] : memref<1x1x36x16xbf16, #tpu.memory_space<vmem>>, vector<1x1x22x16xbf16>
    %20 = vector.shape_cast %19 : vector<1x1x22x16xbf16> to vector<22x16xbf16>
    %c0_24 = arith.constant 0 : index
    %c32 = arith.constant 32 : index
    %c0_25 = arith.constant 0 : index
    %21 = vector.load %arg4[%c0_24, %c32, %c0_25] : memref<1x144x128xbf16, #tpu.memory_space<vmem>>, vector<1x16x128xbf16>
    %22 = vector.shape_cast %21 : vector<1x16x128xbf16> to vector<16x128xbf16>
    %c0_26 = arith.constant 0 : index
    %c0_27 = arith.constant 0 : index
    %23 = vector.load %arg7[%c0_26, %c0_27] : memref<22x128xf32, #tpu.memory_space<vmem>>, vector<22x128xf32>
    %cst_28 = arith.constant dense<0.000000e+00> : vector<22x128xf32>
    %24 = tpu.matmul %20, %22, %cst_28 {dimension_numbers = #tpu.dot_dimension_numbers<[1], [0], [0], [1], [0, 0, 1, 1], [], []>} : vector<22x16xbf16>, vector<16x128xbf16>, vector<22x128xf32> -> vector<22x128xf32>
    %25 = arith.addf %23, %24 : vector<22x128xf32>
    %c0_29 = arith.constant 0 : index
    %c0_30 = arith.constant 0 : index
    %26 = vector.load %arg7[%c0_29, %c0_30] : memref<22x128xf32, #tpu.memory_space<vmem>>, vector<22x128xf32>
    tpu.vector_store %arg7[%c0_29, %c0_30], %25 {strides = array<i32>} : memref<22x128xf32, #tpu.memory_space<vmem>>, vector<22x128xf32>,
    %c0_31 = arith.constant 0 : index
    %c0_32 = arith.constant 0 : index
    %c6 = arith.constant 6 : index
    %c0_33 = arith.constant 0 : index
    %27 = vector.load %arg3[%c0_31, %c0_32, %c6, %c0_33] : memref<1x1x36x16xbf16, #tpu.memory_space<vmem>>, vector<1x1x22x16xbf16>
    %28 = vector.shape_cast %27 : vector<1x1x22x16xbf16> to vector<22x16xbf16>
    %c0_34 = arith.constant 0 : index
    %c48 = arith.constant 48 : index
    %c0_35 = arith.constant 0 : index
    %29 = vector.load %arg4[%c0_34, %c48, %c0_35] : memref<1x144x128xbf16, #tpu.memory_space<vmem>>, vector<1x16x128xbf16>
    %30 = vector.shape_cast %29 : vector<1x16x128xbf16> to vector<16x128xbf16>
    %c0_36 = arith.constant 0 : index
    %c0_37 = arith.constant 0 : index
    %31 = vector.load %arg7[%c0_36, %c0_37] : memref<22x128xf32, #tpu.memory_space<vmem>>, vector<22x128xf32>
    %cst_38 = arith.constant dense<0.000000e+00> : vector<22x128xf32>
    %32 = tpu.matmul %28, %30, %cst_38 {dimension_numbers = #tpu.dot_dimension_numbers<[1], [0], [0], [1], [0, 0, 1, 1], [], []>} : vector<22x16xbf16>, vector<16x128xbf16>, vector<22x128xf32> -> vector<22x128xf32>
    %33 = arith.addf %31, %32 : vector<22x128xf32>
    %c0_39 = arith.constant 0 : index
    %c0_40 = arith.constant 0 : index
    %34 = vector.load %arg7[%c0_39, %c0_40] : memref<22x128xf32, #tpu.memory_space<vmem>>, vector<22x128xf32>
    tpu.vector_store %arg7[%c0_39, %c0_40], %33 {strides = array<i32>} : memref<22x128xf32, #tpu.memory_space<vmem>>, vector<22x128xf32>,
    %c0_41 = arith.constant 0 : index
    %c0_42 = arith.constant 0 : index
    %c7 = arith.constant 7 : index
    %c0_43 = arith.constant 0 : index
    %35 = vector.load %arg3[%c0_41, %c0_42, %c7, %c0_43] : memref<1x1x36x16xbf16, #tpu.memory_space<vmem>>, vector<1x1x22x16xbf16>
    %36 = vector.shape_cast %35 : vector<1x1x22x16xbf16> to vector<22x16xbf16>
    %c0_44 = arith.constant 0 : index
    %c64 = arith.constant 64 : index
    %c0_45 = arith.constant 0 : index
    %37 = vector.load %arg4[%c0_44, %c64, %c0_45] : memref<1x144x128xbf16, #tpu.memory_space<vmem>>, vector<1x16x128xbf16>
    %38 = vector.shape_cast %37 : vector<1x16x128xbf16> to vector<16x128xbf16>
    %c0_46 = arith.constant 0 : index
    %c0_47 = arith.constant 0 : index
    %39 = vector.load %arg7[%c0_46, %c0_47] : memref<22x128xf32, #tpu.memory_space<vmem>>, vector<22x128xf32>
    %cst_48 = arith.constant dense<0.000000e+00> : vector<22x128xf32>
    %40 = tpu.matmul %36, %38, %cst_48 {dimension_numbers = #tpu.dot_dimension_numbers<[1], [0], [0], [1], [0, 0, 1, 1], [], []>} : vector<22x16xbf16>, vector<16x128xbf16>, vector<22x128xf32> -> vector<22x128xf32>
    %41 = arith.addf %39, %40 : vector<22x128xf32>
    %c0_49 = arith.constant 0 : index
    %c0_50 = arith.constant 0 : index
    %42 = vector.load %arg7[%c0_49, %c0_50] : memref<22x128xf32, #tpu.memory_space<vmem>>, vector<22x128xf32>
    tpu.vector_store %arg7[%c0_49, %c0_50], %41 {strides = array<i32>} : memref<22x128xf32, #tpu.memory_space<vmem>>, vector<22x128xf32>,
    %c0_51 = arith.constant 0 : index
    %c0_52 = arith.constant 0 : index
    %c8 = arith.constant 8 : index
    %c0_53 = arith.constant 0 : index
    %43 = vector.load %arg3[%c0_51, %c0_52, %c8, %c0_53] : memref<1x1x36x16xbf16, #tpu.memory_space<vmem>>, vector<1x1x22x16xbf16>
    %44 = vector.shape_cast %43 : vector<1x1x22x16xbf16> to vector<22x16xbf16>
    %c0_54 = arith.constant 0 : index
    %c80 = arith.constant 80 : index
    %c0_55 = arith.constant 0 : index
    %45 = vector.load %arg4[%c0_54, %c80, %c0_55] : memref<1x144x128xbf16, #tpu.memory_space<vmem>>, vector<1x16x128xbf16>
    %46 = vector.shape_cast %45 : vector<1x16x128xbf16> to vector<16x128xbf16>
    %c0_56 = arith.constant 0 : index
    %c0_57 = arith.constant 0 : index
    %47 = vector.load %arg7[%c0_56, %c0_57] : memref<22x128xf32, #tpu.memory_space<vmem>>, vector<22x128xf32>
    %cst_58 = arith.constant dense<0.000000e+00> : vector<22x128xf32>
    %48 = tpu.matmul %44, %46, %cst_58 {dimension_numbers = #tpu.dot_dimension_numbers<[1], [0], [0], [1], [0, 0, 1, 1], [], []>} : vector<22x16xbf16>, vector<16x128xbf16>, vector<22x128xf32> -> vector<22x128xf32>
    %49 = arith.addf %47, %48 : vector<22x128xf32>
    %c0_59 = arith.constant 0 : index
    %c0_60 = arith.constant 0 : index
    %50 = vector.load %arg7[%c0_59, %c0_60] : memref<22x128xf32, #tpu.memory_space<vmem>>, vector<22x128xf32>
    tpu.vector_store %arg7[%c0_59, %c0_60], %49 {strides = array<i32>} : memref<22x128xf32, #tpu.memory_space<vmem>>, vector<22x128xf32>,
    %c0_61 = arith.constant 0 : index
    %c0_62 = arith.constant 0 : index
    %c12 = arith.constant 12 : index
    %c0_63 = arith.constant 0 : index
    %51 = vector.load %arg3[%c0_61, %c0_62, %c12, %c0_63] : memref<1x1x36x16xbf16, #tpu.memory_space<vmem>>, vector<1x1x22x16xbf16>
    %52 = vector.shape_cast %51 : vector<1x1x22x16xbf16> to vector<22x16xbf16>
    %c0_64 = arith.constant 0 : index
    %c96 = arith.constant 96 : index
    %c0_65 = arith.constant 0 : index
    %53 = vector.load %arg4[%c0_64, %c96, %c0_65] : memref<1x144x128xbf16, #tpu.memory_space<vmem>>, vector<1x16x128xbf16>
    %54 = vector.shape_cast %53 : vector<1x16x128xbf16> to vector<16x128xbf16>
    %c0_66 = arith.constant 0 : index
    %c0_67 = arith.constant 0 : index
    %55 = vector.load %arg7[%c0_66, %c0_67] : memref<22x128xf32, #tpu.memory_space<vmem>>, vector<22x128xf32>
    %cst_68 = arith.constant dense<0.000000e+00> : vector<22x128xf32>
    %56 = tpu.matmul %52, %54, %cst_68 {dimension_numbers = #tpu.dot_dimension_numbers<[1], [0], [0], [1], [0, 0, 1, 1], [], []>} : vector<22x16xbf16>, vector<16x128xbf16>, vector<22x128xf32> -> vector<22x128xf32>
    %57 = arith.addf %55, %56 : vector<22x128xf32>
    %c0_69 = arith.constant 0 : index
    %c0_70 = arith.constant 0 : index
    %58 = vector.load %arg7[%c0_69, %c0_70] : memref<22x128xf32, #tpu.memory_space<vmem>>, vector<22x128xf32>
    tpu.vector_store %arg7[%c0_69, %c0_70], %57 {strides = array<i32>} : memref<22x128xf32, #tpu.memory_space<vmem>>, vector<22x128xf32>,
    %c0_71 = arith.constant 0 : index
    %c0_72 = arith.constant 0 : index
    %c13 = arith.constant 13 : index
    %c0_73 = arith.constant 0 : index
    %59 = vector.load %arg3[%c0_71, %c0_72, %c13, %c0_73] : memref<1x1x36x16xbf16, #tpu.memory_space<vmem>>, vector<1x1x22x16xbf16>
    %60 = vector.shape_cast %59 : vector<1x1x22x16xbf16> to vector<22x16xbf16>
    %c0_74 = arith.constant 0 : index
    %c112 = arith.constant 112 : index
    %c0_75 = arith.constant 0 : index
    %61 = vector.load %arg4[%c0_74, %c112, %c0_75] : memref<1x144x128xbf16, #tpu.memory_space<vmem>>, vector<1x16x128xbf16>
    %62 = vector.shape_cast %61 : vector<1x16x128xbf16> to vector<16x128xbf16>
    %c0_76 = arith.constant 0 : index
    %c0_77 = arith.constant 0 : index
    %63 = vector.load %arg7[%c0_76, %c0_77] : memref<22x128xf32, #tpu.memory_space<vmem>>, vector<22x128xf32>
    %cst_78 = arith.constant dense<0.000000e+00> : vector<22x128xf32>
    %64 = tpu.matmul %60, %62, %cst_78 {dimension_numbers = #tpu.dot_dimension_numbers<[1], [0], [0], [1], [0, 0, 1, 1], [], []>} : vector<22x16xbf16>, vector<16x128xbf16>, vector<22x128xf32> -> vector<22x128xf32>
    %65 = arith.addf %63, %64 : vector<22x128xf32>
    %c0_79 = arith.constant 0 : index
    %c0_80 = arith.constant 0 : index
    %66 = vector.load %arg7[%c0_79, %c0_80] : memref<22x128xf32, #tpu.memory_space<vmem>>, vector<22x128xf32>
    tpu.vector_store %arg7[%c0_79, %c0_80], %65 {strides = array<i32>} : memref<22x128xf32, #tpu.memory_space<vmem>>, vector<22x128xf32>,
    %c0_81 = arith.constant 0 : index
    %c0_82 = arith.constant 0 : index
    %c14 = arith.constant 14 : index
    %c0_83 = arith.constant 0 : index
    %67 = vector.load %arg3[%c0_81, %c0_82, %c14, %c0_83] : memref<1x1x36x16xbf16, #tpu.memory_space<vmem>>, vector<1x1x22x16xbf16>
    %68 = vector.shape_cast %67 : vector<1x1x22x16xbf16> to vector<22x16xbf16>
    %c0_84 = arith.constant 0 : index
    %c128 = arith.constant 128 : index
    %c0_85 = arith.constant 0 : index
    %69 = vector.load %arg4[%c0_84, %c128, %c0_85] : memref<1x144x128xbf16, #tpu.memory_space<vmem>>, vector<1x16x128xbf16>
    %70 = vector.shape_cast %69 : vector<1x16x128xbf16> to vector<16x128xbf16>
    %c0_86 = arith.constant 0 : index
    %c0_87 = arith.constant 0 : index
    %71 = vector.load %arg7[%c0_86, %c0_87] : memref<22x128xf32, #tpu.memory_space<vmem>>, vector<22x128xf32>
    %cst_88 = arith.constant dense<0.000000e+00> : vector<22x128xf32>
    %72 = tpu.matmul %68, %70, %cst_88 {dimension_numbers = #tpu.dot_dimension_numbers<[1], [0], [0], [1], [0, 0, 1, 1], [], []>} : vector<22x16xbf16>, vector<16x128xbf16>, vector<22x128xf32> -> vector<22x128xf32>
    %73 = arith.addf %71, %72 : vector<22x128xf32>
    %c0_89 = arith.constant 0 : index
    %c0_90 = arith.constant 0 : index
    %74 = vector.load %arg7[%c0_89, %c0_90] : memref<22x128xf32, #tpu.memory_space<vmem>>, vector<22x128xf32>
    tpu.vector_store %arg7[%c0_89, %c0_90], %73 {strides = array<i32>} : memref<22x128xf32, #tpu.memory_space<vmem>>, vector<22x128xf32>,
    %c2_i32 = arith.constant 2 : i32
    %75 = arith.cmpi eq, %arg2, %c2_i32 : i32
    %76 = arith.extui %75 : i1 to i32
    %c0_i32_91 = arith.constant 0 : i32
    %77 = arith.cmpi ne, %76, %c0_i32_91 : i32
    scf.if %77 {
      %c0_92 = arith.constant 0 : index
      %c0_93 = arith.constant 0 : index
      %78 = vector.load %arg7[%c0_92, %c0_93] : memref<22x128xf32, #tpu.memory_space<vmem>>, vector<22x128xf32>
      %c0_94 = arith.constant 0 : index
      %c0_95 = arith.constant 0 : index
      %79 = vector.load %arg5[%c0_94, %c0_95] : memref<1x128xf32, #tpu.memory_space<vmem>>, vector<1x128xf32>
      %80 = vector.broadcast %79 : vector<1x128xf32> to vector<22x128xf32>
      %81 = arith.addf %78, %80 : vector<22x128xf32>
      %c0_96 = arith.constant 0 : index
      %c0_97 = arith.constant 0 : index
      %c0_98 = arith.constant 0 : index
      %c0_99 = arith.constant 0 : index
      %82 = vector.load %arg6[%c0_96, %c0_97, %c0_98, %c0_99] : memref<1x1x24x128xf32, #tpu.memory_space<vmem>>, vector<1x1x22x128xf32>
      %83 = vector.shape_cast %82 : vector<1x1x22x128xf32> to vector<22x128xf32>
      %84 = vector.shape_cast %81 : vector<22x128xf32> to vector<1x1x22x128xf32>
      tpu.vector_store %arg6[%c0_96, %c0_97, %c0_98, %c0_99], %84 {strides = array<i32>} : memref<1x1x24x128xf32, #tpu.memory_space<vmem>>, vector<1x1x22x128xf32>,
    } else {
    }
    return
  }
  func.func @transform_0(%arg0: i32, %arg1: i32, %arg2: i32) -> (i32, i32, i32, i32) {
    %0 = arith.addi %arg1, %arg2 : i32
    %c0_i32 = arith.constant 0 : i32
    %c0_i32_0 = arith.constant 0 : i32
    %c0_i32_1 = arith.constant 0 : i32
    return %arg0, %0, %c0_i32, %c0_i32_0 : i32, i32, i32, i32
  }
  func.func @transform_1(%arg0: i32, %arg1: i32, %arg2: i32) -> (i32, i32, i32) {
    %c0_i32 = arith.constant 0 : i32
    %c0_i32_0 = arith.constant 0 : i32
    %c0_i32_1 = arith.constant 0 : i32
    return %arg2, %c0_i32, %c0_i32_0 : i32, i32, i32
  }
  func.func @transform_2(%arg0: i32, %arg1: i32, %arg2: i32) -> (i32, i32) {
    %c0_i32 = arith.constant 0 : i32
    %c0_i32_0 = arith.constant 0 : i32
    %c0_i32_1 = arith.constant 0 : i32
    return %c0_i32, %c0_i32_0 : i32, i32
  }
  func.func @transform_3(%arg0: i32, %arg1: i32, %arg2: i32) -> (i32, i32, i32, i32) {
    %c0_i32 = arith.constant 0 : i32
    %c0_i32_0 = arith.constant 0 : i32
    %c0_i32_1 = arith.constant 0 : i32
    return %arg0, %arg1, %c0_i32, %c0_i32_0 : i32, i32, i32, i32
  }
}

module attributes {stable_mosaic.version = 11 : i64} {
  func.func @_add_kernel(%arg0: i32, %arg1: memref<1x16x16xf32, #tpu.memory_space<vmem>>, %arg2: memref<1x16x16xf32, #tpu.memory_space<vmem>>, %arg3: memref<1x16x16xf32, #tpu.memory_space<vmem>>) attributes {dimension_semantics = [#tpu.dimension_semantics<parallel>], iteration_bounds = array<i64: 4>, scalar_prefetch = 0 : i64, scratch_operands = 0 : i64, tpu.core_type = #tpu.core_type<tc>, window_params = [{transform_indices = @transform_0, window_bounds = array<i64: 1, 16, 16>}, {transform_indices = @transform_1, window_bounds = array<i64: 1, 16, 16>}, {transform_indices = @transform_2, window_bounds = array<i64: 1, 16, 16>}]} {
    %c0 = arith.constant 0 : index
    %c0_0 = arith.constant 0 : index
    %c0_1 = arith.constant 0 : index
    %0 = vector.load %arg1[%c0, %c0_0, %c0_1] : memref<1x16x16xf32, #tpu.memory_space<vmem>>, vector<1x16x16xf32>
    %c0_2 = arith.constant 0 : index
    %c0_3 = arith.constant 0 : index
    %c0_4 = arith.constant 0 : index
    %1 = vector.load %arg2[%c0_2, %c0_3, %c0_4] : memref<1x16x16xf32, #tpu.memory_space<vmem>>, vector<1x16x16xf32>
    %2 = arith.addf %0, %1 : vector<1x16x16xf32>
    %c0_5 = arith.constant 0 : index
    %c0_6 = arith.constant 0 : index
    %c0_7 = arith.constant 0 : index
    %3 = vector.load %arg3[%c0_5, %c0_6, %c0_7] : memref<1x16x16xf32, #tpu.memory_space<vmem>>, vector<1x16x16xf32>
    tpu.vector_store %arg3[%c0_5, %c0_6, %c0_7], %2 {strides = array<i32>} : memref<1x16x16xf32, #tpu.memory_space<vmem>>, vector<1x16x16xf32>,
    return
  }
  func.func @transform_0(%arg0: i32) -> (i32, i32, i32) {
    %c0_i32 = arith.constant 0 : i32
    %c0_i32_0 = arith.constant 0 : i32
    %c0_i32_1 = arith.constant 0 : i32
    return %arg0, %c0_i32, %c0_i32_0 : i32, i32, i32
  }
  func.func @transform_1(%arg0: i32) -> (i32, i32, i32) {
    %c0_i32 = arith.constant 0 : i32
    %c0_i32_0 = arith.constant 0 : i32
    %c0_i32_1 = arith.constant 0 : i32
    return %arg0, %c0_i32, %c0_i32_0 : i32, i32, i32
  }
  func.func @transform_2(%arg0: i32) -> (i32, i32, i32) {
    %c0_i32 = arith.constant 0 : i32
    %c0_i32_0 = arith.constant 0 : i32
    %c0_i32_1 = arith.constant 0 : i32
    return %arg0, %c0_i32, %c0_i32_0 : i32, i32, i32
  }
}

module attributes {stable_mosaic.version = 11 : i64} {
  func.func @_gn_silu_kernel(%arg0: i32, %arg1: memref<1x32x16xf32, #tpu.memory_space<vmem>>, %arg2: memref<1x16xf32, #tpu.memory_space<vmem>>, %arg3: memref<1x16xf32, #tpu.memory_space<vmem>>, %arg4: memref<16x4xf32, #tpu.memory_space<vmem>>, %arg5: memref<4x16xf32, #tpu.memory_space<vmem>>, %arg6: memref<1x32x16xf32, #tpu.memory_space<vmem>>) attributes {dimension_semantics = [#tpu.dimension_semantics<parallel>], iteration_bounds = array<i64: 2>, scalar_prefetch = 0 : i64, scratch_operands = 0 : i64, tpu.core_type = #tpu.core_type<tc>, window_params = [{transform_indices = @transform_0, window_bounds = array<i64: 1, 32, 16>}, {pipeline_mode = #tpu.pipeline_mode<synchronous>, transform_indices = @transform_1, window_bounds = array<i64: 1, 16>}, {pipeline_mode = #tpu.pipeline_mode<synchronous>, transform_indices = @transform_2, window_bounds = array<i64: 1, 16>}, {pipeline_mode = #tpu.pipeline_mode<synchronous>, transform_indices = @transform_3, window_bounds = array<i64: 16, 4>}, {pipeline_mode = #tpu.pipeline_mode<synchronous>, transform_indices = @transform_4, window_bounds = array<i64: 4, 16>}, {transform_indices = @transform_5, window_bounds = array<i64: 1, 32, 16>}]} {
    %c0 = arith.constant 0 : index
    %c0_0 = arith.constant 0 : index
    %c0_1 = arith.constant 0 : index
    %0 = vector.load %arg1[%c0, %c0_0, %c0_1] : memref<1x32x16xf32, #tpu.memory_space<vmem>>, vector<1x32x16xf32>
    %1 = vector.shape_cast %0 : vector<1x32x16xf32> to vector<32x16xf32>
    %cst = arith.constant dense<0.000000e+00> : vector<16xf32>
    %2 = vector.multi_reduction <add>, %1, %cst [0] : vector<32x16xf32> to vector<16xf32>
    %3 = vector.shape_cast %2 : vector<16xf32> to vector<1x16xf32>
    %4 = arith.mulf %1, %1 : vector<32x16xf32>
    %cst_2 = arith.constant dense<0.000000e+00> : vector<16xf32>
    %5 = vector.multi_reduction <add>, %4, %cst_2 [0] : vector<32x16xf32> to vector<16xf32>
    %6 = vector.shape_cast %5 : vector<16xf32> to vector<1x16xf32>
    %c0_3 = arith.constant 0 : index
    %c0_4 = arith.constant 0 : index
    %7 = vector.load %arg4[%c0_3, %c0_4] : memref<16x4xf32, #tpu.memory_space<vmem>>, vector<16x4xf32>
    %cst_5 = arith.constant dense<0.000000e+00> : vector<1x4xf32>
    %8 = tpu.matmul %3, %7, %cst_5 {dimension_numbers = #tpu.dot_dimension_numbers<[1], [0], [0], [1], [0, 0, 1, 1], [], []>} : vector<1x16xf32>, vector<16x4xf32>, vector<1x4xf32> -> vector<1x4xf32>
    %c0_6 = arith.constant 0 : index
    %c0_7 = arith.constant 0 : index
    %9 = vector.load %arg4[%c0_6, %c0_7] : memref<16x4xf32, #tpu.memory_space<vmem>>, vector<16x4xf32>
    %cst_8 = arith.constant dense<0.000000e+00> : vector<1x4xf32>
    %10 = tpu.matmul %6, %9, %cst_8 {dimension_numbers = #tpu.dot_dimension_numbers<[1], [0], [0], [1], [0, 0, 1, 1], [], []>} : vector<1x16xf32>, vector<16x4xf32>, vector<1x4xf32> -> vector<1x4xf32>
    %cst_9 = arith.constant 7.812500e-03 : f32
    %11 = vector.broadcast %cst_9 : f32 to vector<1x4xf32>
    %12 = arith.mulf %8, %11 : vector<1x4xf32>
    %cst_10 = arith.constant 7.812500e-03 : f32
    %13 = vector.broadcast %cst_10 : f32 to vector<1x4xf32>
    %14 = arith.mulf %10, %13 : vector<1x4xf32>
    %15 = arith.mulf %12, %12 : vector<1x4xf32>
    %16 = arith.subf %14, %15 : vector<1x4xf32>
    %cst_11 = arith.constant 0.000000e+00 : f32
    %17 = vector.broadcast %cst_11 : f32 to vector<1x4xf32>
    %18 = arith.maximumf %16, %17 : vector<1x4xf32>
    %cst_12 = arith.constant 9.99999997E-7 : f32
    %19 = vector.broadcast %cst_12 : f32 to vector<1x4xf32>
    %20 = arith.addf %18, %19 : vector<1x4xf32>
    %21 = math.rsqrt %20 : vector<1x4xf32>
    %c0_13 = arith.constant 0 : index
    %c0_14 = arith.constant 0 : index
    %22 = vector.load %arg5[%c0_13, %c0_14] : memref<4x16xf32, #tpu.memory_space<vmem>>, vector<4x16xf32>
    %cst_15 = arith.constant dense<0.000000e+00> : vector<1x16xf32>
    %23 = tpu.matmul %12, %22, %cst_15 {dimension_numbers = #tpu.dot_dimension_numbers<[1], [0], [0], [1], [0, 0, 1, 1], [], []>} : vector<1x4xf32>, vector<4x16xf32>, vector<1x16xf32> -> vector<1x16xf32>
    %c0_16 = arith.constant 0 : index
    %c0_17 = arith.constant 0 : index
    %24 = vector.load %arg5[%c0_16, %c0_17] : memref<4x16xf32, #tpu.memory_space<vmem>>, vector<4x16xf32>
    %cst_18 = arith.constant dense<0.000000e+00> : vector<1x16xf32>
    %25 = tpu.matmul %21, %24, %cst_18 {dimension_numbers = #tpu.dot_dimension_numbers<[1], [0], [0], [1], [0, 0, 1, 1], [], []>} : vector<1x4xf32>, vector<4x16xf32>, vector<1x16xf32> -> vector<1x16xf32>
    %c0_19 = arith.constant 0 : index
    %c0_20 = arith.constant 0 : index
    %26 = vector.load %arg2[%c0_19, %c0_20] : memref<1x16xf32, #tpu.memory_space<vmem>>, vector<1x16xf32>
    %27 = arith.mulf %26, %25 : vector<1x16xf32>
    %c0_21 = arith.constant 0 : index
    %c0_22 = arith.constant 0 : index
    %28 = vector.load %arg3[%c0_21, %c0_22] : memref<1x16xf32, #tpu.memory_space<vmem>>, vector<1x16xf32>
    %29 = arith.mulf %23, %27 : vector<1x16xf32>
    %30 = arith.subf %28, %29 : vector<1x16xf32>
    %31 = vector.broadcast %27 : vector<1x16xf32> to vector<32x16xf32>
    %32 = arith.mulf %1, %31 : vector<32x16xf32>
    %33 = vector.broadcast %30 : vector<1x16xf32> to vector<32x16xf32>
    %34 = arith.addf %32, %33 : vector<32x16xf32>
    %35 = arith.negf %34 : vector<32x16xf32>
    %36 = math.exp %35 : vector<32x16xf32>
    %cst_23 = arith.constant 1.000000e+00 : f32
    %37 = vector.broadcast %cst_23 : f32 to vector<32x16xf32>
    %38 = arith.addf %37, %36 : vector<32x16xf32>
    %39 = arith.divf %37, %38 : vector<32x16xf32>
    %40 = arith.mulf %34, %39 : vector<32x16xf32>
    %c0_24 = arith.constant 0 : index
    %c0_25 = arith.constant 0 : index
    %c0_26 = arith.constant 0 : index
    %41 = vector.load %arg6[%c0_24, %c0_25, %c0_26] : memref<1x32x16xf32, #tpu.memory_space<vmem>>, vector<1x32x16xf32>
    %42 = vector.shape_cast %41 : vector<1x32x16xf32> to vector<32x16xf32>
    %43 = vector.shape_cast %40 : vector<32x16xf32> to vector<1x32x16xf32>
    tpu.vector_store %arg6[%c0_24, %c0_25, %c0_26], %43 {strides = array<i32>} : memref<1x32x16xf32, #tpu.memory_space<vmem>>, vector<1x32x16xf32>,
    return
  }
  func.func @transform_0(%arg0: i32) -> (i32, i32, i32) {
    %c0_i32 = arith.constant 0 : i32
    %c0_i32_0 = arith.constant 0 : i32
    %c0_i32_1 = arith.constant 0 : i32
    return %arg0, %c0_i32, %c0_i32_0 : i32, i32, i32
  }
  func.func @transform_1(%arg0: i32) -> (i32, i32) {
    %c0_i32 = arith.constant 0 : i32
    %c0_i32_0 = arith.constant 0 : i32
    %c0_i32_1 = arith.constant 0 : i32
    return %c0_i32, %c0_i32_0 : i32, i32
  }
  func.func @transform_2(%arg0: i32) -> (i32, i32) {
    %c0_i32 = arith.constant 0 : i32
    %c0_i32_0 = arith.constant 0 : i32
    %c0_i32_1 = arith.constant 0 : i32
    return %c0_i32, %c0_i32_0 : i32, i32
  }
  func.func @transform_3(%arg0: i32) -> (i32, i32) {
    %c0_i32 = arith.constant 0 : i32
    %c0_i32_0 = arith.constant 0 : i32
    %c0_i32_1 = arith.constant 0 : i32
    return %c0_i32, %c0_i32_0 : i32, i32
  }
  func.func @transform_4(%arg0: i32) -> (i32, i32) {
    %c0_i32 = arith.constant 0 : i32
    %c0_i32_0 = arith.constant 0 : i32
    %c0_i32_1 = arith.constant 0 : i32
    return %c0_i32, %c0_i32_0 : i32, i32
  }
  func.func @transform_5(%arg0: i32) -> (i32, i32, i32) {
    %c0_i32 = arith.constant 0 : i32
    %c0_i32_0 = arith.constant 0 : i32
    %c0_i32_1 = arith.constant 0 : i32
    return %arg0, %c0_i32, %c0_i32_0 : i32, i32, i32
  }
}

</mosaic_0001>

<llo_original>
// kernel: _lambda_.8
$region0: #{_lambda_.8}
  #allocation0 [shape = 'u32[]', space=smem, size = 0x4, offset = 0x4, fixed_abs, tag = 'smem constant byte address 0x4 - core index']
  #allocation1 [shape = 'u32[144,128]{1,0:T(1,128)}', space=vmem, size = 0x12000, scoped, tag = 'internal scratch']
  #allocation2 [shape = 'f32[78,128]{1,0:T(8,128)}', space=vmem, size = 0xa000, scoped, tag = 'scratch operand']
  %s0 = inlined_call_operand.hbm [shape: bf16[2,6,100,3], index: 0, kind: input, shape index: {}]
  %s1 = inlined_call_operand.hbm [shape: bf16[3,27,128], index: 1, kind: input, shape index: {}]
  %s2 = inlined_call_operand.hbm [shape: f32[1,128], index: 2, kind: input, shape index: {}]
  %s3 = inlined_call_operand.hbm [shape: f32[2,4,80,128], index: 3, kind: output, shape index: {}]
  %s4 = sld [smem:[#allocation0]]
  $region65: #{_lambda_.8} parent=0
    _
  %s6 = ssub.s32 1, %s4
  %s7 = scalar_select 0, %s6, %s4
  $region1: #{_lambda_.8} parent=0
    #allocation3 [shape = 'u8[53248]{0}', space=vmem, size = 0xd000, scoped, tag = 'input window, operand 0']
    #allocation4 [shape = 's32[2]{0}', space=sflag, size = 0x8, scoped, tag = 'scoped memory for _lambda_.8']
    #allocation5 [shape = 's32[2]{0}', space=sflag, size = 0x8, scoped, tag = 'scoped memory for _lambda_.8']
    #allocation6 [shape = 'u8[16384]{0}', space=vmem, size = 0x4000, scoped, tag = 'input window, operand 1']
    #allocation7 [shape = 's32[2]{0}', space=sflag, size = 0x8, scoped, tag = 'scoped memory for _lambda_.8']
    #allocation8 [shape = 'u8[512]{0}', space=vmem, size = 0x400, scoped, tag = 'input window, operand 2, single buffered']
    #allocation9 [shape = 'u8[81920]{0}', space=vmem, size = 0x14000, scoped, tag = 'output window, operand 0']
    %8 = vsyncpa [#allocation4], 0
    %s9 = scalar_lea.sflag [#allocation4], 1
    %10 = vsyncpa %s9, 0
    %11 = vsyncpa [#allocation7], 0
    %s12 = scalar_lea.sflag [#allocation7], 1
    %13 = vsyncpa %s12, 0
    %14 = vsyncpa [#allocation5], 0
    %s15 = scalar_lea.sflag [#allocation5], 1
    %16 = vsyncpa %s15, 0
    loop: start=0, step=1, limit=26
    $region2: #{_lambda_.8} parent=1 // loop_pre_header
      _
    $region3: #{_lambda_.8} parent=1 // loop_header
      %s18 = sphi 0, %s22
      %p19 = scmp.ge.s32.totalorder %s18, 26
      %s25 = sphi 0, %s44
      %s26 = sphi 0, %s40
      %s27 = sphi 0, %s36
      %s28 = sphi 0, %s25
      %s29 = sphi 0, %s26
      %s30 = sphi 0, %s27
      %s31 = sphi 0, %s28
      %s32 = sphi 0, %s29
      %s33 = sphi 0, %s30
      %s51 = sphi 0, %s53
      %s54 = sphi 0, %s51
      %s55 = sphi 0, %s54
      %s71 = sphi 0, %s55
      %s77 = sphi 0, %s79
      %s80 = sphi 0, %s77
      %s81 = sphi 0, %s80
      %s97 = sphi 0, %s81
      %s101 = sphi 0, %s101
      %s103 = sphi 0, %s101
      %s104 = sphi 0, %s103
      %s118 = sphi 0, %s104
      %s126 = sphi 0, %s128
      %s129 = sphi 0, %s126
      %s130 = sphi 0, %s129
      %s146 = sphi 0, %s130
    $region4: #{_lambda_.8} parent=1 // loop_header_branch
      %21 = sbr.rel (%p19) target = $region8
    $region5: #{_lambda_.8} parent=1 // loop_body
      %s23 = ssub.s32 %s18, 1
      %s24 = ssub.s32 %s18, 2
      %s34 = sadd.s32 1, %s27
      %p35 = scmp.ge.s32.totalorder %s34, 3
      %s36 = scalar_select %p35, 0, %s34
      %s37 = sadd.s32 1, %s26
      %s38 = scalar_select %p35, %s37, %s26
      %p39 = scmp.ge.s32.totalorder %s38, 4
      %s40 = scalar_select %p39, 0, %s38
      %s41 = sadd.s32 1, %s25
      %s42 = scalar_select %p39, %s41, %s25
      %p43 = scmp.ge.s32.totalorder %s42, 2
      %s44 = scalar_select %p43, 0, %s42
      %s45 = sadd.s32 %s26, %s27
      %s46 = sadd.s32 %s40, %s36
      %s47 = ssub.s32 %s25, %s44
      %s48 = ssub.s32 %s45, %s46
      %s49 = sor.u32 %s47, %s48
      %p50 = scmp.eq.s32.totalorder %s49, 0
      %s52 = sadd.s32 %s51, 1
      %s53 = scalar_select %p50, %s51, %s52
      %p56 = pneg %p50
      %p57 = scmp.eq.s32.totalorder %s18, 23
      %p58 = por %p56, %p57
      %p59 = scmp.ne.s32.totalorder %s51, %s54
      %p60 = scmp.eq.s32.totalorder %s18, 0
      %p61 = por %p59, %p60
      %p62 = scmp.ne.s32.totalorder %s51, %s54
      %p63 = scmp.eq.s32.totalorder %s23, 23
      %p64 = por %p62, %p63
      %p65 = scmp.ne.s32.totalorder %s54, %s55
      %p66 = scmp.eq.s32.totalorder %s23, 0
      %p67 = por %p65, %p66
      %p68 = scmp.ne.s32.totalorder %s54, %s55
      %p69 = scmp.eq.s32.totalorder %s24, 23
      %p70 = por %p68, %p69
      %p72 = scmp.ne.s32.totalorder %s55, %s71
      %p73 = scmp.eq.s32.totalorder %s24, 0
      %p74 = por %p72, %p73
      %s75 = ssub.s32 %s27, %s36
      %p76 = scmp.eq.s32.totalorder %s75, 0
      %s78 = sadd.s32 %s77, 1
      %s79 = scalar_select %p76, %s77, %s78
      %p82 = pneg %p76
      %p83 = scmp.eq.s32.totalorder %s18, 23
      %p84 = por %p82, %p83
      %p85 = scmp.ne.s32.totalorder %s77, %s80
      %p86 = scmp.eq.s32.totalorder %s18, 0
      %p87 = por %p85, %p86
      %p88 = scmp.ne.s32.totalorder %s77, %s80
      %p89 = scmp.eq.s32.totalorder %s23, 23
      %p90 = por %p88, %p89
      %p91 = scmp.ne.s32.totalorder %s80, %s81
      %p92 = scmp.eq.s32.totalorder %s23, 0
      %p93 = por %p91, %p92
      %p94 = scmp.ne.s32.totalorder %s80, %s81
      %p95 = scmp.eq.s32.totalorder %s24, 23
      %p96 = por %p94, %p95
      %p98 = scmp.ne.s32.totalorder %s81, %s97
      %p99 = scmp.eq.s32.totalorder %s24, 0
      %p100 = por %p98, %p99
      %s102 = sadd.s32 %s101, 1
      %p105 = scmp.eq.s32.totalorder %s18, 23
      %p106 = scmp.ne.s32.totalorder %s101, %s103
      %p107 = scmp.eq.s32.totalorder %s18, 0
      %p108 = por %p106, %p107
      %p109 = scmp.ne.s32.totalorder %s101, %s103
      %p110 = scmp.eq.s32.totalorder %s23, 23
      %p111 = por %p109, %p110
      %p112 = scmp.ne.s32.totalorder %s103, %s104
      %p113 = scmp.eq.s32.totalorder %s23, 0
      %p114 = por %p112, %p113
      %p115 = scmp.ne.s32.totalorder %s103, %s104
      %p116 = scmp.eq.s32.totalorder %s24, 23
      %p117 = por %p115, %p116
      %p119 = scmp.ne.s32.totalorder %s104, %s118
      %p120 = scmp.eq.s32.totalorder %s24, 0
      %p121 = por %p119, %p120
      %s122 = ssub.s32 %s25, %s44
      %s123 = ssub.s32 %s26, %s40
      %s124 = sor.u32 %s122, %s123
      %p125 = scmp.eq.s32.totalorder %s124, 0
      %s127 = sadd.s32 %s126, 1
      %s128 = scalar_select %p125, %s126, %s127
      %p131 = pneg %p125
      %p132 = scmp.eq.s32.totalorder %s18, 23
      %p133 = por %p131, %p132
      %p134 = scmp.ne.s32.totalorder %s126, %s129
      %p135 = scmp.eq.s32.totalorder %s18, 0
      %p136 = por %p134, %p135
      %p137 = scmp.ne.s32.totalorder %s126, %s129
      %p138 = scmp.eq.s32.totalorder %s23, 23
      %p139 = por %p137, %p138
      %p140 = scmp.ne.s32.totalorder %s129, %s130
      %p141 = scmp.eq.s32.totalorder %s23, 0
      %p142 = por %p140, %p141
      %p143 = scmp.ne.s32.totalorder %s129, %s130
      %p144 = scmp.eq.s32.totalorder %s24, 23
      %p145 = por %p143, %p144
      %p147 = scmp.ne.s32.totalorder %s130, %s146
      %p148 = scmp.eq.s32.totalorder %s24, 0
      %p149 = por %p147, %p148
      %p150 = scmp.le.s32.totalorder 1, %s18
      %p151 = scmp.lt.s32.totalorder %s18, 25
      %p152 = pnand %p150, %p151
      %p153 = pneg %p152
      // Predicated region
      $region9: #{_lambda_.8} parent=5 // pred_check
        _
      $region10: #{_lambda_.8} parent=5 // pred_check_branch
        %155 = sbr.rel (%p152) target = $region12
      $region11: #{_lambda_.8} parent=5 // pred_region
        %s156 = ssub.s32 %s18, 1
        // Predicated region
        $region13: #{_lambda_.8} parent=11 // pred_check
          %p157 = pneg %p114
        $region14: #{_lambda_.8} parent=11 // pred_check_branch
          %159 = sbr.rel (%p157) target = $region16
        $region15: #{_lambda_.8} parent=11 // pred_region
          %s161 = ssub.s32 16, 16
          %162 = vsyncadd [#allocation7], %s161
          %s164 = sshll.u32 [#allocation8], 4
          %s165 = int_to_ptr.vmem [resolvable:$true] %s164
          %167 = dma.hbm_to_vmem [thread:$0]  %s2, 16, %s165, [#allocation7]
        $region16: #{_lambda_.8} parent=11 // pred_fallthru
          _
      $region12: #{_lambda_.8} parent=5 // pred_fallthru
        _
      %p168 = scmp.lt.s32.totalorder %s18, 24
      // Predicated region
      $region17: #{_lambda_.8} parent=5 // pred_check
        %p169 = pneg %p168
      $region18: #{_lambda_.8} parent=5 // pred_check_branch
        %171 = sbr.rel (%p169) target = $region20
      $region19: #{_lambda_.8} parent=5 // pred_region
        // Predicated region
        $region21: #{_lambda_.8} parent=19 // pred_check
          %p172 = pneg %p61
        $region22: #{_lambda_.8} parent=19 // pred_check_branch
          %174 = sbr.rel (%p172) target = $region24
        $region23: #{_lambda_.8} parent=19 // pred_region
          %s175 = sand.u32 %s51, 1
          %s176 = scalar_lea.sflag [#allocation4], %s175
          %s177 = sand.u32 %s51, 1
          %s178 = smul.addr %s177, 52
          %s179 = scalar_lea.vmem [#allocation3], %s178
          %s180 = sadd.s32 %s26, %s27
          %s182 = ssub.s32 832, 832
          %183 = vsyncadd %s176, %s182
          %s184 = smul.addr %s180, 13
          %s185 = smul.addr %s25, 78
          %s186 = sadd.s32 %s184, %s185
          %s187 = smul.addr %s186, 64
          %s188 = scalar_lea.hbm %s0, %s187
          %s189 = sshll.u32 %s179, 4
          %s190 = int_to_ptr.vmem [resolvable:$true] %s189
          %195 = dma.hbm_to_vmem [thread:$0]  %s188, 832, %s190, %s176, 64, 64, 4
        $region24: #{_lambda_.8} parent=19 // pred_fallthru
          _
        // Predicated region
        $region25: #{_lambda_.8} parent=19 // pred_check
          %p196 = pneg %p87
        $region26: #{_lambda_.8} parent=19 // pred_check_branch
          %198 = sbr.rel (%p196) target = $region28
        $region27: #{_lambda_.8} parent=19 // pred_region
          %s199 = sand.u32 %s18, 1
          %s200 = scalar_lea.sflag [#allocation7], %s199
          %s201 = sand.u32 %s77, 1
          %s202 = smul.addr %s201, 16
          %s203 = scalar_lea.vmem [#allocation6], %s202
          %s205 = ssub.s32 256, 256
          %206 = vsyncadd %s200, %s205
          %s207 = smul.addr %s27, 4
          %s208 = smul.addr %s207, 64
          %s209 = scalar_lea.hbm %s1, %s208
          %s210 = sshll.u32 %s203, 4
          %s211 = int_to_ptr.vmem [resolvable:$true] %s210
          %216 = dma.hbm_to_vmem [thread:$0]  %s209, 256, %s211, %s200, 64, 64, 4
        $region28: #{_lambda_.8} parent=19 // pred_fallthru
          _
      $region20: #{_lambda_.8} parent=5 // pred_fallthru
        _
      %p217 = scmp.le.s32.totalorder 1, %s18
      %p218 = scmp.lt.s32.totalorder %s18, 25
      %p219 = pnand %p217, %p218
      %p220 = pneg %p219
      // Predicated region
      $region29: #{_lambda_.8} parent=5 // pred_check
        _
      $region30: #{_lambda_.8} parent=5 // pred_check_branch
        %222 = sbr.rel (%p219) target = $region32
      $region31: #{_lambda_.8} parent=5 // pred_region
        %s223 = ssub.s32 %s18, 1
        %s224 = sand.u32 %s54, 1
        %s225 = scalar_lea.sflag [#allocation4], %s224
        %s226 = sand.u32 %s54, 1
        %s227 = smul.addr %s226, 52
        %s228 = scalar_lea.vmem [#allocation3], %s227
        // Predicated region
        $region33: #{_lambda_.8} parent=31 // pred_check
          %p229 = pneg %p67
        $region34: #{_lambda_.8} parent=31 // pred_check_branch
          %231 = sbr.rel (%p229) target = $region36
        $region35: #{_lambda_.8} parent=31 // pred_region
          %232 = dma.done %s225, 832
        $region36: #{_lambda_.8} parent=31 // pred_fallthru
          _
        %s233 = sand.u32 %s23, 1
        %s234 = scalar_lea.sflag [#allocation7], %s233
        %s235 = sand.u32 %s80, 1
        %s236 = smul.addr %s235, 16
        %s237 = scalar_lea.vmem [#allocation6], %s236
        // Predicated region
        $region37: #{_lambda_.8} parent=31 // pred_check
          %p238 = pneg %p93
        $region38: #{_lambda_.8} parent=31 // pred_check_branch
          %240 = sbr.rel (%p238) target = $region40
        $region39: #{_lambda_.8} parent=31 // pred_region
          %241 = dma.done %s234, 256
        $region40: #{_lambda_.8} parent=31 // pred_fallthru
          _
        // Predicated region
        $region41: #{_lambda_.8} parent=31 // pred_check
          %p242 = pneg %p114
        $region42: #{_lambda_.8} parent=31 // pred_check_branch
          %244 = sbr.rel (%p242) target = $region44
        $region43: #{_lambda_.8} parent=31 // pred_region
          %245 = dma.done [#allocation7], 16
        $region44: #{_lambda_.8} parent=31 // pred_fallthru
          _
        %s246 = sand.u32 %s54, 1
        %s247 = scalar_lea.sflag [#allocation4], %s246
        %s248 = sand.u32 %s54, 1
        %s249 = smul.addr %s248, 52
        %s250 = scalar_lea.vmem [#allocation3], %s249
        %p251 = pneg %p67
        %p252 = pneg %p64
        %s253 = sand.u32 %s23, 1
        %s254 = scalar_lea.sflag [#allocation7], %s253
        %s255 = sand.u32 %s80, 1
        %s256 = smul.addr %s255, 16
        %s257 = scalar_lea.vmem [#allocation6], %s256
        %p258 = pneg %p93
        %p259 = pneg %p90
        %p260 = pneg %p114
        %p261 = pneg %p111
        %p262 = pneg %p142
        %p263 = pneg %p139
        %s264 = sand.u32 %s129, 1
        %s265 = scalar_lea.sflag [#allocation5], %s264
        %s266 = sand.u32 %s129, 1
        %s267 = smul.addr %s266, 80
        %s268 = scalar_lea.vmem [#allocation9], %s267
        %s269 = sadd.s32 %s29, %s30
        %p271 = scmp.eq.s32.totalorder %s30, 0
        // Predicated region
        $region45: #{_lambda_.8} parent=31 // pred_check
          %p272 = pneg %p271
        $region46: #{_lambda_.8} parent=31 // pred_check_branch
          %274 = sbr.rel (%p272) target = $region48
        $region47: #{_lambda_.8} parent=31 // pred_region
          %275 = vst [vmem:[#allocation2] sm:$0xff] 0.0
          %276 = vst [vmem:[#allocation2 + $0x8] sm:$0xff] 0.0
          %277 = vst [vmem:[#allocation2 + $0x10] sm:$0xff] 0.0
          %278 = vst [vmem:[#allocation2 + $0x18] sm:$0xff] 0.0
          %279 = vst [vmem:[#allocation2 + $0x20] sm:$0xff] 0.0
          %280 = vst [vmem:[#allocation2 + $0x28] sm:$0xff] 0.0
          %281 = vst [vmem:[#allocation2 + $0x30] sm:$0xff] 0.0
          %282 = vst [vmem:[#allocation2 + $0x38] sm:$0xff] 0.0
          %283 = vst [vmem:[#allocation2 + $0x40] sm:$0xff] 0.0
          %284 = vst [vmem:[#allocation2 + $0x48] sm:$0x3f] 0.0
        $region48: #{_lambda_.8} parent=31 // pred_fallthru
          _
        %v285 = vld [vmem:[%s228] sm:$0xf]
        %v286 = vld [vmem:[%s228 + $0x4] sm:$0xf]
        %v287 = vld [vmem:[%s228 + $0x8] sm:$0xf]
        %v288 = vld [vmem:[%s228 + $0xc] sm:$0xf]
        %v289 = vld [vmem:[%s228 + $0x10] sm:$0xf]
        %v290 = vld [vmem:[%s228 + $0x14] sm:$0xf]
        %v291 = vld [vmem:[%s228 + $0x18] sm:$0xf]
        %v292 = vld [vmem:[%s228 + $0x1c] sm:$0xf]
        %v293 = vld [vmem:[%s228 + $0x20] sm:$0xf]
        %v294 = vld [vmem:[%s228 + $0x24] sm:$0x7]
        %v295 = vld [vmem:[%s237] sm:$0x3]
        %v296 = vld [vmem:[#allocation2] sm:$0xff]
        %v297 = vld [vmem:[#allocation2 + $0x8] sm:$0xff]
        %v298 = vld [vmem:[#allocation2 + $0x10] sm:$0xff]
        %v299 = vld [vmem:[#allocation2 + $0x18] sm:$0xff]
        %v300 = vld [vmem:[#allocation2 + $0x20] sm:$0xff]
        %v301 = vld [vmem:[#allocation2 + $0x28] sm:$0xff]
        %v302 = vld [vmem:[#allocation2 + $0x30] sm:$0xff]
        %v303 = vld [vmem:[#allocation2 + $0x38] sm:$0xff]
        %v304 = vld [vmem:[#allocation2 + $0x40] sm:$0xff]
        %v305 = vld [vmem:[#allocation2 + $0x48] sm:$0x3f]
        %v316 = vunpack.c.l.b16 %v285
        %v317 = vunpack.c.l.b16 %v286
        %v318 = vunpack.c.l.b16 %v287
        %v319 = vunpack.c.l.b16 %v288
        %v320 = vunpack.c.l.b16 %v289
        %v321 = vunpack.c.l.b16 %v290
        %v322 = vunpack.c.l.b16 %v291
        %v323 = vunpack.c.l.b16 %v292
        %v324 = vunpack.c.l.b16 %v293
        %v325 = vunpack.c.l.b16 %v294
        %v326 = vpack.c.b16 %v317, %v316
        %v327 = vpack.c.b16 %v319, %v318
        %v328 = vpack.c.b16 %v321, %v320
        %v329 = vpack.c.b16 %v323, %v322
        %v330 = vpack.c.b16 %v325, %v324
        %vm331 = vcmask 23552
        %v333 = vsel %vm331, %v326, 0
        %v336 = vsel %vm331, %v327, 0
        %v339 = vsel %vm331, %v328, 0
        %v342 = vsel %vm331, %v329, 0
        %v345 = vsel %vm331, %v330, 0
        %vm347 = vcmask 1040384
        %vm348 = vcmask 1041408
        %v349 = vsel %vm347, 4294967295, 65535
        %v350 = vsel %vm348, %v349, 0
        %v352 = vand.u32 %v295, %v350
        %354 = vmatprep.subr.bf16.mxu0 0
        %355 = vmatpush1.bf16.msra.mxu0 %v352
        %356 = vmatprep.subr.bf16.mxu0 0
        %357 = vmatpush1.bf16.msra.mxu0 0
        %358 = vmatprep.subr.bf16.mxu0 0
        %359 = vmatpush1.bf16.msra.mxu0 0
        %360 = vmatprep.subr.bf16.mxu0 0
        %361 = vmatpush1.bf16.msra.mxu0 0
        %362 = vmatprep.subr.bf16.mxu0 0
        %363 = vmatpush1.bf16.msra.mxu0 0
        %364 = vmatprep.subr.bf16.mxu0 0
        %365 = vmatpush1.bf16.msra.mxu0 0
        %366 = vmatprep.subr.bf16.mxu0 0
        %367 = vmatpush1.bf16.msra.mxu0 0
        %368 = vmatprep.subr.bf16.mxu0 0
        %369 = vmatpush1.bf16.msra.mxu0 0
        %370 = vmatprep.subr.bf16.mxu0 0
        %371 = vmatpush1.bf16.msra.mxu0 0
        %372 = vmatprep.subr.bf16.mxu0 0
        %373 = vmatpush1.bf16.msra.mxu0 0
        %374 = vmatprep.subr.bf16.mxu0 0
        %375 = vmatpush1.bf16.msra.mxu0 0
        %376 = vmatprep.subr.bf16.mxu0 0
        %377 = vmatpush1.bf16.msra.mxu0 0
        %378 = vmatprep.subr.bf16.mxu0 0
        %379 = vmatpush1.bf16.msra.mxu0 0
        %380 = vmatprep.subr.bf16.mxu0 0
        %381 = vmatpush1.bf16.msra.mxu0 0
        %382 = vmatprep.subr.bf16.mxu0 0
        %383 = vmatpush1.bf16.msra.mxu0 0
        %384 = vmatprep.subr.bf16.mxu0 0
        %385 = vmatpush1.bf16.msra.mxu0 0
        %386 = vmatprep.mubr.bf16.mxu0 0
        %387 = vmatmul.mubr.bf16.gmra.mrb[0].mxu0 %v333
        %v388 = vpop.f32.mrb[0].mxu0
        %v389 = vadd.f32 0.0, %v388
        %v390 = vpop.f32.mrb[0].mxu0
        %v391 = vpop.f32.mrb[0].mxu0
        %v392 = vadd.f32 0.0, %v391
        %v393 = vpop.f32.mrb[0].mxu0
        %394 = vmatprep.mubr.bf16.mxu0 0
        %395 = vmatmul.mubr.bf16.gmra.mrb[0].mxu0 %v336
        %v396 = vpop.f32.mrb[0].mxu0
        %v397 = vadd.f32 0.0, %v396
        %v398 = vpop.f32.mrb[0].mxu0
        %v399 = vpop.f32.mrb[0].mxu0
        %v400 = vadd.f32 0.0, %v399
        %v401 = vpop.f32.mrb[0].mxu0
        %402 = vmatprep.mubr.bf16.mxu0 0
        %403 = vmatmul.mubr.bf16.gmra.mrb[0].mxu0 %v339
        %v404 = vpop.f32.mrb[0].mxu0
        %v405 = vadd.f32 0.0, %v404
        %v406 = vpop.f32.mrb[0].mxu0
        %v407 = vpop.f32.mrb[0].mxu0
        %v408 = vadd.f32 0.0, %v407
        %v409 = vpop.f32.mrb[0].mxu0
        %410 = vmatprep.mubr.bf16.mxu0 0
        %411 = vmatmul.mubr.bf16.gmra.mrb[0].mxu0 %v342
        %v412 = vpop.f32.mrb[0].mxu0
        %v413 = vadd.f32 0.0, %v412
        %v414 = vpop.f32.mrb[0].mxu0
        %v415 = vpop.f32.mrb[0].mxu0
        %v416 = vadd.f32 0.0, %v415
        %v417 = vpop.f32.mrb[0].mxu0
        %418 = vmatprep.mubr.bf16.mxu0 0
        %419 = vmatmul.mubr.bf16.gmra.mrb[0].mxu0 %v345
        %v420 = vpop.f32.mrb[0].mxu0
        %v421 = vadd.f32 0.0, %v420
        %v422 = vpop.f32.mrb[0].mxu0
        %v423 = vpop.f32.mrb[0].mxu0
        %v424 = vadd.f32 0.0, %v423
        %v425 = vpop.f32.mrb[0].mxu0
        %426 = vdwg.mxu0
        %v427 = vadd.f32 %v296, %v389
        %v428 = vadd.f32 %v297, %v392
        %v429 = vadd.f32 %v298, %v397
        %v430 = vadd.f32 %v299, %v400
        %v431 = vadd.f32 %v300, %v405
        %v432 = vadd.f32 %v301, %v408
        %v433 = vadd.f32 %v302, %v413
        %v434 = vadd.f32 %v303, %v416
        %v435 = vadd.f32 %v304, %v421
        %v436 = vadd.f32 %v305, %v424
        %437 = vst [vmem:[#allocation2] sm:$0xff] %v427
        %438 = vst [vmem:[#allocation2 + $0x8] sm:$0xff] %v428
        %439 = vst [vmem:[#allocation2 + $0x10] sm:$0xff] %v429
        %440 = vst [vmem:[#allocation2 + $0x18] sm:$0xff] %v430
        %441 = vst [vmem:[#allocation2 + $0x20] sm:$0xff] %v431
        %442 = vst [vmem:[#allocation2 + $0x28] sm:$0xff] %v432
        %443 = vst [vmem:[#allocation2 + $0x30] sm:$0xff] %v433
        %444 = vst [vmem:[#allocation2 + $0x38] sm:$0xff] %v434
        %445 = vst [vmem:[#allocation2 + $0x40] sm:$0xff] %v435
        %446 = vst [vmem:[#allocation2 + $0x48] sm:$0x3f] %v436
        %v447 = vld [vmem:[%s228] sm:$0xf]
        %v448 = vld [vmem:[%s228 + $0x4] sm:$0xf]
        %v449 = vld [vmem:[%s228 + $0x8] sm:$0xf]
        %v450 = vld [vmem:[%s228 + $0xc] sm:$0xf]
        %v451 = vld [vmem:[%s228 + $0x10] sm:$0xf]
        %v452 = vld [vmem:[%s228 + $0x14] sm:$0xf]
        %v453 = vld [vmem:[%s228 + $0x18] sm:$0xf]
        %v454 = vld [vmem:[%s228 + $0x1c] sm:$0xf]
        %v455 = vld [vmem:[%s228 + $0x20] sm:$0xf]
        %v456 = vld [vmem:[%s228 + $0x24] sm:$0xf]
        %v457 = vld [vmem:[%s237] sm:$0x6]
        %v458 = vld [vmem:[#allocation2] sm:$0xff]
        %v459 = vld [vmem:[#allocation2 + $0x8] sm:$0xff]
        %v460 = vld [vmem:[#allocation2 + $0x10] sm:$0xff]
        %v461 = vld [vmem:[#allocation2 + $0x18] sm:$0xff]
        %v462 = vld [vmem:[#allocation2 + $0x20] sm:$0xff]
        %v463 = vld [vmem:[#allocation2 + $0x28] sm:$0xff]
        %v464 = vld [vmem:[#allocation2 + $0x30] sm:$0xff]
        %v465 = vld [vmem:[#allocation2 + $0x38] sm:$0xff]
        %v466 = vld [vmem:[#allocation2 + $0x40] sm:$0xff]
        %v467 = vld [vmem:[#allocation2 + $0x48] sm:$0x3f]
        %v478 = vunpack.c.l.b16 %v447
        %v479 = vunpack.c.l.b16 %v448
        %v480 = vunpack.c.l.b16 %v449
        %v481 = vunpack.c.l.b16 %v450
        %v482 = vunpack.c.l.b16 %v451
        %v483 = vunpack.c.l.b16 %v452
        %v484 = vunpack.c.l.b16 %v453
        %v485 = vunpack.c.l.b16 %v454
        %v486 = vunpack.c.l.b16 %v455
        %v487 = vunpack.c.l.b16 %v456
        %v488 = vpack.c.b16 %v479, %v478
        %v489 = vpack.c.b16 %v481, %v480
        %v490 = vpack.c.b16 %v483, %v482
        %v491 = vpack.c.b16 %v485, %v484
        %v492 = vpack.c.b16 %v487, %v486
        %vm493 = vsmask.f32 7424
        %v495 = vshrl.u32 %v488, 16
        %v497 = vshll.u32 %v488, 16
        %v499 = vrot.slane %v497, 1
        %v500 = vor.u32 %v495, %v499
        %v502 = vshll.u32 %v489, 16
        %v504 = vrot.slane %v502, 1
        %v505 = vsel %vm493, %v500, %v504
        %v506 = vshrl.u32 %v489, 16
        %v508 = vor.u32 %v506, %v504
        %v510 = vshll.u32 %v490, 16
        %v512 = vrot.slane %v510, 1
        %v513 = vsel %vm493, %v508, %v512
        %v514 = vshrl.u32 %v490, 16
        %v516 = vor.u32 %v514, %v512
        %v518 = vshll.u32 %v491, 16
        %v520 = vrot.slane %v518, 1
        %v521 = vsel %vm493, %v516, %v520
        %v522 = vshrl.u32 %v491, 16
        %v524 = vor.u32 %v522, %v520
        %v526 = vshll.u32 %v492, 16
        %v528 = vrot.slane %v526, 1
        %v529 = vsel %vm493, %v524, %v528
        %v530 = vshrl.u32 %v492, 16
        %v532 = vor.u32 %v530, %v528
        %v534 = vunpack.c.l.b16 %v457
        %v535 = vpack.c.b16 %v534, %v534
        %v537 = vshrl.u32 %v535, 16
        %v539 = vrot.slane %v537, 1
        %v540 = vshll.u32 %v535, 16
        %v542 = vrot.slane %v540, 2
        %v543 = vor.u32 %v539, %v542
        %v545 = vsel %vm331, %v505, 0
        %v548 = vsel %vm331, %v513, 0
        %v551 = vsel %vm331, %v521, 0
        %v554 = vsel %vm331, %v529, 0
        %v557 = vsel %vm331, %v532, 0
        %v560 = vand.u32 %v543, %v350
        %562 = vmatprep.subr.bf16.mxu0 0
        %563 = vmatpush1.bf16.msra.mxu0 %v560
        %564 = vmatprep.subr.bf16.mxu0 0
        %565 = vmatpush1.bf16.msra.mxu0 0
        %566 = vmatprep.subr.bf16.mxu0 0
        %567 = vmatpush1.bf16.msra.mxu0 0
        %568 = vmatprep.subr.bf16.mxu0 0
        %569 = vmatpush1.bf16.msra.mxu0 0
        %570 = vmatprep.subr.bf16.mxu0 0
        %571 = vmatpush1.bf16.msra.mxu0 0
        %572 = vmatprep.subr.bf16.mxu0 0
        %573 = vmatpush1.bf16.msra.mxu0 0
        %574 = vmatprep.subr.bf16.mxu0 0
        %575 = vmatpush1.bf16.msra.mxu0 0
        %576 = vmatprep.subr.bf16.mxu0 0
        %577 = vmatpush1.bf16.msra.mxu0 0
        %578 = vmatprep.subr.bf16.mxu0 0
        %579 = vmatpush1.bf16.msra.mxu0 0
        %580 = vmatprep.subr.bf16.mxu0 0
        %581 = vmatpush1.bf16.msra.mxu0 0
        %582 = vmatprep.subr.bf16.mxu0 0
        %583 = vmatpush1.bf16.msra.mxu0 0
        %584 = vmatprep.subr.bf16.mxu0 0
        %585 = vmatpush1.bf16.msra.mxu0 0
        %586 = vmatprep.subr.bf16.mxu0 0
        %587 = vmatpush1.bf16.msra.mxu0 0
        %588 = vmatprep.subr.bf16.mxu0 0
        %589 = vmatpush1.bf16.msra.mxu0 0
        %590 = vmatprep.subr.bf16.mxu0 0
        %591 = vmatpush1.bf16.msra.mxu0 0
        %592 = vmatprep.subr.bf16.mxu0 0
        %593 = vmatpush1.bf16.msra.mxu0 0
        %594 = vmatprep.mubr.bf16.mxu0 0
        %595 = vmatmul.mubr.bf16.gmra.mrb[0].mxu0 %v545
        %v596 = vpop.f32.mrb[0].mxu0
        %v597 = vadd.f32 0.0, %v596
        %v598 = vpop.f32.mrb[0].mxu0
        %v599 = vpop.f32.mrb[0].mxu0
        %v600 = vadd.f32 0.0, %v599
        %v601 = vpop.f32.mrb[0].mxu0
        %602 = vmatprep.mubr.bf16.mxu0 0
        %603 = vmatmul.mubr.bf16.gmra.mrb[0].mxu0 %v548
        %v604 = vpop.f32.mrb[0].mxu0
        %v605 = vadd.f32 0.0, %v604
        %v606 = vpop.f32.mrb[0].mxu0
        %v607 = vpop.f32.mrb[0].mxu0
        %v608 = vadd.f32 0.0, %v607
        %v609 = vpop.f32.mrb[0].mxu0
        %610 = vmatprep.mubr.bf16.mxu0 0
        %611 = vmatmul.mubr.bf16.gmra.mrb[0].mxu0 %v551
        %v612 = vpop.f32.mrb[0].mxu0
        %v613 = vadd.f32 0.0, %v612
        %v614 = vpop.f32.mrb[0].mxu0
        %v615 = vpop.f32.mrb[0].mxu0
        %v616 = vadd.f32 0.0, %v615
        %v617 = vpop.f32.mrb[0].mxu0
        %618 = vmatprep.mubr.bf16.mxu0 0
        %619 = vmatmul.mubr.bf16.gmra.mrb[0].mxu0 %v554
        %v620 = vpop.f32.mrb[0].mxu0
        %v621 = vadd.f32 0.0, %v620
        %v622 = vpop.f32.mrb[0].mxu0
        %v623 = vpop.f32.mrb[0].mxu0
        %v624 = vadd.f32 0.0, %v623
        %v625 = vpop.f32.mrb[0].mxu0
        %626 = vmatprep.mubr.bf16.mxu0 0
        %627 = vmatmul.mubr.bf16.gmra.mrb[0].mxu0 %v557
        %v628 = vpop.f32.mrb[0].mxu0
        %v629 = vadd.f32 0.0, %v628
        %v630 = vpop.f32.mrb[0].mxu0
        %v631 = vpop.f32.mrb[0].mxu0
        %v632 = vadd.f32 0.0, %v631
        %v633 = vpop.f32.mrb[0].mxu0
        %634 = vdwg.mxu0
        %v635 = vadd.f32 %v458, %v597
        %v636 = vadd.f32 %v459, %v600
        %v637 = vadd.f32 %v460, %v605
        %v638 = vadd.f32 %v461, %v608
        %v639 = vadd.f32 %v462, %v613
        %v640 = vadd.f32 %v463, %v616
        %v641 = vadd.f32 %v464, %v621
        %v642 = vadd.f32 %v465, %v624
        %v643 = vadd.f32 %v466, %v629
        %v644 = vadd.f32 %v467, %v632
        %645 = vst [vmem:[#allocation2] sm:$0xff] %v635
        %646 = vst [vmem:[#allocation2 + $0x8] sm:$0xff] %v636
        %647 = vst [vmem:[#allocation2 + $0x10] sm:$0xff] %v637
        %648 = vst [vmem:[#allocation2 + $0x18] sm:$0xff] %v638
        %649 = vst [vmem:[#allocation2 + $0x20] sm:$0xff] %v639
        %650 = vst [vmem:[#allocation2 + $0x28] sm:$0xff] %v640
        %651 = vst [vmem:[#allocation2 + $0x30] sm:$0xff] %v641
        %652 = vst [vmem:[#allocation2 + $0x38] sm:$0xff] %v642
        %653 = vst [vmem:[#allocation2 + $0x40] sm:$0xff] %v643
        %654 = vst [vmem:[#allocation2 + $0x48] sm:$0x3f] %v644
        %v655 = vld [vmem:[%s228] sm:$0xe]
        %v656 = vld [vmem:[%s228 + $0x4] sm:$0xf]
        %v657 = vld [vmem:[%s228 + $0x8] sm:$0xf]
        %v658 = vld [vmem:[%s228 + $0xc] sm:$0xf]
        %v659 = vld [vmem:[%s228 + $0x10] sm:$0xf]
        %v660 = vld [vmem:[%s228 + $0x14] sm:$0xf]
        %v661 = vld [vmem:[%s228 + $0x18] sm:$0xf]
        %v662 = vld [vmem:[%s228 + $0x1c] sm:$0xf]
        %v663 = vld [vmem:[%s228 + $0x20] sm:$0xf]
        %v664 = vld [vmem:[%s228 + $0x24] sm:$0xf]
        %v665 = vld [vmem:[%s237] sm:$0x8]
        %v666 = vld [vmem:[%s237 + $0x4] sm:$0x1]
        %v667 = vld [vmem:[#allocation2] sm:$0xff]
        %v668 = vld [vmem:[#allocation2 + $0x8] sm:$0xff]
        %v669 = vld [vmem:[#allocation2 + $0x10] sm:$0xff]
        %v670 = vld [vmem:[#allocation2 + $0x18] sm:$0xff]
        %v671 = vld [vmem:[#allocation2 + $0x20] sm:$0xff]
        %v672 = vld [vmem:[#allocation2 + $0x28] sm:$0xff]
        %v673 = vld [vmem:[#allocation2 + $0x30] sm:$0xff]
        %v674 = vld [vmem:[#allocation2 + $0x38] sm:$0xff]
        %v675 = vld [vmem:[#allocation2 + $0x40] sm:$0xff]
        %v676 = vld [vmem:[#allocation2 + $0x48] sm:$0x3f]
        %v687 = vunpack.c.l.b16 %v655
        %v688 = vunpack.c.l.b16 %v656
        %v689 = vunpack.c.l.b16 %v657
        %v690 = vunpack.c.l.b16 %v658
        %v691 = vunpack.c.l.b16 %v659
        %v692 = vunpack.c.l.b16 %v660
        %v693 = vunpack.c.l.b16 %v661
        %v694 = vunpack.c.l.b16 %v662
        %v695 = vunpack.c.l.b16 %v663
        %v696 = vunpack.c.l.b16 %v664
        %v697 = vpack.c.b16 %v688, %v687
        %v698 = vpack.c.b16 %v690, %v689
        %v699 = vpack.c.b16 %v692, %v691
        %v700 = vpack.c.b16 %v694, %v693
        %v701 = vpack.c.b16 %v696, %v695
        %vm702 = vcmask 1046528
        %v703 = vrot.slane %v697, 1
        %v704 = vrot.slane %v698, 1
        %v705 = vsel %vm702, %v703, %v704
        %v706 = vrot.slane %v699, 1
        %v707 = vsel %vm702, %v704, %v706
        %v708 = vrot.slane %v700, 1
        %v709 = vsel %vm702, %v706, %v708
        %v710 = vrot.slane %v701, 1
        %v711 = vsel %vm702, %v708, %v710
        %v714 = vunpack.c.l.b16 %v665
        %v715 = vunpack.c.l.b16 %v666
        %v716 = vpack.c.b16 %v715, %v714
        %v717 = vrot.slane %v716, 3
        %v719 = vsel %vm331, %v705, 0
        %v722 = vsel %vm331, %v707, 0
        %v725 = vsel %vm331, %v709, 0
        %v728 = vsel %vm331, %v711, 0
        %v731 = vsel %vm331, %v710, 0
        %v734 = vand.u32 %v717, %v350
        %736 = vmatprep.subr.bf16.mxu0 0
        %737 = vmatpush1.bf16.msra.mxu0 %v734
        %738 = vmatprep.subr.bf16.mxu0 0
        %739 = vmatpush1.bf16.msra.mxu0 0
        %740 = vmatprep.subr.bf16.mxu0 0
        %741 = vmatpush1.bf16.msra.mxu0 0
        %742 = vmatprep.subr.bf16.mxu0 0
        %743 = vmatpush1.bf16.msra.mxu0 0
        %744 = vmatprep.subr.bf16.mxu0 0
        %745 = vmatpush1.bf16.msra.mxu0 0
        %746 = vmatprep.subr.bf16.mxu0 0
        %747 = vmatpush1.bf16.msra.mxu0 0
        %748 = vmatprep.subr.bf16.mxu0 0
        %749 = vmatpush1.bf16.msra.mxu0 0
        %750 = vmatprep.subr.bf16.mxu0 0
        %751 = vmatpush1.bf16.msra.mxu0 0
        %752 = vmatprep.subr.bf16.mxu0 0
        %753 = vmatpush1.bf16.msra.mxu0 0
        %754 = vmatprep.subr.bf16.mxu0 0
        %755 = vmatpush1.bf16.msra.mxu0 0
        %756 = vmatprep.subr.bf16.mxu0 0
        %757 = vmatpush1.bf16.msra.mxu0 0
        %758 = vmatprep.subr.bf16.mxu0 0
        %759 = vmatpush1.bf16.msra.mxu0 0
        %760 = vmatprep.subr.bf16.mxu0 0
        %761 = vmatpush1.bf16.msra.mxu0 0
        %762 = vmatprep.subr.bf16.mxu0 0
        %763 = vmatpush1.bf16.msra.mxu0 0
        %764 = vmatprep.subr.bf16.mxu0 0
        %765 = vmatpush1.bf16.msra.mxu0 0
        %766 = vmatprep.subr.bf16.mxu0 0
        %767 = vmatpush1.bf16.msra.mxu0 0
        %768 = vmatprep.mubr.bf16.mxu0 0
        %769 = vmatmul.mubr.bf16.gmra.mrb[0].mxu0 %v719
        %v770 = vpop.f32.mrb[0].mxu0
        %v771 = vadd.f32 0.0, %v770
        %v772 = vpop.f32.mrb[0].mxu0
        %v773 = vpop.f32.mrb[0].mxu0
        %v774 = vadd.f32 0.0, %v773
        %v775 = vpop.f32.mrb[0].mxu0
        %776 = vmatprep.mubr.bf16.mxu0 0
        %777 = vmatmul.mubr.bf16.gmra.mrb[0].mxu0 %v722
        %v778 = vpop.f32.mrb[0].mxu0
        %v779 = vadd.f32 0.0, %v778
        %v780 = vpop.f32.mrb[0].mxu0
        %v781 = vpop.f32.mrb[0].mxu0
        %v782 = vadd.f32 0.0, %v781
        %v783 = vpop.f32.mrb[0].mxu0
        %784 = vmatprep.mubr.bf16.mxu0 0
        %785 = vmatmul.mubr.bf16.gmra.mrb[0].mxu0 %v725
        %v786 = vpop.f32.mrb[0].mxu0
        %v787 = vadd.f32 0.0, %v786
        %v788 = vpop.f32.mrb[0].mxu0
        %v789 = vpop.f32.mrb[0].mxu0
        %v790 = vadd.f32 0.0, %v789
        %v791 = vpop.f32.mrb[0].mxu0
        %792 = vmatprep.mubr.bf16.mxu0 0
        %793 = vmatmul.mubr.bf16.gmra.mrb[0].mxu0 %v728
        %v794 = vpop.f32.mrb[0].mxu0
        %v795 = vadd.f32 0.0, %v794
        %v796 = vpop.f32.mrb[0].mxu0
        %v797 = vpop.f32.mrb[0].mxu0
        %v798 = vadd.f32 0.0, %v797
        %v799 = vpop.f32.mrb[0].mxu0
        %800 = vmatprep.mubr.bf16.mxu0 0
        %801 = vmatmul.mubr.bf16.gmra.mrb[0].mxu0 %v731
        %v802 = vpop.f32.mrb[0].mxu0
        %v803 = vadd.f32 0.0, %v802
        %v804 = vpop.f32.mrb[0].mxu0
        %v805 = vpop.f32.mrb[0].mxu0
        %v806 = vadd.f32 0.0, %v805
        %v807 = vpop.f32.mrb[0].mxu0
        %808 = vdwg.mxu0
        %v809 = vadd.f32 %v667, %v771
        %v810 = vadd.f32 %v668, %v774
        %v811 = vadd.f32 %v669, %v779
        %v812 = vadd.f32 %v670, %v782
        %v813 = vadd.f32 %v671, %v787
        %v814 = vadd.f32 %v672, %v790
        %v815 = vadd.f32 %v673, %v795
        %v816 = vadd.f32 %v674, %v798
        %v817 = vadd.f32 %v675, %v803
        %v818 = vadd.f32 %v676, %v806
        %819 = vst [vmem:[#allocation2] sm:$0xff] %v809
        %820 = vst [vmem:[#allocation2 + $0x8] sm:$0xff] %v810
        %821 = vst [vmem:[#allocation2 + $0x10] sm:$0xff] %v811
        %822 = vst [vmem:[#allocation2 + $0x18] sm:$0xff] %v812
        %823 = vst [vmem:[#allocation2 + $0x20] sm:$0xff] %v813
        %824 = vst [vmem:[#allocation2 + $0x28] sm:$0xff] %v814
        %825 = vst [vmem:[#allocation2 + $0x30] sm:$0xff] %v815
        %826 = vst [vmem:[#allocation2 + $0x38] sm:$0xff] %v816
        %827 = vst [vmem:[#allocation2 + $0x40] sm:$0xff] %v817
        %828 = vst [vmem:[#allocation2 + $0x48] sm:$0x3f] %v818
        %v829 = vld [vmem:[%s228 + $0x4] sm:$0xe]
        %v830 = vld [vmem:[%s228 + $0x8] sm:$0xf]
        %v831 = vld [vmem:[%s228 + $0xc] sm:$0xf]
        %v832 = vld [vmem:[%s228 + $0x10] sm:$0xf]
        %v833 = vld [vmem:[%s228 + $0x14] sm:$0xf]
        %v834 = vld [vmem:[%s228 + $0x18] sm:$0xf]
        %v835 = vld [vmem:[%s228 + $0x1c] sm:$0xf]
        %v836 = vld [vmem:[%s228 + $0x20] sm:$0xf]
        %v837 = vld [vmem:[%s228 + $0x24] sm:$0xf]
        %v838 = vld [vmem:[%s228 + $0x28] sm:$0xf]
        %v839 = vld [vmem:[%s237 + $0x4] sm:$0x3]
        %v840 = vld [vmem:[#allocation2] sm:$0xff]
        %v841 = vld [vmem:[#allocation2 + $0x8] sm:$0xff]
        %v842 = vld [vmem:[#allocation2 + $0x10] sm:$0xff]
        %v843 = vld [vmem:[#allocation2 + $0x18] sm:$0xff]
        %v844 = vld [vmem:[#allocation2 + $0x20] sm:$0xff]
        %v845 = vld [vmem:[#allocation2 + $0x28] sm:$0xff]
        %v846 = vld [vmem:[#allocation2 + $0x30] sm:$0xff]
        %v847 = vld [vmem:[#allocation2 + $0x38] sm:$0xff]
        %v848 = vld [vmem:[#allocation2 + $0x40] sm:$0xff]
        %v849 = vld [vmem:[#allocation2 + $0x48] sm:$0x3f]
        %v860 = vunpack.c.l.b16 %v829
        %v861 = vunpack.c.l.b16 %v830
        %v862 = vunpack.c.l.b16 %v831
        %v863 = vunpack.c.l.b16 %v832
        %v864 = vunpack.c.l.b16 %v833
        %v865 = vunpack.c.l.b16 %v834
        %v866 = vunpack.c.l.b16 %v835
        %v867 = vunpack.c.l.b16 %v836
        %v868 = vunpack.c.l.b16 %v837
        %v869 = vunpack.c.l.b16 %v838
        %v870 = vpack.c.b16 %v861, %v860
        %v871 = vpack.c.b16 %v863, %v862
        %v872 = vpack.c.b16 %v865, %v864
        %v873 = vpack.c.b16 %v867, %v866
        %v874 = vpack.c.b16 %v869, %v868
        %v875 = vrot.slane %v870, 1
        %v876 = vrot.slane %v871, 1
        %v877 = vsel %vm702, %v875, %v876
        %v878 = vrot.slane %v872, 1
        %v879 = vsel %vm702, %v876, %v878
        %v880 = vrot.slane %v873, 1
        %v881 = vsel %vm702, %v878, %v880
        %v882 = vrot.slane %v874, 1
        %v883 = vsel %vm702, %v880, %v882
        %v885 = vunpack.c.l.b16 %v839
        %v886 = vpack.c.b16 %v885, %v885
        %v888 = vshrl.u32 %v886, 16
        %v890 = vshll.u32 %v886, 16
        %v892 = vrot.slane %v890, 1
        %v893 = vor.u32 %v888, %v892
        %v895 = vsel %vm331, %v877, 0
        %v898 = vsel %vm331, %v879, 0
        %v901 = vsel %vm331, %v881, 0
        %v904 = vsel %vm331, %v883, 0
        %v907 = vsel %vm331, %v882, 0
        %v910 = vand.u32 %v893, %v350
        %912 = vmatprep.subr.bf16.mxu0 0
        %913 = vmatpush1.bf16.msra.mxu0 %v910
        %914 = vmatprep.subr.bf16.mxu0 0
        %915 = vmatpush1.bf16.msra.mxu0 0
        %916 = vmatprep.subr.bf16.mxu0 0
        %917 = vmatpush1.bf16.msra.mxu0 0
        %918 = vmatprep.subr.bf16.mxu0 0
        %919 = vmatpush1.bf16.msra.mxu0 0
        %920 = vmatprep.subr.bf16.mxu0 0
        %921 = vmatpush1.bf16.msra.mxu0 0
        %922 = vmatprep.subr.bf16.mxu0 0
        %923 = vmatpush1.bf16.msra.mxu0 0
        %924 = vmatprep.subr.bf16.mxu0 0
        %925 = vmatpush1.bf16.msra.mxu0 0
        %926 = vmatprep.subr.bf16.mxu0 0
        %927 = vmatpush1.bf16.msra.mxu0 0
        %928 = vmatprep.subr.bf16.mxu0 0
        %929 = vmatpush1.bf16.msra.mxu0 0
        %930 = vmatprep.subr.bf16.mxu0 0
        %931 = vmatpush1.bf16.msra.mxu0 0
        %932 = vmatprep.subr.bf16.mxu0 0
        %933 = vmatpush1.bf16.msra.mxu0 0
        %934 = vmatprep.subr.bf16.mxu0 0
        %935 = vmatpush1.bf16.msra.mxu0 0
        %936 = vmatprep.subr.bf16.mxu0 0
        %937 = vmatpush1.bf16.msra.mxu0 0
        %938 = vmatprep.subr.bf16.mxu0 0
        %939 = vmatpush1.bf16.msra.mxu0 0
        %940 = vmatprep.subr.bf16.mxu0 0
        %941 = vmatpush1.bf16.msra.mxu0 0
        %942 = vmatprep.subr.bf16.mxu0 0
        %943 = vmatpush1.bf16.msra.mxu0 0
        %944 = vmatprep.mubr.bf16.mxu0 0
        %945 = vmatmul.mubr.bf16.gmra.mrb[0].mxu0 %v895
        %v946 = vpop.f32.mrb[0].mxu0
        %v947 = vadd.f32 0.0, %v946
        %v948 = vpop.f32.mrb[0].mxu0
        %v949 = vpop.f32.mrb[0].mxu0
        %v950 = vadd.f32 0.0, %v949
        %v951 = vpop.f32.mrb[0].mxu0
        %952 = vmatprep.mubr.bf16.mxu0 0
        %953 = vmatmul.mubr.bf16.gmra.mrb[0].mxu0 %v898
        %v954 = vpop.f32.mrb[0].mxu0
        %v955 = vadd.f32 0.0, %v954
        %v956 = vpop.f32.mrb[0].mxu0
        %v957 = vpop.f32.mrb[0].mxu0
        %v958 = vadd.f32 0.0, %v957
        %v959 = vpop.f32.mrb[0].mxu0
        %960 = vmatprep.mubr.bf16.mxu0 0
        %961 = vmatmul.mubr.bf16.gmra.mrb[0].mxu0 %v901
        %v962 = vpop.f32.mrb[0].mxu0
        %v963 = vadd.f32 0.0, %v962
        %v964 = vpop.f32.mrb[0].mxu0
        %v965 = vpop.f32.mrb[0].mxu0
        %v966 = vadd.f32 0.0, %v965
        %v967 = vpop.f32.mrb[0].mxu0
        %968 = vmatprep.mubr.bf16.mxu0 0
        %969 = vmatmul.mubr.bf16.gmra.mrb[0].mxu0 %v904
        %v970 = vpop.f32.mrb[0].mxu0
        %v971 = vadd.f32 0.0, %v970
        %v972 = vpop.f32.mrb[0].mxu0
        %v973 = vpop.f32.mrb[0].mxu0
        %v974 = vadd.f32 0.0, %v973
        %v975 = vpop.f32.mrb[0].mxu0
        %976 = vmatprep.mubr.bf16.mxu0 0
        %977 = vmatmul.mubr.bf16.gmra.mrb[0].mxu0 %v907
        %v978 = vpop.f32.mrb[0].mxu0
        %v979 = vadd.f32 0.0, %v978
        %v980 = vpop.f32.mrb[0].mxu0
        %v981 = vpop.f32.mrb[0].mxu0
        %v982 = vadd.f32 0.0, %v981
        %v983 = vpop.f32.mrb[0].mxu0
        %984 = vdwg.mxu0
        %v985 = vadd.f32 %v840, %v947
        %v986 = vadd.f32 %v841, %v950
        %v987 = vadd.f32 %v842, %v955
        %v988 = vadd.f32 %v843, %v958
        %v989 = vadd.f32 %v844, %v963
        %v990 = vadd.f32 %v845, %v966
        %v991 = vadd.f32 %v846, %v971
        %v992 = vadd.f32 %v847, %v974
        %v993 = vadd.f32 %v848, %v979
        %v994 = vadd.f32 %v849, %v982
        %995 = vst [vmem:[#allocation2] sm:$0xff] %v985
        %996 = vst [vmem:[#allocation2 + $0x8] sm:$0xff] %v986
        %997 = vst [vmem:[#allocation2 + $0x10] sm:$0xff] %v987
        %998 = vst [vmem:[#allocation2 + $0x18] sm:$0xff] %v988
        %999 = vst [vmem:[#allocation2 + $0x20] sm:$0xff] %v989
        %1000 = vst [vmem:[#allocation2 + $0x28] sm:$0xff] %v990
        %1001 = vst [vmem:[#allocation2 + $0x30] sm:$0xff] %v991
        %1002 = vst [vmem:[#allocation2 + $0x38] sm:$0xff] %v992
        %1003 = vst [vmem:[#allocation2 + $0x40] sm:$0xff] %v993
        %1004 = vst [vmem:[#allocation2 + $0x48] sm:$0x3f] %v994
        %v1005 = vld [vmem:[%s228 + $0x4] sm:$0xe]
        %v1006 = vld [vmem:[%s228 + $0x8] sm:$0xf]
        %v1007 = vld [vmem:[%s228 + $0xc] sm:$0xf]
        %v1008 = vld [vmem:[%s228 + $0x10] sm:$0xf]
        %v1009 = vld [vmem:[%s228 + $0x14] sm:$0xf]
        %v1010 = vld [vmem:[%s228 + $0x18] sm:$0xf]
        %v1011 = vld [vmem:[%s228 + $0x1c] sm:$0xf]
        %v1012 = vld [vmem:[%s228 + $0x20] sm:$0xf]
        %v1013 = vld [vmem:[%s228 + $0x24] sm:$0xf]
        %v1014 = vld [vmem:[%s228 + $0x28] sm:$0xf]
        %v1015 = vld [vmem:[%s228 + $0x2c] sm:$0x1]
        %v1016 = vld [vmem:[%s237 + $0x4] sm:$0xc]
        %v1017 = vld [vmem:[#allocation2] sm:$0xff]
        %v1018 = vld [vmem:[#allocation2 + $0x8] sm:$0xff]
        %v1019 = vld [vmem:[#allocation2 + $0x10] sm:$0xff]
        %v1020 = vld [vmem:[#allocation2 + $0x18] sm:$0xff]
        %v1021 = vld [vmem:[#allocation2 + $0x20] sm:$0xff]
        %v1022 = vld [vmem:[#allocation2 + $0x28] sm:$0xff]
        %v1023 = vld [vmem:[#allocation2 + $0x30] sm:$0xff]
        %v1024 = vld [vmem:[#allocation2 + $0x38] sm:$0xff]
        %v1025 = vld [vmem:[#allocation2 + $0x40] sm:$0xff]
        %v1026 = vld [vmem:[#allocation2 + $0x48] sm:$0x3f]
        %v1038 = vunpack.c.l.b16 %v1005
        %v1039 = vunpack.c.l.b16 %v1006
        %v1040 = vunpack.c.l.b16 %v1007
        %v1041 = vunpack.c.l.b16 %v1008
        %v1042 = vunpack.c.l.b16 %v1009
        %v1043 = vunpack.c.l.b16 %v1010
        %v1044 = vunpack.c.l.b16 %v1011
        %v1045 = vunpack.c.l.b16 %v1012
        %v1046 = vunpack.c.l.b16 %v1013
        %v1047 = vunpack.c.l.b16 %v1014
        %v1048 = vunpack.c.l.b16 %v1015
        %v1049 = vpack.c.b16 %v1039, %v1038
        %v1050 = vpack.c.b16 %v1041, %v1040
        %v1051 = vpack.c.b16 %v1043, %v1042
        %v1052 = vpack.c.b16 %v1045, %v1044
        %v1053 = vpack.c.b16 %v1047, %v1046
        %v1054 = vpack.c.b16 %v1048, %v1048
        %vm1055 = vsmask.f32 6400
        %v1057 = vshrl.u32 %v1049, 16
        %v1059 = vrot.slane %v1057, 1
        %v1060 = vshll.u32 %v1049, 16
        %v1062 = vrot.slane %v1060, 2
        %v1063 = vor.u32 %v1059, %v1062
        %v1065 = vshrl.u32 %v1050, 16
        %v1067 = vrot.slane %v1065, 1
        %v1068 = vshll.u32 %v1050, 16
        %v1070 = vrot.slane %v1068, 2
        %v1071 = vor.u32 %v1067, %v1070
        %v1072 = vsel %vm1055, %v1063, %v1071
        %v1074 = vshrl.u32 %v1051, 16
        %v1076 = vrot.slane %v1074, 1
        %v1077 = vshll.u32 %v1051, 16
        %v1079 = vrot.slane %v1077, 2
        %v1080 = vor.u32 %v1076, %v1079
        %v1081 = vsel %vm1055, %v1071, %v1080
        %v1083 = vshrl.u32 %v1052, 16
        %v1085 = vrot.slane %v1083, 1
        %v1086 = vshll.u32 %v1052, 16
        %v1088 = vrot.slane %v1086, 2
        %v1089 = vor.u32 %v1085, %v1088
        %v1090 = vsel %vm1055, %v1080, %v1089
        %v1092 = vshrl.u32 %v1053, 16
        %v1094 = vrot.slane %v1092, 1
        %v1095 = vshll.u32 %v1053, 16
        %v1097 = vrot.slane %v1095, 2
        %v1098 = vor.u32 %v1094, %v1097
        %v1099 = vsel %vm1055, %v1089, %v1098
        %v1101 = vshll.u32 %v1054, 16
        %v1103 = vrot.slane %v1101, 2
        %v1104 = vsel %vm1055, %v1098, %v1103
        %v1106 = vunpack.c.l.b16 %v1016
        %v1107 = vpack.c.b16 %v1106, %v1106
        %v1108 = vrot.slane %v1107, 2
        %v1110 = vsel %vm331, %v1072, 0
        %v1113 = vsel %vm331, %v1081, 0
        %v1116 = vsel %vm331, %v1090, 0
        %v1119 = vsel %vm331, %v1099, 0
        %v1122 = vsel %vm331, %v1104, 0
        %v1125 = vand.u32 %v1108, %v350
        %1127 = vmatprep.subr.bf16.mxu0 0
        %1128 = vmatpush1.bf16.msra.mxu0 %v1125
        %1129 = vmatprep.subr.bf16.mxu0 0
        %1130 = vmatpush1.bf16.msra.mxu0 0
        %1131 = vmatprep.subr.bf16.mxu0 0
        %1132 = vmatpush1.bf16.msra.mxu0 0
        %1133 = vmatprep.subr.bf16.mxu0 0
        %1134 = vmatpush1.bf16.msra.mxu0 0
        %1135 = vmatprep.subr.bf16.mxu0 0
        %1136 = vmatpush1.bf16.msra.mxu0 0
        %1137 = vmatprep.subr.bf16.mxu0 0
        %1138 = vmatpush1.bf16.msra.mxu0 0
        %1139 = vmatprep.subr.bf16.mxu0 0
        %1140 = vmatpush1.bf16.msra.mxu0 0
        %1141 = vmatprep.subr.bf16.mxu0 0
        %1142 = vmatpush1.bf16.msra.mxu0 0
        %1143 = vmatprep.subr.bf16.mxu0 0
        %1144 = vmatpush1.bf16.msra.mxu0 0
        %1145 = vmatprep.subr.bf16.mxu0 0
        %1146 = vmatpush1.bf16.msra.mxu0 0
        %1147 = vmatprep.subr.bf16.mxu0 0
        %1148 = vmatpush1.bf16.msra.mxu0 0
        %1149 = vmatprep.subr.bf16.mxu0 0
        %1150 = vmatpush1.bf16.msra.mxu0 0
        %1151 = vmatprep.subr.bf16.mxu0 0
        %1152 = vmatpush1.bf16.msra.mxu0 0
        %1153 = vmatprep.subr.bf16.mxu0 0
        %1154 = vmatpush1.bf16.msra.mxu0 0
        %1155 = vmatprep.subr.bf16.mxu0 0
        %1156 = vmatpush1.bf16.msra.mxu0 0
        %1157 = vmatprep.subr.bf16.mxu0 0
        %1158 = vmatpush1.bf16.msra.mxu0 0
        %1159 = vmatprep.mubr.bf16.mxu0 0
        %1160 = vmatmul.mubr.bf16.gmra.mrb[0].mxu0 %v1110
        %v1161 = vpop.f32.mrb[0].mxu0
        %v1162 = vadd.f32 0.0, %v1161
        %v1163 = vpop.f32.mrb[0].mxu0
        %v1164 = vpop.f32.mrb[0].mxu0
        %v1165 = vadd.f32 0.0, %v1164
        %v1166 = vpop.f32.mrb[0].mxu0
        %1167 = vmatprep.mubr.bf16.mxu0 0
        %1168 = vmatmul.mubr.bf16.gmra.mrb[0].mxu0 %v1113
        %v1169 = vpop.f32.mrb[0].mxu0
        %v1170 = vadd.f32 0.0, %v1169
        %v1171 = vpop.f32.mrb[0].mxu0
        %v1172 = vpop.f32.mrb[0].mxu0
        %v1173 = vadd.f32 0.0, %v1172
        %v1174 = vpop.f32.mrb[0].mxu0
        %1175 = vmatprep.mubr.bf16.mxu0 0
        %1176 = vmatmul.mubr.bf16.gmra.mrb[0].mxu0 %v1116
        %v1177 = vpop.f32.mrb[0].mxu0
        %v1178 = vadd.f32 0.0, %v1177
        %v1179 = vpop.f32.mrb[0].mxu0
        %v1180 = vpop.f32.mrb[0].mxu0
        %v1181 = vadd.f32 0.0, %v1180
        %v1182 = vpop.f32.mrb[0].mxu0
        %1183 = vmatprep.mubr.bf16.mxu0 0
        %1184 = vmatmul.mubr.bf16.gmra.mrb[0].mxu0 %v1119
        %v1185 = vpop.f32.mrb[0].mxu0
        %v1186 = vadd.f32 0.0, %v1185
        %v1187 = vpop.f32.mrb[0].mxu0
        %v1188 = vpop.f32.mrb[0].mxu0
        %v1189 = vadd.f32 0.0, %v1188
        %v1190 = vpop.f32.mrb[0].mxu0
        %1191 = vmatprep.mubr.bf16.mxu0 0
        %1192 = vmatmul.mubr.bf16.gmra.mrb[0].mxu0 %v1122
        %v1193 = vpop.f32.mrb[0].mxu0
        %v1194 = vadd.f32 0.0, %v1193
        %v1195 = vpop.f32.mrb[0].mxu0
        %v1196 = vpop.f32.mrb[0].mxu0
        %v1197 = vadd.f32 0.0, %v1196
        %v1198 = vpop.f32.mrb[0].mxu0
        %1199 = vdwg.mxu0
        %v1200 = vadd.f32 %v1017, %v1162
        %v1201 = vadd.f32 %v1018, %v1165
        %v1202 = vadd.f32 %v1019, %v1170
        %v1203 = vadd.f32 %v1020, %v1173
        %v1204 = vadd.f32 %v1021, %v1178
        %v1205 = vadd.f32 %v1022, %v1181
        %v1206 = vadd.f32 %v1023, %v1186
        %v1207 = vadd.f32 %v1024, %v1189
        %v1208 = vadd.f32 %v1025, %v1194
        %v1209 = vadd.f32 %v1026, %v1197
        %1210 = vst [vmem:[#allocation2] sm:$0xff] %v1200
        %1211 = vst [vmem:[#allocation2 + $0x8] sm:$0xff] %v1201
        %1212 = vst [vmem:[#allocation2 + $0x10] sm:$0xff] %v1202
        %1213 = vst [vmem:[#allocation2 + $0x18] sm:$0xff] %v1203
        %1214 = vst [vmem:[#allocation2 + $0x20] sm:$0xff] %v1204
        %1215 = vst [vmem:[#allocation2 + $0x28] sm:$0xff] %v1205
        %1216 = vst [vmem:[#allocation2 + $0x30] sm:$0xff] %v1206
        %1217 = vst [vmem:[#allocation2 + $0x38] sm:$0xff] %v1207
        %1218 = vst [vmem:[#allocation2 + $0x40] sm:$0xff] %v1208
        %1219 = vst [vmem:[#allocation2 + $0x48] sm:$0x3f] %v1209
        %v1220 = vld [vmem:[%s228 + $0x4] sm:$0xc]
        %v1221 = vld [vmem:[%s228 + $0x8] sm:$0xf]
        %v1222 = vld [vmem:[%s228 + $0xc] sm:$0xf]
        %v1223 = vld [vmem:[%s228 + $0x10] sm:$0xf]
        %v1224 = vld [vmem:[%s228 + $0x14] sm:$0xf]
        %v1225 = vld [vmem:[%s228 + $0x18] sm:$0xf]
        %v1226 = vld [vmem:[%s228 + $0x1c] sm:$0xf]
        %v1227 = vld [vmem:[%s228 + $0x20] sm:$0xf]
        %v1228 = vld [vmem:[%s228 + $0x24] sm:$0xf]
        %v1229 = vld [vmem:[%s228 + $0x28] sm:$0xf]
        %v1230 = vld [vmem:[%s228 + $0x2c] sm:$0x1]
        %v1231 = vld [vmem:[%s237 + $0x4] sm:$0x8]
        %v1232 = vld [vmem:[%s237 + $0x8] sm:$0x1]
        %v1233 = vld [vmem:[#allocation2] sm:$0xff]
        %v1234 = vld [vmem:[#allocation2 + $0x8] sm:$0xff]
        %v1235 = vld [vmem:[#allocation2 + $0x10] sm:$0xff]
        %v1236 = vld [vmem:[#allocation2 + $0x18] sm:$0xff]
        %v1237 = vld [vmem:[#allocation2 + $0x20] sm:$0xff]
        %v1238 = vld [vmem:[#allocation2 + $0x28] sm:$0xff]
        %v1239 = vld [vmem:[#allocation2 + $0x30] sm:$0xff]
        %v1240 = vld [vmem:[#allocation2 + $0x38] sm:$0xff]
        %v1241 = vld [vmem:[#allocation2 + $0x40] sm:$0xff]
        %v1242 = vld [vmem:[#allocation2 + $0x48] sm:$0x3f]
        %v1254 = vunpack.c.l.b16 %v1220
        %v1255 = vunpack.c.l.b16 %v1221
        %v1256 = vunpack.c.l.b16 %v1222
        %v1257 = vunpack.c.l.b16 %v1223
        %v1258 = vunpack.c.l.b16 %v1224
        %v1259 = vunpack.c.l.b16 %v1225
        %v1260 = vunpack.c.l.b16 %v1226
        %v1261 = vunpack.c.l.b16 %v1227
        %v1262 = vunpack.c.l.b16 %v1228
        %v1263 = vunpack.c.l.b16 %v1229
        %v1264 = vunpack.c.l.b16 %v1230
        %v1265 = vpack.c.b16 %v1255, %v1254
        %v1266 = vpack.c.b16 %v1257, %v1256
        %v1267 = vpack.c.b16 %v1259, %v1258
        %v1268 = vpack.c.b16 %v1261, %v1260
        %v1269 = vpack.c.b16 %v1263, %v1262
        %v1270 = vpack.c.b16 %v1264, %v1264
        %vm1271 = vcmask 1045504
        %v1272 = vrot.slane %v1265, 2
        %v1273 = vrot.slane %v1266, 2
        %v1274 = vsel %vm1271, %v1272, %v1273
        %v1275 = vrot.slane %v1267, 2
        %v1276 = vsel %vm1271, %v1273, %v1275
        %v1277 = vrot.slane %v1268, 2
        %v1278 = vsel %vm1271, %v1275, %v1277
        %v1279 = vrot.slane %v1269, 2
        %v1280 = vsel %vm1271, %v1277, %v1279
        %v1281 = vrot.slane %v1270, 2
        %v1282 = vsel %vm1271, %v1279, %v1281
        %v1285 = vunpack.c.l.b16 %v1231
        %v1286 = vunpack.c.l.b16 %v1232
        %v1287 = vpack.c.b16 %v1286, %v1285
        %v1289 = vshrl.u32 %v1287, 16
        %v1291 = vrot.slane %v1289, 3
        %v1292 = vshll.u32 %v1287, 16
        %v1294 = vrot.slane %v1292, 4
        %v1295 = vor.u32 %v1291, %v1294
        %v1297 = vsel %vm331, %v1274, 0
        %v1300 = vsel %vm331, %v1276, 0
        %v1303 = vsel %vm331, %v1278, 0
        %v1306 = vsel %vm331, %v1280, 0
        %v1309 = vsel %vm331, %v1282, 0
        %v1312 = vand.u32 %v1295, %v350
        %1314 = vmatprep.subr.bf16.mxu0 0
        %1315 = vmatpush1.bf16.msra.mxu0 %v1312
        %1316 = vmatprep.subr.bf16.mxu0 0
        %1317 = vmatpush1.bf16.msra.mxu0 0
        %1318 = vmatprep.subr.bf16.mxu0 0
        %1319 = vmatpush1.bf16.msra.mxu0 0
        %1320 = vmatprep.subr.bf16.mxu0 0
        %1321 = vmatpush1.bf16.msra.mxu0 0
        %1322 = vmatprep.subr.bf16.mxu0 0
        %1323 = vmatpush1.bf16.msra.mxu0 0
        %1324 = vmatprep.subr.bf16.mxu0 0
        %1325 = vmatpush1.bf16.msra.mxu0 0
        %1326 = vmatprep.subr.bf16.mxu0 0
        %1327 = vmatpush1.bf16.msra.mxu0 0
        %1328 = vmatprep.subr.bf16.mxu0 0
        %1329 = vmatpush1.bf16.msra.mxu0 0
        %1330 = vmatprep.subr.bf16.mxu0 0
        %1331 = vmatpush1.bf16.msra.mxu0 0
        %1332 = vmatprep.subr.bf16.mxu0 0
        %1333 = vmatpush1.bf16.msra.mxu0 0
        %1334 = vmatprep.subr.bf16.mxu0 0
        %1335 = vmatpush1.bf16.msra.mxu0 0
        %1336 = vmatprep.subr.bf16.mxu0 0
        %1337 = vmatpush1.bf16.msra.mxu0 0
        %1338 = vmatprep.subr.bf16.mxu0 0
        %1339 = vmatpush1.bf16.msra.mxu0 0
        %1340 = vmatprep.subr.bf16.mxu0 0
        %1341 = vmatpush1.bf16.msra.mxu0 0
        %1342 = vmatprep.subr.bf16.mxu0 0
        %1343 = vmatpush1.bf16.msra.mxu0 0
        %1344 = vmatprep.subr.bf16.mxu0 0
        %1345 = vmatpush1.bf16.msra.mxu0 0
        %1346 = vmatprep.mubr.bf16.mxu0 0
        %1347 = vmatmul.mubr.bf16.gmra.mrb[0].mxu0 %v1297
        %v1348 = vpop.f32.mrb[0].mxu0
        %v1349 = vadd.f32 0.0, %v1348
        %v1350 = vpop.f32.mrb[0].mxu0
        %v1351 = vpop.f32.mrb[0].mxu0
        %v1352 = vadd.f32 0.0, %v1351
        %v1353 = vpop.f32.mrb[0].mxu0
        %1354 = vmatprep.mubr.bf16.mxu0 0
        %1355 = vmatmul.mubr.bf16.gmra.mrb[0].mxu0 %v1300
        %v1356 = vpop.f32.mrb[0].mxu0
        %v1357 = vadd.f32 0.0, %v1356
        %v1358 = vpop.f32.mrb[0].mxu0
        %v1359 = vpop.f32.mrb[0].mxu0
        %v1360 = vadd.f32 0.0, %v1359
        %v1361 = vpop.f32.mrb[0].mxu0
        %1362 = vmatprep.mubr.bf16.mxu0 0
        %1363 = vmatmul.mubr.bf16.gmra.mrb[0].mxu0 %v1303
        %v1364 = vpop.f32.mrb[0].mxu0
        %v1365 = vadd.f32 0.0, %v1364
        %v1366 = vpop.f32.mrb[0].mxu0
        %v1367 = vpop.f32.mrb[0].mxu0
        %v1368 = vadd.f32 0.0, %v1367
        %v1369 = vpop.f32.mrb[0].mxu0
        %1370 = vmatprep.mubr.bf16.mxu0 0
        %1371 = vmatmul.mubr.bf16.gmra.mrb[0].mxu0 %v1306
        %v1372 = vpop.f32.mrb[0].mxu0
        %v1373 = vadd.f32 0.0, %v1372
        %v1374 = vpop.f32.mrb[0].mxu0
        %v1375 = vpop.f32.mrb[0].mxu0
        %v1376 = vadd.f32 0.0, %v1375
        %v1377 = vpop.f32.mrb[0].mxu0
        %1378 = vmatprep.mubr.bf16.mxu0 0
        %1379 = vmatmul.mubr.bf16.gmra.mrb[0].mxu0 %v1309
        %v1380 = vpop.f32.mrb[0].mxu0
        %v1381 = vadd.f32 0.0, %v1380
        %v1382 = vpop.f32.mrb[0].mxu0
        %v1383 = vpop.f32.mrb[0].mxu0
        %v1384 = vadd.f32 0.0, %v1383
        %v1385 = vpop.f32.mrb[0].mxu0
        %1386 = vdwg.mxu0
        %v1387 = vadd.f32 %v1233, %v1349
        %v1388 = vadd.f32 %v1234, %v1352
        %v1389 = vadd.f32 %v1235, %v1357
        %v1390 = vadd.f32 %v1236, %v1360
        %v1391 = vadd.f32 %v1237, %v1365
        %v1392 = vadd.f32 %v1238, %v1368
        %v1393 = vadd.f32 %v1239, %v1373
        %v1394 = vadd.f32 %v1240, %v1376
        %v1395 = vadd.f32 %v1241, %v1381
        %v1396 = vadd.f32 %v1242, %v1384
        %1397 = vst [vmem:[#allocation2] sm:$0xff] %v1387
        %1398 = vst [vmem:[#allocation2 + $0x8] sm:$0xff] %v1388
        %1399 = vst [vmem:[#allocation2 + $0x10] sm:$0xff] %v1389
        %1400 = vst [vmem:[#allocation2 + $0x18] sm:$0xff] %v1390
        %1401 = vst [vmem:[#allocation2 + $0x20] sm:$0xff] %v1391
        %1402 = vst [vmem:[#allocation2 + $0x28] sm:$0xff] %v1392
        %1403 = vst [vmem:[#allocation2 + $0x30] sm:$0xff] %v1393
        %1404 = vst [vmem:[#allocation2 + $0x38] sm:$0xff] %v1394
        %1405 = vst [vmem:[#allocation2 + $0x40] sm:$0xff] %v1395
        %1406 = vst [vmem:[#allocation2 + $0x48] sm:$0x3f] %v1396
        %v1407 = vld [vmem:[%s228 + $0x8] sm:$0xc]
        %v1408 = vld [vmem:[%s228 + $0xc] sm:$0xf]
        %v1409 = vld [vmem:[%s228 + $0x10] sm:$0xf]
        %v1410 = vld [vmem:[%s228 + $0x14] sm:$0xf]
        %v1411 = vld [vmem:[%s228 + $0x18] sm:$0xf]
        %v1412 = vld [vmem:[%s228 + $0x1c] sm:$0xf]
        %v1413 = vld [vmem:[%s228 + $0x20] sm:$0xf]
        %v1414 = vld [vmem:[%s228 + $0x24] sm:$0xf]
        %v1415 = vld [vmem:[%s228 + $0x28] sm:$0xf]
        %v1416 = vld [vmem:[%s228 + $0x2c] sm:$0xf]
        %v1417 = vld [vmem:[%s228 + $0x30] sm:$0x1]
        %v1418 = vld [vmem:[%s237 + $0x8] sm:$0x6]
        %v1419 = vld [vmem:[#allocation2] sm:$0xff]
        %v1420 = vld [vmem:[#allocation2 + $0x8] sm:$0xff]
        %v1421 = vld [vmem:[#allocation2 + $0x10] sm:$0xff]
        %v1422 = vld [vmem:[#allocation2 + $0x18] sm:$0xff]
        %v1423 = vld [vmem:[#allocation2 + $0x20] sm:$0xff]
        %v1424 = vld [vmem:[#allocation2 + $0x28] sm:$0xff]
        %v1425 = vld [vmem:[#allocation2 + $0x30] sm:$0xff]
        %v1426 = vld [vmem:[#allocation2 + $0x38] sm:$0xff]
        %v1427 = vld [vmem:[#allocation2 + $0x40] sm:$0xff]
        %v1428 = vld [vmem:[#allocation2 + $0x48] sm:$0x3f]
        %v1440 = vunpack.c.l.b16 %v1407
        %v1441 = vunpack.c.l.b16 %v1408
        %v1442 = vunpack.c.l.b16 %v1409
        %v1443 = vunpack.c.l.b16 %v1410
        %v1444 = vunpack.c.l.b16 %v1411
        %v1445 = vunpack.c.l.b16 %v1412
        %v1446 = vunpack.c.l.b16 %v1413
        %v1447 = vunpack.c.l.b16 %v1414
        %v1448 = vunpack.c.l.b16 %v1415
        %v1449 = vunpack.c.l.b16 %v1416
        %v1450 = vunpack.c.l.b16 %v1417
        %v1451 = vpack.c.b16 %v1441, %v1440
        %v1452 = vpack.c.b16 %v1443, %v1442
        %v1453 = vpack.c.b16 %v1445, %v1444
        %v1454 = vpack.c.b16 %v1447, %v1446
        %v1455 = vpack.c.b16 %v1449, %v1448
        %v1456 = vpack.c.b16 %v1450, %v1450
        %v1457 = vrot.slane %v1451, 2
        %v1458 = vrot.slane %v1452, 2
        %v1459 = vsel %vm1271, %v1457, %v1458
        %v1460 = vrot.slane %v1453, 2
        %v1461 = vsel %vm1271, %v1458, %v1460
        %v1462 = vrot.slane %v1454, 2
        %v1463 = vsel %vm1271, %v1460, %v1462
        %v1464 = vrot.slane %v1455, 2
        %v1465 = vsel %vm1271, %v1462, %v1464
        %v1466 = vrot.slane %v1456, 2
        %v1467 = vsel %vm1271, %v1464, %v1466
        %v1469 = vunpack.c.l.b16 %v1418
        %v1470 = vpack.c.b16 %v1469, %v1469
        %v1471 = vrot.slane %v1470, 1
        %v1473 = vsel %vm331, %v1459, 0
        %v1476 = vsel %vm331, %v1461, 0
        %v1479 = vsel %vm331, %v1463, 0
        %v1482 = vsel %vm331, %v1465, 0
        %v1485 = vsel %vm331, %v1467, 0
        %v1488 = vand.u32 %v1471, %v350
        %1490 = vmatprep.subr.bf16.mxu0 0
        %1491 = vmatpush1.bf16.msra.mxu0 %v1488
        %1492 = vmatprep.subr.bf16.mxu0 0
        %1493 = vmatpush1.bf16.msra.mxu0 0
        %1494 = vmatprep.subr.bf16.mxu0 0
        %1495 = vmatpush1.bf16.msra.mxu0 0
        %1496 = vmatprep.subr.bf16.mxu0 0
        %1497 = vmatpush1.bf16.msra.mxu0 0
        %1498 = vmatprep.subr.bf16.mxu0 0
        %1499 = vmatpush1.bf16.msra.mxu0 0
        %1500 = vmatprep.subr.bf16.mxu0 0
        %1501 = vmatpush1.bf16.msra.mxu0 0
        %1502 = vmatprep.subr.bf16.mxu0 0
        %1503 = vmatpush1.bf16.msra.mxu0 0
        %1504 = vmatprep.subr.bf16.mxu0 0
        %1505 = vmatpush1.bf16.msra.mxu0 0
        %1506 = vmatprep.subr.bf16.mxu0 0
        %1507 = vmatpush1.bf16.msra.mxu0 0
        %1508 = vmatprep.subr.bf16.mxu0 0
        %1509 = vmatpush1.bf16.msra.mxu0 0
        %1510 = vmatprep.subr.bf16.mxu0 0
        %1511 = vmatpush1.bf16.msra.mxu0 0
        %1512 = vmatprep.subr.bf16.mxu0 0
        %1513 = vmatpush1.bf16.msra.mxu0 0
        %1514 = vmatprep.subr.bf16.mxu0 0
        %1515 = vmatpush1.bf16.msra.mxu0 0
        %1516 = vmatprep.subr.bf16.mxu0 0
        %1517 = vmatpush1.bf16.msra.mxu0 0
        %1518 = vmatprep.subr.bf16.mxu0 0
        %1519 = vmatpush1.bf16.msra.mxu0 0
        %1520 = vmatprep.subr.bf16.mxu0 0
        %1521 = vmatpush1.bf16.msra.mxu0 0
        %1522 = vmatprep.mubr.bf16.mxu0 0
        %1523 = vmatmul.mubr.bf16.gmra.mrb[0].mxu0 %v1473
        %v1524 = vpop.f32.mrb[0].mxu0
        %v1525 = vadd.f32 0.0, %v1524
        %v1526 = vpop.f32.mrb[0].mxu0
        %v1527 = vpop.f32.mrb[0].mxu0
        %v1528 = vadd.f32 0.0, %v1527
        %v1529 = vpop.f32.mrb[0].mxu0
        %1530 = vmatprep.mubr.bf16.mxu0 0
        %1531 = vmatmul.mubr.bf16.gmra.mrb[0].mxu0 %v1476
        %v1532 = vpop.f32.mrb[0].mxu0
        %v1533 = vadd.f32 0.0, %v1532
        %v1534 = vpop.f32.mrb[0].mxu0
        %v1535 = vpop.f32.mrb[0].mxu0
        %v1536 = vadd.f32 0.0, %v1535
        %v1537 = vpop.f32.mrb[0].mxu0
        %1538 = vmatprep.mubr.bf16.mxu0 0
        %1539 = vmatmul.mubr.bf16.gmra.mrb[0].mxu0 %v1479
        %v1540 = vpop.f32.mrb[0].mxu0
        %v1541 = vadd.f32 0.0, %v1540
        %v1542 = vpop.f32.mrb[0].mxu0
        %v1543 = vpop.f32.mrb[0].mxu0
        %v1544 = vadd.f32 0.0, %v1543
        %v1545 = vpop.f32.mrb[0].mxu0
        %1546 = vmatprep.mubr.bf16.mxu0 0
        %1547 = vmatmul.mubr.bf16.gmra.mrb[0].mxu0 %v1482
        %v1548 = vpop.f32.mrb[0].mxu0
        %v1549 = vadd.f32 0.0, %v1548
        %v1550 = vpop.f32.mrb[0].mxu0
        %v1551 = vpop.f32.mrb[0].mxu0
        %v1552 = vadd.f32 0.0, %v1551
        %v1553 = vpop.f32.mrb[0].mxu0
        %1554 = vmatprep.mubr.bf16.mxu0 0
        %1555 = vmatmul.mubr.bf16.gmra.mrb[0].mxu0 %v1485
        %v1556 = vpop.f32.mrb[0].mxu0
        %v1557 = vadd.f32 0.0, %v1556
        %v1558 = vpop.f32.mrb[0].mxu0
        %v1559 = vpop.f32.mrb[0].mxu0
        %v1560 = vadd.f32 0.0, %v1559
        %v1561 = vpop.f32.mrb[0].mxu0
        %1562 = vdwg.mxu0
        %v1563 = vadd.f32 %v1419, %v1525
        %v1564 = vadd.f32 %v1420, %v1528
        %v1565 = vadd.f32 %v1421, %v1533
        %v1566 = vadd.f32 %v1422, %v1536
        %v1567 = vadd.f32 %v1423, %v1541
        %v1568 = vadd.f32 %v1424, %v1544
        %v1569 = vadd.f32 %v1425, %v1549
        %v1570 = vadd.f32 %v1426, %v1552
        %v1571 = vadd.f32 %v1427, %v1557
        %v1572 = vadd.f32 %v1428, %v1560
        %1573 = vst [vmem:[#allocation2] sm:$0xff] %v1563
        %1574 = vst [vmem:[#allocation2 + $0x8] sm:$0xff] %v1564
        %1575 = vst [vmem:[#allocation2 + $0x10] sm:$0xff] %v1565
        %1576 = vst [vmem:[#allocation2 + $0x18] sm:$0xff] %v1566
        %1577 = vst [vmem:[#allocation2 + $0x20] sm:$0xff] %v1567
        %1578 = vst [vmem:[#allocation2 + $0x28] sm:$0xff] %v1568
        %1579 = vst [vmem:[#allocation2 + $0x30] sm:$0xff] %v1569
        %1580 = vst [vmem:[#allocation2 + $0x38] sm:$0xff] %v1570
        %1581 = vst [vmem:[#allocation2 + $0x40] sm:$0xff] %v1571
        %1582 = vst [vmem:[#allocation2 + $0x48] sm:$0x3f] %v1572
        %v1583 = vld [vmem:[%s228 + $0x8] sm:$0xc]
        %v1584 = vld [vmem:[%s228 + $0xc] sm:$0xf]
        %v1585 = vld [vmem:[%s228 + $0x10] sm:$0xf]
        %v1586 = vld [vmem:[%s228 + $0x14] sm:$0xf]
        %v1587 = vld [vmem:[%s228 + $0x18] sm:$0xf]
        %v1588 = vld [vmem:[%s228 + $0x1c] sm:$0xf]
        %v1589 = vld [vmem:[%s228 + $0x20] sm:$0xf]
        %v1590 = vld [vmem:[%s228 + $0x24] sm:$0xf]
        %v1591 = vld [vmem:[%s228 + $0x28] sm:$0xf]
        %v1592 = vld [vmem:[%s228 + $0x2c] sm:$0xf]
        %v1593 = vld [vmem:[%s228 + $0x30] sm:$0x3]
        %v1594 = vld [vmem:[%s237 + $0x8] sm:$0xc]
        %v1595 = vld [vmem:[#allocation2] sm:$0xff]
        %v1596 = vld [vmem:[#allocation2 + $0x8] sm:$0xff]
        %v1597 = vld [vmem:[#allocation2 + $0x10] sm:$0xff]
        %v1598 = vld [vmem:[#allocation2 + $0x18] sm:$0xff]
        %v1599 = vld [vmem:[#allocation2 + $0x20] sm:$0xff]
        %v1600 = vld [vmem:[#allocation2 + $0x28] sm:$0xff]
        %v1601 = vld [vmem:[#allocation2 + $0x30] sm:$0xff]
        %v1602 = vld [vmem:[#allocation2 + $0x38] sm:$0xff]
        %v1603 = vld [vmem:[#allocation2 + $0x40] sm:$0xff]
        %v1604 = vld [vmem:[#allocation2 + $0x48] sm:$0x3f]
        %v1616 = vunpack.c.l.b16 %v1583
        %v1617 = vunpack.c.l.b16 %v1584
        %v1618 = vunpack.c.l.b16 %v1585
        %v1619 = vunpack.c.l.b16 %v1586
        %v1620 = vunpack.c.l.b16 %v1587
        %v1621 = vunpack.c.l.b16 %v1588
        %v1622 = vunpack.c.l.b16 %v1589
        %v1623 = vunpack.c.l.b16 %v1590
        %v1624 = vunpack.c.l.b16 %v1591
        %v1625 = vunpack.c.l.b16 %v1592
        %v1626 = vunpack.c.l.b16 %v1593
        %v1627 = vpack.c.b16 %v1617, %v1616
        %v1628 = vpack.c.b16 %v1619, %v1618
        %v1629 = vpack.c.b16 %v1621, %v1620
        %v1630 = vpack.c.b16 %v1623, %v1622
        %v1631 = vpack.c.b16 %v1625, %v1624
        %v1632 = vpack.c.b16 %v1626, %v1626
        %vm1633 = vsmask.f32 5376
        %v1635 = vshrl.u32 %v1627, 16
        %v1637 = vrot.slane %v1635, 2
        %v1638 = vshll.u32 %v1627, 16
        %v1640 = vrot.slane %v1638, 3
        %v1641 = vor.u32 %v1637, %v1640
        %v1643 = vshrl.u32 %v1628, 16
        %v1645 = vrot.slane %v1643, 2
        %v1646 = vshll.u32 %v1628, 16
        %v1648 = vrot.slane %v1646, 3
        %v1649 = vor.u32 %v1645, %v1648
        %v1650 = vsel %vm1633, %v1641, %v1649
        %v1652 = vshrl.u32 %v1629, 16
        %v1654 = vrot.slane %v1652, 2
        %v1655 = vshll.u32 %v1629, 16
        %v1657 = vrot.slane %v1655, 3
        %v1658 = vor.u32 %v1654, %v1657
        %v1659 = vsel %vm1633, %v1649, %v1658
        %v1661 = vshrl.u32 %v1630, 16
        %v1663 = vrot.slane %v1661, 2
        %v1664 = vshll.u32 %v1630, 16
        %v1666 = vrot.slane %v1664, 3
        %v1667 = vor.u32 %v1663, %v1666
        %v1668 = vsel %vm1633, %v1658, %v1667
        %v1670 = vshrl.u32 %v1631, 16
        %v1672 = vrot.slane %v1670, 2
        %v1673 = vshll.u32 %v1631, 16
        %v1675 = vrot.slane %v1673, 3
        %v1676 = vor.u32 %v1672, %v1675
        %v1677 = vsel %vm1633, %v1667, %v1676
        %v1679 = vshrl.u32 %v1632, 16
        %v1681 = vrot.slane %v1679, 2
        %v1682 = vshll.u32 %v1632, 16
        %v1684 = vrot.slane %v1682, 3
        %v1685 = vor.u32 %v1681, %v1684
        %v1686 = vsel %vm1633, %v1676, %v1685
        %v1688 = vunpack.c.l.b16 %v1594
        %v1689 = vpack.c.b16 %v1688, %v1688
        %v1691 = vshrl.u32 %v1689, 16
        %v1693 = vrot.slane %v1691, 2
        %v1694 = vshll.u32 %v1689, 16
        %v1696 = vrot.slane %v1694, 3
        %v1697 = vor.u32 %v1693, %v1696
        %v1699 = vsel %vm331, %v1650, 0
        %v1702 = vsel %vm331, %v1659, 0
        %v1705 = vsel %vm331, %v1668, 0
        %v1708 = vsel %vm331, %v1677, 0
        %v1711 = vsel %vm331, %v1686, 0
        %v1714 = vand.u32 %v1697, %v350
        %1716 = vmatprep.subr.bf16.mxu0 0
        %1717 = vmatpush1.bf16.msra.mxu0 %v1714
        %1718 = vmatprep.subr.bf16.mxu0 0
        %1719 = vmatpush1.bf16.msra.mxu0 0
        %1720 = vmatprep.subr.bf16.mxu0 0
        %1721 = vmatpush1.bf16.msra.mxu0 0
        %1722 = vmatprep.subr.bf16.mxu0 0
        %1723 = vmatpush1.bf16.msra.mxu0 0
        %1724 = vmatprep.subr.bf16.mxu0 0
        %1725 = vmatpush1.bf16.msra.mxu0 0
        %1726 = vmatprep.subr.bf16.mxu0 0
        %1727 = vmatpush1.bf16.msra.mxu0 0
        %1728 = vmatprep.subr.bf16.mxu0 0
        %1729 = vmatpush1.bf16.msra.mxu0 0
        %1730 = vmatprep.subr.bf16.mxu0 0
        %1731 = vmatpush1.bf16.msra.mxu0 0
        %1732 = vmatprep.subr.bf16.mxu0 0
        %1733 = vmatpush1.bf16.msra.mxu0 0
        %1734 = vmatprep.subr.bf16.mxu0 0
        %1735 = vmatpush1.bf16.msra.mxu0 0
        %1736 = vmatprep.subr.bf16.mxu0 0
        %1737 = vmatpush1.bf16.msra.mxu0 0
        %1738 = vmatprep.subr.bf16.mxu0 0
        %1739 = vmatpush1.bf16.msra.mxu0 0
        %1740 = vmatprep.subr.bf16.mxu0 0
        %1741 = vmatpush1.bf16.msra.mxu0 0
        %1742 = vmatprep.subr.bf16.mxu0 0
        %1743 = vmatpush1.bf16.msra.mxu0 0
        %1744 = vmatprep.subr.bf16.mxu0 0
        %1745 = vmatpush1.bf16.msra.mxu0 0
        %1746 = vmatprep.subr.bf16.mxu0 0
        %1747 = vmatpush1.bf16.msra.mxu0 0
        %1748 = vmatprep.mubr.bf16.mxu0 0
        %1749 = vmatmul.mubr.bf16.gmra.mrb[0].mxu0 %v1699
        %v1750 = vpop.f32.mrb[0].mxu0
        %v1751 = vadd.f32 0.0, %v1750
        %v1752 = vpop.f32.mrb[0].mxu0
        %v1753 = vpop.f32.mrb[0].mxu0
        %v1754 = vadd.f32 0.0, %v1753
        %v1755 = vpop.f32.mrb[0].mxu0
        %1756 = vmatprep.mubr.bf16.mxu0 0
        %1757 = vmatmul.mubr.bf16.gmra.mrb[0].mxu0 %v1702
        %v1758 = vpop.f32.mrb[0].mxu0
        %v1759 = vadd.f32 0.0, %v1758
        %v1760 = vpop.f32.mrb[0].mxu0
        %v1761 = vpop.f32.mrb[0].mxu0
        %v1762 = vadd.f32 0.0, %v1761
        %v1763 = vpop.f32.mrb[0].mxu0
        %1764 = vmatprep.mubr.bf16.mxu0 0
        %1765 = vmatmul.mubr.bf16.gmra.mrb[0].mxu0 %v1705
        %v1766 = vpop.f32.mrb[0].mxu0
        %v1767 = vadd.f32 0.0, %v1766
        %v1768 = vpop.f32.mrb[0].mxu0
        %v1769 = vpop.f32.mrb[0].mxu0
        %v1770 = vadd.f32 0.0, %v1769
        %v1771 = vpop.f32.mrb[0].mxu0
        %1772 = vmatprep.mubr.bf16.mxu0 0
        %1773 = vmatmul.mubr.bf16.gmra.mrb[0].mxu0 %v1708
        %v1774 = vpop.f32.mrb[0].mxu0
        %v1775 = vadd.f32 0.0, %v1774
        %v1776 = vpop.f32.mrb[0].mxu0
        %v1777 = vpop.f32.mrb[0].mxu0
        %v1778 = vadd.f32 0.0, %v1777
        %v1779 = vpop.f32.mrb[0].mxu0
        %1780 = vmatprep.mubr.bf16.mxu0 0
        %1781 = vmatmul.mubr.bf16.gmra.mrb[0].mxu0 %v1711
        %v1782 = vpop.f32.mrb[0].mxu0
        %v1783 = vadd.f32 0.0, %v1782
        %v1784 = vpop.f32.mrb[0].mxu0
        %v1785 = vpop.f32.mrb[0].mxu0
        %v1786 = vadd.f32 0.0, %v1785
        %v1787 = vpop.f32.mrb[0].mxu0
        %1788 = vdwg.mxu0
        %v1789 = vadd.f32 %v1595, %v1751
        %v1790 = vadd.f32 %v1596, %v1754
        %v1791 = vadd.f32 %v1597, %v1759
        %v1792 = vadd.f32 %v1598, %v1762
        %v1793 = vadd.f32 %v1599, %v1767
        %v1794 = vadd.f32 %v1600, %v1770
        %v1795 = vadd.f32 %v1601, %v1775
        %v1796 = vadd.f32 %v1602, %v1778
        %v1797 = vadd.f32 %v1603, %v1783
        %v1798 = vadd.f32 %v1604, %v1786
        %1799 = vst [vmem:[#allocation2] sm:$0xff] %v1789
        %1800 = vst [vmem:[#allocation2 + $0x8] sm:$0xff] %v1790
        %1801 = vst [vmem:[#allocation2 + $0x10] sm:$0xff] %v1791
        %1802 = vst [vmem:[#allocation2 + $0x18] sm:$0xff] %v1792
        %1803 = vst [vmem:[#allocation2 + $0x20] sm:$0xff] %v1793
        %1804 = vst [vmem:[#allocation2 + $0x28] sm:$0xff] %v1794
        %1805 = vst [vmem:[#allocation2 + $0x30] sm:$0xff] %v1795
        %1806 = vst [vmem:[#allocation2 + $0x38] sm:$0xff] %v1796
        %1807 = vst [vmem:[#allocation2 + $0x40] sm:$0xff] %v1797
        %1808 = vst [vmem:[#allocation2 + $0x48] sm:$0x3f] %v1798
        %v1809 = vld [vmem:[%s228 + $0x8] sm:$0x8]
        %v1810 = vld [vmem:[%s228 + $0xc] sm:$0xf]
        %v1811 = vld [vmem:[%s228 + $0x10] sm:$0xf]
        %v1812 = vld [vmem:[%s228 + $0x14] sm:$0xf]
        %v1813 = vld [vmem:[%s228 + $0x18] sm:$0xf]
        %v1814 = vld [vmem:[%s228 + $0x1c] sm:$0xf]
        %v1815 = vld [vmem:[%s228 + $0x20] sm:$0xf]
        %v1816 = vld [vmem:[%s228 + $0x24] sm:$0xf]
        %v1817 = vld [vmem:[%s228 + $0x28] sm:$0xf]
        %v1818 = vld [vmem:[%s228 + $0x2c] sm:$0xf]
        %v1819 = vld [vmem:[%s228 + $0x30] sm:$0x3]
        %v1820 = vld [vmem:[%s237 + $0xc] sm:$0x3]
        %v1821 = vld [vmem:[#allocation2] sm:$0xff]
        %v1822 = vld [vmem:[#allocation2 + $0x8] sm:$0xff]
        %v1823 = vld [vmem:[#allocation2 + $0x10] sm:$0xff]
        %v1824 = vld [vmem:[#allocation2 + $0x18] sm:$0xff]
        %v1825 = vld [vmem:[#allocation2 + $0x20] sm:$0xff]
        %v1826 = vld [vmem:[#allocation2 + $0x28] sm:$0xff]
        %v1827 = vld [vmem:[#allocation2 + $0x30] sm:$0xff]
        %v1828 = vld [vmem:[#allocation2 + $0x38] sm:$0xff]
        %v1829 = vld [vmem:[#allocation2 + $0x40] sm:$0xff]
        %v1830 = vld [vmem:[#allocation2 + $0x48] sm:$0x3f]
        %v1842 = vunpack.c.l.b16 %v1809
        %v1843 = vunpack.c.l.b16 %v1810
        %v1844 = vunpack.c.l.b16 %v1811
        %v1845 = vunpack.c.l.b16 %v1812
        %v1846 = vunpack.c.l.b16 %v1813
        %v1847 = vunpack.c.l.b16 %v1814
        %v1848 = vunpack.c.l.b16 %v1815
        %v1849 = vunpack.c.l.b16 %v1816
        %v1850 = vunpack.c.l.b16 %v1817
        %v1851 = vunpack.c.l.b16 %v1818
        %v1852 = vunpack.c.l.b16 %v1819
        %v1853 = vpack.c.b16 %v1843, %v1842
        %v1854 = vpack.c.b16 %v1845, %v1844
        %v1855 = vpack.c.b16 %v1847, %v1846
        %v1856 = vpack.c.b16 %v1849, %v1848
        %v1857 = vpack.c.b16 %v1851, %v1850
        %v1858 = vpack.c.b16 %v1852, %v1852
        %vm1859 = vcmask 1044480
        %v1860 = vrot.slane %v1853, 3
        %v1861 = vrot.slane %v1854, 3
        %v1862 = vsel %vm1859, %v1860, %v1861
        %v1863 = vrot.slane %v1855, 3
        %v1864 = vsel %vm1859, %v1861, %v1863
        %v1865 = vrot.slane %v1856, 3
        %v1866 = vsel %vm1859, %v1863, %v1865
        %v1867 = vrot.slane %v1857, 3
        %v1868 = vsel %vm1859, %v1865, %v1867
        %v1869 = vrot.slane %v1858, 3
        %v1870 = vsel %vm1859, %v1867, %v1869
        %v1872 = vsel %vm331, %v1862, 0
        %v1875 = vsel %vm331, %v1864, 0
        %v1878 = vsel %vm331, %v1866, 0
        %v1881 = vsel %vm331, %v1868, 0
        %v1884 = vsel %vm331, %v1870, 0
        %v1887 = vand.u32 %v1820, %v350
        %1889 = vmatprep.subr.bf16.mxu0 0
        %1890 = vmatpush1.bf16.msra.mxu0 %v1887
        %1891 = vmatprep.subr.bf16.mxu0 0
        %1892 = vmatpush1.bf16.msra.mxu0 0
        %1893 = vmatprep.subr.bf16.mxu0 0
        %1894 = vmatpush1.bf16.msra.mxu0 0
        %1895 = vmatprep.subr.bf16.mxu0 0
        %1896 = vmatpush1.bf16.msra.mxu0 0
        %1897 = vmatprep.subr.bf16.mxu0 0
        %1898 = vmatpush1.bf16.msra.mxu0 0
        %1899 = vmatprep.subr.bf16.mxu0 0
        %1900 = vmatpush1.bf16.msra.mxu0 0
        %1901 = vmatprep.subr.bf16.mxu0 0
        %1902 = vmatpush1.bf16.msra.mxu0 0
        %1903 = vmatprep.subr.bf16.mxu0 0
        %1904 = vmatpush1.bf16.msra.mxu0 0
        %1905 = vmatprep.subr.bf16.mxu0 0
        %1906 = vmatpush1.bf16.msra.mxu0 0
        %1907 = vmatprep.subr.bf16.mxu0 0
        %1908 = vmatpush1.bf16.msra.mxu0 0
        %1909 = vmatprep.subr.bf16.mxu0 0
        %1910 = vmatpush1.bf16.msra.mxu0 0
        %1911 = vmatprep.subr.bf16.mxu0 0
        %1912 = vmatpush1.bf16.msra.mxu0 0
        %1913 = vmatprep.subr.bf16.mxu0 0
        %1914 = vmatpush1.bf16.msra.mxu0 0
        %1915 = vmatprep.subr.bf16.mxu0 0
        %1916 = vmatpush1.bf16.msra.mxu0 0
        %1917 = vmatprep.subr.bf16.mxu0 0
        %1918 = vmatpush1.bf16.msra.mxu0 0
        %1919 = vmatprep.subr.bf16.mxu0 0
        %1920 = vmatpush1.bf16.msra.mxu0 0
        %1921 = vmatprep.mubr.bf16.mxu0 0
        %1922 = vmatmul.mubr.bf16.gmra.mrb[0].mxu0 %v1872
        %v1923 = vpop.f32.mrb[0].mxu0
        %v1924 = vadd.f32 0.0, %v1923
        %v1925 = vpop.f32.mrb[0].mxu0
        %v1926 = vpop.f32.mrb[0].mxu0
        %v1927 = vadd.f32 0.0, %v1926
        %v1928 = vpop.f32.mrb[0].mxu0
        %1929 = vmatprep.mubr.bf16.mxu0 0
        %1930 = vmatmul.mubr.bf16.gmra.mrb[0].mxu0 %v1875
        %v1931 = vpop.f32.mrb[0].mxu0
        %v1932 = vadd.f32 0.0, %v1931
        %v1933 = vpop.f32.mrb[0].mxu0
        %v1934 = vpop.f32.mrb[0].mxu0
        %v1935 = vadd.f32 0.0, %v1934
        %v1936 = vpop.f32.mrb[0].mxu0
        %1937 = vmatprep.mubr.bf16.mxu0 0
        %1938 = vmatmul.mubr.bf16.gmra.mrb[0].mxu0 %v1878
        %v1939 = vpop.f32.mrb[0].mxu0
        %v1940 = vadd.f32 0.0, %v1939
        %v1941 = vpop.f32.mrb[0].mxu0
        %v1942 = vpop.f32.mrb[0].mxu0
        %v1943 = vadd.f32 0.0, %v1942
        %v1944 = vpop.f32.mrb[0].mxu0
        %1945 = vmatprep.mubr.bf16.mxu0 0
        %1946 = vmatmul.mubr.bf16.gmra.mrb[0].mxu0 %v1881
        %v1947 = vpop.f32.mrb[0].mxu0
        %v1948 = vadd.f32 0.0, %v1947
        %v1949 = vpop.f32.mrb[0].mxu0
        %v1950 = vpop.f32.mrb[0].mxu0
        %v1951 = vadd.f32 0.0, %v1950
        %v1952 = vpop.f32.mrb[0].mxu0
        %1953 = vmatprep.mubr.bf16.mxu0 0
        %1954 = vmatmul.mubr.bf16.gmra.mrb[0].mxu0 %v1884
        %v1955 = vpop.f32.mrb[0].mxu0
        %v1956 = vadd.f32 0.0, %v1955
        %v1957 = vpop.f32.mrb[0].mxu0
        %v1958 = vpop.f32.mrb[0].mxu0
        %v1959 = vadd.f32 0.0, %v1958
        %v1960 = vpop.f32.mrb[0].mxu0
        %1961 = vdwg.mxu0
        %v1962 = vadd.f32 %v1821, %v1924
        %v1963 = vadd.f32 %v1822, %v1927
        %v1964 = vadd.f32 %v1823, %v1932
        %v1965 = vadd.f32 %v1824, %v1935
        %v1966 = vadd.f32 %v1825, %v1940
        %v1967 = vadd.f32 %v1826, %v1943
        %v1968 = vadd.f32 %v1827, %v1948
        %v1969 = vadd.f32 %v1828, %v1951
        %v1970 = vadd.f32 %v1829, %v1956
        %v1971 = vadd.f32 %v1830, %v1959
        %1972 = vst [vmem:[#allocation2] sm:$0xff] %v1962
        %1973 = vst [vmem:[#allocation2 + $0x8] sm:$0xff] %v1963
        %1974 = vst [vmem:[#allocation2 + $0x10] sm:$0xff] %v1964
        %1975 = vst [vmem:[#allocation2 + $0x18] sm:$0xff] %v1965
        %1976 = vst [vmem:[#allocation2 + $0x20] sm:$0xff] %v1966
        %1977 = vst [vmem:[#allocation2 + $0x28] sm:$0xff] %v1967
        %1978 = vst [vmem:[#allocation2 + $0x30] sm:$0xff] %v1968
        %1979 = vst [vmem:[#allocation2 + $0x38] sm:$0xff] %v1969
        %1980 = vst [vmem:[#allocation2 + $0x40] sm:$0xff] %v1970
        %1981 = vst [vmem:[#allocation2 + $0x48] sm:$0x3f] %v1971
        %p1982 = scmp.eq.s32.totalorder %s30, 2
        // Predicated region
        $region49: #{_lambda_.8} parent=31 // pred_check
          %p1983 = pneg %p1982
        $region50: #{_lambda_.8} parent=31 // pred_check_branch
          %1985 = sbr.rel (%p1983) target = $region52
        $region51: #{_lambda_.8} parent=31 // pred_region
          %v1986 = vld [vmem:[#allocation2] sm:$0xff]
          %v1987 = vld [vmem:[#allocation2 + $0x8] sm:$0xff]
          %v1988 = vld [vmem:[#allocation2 + $0x10] sm:$0xff]
          %v1989 = vld [vmem:[#allocation2 + $0x18] sm:$0xff]
          %v1990 = vld [vmem:[#allocation2 + $0x20] sm:$0xff]
          %v1991 = vld [vmem:[#allocation2 + $0x28] sm:$0xff]
          %v1992 = vld [vmem:[#allocation2 + $0x30] sm:$0xff]
          %v1993 = vld [vmem:[#allocation2 + $0x38] sm:$0xff]
          %v1994 = vld [vmem:[#allocation2 + $0x40] sm:$0xff]
          %v1995 = vld [vmem:[#allocation2 + $0x48] sm:$0x3f]
          %v1996 = vld [vmem:[#allocation8] sm:$0x1]
          %v1998 = vlaneseq
          %v1999 = vshrl.u32 %v1998, 7
          %v2000 = vsub.s32 0, %v1999
          %v2001 = vrot.slane %v1996, %v2000
          %v2003 = vadd.f32 %v1986, %v2001
          %v2004 = vadd.f32 %v1987, %v2001
          %v2005 = vadd.f32 %v1988, %v2001
          %v2006 = vadd.f32 %v1989, %v2001
          %v2007 = vadd.f32 %v1990, %v2001
          %v2008 = vadd.f32 %v1991, %v2001
          %v2009 = vadd.f32 %v1992, %v2001
          %v2010 = vadd.f32 %v1993, %v2001
          %v2011 = vadd.f32 %v1994, %v2001
          %v2012 = vadd.f32 %v1995, %v2001
          %2013 = vst [vmem:[%s268] sm:$0xff] %v2003
          %2014 = vst [vmem:[%s268 + $0x8] sm:$0xff] %v2004
          %2015 = vst [vmem:[%s268 + $0x10] sm:$0xff] %v2005
          %2016 = vst [vmem:[%s268 + $0x18] sm:$0xff] %v2006
          %2017 = vst [vmem:[%s268 + $0x20] sm:$0xff] %v2007
          %2018 = vst [vmem:[%s268 + $0x28] sm:$0xff] %v2008
          %2019 = vst [vmem:[%s268 + $0x30] sm:$0xff] %v2009
          %2020 = vst [vmem:[%s268 + $0x38] sm:$0xff] %v2010
          %2021 = vst [vmem:[%s268 + $0x40] sm:$0xff] %v2011
          %2022 = vst [vmem:[%s268 + $0x48] sm:$0x3f] %v2012
        $region52: #{_lambda_.8} parent=31 // pred_fallthru
          _
        %s2023 = sand.u32 %s129, 1
        %s2024 = scalar_lea.sflag [#allocation5], %s2023
        %s2025 = sand.u32 %s129, 1
        %s2026 = smul.addr %s2025, 80
        %s2027 = scalar_lea.vmem [#allocation9], %s2026
        // Predicated region
        $region53: #{_lambda_.8} parent=31 // pred_check
          %p2028 = pneg %p139
        $region54: #{_lambda_.8} parent=31 // pred_check_branch
          %2030 = sbr.rel (%p2028) target = $region56
        $region55: #{_lambda_.8} parent=31 // pred_region
          %s2032 = ssub.s32 1280, 1280
          %2033 = vsyncadd %s2024, %s2032
          %s2034 = smul.addr %s29, 10
          %s2035 = smul.addr %s28, 40
          %s2036 = sadd.s32 %s2034, %s2035
          %s2037 = smul.addr %s2036, 128
          %s2038 = scalar_lea.hbm %s3, %s2037
          %s2039 = sshll.u32 %s2027, 4
          %s2040 = int_to_ptr.vmem [resolvable:$true] %s2039
          %2045 = dma.vmem_to_hbm [thread:$0]  %s2040, 1280, %s2038, %s2024, 128, 128, 8
        $region56: #{_lambda_.8} parent=31 // pred_fallthru
          _
      $region32: #{_lambda_.8} parent=5 // pred_fallthru
        _
      %p2046 = scmp.le.s32.totalorder 2, %s18
      // Predicated region
      $region57: #{_lambda_.8} parent=5 // pred_check
        %p2047 = pneg %p2046
      $region58: #{_lambda_.8} parent=5 // pred_check_branch
        %2049 = sbr.rel (%p2047) target = $region60
      $region59: #{_lambda_.8} parent=5 // pred_region
        %s2050 = ssub.s32 %s18, 2
        // Predicated region
        $region61: #{_lambda_.8} parent=59 // pred_check
          %p2051 = pneg %p145
        $region62: #{_lambda_.8} parent=59 // pred_check_branch
          %2053 = sbr.rel (%p2051) target = $region64
        $region63: #{_lambda_.8} parent=59 // pred_region
          %s2054 = sand.u32 %s130, 1
          %s2055 = scalar_lea.sflag [#allocation5], %s2054
          %s2056 = sand.u32 %s130, 1
          %s2057 = smul.addr %s2056, 80
          %s2058 = scalar_lea.vmem [#allocation9], %s2057
          %2059 = dma.done %s2055, 1280
        $region64: #{_lambda_.8} parent=59 // pred_fallthru
          _
      $region60: #{_lambda_.8} parent=5 // pred_fallthru
        _
    $region6: #{_lambda_.8} parent=1 // loop_footer
      %s22 = sadd.s32 1, %s18
    $region7: #{_lambda_.8} parent=1 // loop_footer_branch
      %17 = sbr.rel target = $region3
    $region8: #{_lambda_.8} parent=1 // loop_exit
      _
    %2060 = vsyncpa [#allocation4], 1
    %s2061 = scalar_lea.sflag [#allocation4], 1
    %2062 = vsyncpa %s2061, 1
    %2063 = vsyncpa [#allocation7], 1
    %s2064 = scalar_lea.sflag [#allocation7], 1
    %2065 = vsyncpa %s2064, 1
    %2066 = vsyncpa [#allocation5], 1
    %s2067 = scalar_lea.sflag [#allocation5], 1
    %2068 = vsyncpa %s2067, 1

// kernel: _lambda_.10
$region0: #{_lambda_.10}
  #allocation0 [shape = 'u32[]', space=smem, size = 0x4, offset = 0x4, fixed_abs, tag = 'smem constant byte address 0x4 - core index']
  #allocation1 [shape = 'u32[144,128]{1,0:T(1,128)}', space=vmem, size = 0x12000, scoped, tag = 'internal scratch']
  %s0 = inlined_call_operand.vmem [shape: f32[2,32,16], index: 0, kind: input, shape index: {}]
  %s1 = inlined_call_operand.vmem [shape: f32[1,16], index: 1, kind: input, shape index: {}]
  %s2 = inlined_call_operand.vmem [shape: f32[1,16], index: 2, kind: input, shape index: {}]
  %s3 = inlined_call_operand.vmem [shape: f32[16,4], index: 3, kind: input, shape index: {}]
  %s4 = inlined_call_operand.vmem [shape: f32[4,16], index: 4, kind: input, shape index: {}]
  %s5 = inlined_call_operand.vmem [shape: f32[2,32,16], index: 5, kind: output, shape index: {}]
  %s6 = sld [smem:[#allocation0]]
  $region53: #{_lambda_.10} parent=0
    _
  %s8 = ssub.s32 1, %s6
  %s9 = scalar_select 0, %s8, %s6
  loop: start=0, step=1, limit=4
  $region2: #{_lambda_.10} parent=0 // loop_pre_header
    _
  $region3: #{_lambda_.10} parent=0 // loop_header
    %s11 = sphi 0, %s15
    %p12 = scmp.ge.s32.totalorder %s11, 4
    %s21 = sphi 0, %s23
    %s24 = sphi 0, %s21
    %s25 = sphi 0, %s24
    %s41 = sphi 0, %s25
    %s45 = sphi 0, %s45
    %s47 = sphi 0, %s45
    %s48 = sphi 0, %s47
    %s62 = sphi 0, %s48
    %s66 = sphi 0, %s66
    %s68 = sphi 0, %s66
    %s69 = sphi 0, %s68
    %s83 = sphi 0, %s69
    %s87 = sphi 0, %s87
    %s89 = sphi 0, %s87
    %s90 = sphi 0, %s89
    %s104 = sphi 0, %s90
    %s108 = sphi 0, %s108
    %s110 = sphi 0, %s108
    %s111 = sphi 0, %s110
    %s125 = sphi 0, %s111
    %s131 = sphi 0, %s133
    %s134 = sphi 0, %s131
    %s135 = sphi 0, %s134
    %s151 = sphi 0, %s135
  $region4: #{_lambda_.10} parent=0 // loop_header_branch
    %14 = sbr.rel (%p12) target = $region8
  $region5: #{_lambda_.10} parent=0 // loop_body
    %s16 = ssub.s32 %s11, 1
    %s17 = ssub.s32 %s11, 2
    %s18 = sadd.s32 %s11, 1
    %s19 = ssub.s32 %s11, %s18
    %p20 = scmp.eq.s32.totalorder %s19, 0
    %s22 = sadd.s32 %s21, 1
    %s23 = scalar_select %p20, %s21, %s22
    %p26 = pneg %p20
    %p27 = scmp.eq.s32.totalorder %s11, 1
    %p28 = por %p26, %p27
    %p29 = scmp.ne.s32.totalorder %s21, %s24
    %p30 = scmp.eq.s32.totalorder %s11, 0
    %p31 = por %p29, %p30
    %p32 = scmp.ne.s32.totalorder %s21, %s24
    %p33 = scmp.eq.s32.totalorder %s16, 1
    %p34 = por %p32, %p33
    %p35 = scmp.ne.s32.totalorder %s24, %s25
    %p36 = scmp.eq.s32.totalorder %s16, 0
    %p37 = por %p35, %p36
    %p38 = scmp.ne.s32.totalorder %s24, %s25
    %p39 = scmp.eq.s32.totalorder %s17, 1
    %p40 = por %p38, %p39
    %p42 = scmp.ne.s32.totalorder %s25, %s41
    %p43 = scmp.eq.s32.totalorder %s17, 0
    %p44 = por %p42, %p43
    %s46 = sadd.s32 %s45, 1
    %p49 = scmp.eq.s32.totalorder %s11, 1
    %p50 = scmp.ne.s32.totalorder %s45, %s47
    %p51 = scmp.eq.s32.totalorder %s11, 0
    %p52 = por %p50, %p51
    %p53 = scmp.ne.s32.totalorder %s45, %s47
    %p54 = scmp.eq.s32.totalorder %s16, 1
    %p55 = por %p53, %p54
    %p56 = scmp.ne.s32.totalorder %s47, %s48
    %p57 = scmp.eq.s32.totalorder %s16, 0
    %p58 = por %p56, %p57
    %p59 = scmp.ne.s32.totalorder %s47, %s48
    %p60 = scmp.eq.s32.totalorder %s17, 1
    %p61 = por %p59, %p60
    %p63 = scmp.ne.s32.totalorder %s48, %s62
    %p64 = scmp.eq.s32.totalorder %s17, 0
    %p65 = por %p63, %p64
    %s67 = sadd.s32 %s66, 1
    %p70 = scmp.eq.s32.totalorder %s11, 1
    %p71 = scmp.ne.s32.totalorder %s66, %s68
    %p72 = scmp.eq.s32.totalorder %s11, 0
    %p73 = por %p71, %p72
    %p74 = scmp.ne.s32.totalorder %s66, %s68
    %p75 = scmp.eq.s32.totalorder %s16, 1
    %p76 = por %p74, %p75
    %p77 = scmp.ne.s32.totalorder %s68, %s69
    %p78 = scmp.eq.s32.totalorder %s16, 0
    %p79 = por %p77, %p78
    %p80 = scmp.ne.s32.totalorder %s68, %s69
    %p81 = scmp.eq.s32.totalorder %s17, 1
    %p82 = por %p80, %p81
    %p84 = scmp.ne.s32.totalorder %s69, %s83
    %p85 = scmp.eq.s32.totalorder %s17, 0
    %p86 = por %p84, %p85
    %s88 = sadd.s32 %s87, 1
    %p91 = scmp.eq.s32.totalorder %s11, 1
    %p92 = scmp.ne.s32.totalorder %s87, %s89
    %p93 = scmp.eq.s32.totalorder %s11, 0
    %p94 = por %p92, %p93
    %p95 = scmp.ne.s32.totalorder %s87, %s89
    %p96 = scmp.eq.s32.totalorder %s16, 1
    %p97 = por %p95, %p96
    %p98 = scmp.ne.s32.totalorder %s89, %s90
    %p99 = scmp.eq.s32.totalorder %s16, 0
    %p100 = por %p98, %p99
    %p101 = scmp.ne.s32.totalorder %s89, %s90
    %p102 = scmp.eq.s32.totalorder %s17, 1
    %p103 = por %p101, %p102
    %p105 = scmp.ne.s32.totalorder %s90, %s104
    %p106 = scmp.eq.s32.totalorder %s17, 0
    %p107 = por %p105, %p106
    %s109 = sadd.s32 %s108, 1
    %p112 = scmp.eq.s32.totalorder %s11, 1
    %p113 = scmp.ne.s32.totalorder %s108, %s110
    %p114 = scmp.eq.s32.totalorder %s11, 0
    %p115 = por %p113, %p114
    %p116 = scmp.ne.s32.totalorder %s108, %s110
    %p117 = scmp.eq.s32.totalorder %s16, 1
    %p118 = por %p116, %p117
    %p119 = scmp.ne.s32.totalorder %s110, %s111
    %p120 = scmp.eq.s32.totalorder %s16, 0
    %p121 = por %p119, %p120
    %p122 = scmp.ne.s32.totalorder %s110, %s111
    %p123 = scmp.eq.s32.totalorder %s17, 1
    %p124 = por %p122, %p123
    %p126 = scmp.ne.s32.totalorder %s111, %s125
    %p127 = scmp.eq.s32.totalorder %s17, 0
    %p128 = por %p126, %p127
    %s129 = ssub.s32 %s11, %s18
    %p130 = scmp.eq.s32.totalorder %s129, 0
    %s132 = sadd.s32 %s131, 1
    %s133 = scalar_select %p130, %s131, %s132
    %p136 = pneg %p130
    %p137 = scmp.eq.s32.totalorder %s11, 1
    %p138 = por %p136, %p137
    %p139 = scmp.ne.s32.totalorder %s131, %s134
    %p140 = scmp.eq.s32.totalorder %s11, 0
    %p141 = por %p139, %p140
    %p142 = scmp.ne.s32.totalorder %s131, %s134
    %p143 = scmp.eq.s32.totalorder %s16, 1
    %p144 = por %p142, %p143
    %p145 = scmp.ne.s32.totalorder %s134, %s135
    %p146 = scmp.eq.s32.totalorder %s16, 0
    %p147 = por %p145, %p146
    %p148 = scmp.ne.s32.totalorder %s134, %s135
    %p149 = scmp.eq.s32.totalorder %s17, 1
    %p150 = por %p148, %p149
    %p152 = scmp.ne.s32.totalorder %s135, %s151
    %p153 = scmp.eq.s32.totalorder %s17, 0
    %p154 = por %p152, %p153
    %p155 = scmp.le.s32.totalorder 1, %s11
    %p156 = scmp.lt.s32.totalorder %s11, 3
    %p157 = pnand %p155, %p156
    %p158 = pneg %p157
    // Predicated region
    $region9: #{_lambda_.10} parent=5 // pred_check
      _
    $region10: #{_lambda_.10} parent=5 // pred_check_branch
      %160 = sbr.rel (%p157) target = $region12
    $region11: #{_lambda_.10} parent=5 // pred_region
      %s161 = ssub.s32 %s11, 1
      // Predicated region
      $region13: #{_lambda_.10} parent=11 // pred_check
        %p162 = pneg %p58
      $region14: #{_lambda_.10} parent=11 // pred_check_branch
        %164 = sbr.rel (%p162) target = $region16
      $region15: #{_lambda_.10} parent=11 // pred_region
        _
      $region16: #{_lambda_.10} parent=11 // pred_fallthru
        _
      // Predicated region
      $region17: #{_lambda_.10} parent=11 // pred_check
        %p165 = pneg %p79
      $region18: #{_lambda_.10} parent=11 // pred_check_branch
        %167 = sbr.rel (%p165) target = $region20
      $region19: #{_lambda_.10} parent=11 // pred_region
        _
      $region20: #{_lambda_.10} parent=11 // pred_fallthru
        _
      // Predicated region
      $region21: #{_lambda_.10} parent=11 // pred_check
        %p168 = pneg %p100
      $region22: #{_lambda_.10} parent=11 // pred_check_branch
        %170 = sbr.rel (%p168) target = $region24
      $region23: #{_lambda_.10} parent=11 // pred_region
        _
      $region24: #{_lambda_.10} parent=11 // pred_fallthru
        _
      // Predicated region
      $region25: #{_lambda_.10} parent=11 // pred_check
        %p171 = pneg %p121
      $region26: #{_lambda_.10} parent=11 // pred_check_branch
        %173 = sbr.rel (%p171) target = $region28
      $region27: #{_lambda_.10} parent=11 // pred_region
        _
      $region28: #{_lambda_.10} parent=11 // pred_fallthru
        _
    $region12: #{_lambda_.10} parent=5 // pred_fallthru
      _
    %p174 = scmp.lt.s32.totalorder %s11, 2
    // Predicated region
    $region29: #{_lambda_.10} parent=5 // pred_check
      %p175 = pneg %p174
    $region30: #{_lambda_.10} parent=5 // pred_check_branch
      %177 = sbr.rel (%p175) target = $region32
    $region31: #{_lambda_.10} parent=5 // pred_region
      // Predicated region
      $region33: #{_lambda_.10} parent=31 // pred_check
        %p178 = pneg %p31
      $region34: #{_lambda_.10} parent=31 // pred_check_branch
        %180 = sbr.rel (%p178) target = $region36
      $region35: #{_lambda_.10} parent=31 // pred_region
        %p181 = scmp.lt.s32.totalorder %s11, 1
        %s182 = scalar_select %p181, %s11, 1
        %s183 = smul.addr %s182, 4
        %s184 = smul.addr %s183, 8
        %s185 = scalar_lea.vmem %s0, %s184
      $region36: #{_lambda_.10} parent=31 // pred_fallthru
        _
    $region32: #{_lambda_.10} parent=5 // pred_fallthru
      _
    %p186 = scmp.le.s32.totalorder 1, %s11
    %p187 = scmp.lt.s32.totalorder %s11, 3
    %p188 = pnand %p186, %p187
    %p189 = pneg %p188
    // Predicated region
    $region37: #{_lambda_.10} parent=5 // pred_check
      _
    $region38: #{_lambda_.10} parent=5 // pred_check_branch
      %191 = sbr.rel (%p188) target = $region40
    $region39: #{_lambda_.10} parent=5 // pred_region
      %s192 = ssub.s32 %s11, 1
      %p193 = scmp.lt.s32.totalorder %s16, 1
      %s194 = scalar_select %p193, %s16, 1
      %s195 = smul.addr %s194, 4
      %s196 = smul.addr %s195, 8
      %s197 = scalar_lea.vmem %s0, %s196
      %p198 = pneg %p37
      %p199 = pneg %p34
      %p200 = pneg %p58
      %p201 = pneg %p55
      %p202 = pneg %p79
      %p203 = pneg %p76
      %p204 = pneg %p100
      %p205 = pneg %p97
      %p206 = pneg %p121
      %p207 = pneg %p118
      %p208 = pneg %p147
      %p209 = pneg %p144
      %p210 = scmp.lt.s32.totalorder %s16, 1
      %s211 = scalar_select %p210, %s16, 1
      %s212 = smul.addr %s211, 4
      %s213 = smul.addr %s212, 8
      %s214 = scalar_lea.vmem %s5, %s213
      %p215 = scmp.lt.s32.totalorder %s16, 1
      %s216 = scalar_select %p215, %s16, 1
      %s217 = smul.addr %s216, 4
      %s218 = smul.addr %s217, 8
      %s219 = scalar_lea.vmem %s0, %s218
      %p220 = scmp.lt.s32.totalorder %s16, 1
      %s221 = scalar_select %p220, %s16, 1
      %s222 = smul.addr %s221, 4
      %s223 = smul.addr %s222, 8
      %s224 = scalar_lea.vmem %s5, %s223
      %v225 = vld [vmem:[%s219] sm:$0xff]
      %v226 = vld [vmem:[%s219 + $0x8] sm:$0xff]
      %v227 = vld [vmem:[%s219 + $0x10] sm:$0xff]
      %v228 = vld [vmem:[%s219 + $0x18] sm:$0xff]
      %vm229 = vcmask 130048
      %v230 = vsel %vm229, %v225, 0.0
      %v231 = vsel %vm229, %v226, 0.0
      %v232 = vadd.f32 %v230, %v231
      %v233 = vsel %vm229, %v227, 0.0
      %v234 = vadd.f32 %v232, %v233
      %v235 = vsel %vm229, %v228, 0.0
      %v236 = vadd.f32 %v234, %v235
      %v237 = vrot.slane %v236, 4
      %v238 = vadd.f32 %v236, %v237
      %v239 = vrot.slane %v238, 2
      %v240 = vadd.f32 %v238, %v239
      %v241 = vrot.slane %v240, 1
      %v242 = vadd.f32 %v240, %v241
      %v243 = vmul.f32 %v225, %v225
      %v244 = vmul.f32 %v226, %v226
      %v245 = vmul.f32 %v227, %v227
      %v246 = vmul.f32 %v228, %v228
      %v247 = vsel %vm229, %v243, 0.0
      %v248 = vsel %vm229, %v244, 0.0
      %v249 = vadd.f32 %v247, %v248
      %v250 = vsel %vm229, %v245, 0.0
      %v251 = vadd.f32 %v249, %v250
      %v252 = vsel %vm229, %v246, 0.0
      %v253 = vadd.f32 %v251, %v252
      %v254 = vrot.slane %v253, 4
      %v255 = vadd.f32 %v253, %v254
      %v256 = vrot.slane %v255, 2
      %v257 = vadd.f32 %v255, %v256
      %v258 = vrot.slane %v257, 1
      %v259 = vadd.f32 %v257, %v258
      %v260 = vld [vmem:[%s3] sm:$0xff]
      %v261 = vld [vmem:[%s3 + $0x8] sm:$0xff]
      %v263 = vsel %vm229, %v242, 0
      %265 = vmatprep.subr.mxu0 0.0
      %266 = vmatpush1.msra.mxu0 %v260
      %267 = vmatprep.subr.mxu0 0.0
      %268 = vmatpush1.msra.mxu0 %v261
      %269 = vmatprep.subr.mxu0 0.0
      %270 = vmatpush1.msra.mxu0 0.0
      %271 = vmatprep.subr.mxu0 0.0
      %272 = vmatpush1.msra.mxu0 0.0
      %273 = vmatprep.subr.mxu0 0.0
      %274 = vmatpush1.msra.mxu0 0.0
      %275 = vmatprep.subr.mxu0 0.0
      %276 = vmatpush1.msra.mxu0 0.0
      %277 = vmatprep.subr.mxu0 0.0
      %278 = vmatpush1.msra.mxu0 0.0
      %279 = vmatprep.subr.mxu0 0.0
      %280 = vmatpush1.msra.mxu0 0.0
      %281 = vmatprep.subr.mxu0 0.0
      %282 = vmatpush1.msra.mxu0 0.0
      %283 = vmatprep.subr.mxu0 0.0
      %284 = vmatpush1.msra.mxu0 0.0
      %285 = vmatprep.subr.mxu0 0.0
      %286 = vmatpush1.msra.mxu0 0.0
      %287 = vmatprep.subr.mxu0 0.0
      %288 = vmatpush1.msra.mxu0 0.0
      %289 = vmatprep.subr.mxu0 0.0
      %290 = vmatpush1.msra.mxu0 0.0
      %291 = vmatprep.subr.mxu0 0.0
      %292 = vmatpush1.msra.mxu0 0.0
      %293 = vmatprep.subr.mxu0 0.0
      %294 = vmatpush1.msra.mxu0 0.0
      %295 = vmatprep.subr.mxu0 0.0
      %296 = vmatpush1.msra.mxu0 0.0
      %297 = vmatprep.subr.mxu0 0.0
      %298 = vmatpush1.msra.mxu0 0.0
      %299 = vmatprep.subr.mxu0 0.0
      %300 = vmatpush1.msra.mxu0 0.0
      %301 = vmatprep.subr.mxu0 0.0
      %302 = vmatpush1.msra.mxu0 0.0
      %303 = vmatprep.subr.mxu0 0.0
      %304 = vmatpush1.msra.mxu0 0.0
      %305 = vmatprep.subr.mxu0 0.0
      %306 = vmatpush1.msra.mxu0 0.0
      %307 = vmatprep.subr.mxu0 0.0
      %308 = vmatpush1.msra.mxu0 0.0
      %309 = vmatprep.subr.mxu0 0.0
      %310 = vmatpush1.msra.mxu0 0.0
      %311 = vmatprep.subr.mxu0 0.0
      %312 = vmatpush1.msra.mxu0 0.0
      %313 = vmatprep.subr.mxu0 0.0
      %314 = vmatpush1.msra.mxu0 0.0
      %315 = vmatprep.subr.mxu0 0.0
      %316 = vmatpush1.msra.mxu0 0.0
      %317 = vmatprep.subr.mxu0 0.0
      %318 = vmatpush1.msra.mxu0 0.0
      %319 = vmatprep.subr.mxu0 0.0
      %320 = vmatpush1.msra.mxu0 0.0
      %321 = vmatprep.subr.mxu0 0.0
      %322 = vmatpush1.msra.mxu0 0.0
      %323 = vmatprep.subr.mxu0 0.0
      %324 = vmatpush1.msra.mxu0 0.0
      %325 = vmatprep.subr.mxu0 0.0
      %326 = vmatpush1.msra.mxu0 0.0
      %327 = vmatprep.subr.mxu0 0.0
      %328 = vmatpush1.msra.mxu0 0.0
      %329 = vmatprep.mubr.f32.mxu0 0.0
      %330 = vmatmul.mubr.f32.gmra.mrb[0].mxu0 %v263
      %v331 = vpop.f32.mrb[0].mxu0
      %v332 = vadd.f32 0.0, %v331
      %v333 = vpop.f32.mrb[0].mxu0
      %334 = vdwg.mxu0
      %v336 = vsel %vm229, %v259, 0
      %338 = vmatprep.subr.mxu0 0.0
      %339 = vmatpush1.msra.mxu0 %v260
      %340 = vmatprep.subr.mxu0 0.0
      %341 = vmatpush1.msra.mxu0 %v261
      %342 = vmatprep.subr.mxu0 0.0
      %343 = vmatpush1.msra.mxu0 0.0
      %344 = vmatprep.subr.mxu0 0.0
      %345 = vmatpush1.msra.mxu0 0.0
      %346 = vmatprep.subr.mxu0 0.0
      %347 = vmatpush1.msra.mxu0 0.0
      %348 = vmatprep.subr.mxu0 0.0
      %349 = vmatpush1.msra.mxu0 0.0
      %350 = vmatprep.subr.mxu0 0.0
      %351 = vmatpush1.msra.mxu0 0.0
      %352 = vmatprep.subr.mxu0 0.0
      %353 = vmatpush1.msra.mxu0 0.0
      %354 = vmatprep.subr.mxu0 0.0
      %355 = vmatpush1.msra.mxu0 0.0
      %356 = vmatprep.subr.mxu0 0.0
      %357 = vmatpush1.msra.mxu0 0.0
      %358 = vmatprep.subr.mxu0 0.0
      %359 = vmatpush1.msra.mxu0 0.0
      %360 = vmatprep.subr.mxu0 0.0
      %361 = vmatpush1.msra.mxu0 0.0
      %362 = vmatprep.subr.mxu0 0.0
      %363 = vmatpush1.msra.mxu0 0.0
      %364 = vmatprep.subr.mxu0 0.0
      %365 = vmatpush1.msra.mxu0 0.0
      %366 = vmatprep.subr.mxu0 0.0
      %367 = vmatpush1.msra.mxu0 0.0
      %368 = vmatprep.subr.mxu0 0.0
      %369 = vmatpush1.msra.mxu0 0.0
      %370 = vmatprep.subr.mxu0 0.0
      %371 = vmatpush1.msra.mxu0 0.0
      %372 = vmatprep.subr.mxu0 0.0
      %373 = vmatpush1.msra.mxu0 0.0
      %374 = vmatprep.subr.mxu0 0.0
      %375 = vmatpush1.msra.mxu0 0.0
      %376 = vmatprep.subr.mxu0 0.0
      %377 = vmatpush1.msra.mxu0 0.0
      %378 = vmatprep.subr.mxu0 0.0
      %379 = vmatpush1.msra.mxu0 0.0
      %380 = vmatprep.subr.mxu0 0.0
      %381 = vmatpush1.msra.mxu0 0.0
      %382 = vmatprep.subr.mxu0 0.0
      %383 = vmatpush1.msra.mxu0 0.0
      %384 = vmatprep.subr.mxu0 0.0
      %385 = vmatpush1.msra.mxu0 0.0
      %386 = vmatprep.subr.mxu0 0.0
      %387 = vmatpush1.msra.mxu0 0.0
      %388 = vmatprep.subr.mxu0 0.0
      %389 = vmatpush1.msra.mxu0 0.0
      %390 = vmatprep.subr.mxu0 0.0
      %391 = vmatpush1.msra.mxu0 0.0
      %392 = vmatprep.subr.mxu0 0.0
      %393 = vmatpush1.msra.mxu0 0.0
      %394 = vmatprep.subr.mxu0 0.0
      %395 = vmatpush1.msra.mxu0 0.0
      %396 = vmatprep.subr.mxu0 0.0
      %397 = vmatpush1.msra.mxu0 0.0
      %398 = vmatprep.subr.mxu0 0.0
      %399 = vmatpush1.msra.mxu0 0.0
      %400 = vmatprep.subr.mxu0 0.0
      %401 = vmatpush1.msra.mxu0 0.0
      %402 = vmatprep.mubr.f32.mxu0 0.0
      %403 = vmatmul.mubr.f32.gmra.mrb[0].mxu0 %v336
      %v404 = vpop.f32.mrb[0].mxu0
      %v405 = vadd.f32 0.0, %v404
      %v406 = vpop.f32.mrb[0].mxu0
      %407 = vdwg.mxu0
      %v408 = vmul.f32 %v332, 0.0078125
      %v409 = vmul.f32 %v405, 0.0078125
      %v410 = vmul.f32 %v408, %v408
      %v411 = vsub.f32 %v409, %v410
      %v412 = vmax.f32 %v411, 0.0
      %v413 = vadd.f32 %v412, 1e-06
      %v414 = vrsqrt.pop %v413
      %v415 = vld [vmem:[%s4] sm:$0xf]
      %vm416 = vcmask 31744
      %v418 = vsel %vm416, %v408, 0
      %vm420 = vcmask 1043456
      %v422 = vsel %vm420, %v415, 0
      %424 = vmatprep.subr.mxu0 0.0
      %425 = vmatpush1.msra.mxu0 %v422
      %426 = vmatprep.subr.mxu0 0.0
      %427 = vmatpush1.msra.mxu0 0.0
      %428 = vmatprep.subr.mxu0 0.0
      %429 = vmatpush1.msra.mxu0 0.0
      %430 = vmatprep.subr.mxu0 0.0
      %431 = vmatpush1.msra.mxu0 0.0
      %432 = vmatprep.subr.mxu0 0.0
      %433 = vmatpush1.msra.mxu0 0.0
      %434 = vmatprep.subr.mxu0 0.0
      %435 = vmatpush1.msra.mxu0 0.0
      %436 = vmatprep.subr.mxu0 0.0
      %437 = vmatpush1.msra.mxu0 0.0
      %438 = vmatprep.subr.mxu0 0.0
      %439 = vmatpush1.msra.mxu0 0.0
      %440 = vmatprep.subr.mxu0 0.0
      %441 = vmatpush1.msra.mxu0 0.0
      %442 = vmatprep.subr.mxu0 0.0
      %443 = vmatpush1.msra.mxu0 0.0
      %444 = vmatprep.subr.mxu0 0.0
      %445 = vmatpush1.msra.mxu0 0.0
      %446 = vmatprep.subr.mxu0 0.0
      %447 = vmatpush1.msra.mxu0 0.0
      %448 = vmatprep.subr.mxu0 0.0
      %449 = vmatpush1.msra.mxu0 0.0
      %450 = vmatprep.subr.mxu0 0.0
      %451 = vmatpush1.msra.mxu0 0.0
      %452 = vmatprep.subr.mxu0 0.0
      %453 = vmatpush1.msra.mxu0 0.0
      %454 = vmatprep.subr.mxu0 0.0
      %455 = vmatpush1.msra.mxu0 0.0
      %456 = vmatprep.subr.mxu0 0.0
      %457 = vmatpush1.msra.mxu0 0.0
      %458 = vmatprep.subr.mxu0 0.0
      %459 = vmatpush1.msra.mxu0 0.0
      %460 = vmatprep.subr.mxu0 0.0
      %461 = vmatpush1.msra.mxu0 0.0
      %462 = vmatprep.subr.mxu0 0.0
      %463 = vmatpush1.msra.mxu0 0.0
      %464 = vmatprep.subr.mxu0 0.0
      %465 = vmatpush1.msra.mxu0 0.0
      %466 = vmatprep.subr.mxu0 0.0
      %467 = vmatpush1.msra.mxu0 0.0
      %468 = vmatprep.subr.mxu0 0.0
      %469 = vmatpush1.msra.mxu0 0.0
      %470 = vmatprep.subr.mxu0 0.0
      %471 = vmatpush1.msra.mxu0 0.0
      %472 = vmatprep.subr.mxu0 0.0
      %473 = vmatpush1.msra.mxu0 0.0
      %474 = vmatprep.subr.mxu0 0.0
      %475 = vmatpush1.msra.mxu0 0.0
      %476 = vmatprep.subr.mxu0 0.0
      %477 = vmatpush1.msra.mxu0 0.0
      %478 = vmatprep.subr.mxu0 0.0
      %479 = vmatpush1.msra.mxu0 0.0
      %480 = vmatprep.subr.mxu0 0.0
      %481 = vmatpush1.msra.mxu0 0.0
      %482 = vmatprep.subr.mxu0 0.0
      %483 = vmatpush1.msra.mxu0 0.0
      %484 = vmatprep.subr.mxu0 0.0
      %485 = vmatpush1.msra.mxu0 0.0
      %486 = vmatprep.subr.mxu0 0.0
      %487 = vmatpush1.msra.mxu0 0.0
      %488 = vmatprep.mubr.f32.mxu0 0.0
      %489 = vmatmul.mubr.f32.gmra.mrb[0].mxu0 %v418
      %v490 = vpop.f32.mrb[0].mxu0
      %v491 = vadd.f32 0.0, %v490
      %v492 = vpop.f32.mrb[0].mxu0
      %493 = vdwg.mxu0
      %v495 = vsel %vm416, %v414, 0
      %497 = vmatprep.subr.mxu0 0.0
      %498 = vmatpush1.msra.mxu0 %v422
      %499 = vmatprep.subr.mxu0 0.0
      %500 = vmatpush1.msra.mxu0 0.0
      %501 = vmatprep.subr.mxu0 0.0
      %502 = vmatpush1.msra.mxu0 0.0
      %503 = vmatprep.subr.mxu0 0.0
      %504 = vmatpush1.msra.mxu0 0.0
      %505 = vmatprep.subr.mxu0 0.0
      %506 = vmatpush1.msra.mxu0 0.0
      %507 = vmatprep.subr.mxu0 0.0
      %508 = vmatpush1.msra.mxu0 0.0
      %509 = vmatprep.subr.mxu0 0.0
      %510 = vmatpush1.msra.mxu0 0.0
      %511 = vmatprep.subr.mxu0 0.0
      %512 = vmatpush1.msra.mxu0 0.0
      %513 = vmatprep.subr.mxu0 0.0
      %514 = vmatpush1.msra.mxu0 0.0
      %515 = vmatprep.subr.mxu0 0.0
      %516 = vmatpush1.msra.mxu0 0.0
      %517 = vmatprep.subr.mxu0 0.0
      %518 = vmatpush1.msra.mxu0 0.0
      %519 = vmatprep.subr.mxu0 0.0
      %520 = vmatpush1.msra.mxu0 0.0
      %521 = vmatprep.subr.mxu0 0.0
      %522 = vmatpush1.msra.mxu0 0.0
      %523 = vmatprep.subr.mxu0 0.0
      %524 = vmatpush1.msra.mxu0 0.0
      %525 = vmatprep.subr.mxu0 0.0
      %526 = vmatpush1.msra.mxu0 0.0
      %527 = vmatprep.subr.mxu0 0.0
      %528 = vmatpush1.msra.mxu0 0.0
      %529 = vmatprep.subr.mxu0 0.0
      %530 = vmatpush1.msra.mxu0 0.0
      %531 = vmatprep.subr.mxu0 0.0
      %532 = vmatpush1.msra.mxu0 0.0
      %533 = vmatprep.subr.mxu0 0.0
      %534 = vmatpush1.msra.mxu0 0.0
      %535 = vmatprep.subr.mxu0 0.0
      %536 = vmatpush1.msra.mxu0 0.0
      %537 = vmatprep.subr.mxu0 0.0
      %538 = vmatpush1.msra.mxu0 0.0
      %539 = vmatprep.subr.mxu0 0.0
      %540 = vmatpush1.msra.mxu0 0.0
      %541 = vmatprep.subr.mxu0 0.0
      %542 = vmatpush1.msra.mxu0 0.0
      %543 = vmatprep.subr.mxu0 0.0
      %544 = vmatpush1.msra.mxu0 0.0
      %545 = vmatprep.subr.mxu0 0.0
      %546 = vmatpush1.msra.mxu0 0.0
      %547 = vmatprep.subr.mxu0 0.0
      %548 = vmatpush1.msra.mxu0 0.0
      %549 = vmatprep.subr.mxu0 0.0
      %550 = vmatpush1.msra.mxu0 0.0
      %551 = vmatprep.subr.mxu0 0.0
      %552 = vmatpush1.msra.mxu0 0.0
      %553 = vmatprep.subr.mxu0 0.0
      %554 = vmatpush1.msra.mxu0 0.0
      %555 = vmatprep.subr.mxu0 0.0
      %556 = vmatpush1.msra.mxu0 0.0
      %557 = vmatprep.subr.mxu0 0.0
      %558 = vmatpush1.msra.mxu0 0.0
      %559 = vmatprep.subr.mxu0 0.0
      %560 = vmatpush1.msra.mxu0 0.0
      %561 = vmatprep.mubr.f32.mxu0 0.0
      %562 = vmatmul.mubr.f32.gmra.mrb[0].mxu0 %v495
      %v563 = vpop.f32.mrb[0].mxu0
      %v564 = vadd.f32 0.0, %v563
      %v565 = vpop.f32.mrb[0].mxu0
      %566 = vdwg.mxu0
      %v567 = vld [vmem:[%s1] sm:$0x1]
      %v568 = vmul.f32 %v567, %v564
      %v569 = vld [vmem:[%s2] sm:$0x1]
      %v570 = vmul.f32 %v491, %v568
      %v571 = vsub.f32 %v569, %v570
      %v573 = vlaneseq
      %v574 = vshrl.u32 %v573, 7
      %v575 = vsub.s32 0, %v574
      %v576 = vrot.slane %v568, %v575
      %v578 = vmul.f32 %v225, %v576
      %v579 = vmul.f32 %v226, %v576
      %v580 = vmul.f32 %v227, %v576
      %v581 = vmul.f32 %v228, %v576
      %v583 = vlaneseq
      %v584 = vshrl.u32 %v583, 7
      %v585 = vsub.s32 0, %v584
      %v586 = vrot.slane %v571, %v585
      %v588 = vadd.f32 %v578, %v586
      %v589 = vadd.f32 %v579, %v586
      %v590 = vadd.f32 %v580, %v586
      %v591 = vadd.f32 %v581, %v586
      %v592 = vxor.u32 %v588, 2147483648
      %v593 = vxor.u32 %v589, 2147483648
      %v594 = vxor.u32 %v590, 2147483648
      %v595 = vxor.u32 %v591, 2147483648
      %v596 = vmul.f32 %v592, 1.442695
      %v597 = vpow.pop %v596
      %v598 = vmul.f32 %v593, 1.442695
      %v599 = vpow.pop %v598
      %v600 = vmul.f32 %v594, 1.442695
      %v601 = vpow.pop %v600
      %v602 = vmul.f32 %v595, 1.442695
      %v603 = vpow.pop %v602
      %v604 = vadd.f32 %v597, 1.0
      %v605 = vadd.f32 %v599, 1.0
      %v606 = vadd.f32 %v601, 1.0
      %v607 = vadd.f32 %v603, 1.0
      %v608 = vrcp.pop %v604
      %v609 = vmul.f32 1.0, %v608
      %v610 = vrcp.pop %v605
      %v611 = vmul.f32 1.0, %v610
      %v612 = vrcp.pop %v606
      %v613 = vmul.f32 1.0, %v612
      %v614 = vrcp.pop %v607
      %v615 = vmul.f32 1.0, %v614
      %v616 = vmul.f32 %v588, %v609
      %v617 = vmul.f32 %v589, %v611
      %v618 = vmul.f32 %v590, %v613
      %v619 = vmul.f32 %v591, %v615
      %620 = vst.msk [vmem:[%s224] sm:$0xff] %vm229, %v616
      %621 = vst.msk [vmem:[%s224 + $0x8] sm:$0xff] %vm229, %v617
      %622 = vst.msk [vmem:[%s224 + $0x10] sm:$0xff] %vm229, %v618
      %623 = vst.msk [vmem:[%s224 + $0x18] sm:$0xff] %vm229, %v619
      %p624 = scmp.lt.s32.totalorder %s16, 1
      %s625 = scalar_select %p624, %s16, 1
      %s626 = smul.addr %s625, 4
      %s627 = smul.addr %s626, 8
      %s628 = scalar_lea.vmem %s5, %s627
      // Predicated region
      $region41: #{_lambda_.10} parent=39 // pred_check
        %p629 = pneg %p144
      $region42: #{_lambda_.10} parent=39 // pred_check_branch
        %631 = sbr.rel (%p629) target = $region44
      $region43: #{_lambda_.10} parent=39 // pred_region
        _
      $region44: #{_lambda_.10} parent=39 // pred_fallthru
        _
    $region40: #{_lambda_.10} parent=5 // pred_fallthru
      _
    %p632 = scmp.le.s32.totalorder 2, %s11
    // Predicated region
    $region45: #{_lambda_.10} parent=5 // pred_check
      %p633 = pneg %p632
    $region46: #{_lambda_.10} parent=5 // pred_check_branch
      %635 = sbr.rel (%p633) target = $region48
    $region47: #{_lambda_.10} parent=5 // pred_region
      %s636 = ssub.s32 %s11, 2
      // Predicated region
      $region49: #{_lambda_.10} parent=47 // pred_check
        %p637 = pneg %p150
      $region50: #{_lambda_.10} parent=47 // pred_check_branch
        %639 = sbr.rel (%p637) target = $region52
      $region51: #{_lambda_.10} parent=47 // pred_region
        %p640 = scmp.lt.s32.totalorder %s17, 1
        %s641 = scalar_select %p640, %s17, 1
        %s642 = smul.addr %s641, 4
        %s643 = smul.addr %s642, 8
        %s644 = scalar_lea.vmem %s5, %s643
      $region52: #{_lambda_.10} parent=47 // pred_fallthru
        _
    $region48: #{_lambda_.10} parent=5 // pred_fallthru
      _
  $region6: #{_lambda_.10} parent=0 // loop_footer
    %s15 = sadd.s32 1, %s11
  $region7: #{_lambda_.10} parent=0 // loop_footer_branch
    %10 = sbr.rel target = $region3
  $region8: #{_lambda_.10} parent=0 // loop_exit
    _

// kernel: _lambda_.9
$region0: #{_lambda_.9}
  #allocation0 [shape = 'u32[]', space=smem, size = 0x4, offset = 0x4, fixed_abs, tag = 'smem constant byte address 0x4 - core index']
  #allocation1 [shape = 'u32[144,128]{1,0:T(1,128)}', space=vmem, size = 0x12000, scoped, tag = 'internal scratch']
  #allocation2 [shape = 'f32[67,128]{1,0:T(8,128)}', space=vmem, size = 0x9000, scoped, tag = 'scratch operand']
  %s0 = inlined_call_operand.hbm [shape: bf16[2,6,100,8], index: 0, kind: input, shape index: {}]
  %s1 = inlined_call_operand.hbm [shape: bf16[4,128,128], index: 1, kind: input, shape index: {}]
  %s2 = inlined_call_operand.hbm [shape: f32[1,128], index: 2, kind: input, shape index: {}]
  %s3 = inlined_call_operand.hbm [shape: f32[2,3,70,128], index: 3, kind: output, shape index: {}]
  %s4 = sld [smem:[#allocation0]]
  $region65: #{_lambda_.9} parent=0
    _
  %s6 = ssub.s32 1, %s4
  %s7 = scalar_select 0, %s6, %s4
  $region1: #{_lambda_.9} parent=0
    #allocation3 [shape = 'u8[53248]{0}', space=vmem, size = 0xd000, scoped, tag = 'input window, operand 0']
    #allocation4 [shape = 's32[2]{0}', space=sflag, size = 0x8, scoped, tag = 'scoped memory for _lambda_.9']
    #allocation5 [shape = 's32[2]{0}', space=sflag, size = 0x8, scoped, tag = 'scoped memory for _lambda_.9']
    #allocation6 [shape = 'u8[65536]{0}', space=vmem, size = 0x10000, scoped, tag = 'input window, operand 1']
    #allocation7 [shape = 's32[2]{0}', space=sflag, size = 0x8, scoped, tag = 'scoped memory for _lambda_.9']
    #allocation8 [shape = 'u8[512]{0}', space=vmem, size = 0x400, scoped, tag = 'input window, operand 2, single buffered']
    #allocation9 [shape = 'u8[73728]{0}', space=vmem, size = 0x12000, scoped, tag = 'output window, operand 0']
    %8 = vsyncpa [#allocation4], 0
    %s9 = scalar_lea.sflag [#allocation4], 1
    %10 = vsyncpa %s9, 0
    %11 = vsyncpa [#allocation7], 0
    %s12 = scalar_lea.sflag [#allocation7], 1
    %13 = vsyncpa %s12, 0
    %14 = vsyncpa [#allocation5], 0
    %s15 = scalar_lea.sflag [#allocation5], 1
    %16 = vsyncpa %s15, 0
    loop: start=0, step=1, limit=26
    $region2: #{_lambda_.9} parent=1 // loop_pre_header
      _
    $region3: #{_lambda_.9} parent=1 // loop_header
      %s18 = sphi 0, %s22
      %p19 = scmp.ge.s32.totalorder %s18, 26
      %s25 = sphi 0, %s44
      %s26 = sphi 0, %s40
      %s27 = sphi 0, %s36
      %s28 = sphi 0, %s25
      %s29 = sphi 0, %s26
      %s30 = sphi 0, %s27
      %s31 = sphi 0, %s28
      %s32 = sphi 0, %s29
      %s33 = sphi 0, %s30
      %s51 = sphi 0, %s53
      %s54 = sphi 0, %s51
      %s55 = sphi 0, %s54
      %s71 = sphi 0, %s55
      %s77 = sphi 0, %s79
      %s80 = sphi 0, %s77
      %s81 = sphi 0, %s80
      %s97 = sphi 0, %s81
      %s101 = sphi 0, %s101
      %s103 = sphi 0, %s101
      %s104 = sphi 0, %s103
      %s118 = sphi 0, %s104
      %s126 = sphi 0, %s128
      %s129 = sphi 0, %s126
      %s130 = sphi 0, %s129
      %s146 = sphi 0, %s130
    $region4: #{_lambda_.9} parent=1 // loop_header_branch
      %21 = sbr.rel (%p19) target = $region8
    $region5: #{_lambda_.9} parent=1 // loop_body
      %s23 = ssub.s32 %s18, 1
      %s24 = ssub.s32 %s18, 2
      %s34 = sadd.s32 1, %s27
      %p35 = scmp.ge.s32.totalorder %s34, 4
      %s36 = scalar_select %p35, 0, %s34
      %s37 = sadd.s32 1, %s26
      %s38 = scalar_select %p35, %s37, %s26
      %p39 = scmp.ge.s32.totalorder %s38, 3
      %s40 = scalar_select %p39, 0, %s38
      %s41 = sadd.s32 1, %s25
      %s42 = scalar_select %p39, %s41, %s25
      %p43 = scmp.ge.s32.totalorder %s42, 2
      %s44 = scalar_select %p43, 0, %s42
      %s45 = sadd.s32 %s26, %s27
      %s46 = sadd.s32 %s40, %s36
      %s47 = ssub.s32 %s25, %s44
      %s48 = ssub.s32 %s45, %s46
      %s49 = sor.u32 %s47, %s48
      %p50 = scmp.eq.s32.totalorder %s49, 0
      %s52 = sadd.s32 %s51, 1
      %s53 = scalar_select %p50, %s51, %s52
      %p56 = pneg %p50
      %p57 = scmp.eq.s32.totalorder %s18, 23
      %p58 = por %p56, %p57
      %p59 = scmp.ne.s32.totalorder %s51, %s54
      %p60 = scmp.eq.s32.totalorder %s18, 0
      %p61 = por %p59, %p60
      %p62 = scmp.ne.s32.totalorder %s51, %s54
      %p63 = scmp.eq.s32.totalorder %s23, 23
      %p64 = por %p62, %p63
      %p65 = scmp.ne.s32.totalorder %s54, %s55
      %p66 = scmp.eq.s32.totalorder %s23, 0
      %p67 = por %p65, %p66
      %p68 = scmp.ne.s32.totalorder %s54, %s55
      %p69 = scmp.eq.s32.totalorder %s24, 23
      %p70 = por %p68, %p69
      %p72 = scmp.ne.s32.totalorder %s55, %s71
      %p73 = scmp.eq.s32.totalorder %s24, 0
      %p74 = por %p72, %p73
      %s75 = ssub.s32 %s27, %s36
      %p76 = scmp.eq.s32.totalorder %s75, 0
      %s78 = sadd.s32 %s77, 1
      %s79 = scalar_select %p76, %s77, %s78
      %p82 = pneg %p76
      %p83 = scmp.eq.s32.totalorder %s18, 23
      %p84 = por %p82, %p83
      %p85 = scmp.ne.s32.totalorder %s77, %s80
      %p86 = scmp.eq.s32.totalorder %s18, 0
      %p87 = por %p85, %p86
      %p88 = scmp.ne.s32.totalorder %s77, %s80
      %p89 = scmp.eq.s32.totalorder %s23, 23
      %p90 = por %p88, %p89
      %p91 = scmp.ne.s32.totalorder %s80, %s81
      %p92 = scmp.eq.s32.totalorder %s23, 0
      %p93 = por %p91, %p92
      %p94 = scmp.ne.s32.totalorder %s80, %s81
      %p95 = scmp.eq.s32.totalorder %s24, 23
      %p96 = por %p94, %p95
      %p98 = scmp.ne.s32.totalorder %s81, %s97
      %p99 = scmp.eq.s32.totalorder %s24, 0
      %p100 = por %p98, %p99
      %s102 = sadd.s32 %s101, 1
      %p105 = scmp.eq.s32.totalorder %s18, 23
      %p106 = scmp.ne.s32.totalorder %s101, %s103
      %p107 = scmp.eq.s32.totalorder %s18, 0
      %p108 = por %p106, %p107
      %p109 = scmp.ne.s32.totalorder %s101, %s103
      %p110 = scmp.eq.s32.totalorder %s23, 23
      %p111 = por %p109, %p110
      %p112 = scmp.ne.s32.totalorder %s103, %s104
      %p113 = scmp.eq.s32.totalorder %s23, 0
      %p114 = por %p112, %p113
      %p115 = scmp.ne.s32.totalorder %s103, %s104
      %p116 = scmp.eq.s32.totalorder %s24, 23
      %p117 = por %p115, %p116
      %p119 = scmp.ne.s32.totalorder %s104, %s118
      %p120 = scmp.eq.s32.totalorder %s24, 0
      %p121 = por %p119, %p120
      %s122 = ssub.s32 %s25, %s44
      %s123 = ssub.s32 %s26, %s40
      %s124 = sor.u32 %s122, %s123
      %p125 = scmp.eq.s32.totalorder %s124, 0
      %s127 = sadd.s32 %s126, 1
      %s128 = scalar_select %p125, %s126, %s127
      %p131 = pneg %p125
      %p132 = scmp.eq.s32.totalorder %s18, 23
      %p133 = por %p131, %p132
      %p134 = scmp.ne.s32.totalorder %s126, %s129
      %p135 = scmp.eq.s32.totalorder %s18, 0
      %p136 = por %p134, %p135
      %p137 = scmp.ne.s32.totalorder %s126, %s129
      %p138 = scmp.eq.s32.totalorder %s23, 23
      %p139 = por %p137, %p138
      %p140 = scmp.ne.s32.totalorder %s129, %s130
      %p141 = scmp.eq.s32.totalorder %s23, 0
      %p142 = por %p140, %p141
      %p143 = scmp.ne.s32.totalorder %s129, %s130
      %p144 = scmp.eq.s32.totalorder %s24, 23
      %p145 = por %p143, %p144
      %p147 = scmp.ne.s32.totalorder %s130, %s146
      %p148 = scmp.eq.s32.totalorder %s24, 0
      %p149 = por %p147, %p148
      %p150 = scmp.le.s32.totalorder 1, %s18
      %p151 = scmp.lt.s32.totalorder %s18, 25
      %p152 = pnand %p150, %p151
      %p153 = pneg %p152
      // Predicated region
      $region9: #{_lambda_.9} parent=5 // pred_check
        _
      $region10: #{_lambda_.9} parent=5 // pred_check_branch
        %155 = sbr.rel (%p152) target = $region12
      $region11: #{_lambda_.9} parent=5 // pred_region
        %s156 = ssub.s32 %s18, 1
        // Predicated region
        $region13: #{_lambda_.9} parent=11 // pred_check
          %p157 = pneg %p114
        $region14: #{_lambda_.9} parent=11 // pred_check_branch
          %159 = sbr.rel (%p157) target = $region16
        $region15: #{_lambda_.9} parent=11 // pred_region
          %s161 = ssub.s32 16, 16
          %162 = vsyncadd [#allocation7], %s161
          %s164 = sshll.u32 [#allocation8], 4
          %s165 = int_to_ptr.vmem [resolvable:$true] %s164
          %167 = dma.hbm_to_vmem [thread:$0]  %s2, 16, %s165, [#allocation7]
        $region16: #{_lambda_.9} parent=11 // pred_fallthru
          _
      $region12: #{_lambda_.9} parent=5 // pred_fallthru
        _
      %p168 = scmp.lt.s32.totalorder %s18, 24
      // Predicated region
      $region17: #{_lambda_.9} parent=5 // pred_check
        %p169 = pneg %p168
      $region18: #{_lambda_.9} parent=5 // pred_check_branch
        %171 = sbr.rel (%p169) target = $region20
      $region19: #{_lambda_.9} parent=5 // pred_region
        // Predicated region
        $region21: #{_lambda_.9} parent=19 // pred_check
          %p172 = pneg %p61
        $region22: #{_lambda_.9} parent=19 // pred_check_branch
          %174 = sbr.rel (%p172) target = $region24
        $region23: #{_lambda_.9} parent=19 // pred_region
          %s175 = sand.u32 %s51, 1
          %s176 = scalar_lea.sflag [#allocation4], %s175
          %s177 = sand.u32 %s51, 1
          %s178 = smul.addr %s177, 52
          %s179 = scalar_lea.vmem [#allocation3], %s178
          %s180 = sadd.s32 %s26, %s27
          %s182 = ssub.s32 832, 832
          %183 = vsyncadd %s176, %s182
          %s184 = smul.addr %s180, 13
          %s185 = smul.addr %s25, 78
          %s186 = sadd.s32 %s184, %s185
          %s187 = smul.addr %s186, 64
          %s188 = scalar_lea.hbm %s0, %s187
          %s189 = sshll.u32 %s179, 4
          %s190 = int_to_ptr.vmem [resolvable:$true] %s189
          %195 = dma.hbm_to_vmem [thread:$0]  %s188, 832, %s190, %s176, 64, 64, 4
        $region24: #{_lambda_.9} parent=19 // pred_fallthru
          _
        // Predicated region
        $region25: #{_lambda_.9} parent=19 // pred_check
          %p196 = pneg %p87
        $region26: #{_lambda_.9} parent=19 // pred_check_branch
          %198 = sbr.rel (%p196) target = $region28
        $region27: #{_lambda_.9} parent=19 // pred_region
          %s199 = sand.u32 %s18, 1
          %s200 = scalar_lea.sflag [#allocation7], %s199
          %s201 = sand.u32 %s77, 1
          %s202 = smul.addr %s201, 64
          %s203 = scalar_lea.vmem [#allocation6], %s202
          %s205 = ssub.s32 1024, 1024
          %206 = vsyncadd %s200, %s205
          %s207 = smul.addr %s27, 16
          %s208 = smul.addr %s207, 64
          %s209 = scalar_lea.hbm %s1, %s208
          %s210 = sshll.u32 %s203, 4
          %s211 = int_to_ptr.vmem [resolvable:$true] %s210
          %216 = dma.hbm_to_vmem [thread:$0]  %s209, 1024, %s211, %s200, 64, 64, 4
        $region28: #{_lambda_.9} parent=19 // pred_fallthru
          _
      $region20: #{_lambda_.9} parent=5 // pred_fallthru
        _
      %p217 = scmp.le.s32.totalorder 1, %s18
      %p218 = scmp.lt.s32.totalorder %s18, 25
      %p219 = pnand %p217, %p218
      %p220 = pneg %p219
      // Predicated region
      $region29: #{_lambda_.9} parent=5 // pred_check
        _
      $region30: #{_lambda_.9} parent=5 // pred_check_branch
        %222 = sbr.rel (%p219) target = $region32
      $region31: #{_lambda_.9} parent=5 // pred_region
        %s223 = ssub.s32 %s18, 1
        %s224 = sand.u32 %s54, 1
        %s225 = scalar_lea.sflag [#allocation4], %s224
        %s226 = sand.u32 %s54, 1
        %s227 = smul.addr %s226, 52
        %s228 = scalar_lea.vmem [#allocation3], %s227
        // Predicated region
        $region33: #{_lambda_.9} parent=31 // pred_check
          %p229 = pneg %p67
        $region34: #{_lambda_.9} parent=31 // pred_check_branch
          %231 = sbr.rel (%p229) target = $region36
        $region35: #{_lambda_.9} parent=31 // pred_region
          %232 = dma.done %s225, 832
        $region36: #{_lambda_.9} parent=31 // pred_fallthru
          _
        %s233 = sand.u32 %s23, 1
        %s234 = scalar_lea.sflag [#allocation7], %s233
        %s235 = sand.u32 %s80, 1
        %s236 = smul.addr %s235, 64
        %s237 = scalar_lea.vmem [#allocation6], %s236
        // Predicated region
        $region37: #{_lambda_.9} parent=31 // pred_check
          %p238 = pneg %p93
        $region38: #{_lambda_.9} parent=31 // pred_check_branch
          %240 = sbr.rel (%p238) target = $region40
        $region39: #{_lambda_.9} parent=31 // pred_region
          %241 = dma.done %s234, 1024
        $region40: #{_lambda_.9} parent=31 // pred_fallthru
          _
        // Predicated region
        $region41: #{_lambda_.9} parent=31 // pred_check
          %p242 = pneg %p114
        $region42: #{_lambda_.9} parent=31 // pred_check_branch
          %244 = sbr.rel (%p242) target = $region44
        $region43: #{_lambda_.9} parent=31 // pred_region
          %245 = dma.done [#allocation7], 16
        $region44: #{_lambda_.9} parent=31 // pred_fallthru
          _
        %s246 = sand.u32 %s54, 1
        %s247 = scalar_lea.sflag [#allocation4], %s246
        %s248 = sand.u32 %s54, 1
        %s249 = smul.addr %s248, 52
        %s250 = scalar_lea.vmem [#allocation3], %s249
        %p251 = pneg %p67
        %p252 = pneg %p64
        %s253 = sand.u32 %s23, 1
        %s254 = scalar_lea.sflag [#allocation7], %s253
        %s255 = sand.u32 %s80, 1
        %s256 = smul.addr %s255, 64
        %s257 = scalar_lea.vmem [#allocation6], %s256
        %p258 = pneg %p93
        %p259 = pneg %p90
        %p260 = pneg %p114
        %p261 = pneg %p111
        %p262 = pneg %p142
        %p263 = pneg %p139
        %s264 = sand.u32 %s129, 1
        %s265 = scalar_lea.sflag [#allocation5], %s264
        %s266 = sand.u32 %s129, 1
        %s267 = smul.addr %s266, 72
        %s268 = scalar_lea.vmem [#allocation9], %s267
        %s269 = sadd.s32 %s29, %s30
        %p271 = scmp.eq.s32.totalorder %s30, 0
        // Predicated region
        $region45: #{_lambda_.9} parent=31 // pred_check
          %p272 = pneg %p271
        $region46: #{_lambda_.9} parent=31 // pred_check_branch
          %274 = sbr.rel (%p272) target = $region48
        $region47: #{_lambda_.9} parent=31 // pred_region
          %275 = vst [vmem:[#allocation2] sm:$0xff] 0.0
          %276 = vst [vmem:[#allocation2 + $0x8] sm:$0xff] 0.0
          %277 = vst [vmem:[#allocation2 + $0x10] sm:$0xff] 0.0
          %278 = vst [vmem:[#allocation2 + $0x18] sm:$0xff] 0.0
          %279 = vst [vmem:[#allocation2 + $0x20] sm:$0xff] 0.0
          %280 = vst [vmem:[#allocation2 + $0x28] sm:$0xff] 0.0
          %281 = vst [vmem:[#allocation2 + $0x30] sm:$0xff] 0.0
          %282 = vst [vmem:[#allocation2 + $0x38] sm:$0xff] 0.0
          %283 = vst [vmem:[#allocation2 + $0x40] sm:$0x7] 0.0
        $region48: #{_lambda_.9} parent=31 // pred_fallthru
          _
        %v284 = vld [vmem:[%s228] sm:$0xf]
        %v285 = vld [vmem:[%s228 + $0x4] sm:$0xf]
        %v286 = vld [vmem:[%s228 + $0x8] sm:$0xf]
        %v287 = vld [vmem:[%s228 + $0xc] sm:$0xf]
        %v288 = vld [vmem:[%s228 + $0x10] sm:$0xf]
        %v289 = vld [vmem:[%s228 + $0x14] sm:$0xf]
        %v290 = vld [vmem:[%s228 + $0x18] sm:$0xf]
        %v291 = vld [vmem:[%s228 + $0x1c] sm:$0xf]
        %v292 = vld [vmem:[%s228 + $0x20] sm:$0x3]
        %v293 = vld [vmem:[%s237] sm:$0xf]
        %v294 = vld [vmem:[#allocation2] sm:$0xff]
        %v295 = vld [vmem:[#allocation2 + $0x8] sm:$0xff]
        %v296 = vld [vmem:[#allocation2 + $0x10] sm:$0xff]
        %v297 = vld [vmem:[#allocation2 + $0x18] sm:$0xff]
        %v298 = vld [vmem:[#allocation2 + $0x20] sm:$0xff]
        %v299 = vld [vmem:[#allocation2 + $0x28] sm:$0xff]
        %v300 = vld [vmem:[#allocation2 + $0x30] sm:$0xff]
        %v301 = vld [vmem:[#allocation2 + $0x38] sm:$0xff]
        %v302 = vld [vmem:[#allocation2 + $0x40] sm:$0x7]
        %v312 = vunpack.c.l.b16 %v284
        %v313 = vunpack.c.l.b16 %v285
        %v314 = vunpack.c.l.b16 %v286
        %v315 = vunpack.c.l.b16 %v287
        %v316 = vunpack.c.l.b16 %v288
        %v317 = vunpack.c.l.b16 %v289
        %v318 = vunpack.c.l.b16 %v290
        %v319 = vunpack.c.l.b16 %v291
        %v320 = vunpack.c.l.b16 %v292
        %v321 = vpack.c.b16 %v313, %v312
        %v322 = vpack.c.b16 %v315, %v314
        %v323 = vpack.c.b16 %v317, %v316
        %v324 = vpack.c.b16 %v319, %v318
        %v325 = vpack.c.b16 %v320, %v320
        %vm326 = vcmask 64512
        %v328 = vsel %vm326, %v321, 0
        %v331 = vsel %vm326, %v322, 0
        %v334 = vsel %vm326, %v323, 0
        %v337 = vsel %vm326, %v324, 0
        %v340 = vsel %vm326, %v325, 0
        %vm342 = vcmask 1043456
        %v344 = vsel %vm342, %v293, 0
        %346 = vmatprep.subr.bf16.mxu0 0
        %347 = vmatpush1.bf16.msra.mxu0 %v344
        %348 = vmatprep.subr.bf16.mxu0 0
        %349 = vmatpush1.bf16.msra.mxu0 0
        %350 = vmatprep.subr.bf16.mxu0 0
        %351 = vmatpush1.bf16.msra.mxu0 0
        %352 = vmatprep.subr.bf16.mxu0 0
        %353 = vmatpush1.bf16.msra.mxu0 0
        %354 = vmatprep.subr.bf16.mxu0 0
        %355 = vmatpush1.bf16.msra.mxu0 0
        %356 = vmatprep.subr.bf16.mxu0 0
        %357 = vmatpush1.bf16.msra.mxu0 0
        %358 = vmatprep.subr.bf16.mxu0 0
        %359 = vmatpush1.bf16.msra.mxu0 0
        %360 = vmatprep.subr.bf16.mxu0 0
        %361 = vmatpush1.bf16.msra.mxu0 0
        %362 = vmatprep.subr.bf16.mxu0 0
        %363 = vmatpush1.bf16.msra.mxu0 0
        %364 = vmatprep.subr.bf16.mxu0 0
        %365 = vmatpush1.bf16.msra.mxu0 0
        %366 = vmatprep.subr.bf16.mxu0 0
        %367 = vmatpush1.bf16.msra.mxu0 0
        %368 = vmatprep.subr.bf16.mxu0 0
        %369 = vmatpush1.bf16.msra.mxu0 0
        %370 = vmatprep.subr.bf16.mxu0 0
        %371 = vmatpush1.bf16.msra.mxu0 0
        %372 = vmatprep.subr.bf16.mxu0 0
        %373 = vmatpush1.bf16.msra.mxu0 0
        %374 = vmatprep.subr.bf16.mxu0 0
        %375 = vmatpush1.bf16.msra.mxu0 0
        %376 = vmatprep.subr.bf16.mxu0 0
        %377 = vmatpush1.bf16.msra.mxu0 0
        %378 = vmatprep.mubr.bf16.mxu0 0
        %379 = vmatmul.mubr.bf16.gmra.mrb[0].mxu0 %v328
        %v380 = vpop.f32.mrb[0].mxu0
        %v381 = vadd.f32 0.0, %v380
        %v382 = vpop.f32.mrb[0].mxu0
        %v383 = vpop.f32.mrb[0].mxu0
        %v384 = vadd.f32 0.0, %v383
        %v385 = vpop.f32.mrb[0].mxu0
        %386 = vmatprep.mubr.bf16.mxu0 0
        %387 = vmatmul.mubr.bf16.gmra.mrb[0].mxu0 %v331
        %v388 = vpop.f32.mrb[0].mxu0
        %v389 = vadd.f32 0.0, %v388
        %v390 = vpop.f32.mrb[0].mxu0
        %v391 = vpop.f32.mrb[0].mxu0
        %v392 = vadd.f32 0.0, %v391
        %v393 = vpop.f32.mrb[0].mxu0
        %394 = vmatprep.mubr.bf16.mxu0 0
        %395 = vmatmul.mubr.bf16.gmra.mrb[0].mxu0 %v334
        %v396 = vpop.f32.mrb[0].mxu0
        %v397 = vadd.f32 0.0, %v396
        %v398 = vpop.f32.mrb[0].mxu0
        %v399 = vpop.f32.mrb[0].mxu0
        %v400 = vadd.f32 0.0, %v399
        %v401 = vpop.f32.mrb[0].mxu0
        %402 = vmatprep.mubr.bf16.mxu0 0
        %403 = vmatmul.mubr.bf16.gmra.mrb[0].mxu0 %v337
        %v404 = vpop.f32.mrb[0].mxu0
        %v405 = vadd.f32 0.0, %v404
        %v406 = vpop.f32.mrb[0].mxu0
        %v407 = vpop.f32.mrb[0].mxu0
        %v408 = vadd.f32 0.0, %v407
        %v409 = vpop.f32.mrb[0].mxu0
        %410 = vmatprep.mubr.bf16.mxu0 0
        %411 = vmatmul.mubr.bf16.gmra.mrb[0].mxu0 %v340
        %v412 = vpop.f32.mrb[0].mxu0
        %v413 = vadd.f32 0.0, %v412
        %v414 = vpop.f32.mrb[0].mxu0
        %v415 = vpop.f32.mrb[0].mxu0
        %v416 = vpop.f32.mrb[0].mxu0
        %417 = vdwg.mxu0
        %v418 = vadd.f32 %v294, %v381
        %v419 = vadd.f32 %v295, %v384
        %v420 = vadd.f32 %v296, %v389
        %v421 = vadd.f32 %v297, %v392
        %v422 = vadd.f32 %v298, %v397
        %v423 = vadd.f32 %v299, %v400
        %v424 = vadd.f32 %v300, %v405
        %v425 = vadd.f32 %v301, %v408
        %v426 = vadd.f32 %v302, %v413
        %427 = vst [vmem:[#allocation2] sm:$0xff] %v418
        %428 = vst [vmem:[#allocation2 + $0x8] sm:$0xff] %v419
        %429 = vst [vmem:[#allocation2 + $0x10] sm:$0xff] %v420
        %430 = vst [vmem:[#allocation2 + $0x18] sm:$0xff] %v421
        %431 = vst [vmem:[#allocation2 + $0x20] sm:$0xff] %v422
        %432 = vst [vmem:[#allocation2 + $0x28] sm:$0xff] %v423
        %433 = vst [vmem:[#allocation2 + $0x30] sm:$0xff] %v424
        %434 = vst [vmem:[#allocation2 + $0x38] sm:$0xff] %v425
        %435 = vst [vmem:[#allocation2 + $0x40] sm:$0x7] %v426
        %v436 = vld [vmem:[%s228] sm:$0xf]
        %v437 = vld [vmem:[%s228 + $0x4] sm:$0xf]
        %v438 = vld [vmem:[%s228 + $0x8] sm:$0xf]
        %v439 = vld [vmem:[%s228 + $0xc] sm:$0xf]
        %v440 = vld [vmem:[%s228 + $0x10] sm:$0xf]
        %v441 = vld [vmem:[%s228 + $0x14] sm:$0xf]
        %v442 = vld [vmem:[%s228 + $0x18] sm:$0xf]
        %v443 = vld [vmem:[%s228 + $0x1c] sm:$0xf]
        %v444 = vld [vmem:[%s228 + $0x20] sm:$0x3]
        %v445 = vld [vmem:[%s237 + $0x4] sm:$0xf]
        %v446 = vld [vmem:[#allocation2] sm:$0xff]
        %v447 = vld [vmem:[#allocation2 + $0x8] sm:$0xff]
        %v448 = vld [vmem:[#allocation2 + $0x10] sm:$0xff]
        %v449 = vld [vmem:[#allocation2 + $0x18] sm:$0xff]
        %v450 = vld [vmem:[#allocation2 + $0x20] sm:$0xff]
        %v451 = vld [vmem:[#allocation2 + $0x28] sm:$0xff]
        %v452 = vld [vmem:[#allocation2 + $0x30] sm:$0xff]
        %v453 = vld [vmem:[#allocation2 + $0x38] sm:$0xff]
        %v454 = vld [vmem:[#allocation2 + $0x40] sm:$0x7]
        %v464 = vunpack.c.l.b16 %v436
        %v465 = vunpack.c.l.b16 %v437
        %v466 = vunpack.c.l.b16 %v438
        %v467 = vunpack.c.l.b16 %v439
        %v468 = vunpack.c.l.b16 %v440
        %v469 = vunpack.c.l.b16 %v441
        %v470 = vunpack.c.l.b16 %v442
        %v471 = vunpack.c.l.b16 %v443
        %v472 = vunpack.c.l.b16 %v444
        %v473 = vpack.c.b16 %v465, %v464
        %v474 = vpack.c.b16 %v467, %v466
        %v475 = vpack.c.b16 %v469, %v468
        %v476 = vpack.c.b16 %v471, %v470
        %v477 = vpack.c.b16 %v472, %v472
        %vm478 = vsmask.f32 7424
        %v480 = vshrl.u32 %v473, 16
        %v482 = vshll.u32 %v473, 16
        %v484 = vrot.slane %v482, 1
        %v485 = vor.u32 %v480, %v484
        %v487 = vshll.u32 %v474, 16
        %v489 = vrot.slane %v487, 1
        %v490 = vsel %vm478, %v485, %v489
        %v491 = vshrl.u32 %v474, 16
        %v493 = vor.u32 %v491, %v489
        %v495 = vshll.u32 %v475, 16
        %v497 = vrot.slane %v495, 1
        %v498 = vsel %vm478, %v493, %v497
        %v499 = vshrl.u32 %v475, 16
        %v501 = vor.u32 %v499, %v497
        %v503 = vshll.u32 %v476, 16
        %v505 = vrot.slane %v503, 1
        %v506 = vsel %vm478, %v501, %v505
        %v507 = vshrl.u32 %v476, 16
        %v509 = vor.u32 %v507, %v505
        %v511 = vshll.u32 %v477, 16
        %v513 = vrot.slane %v511, 1
        %v514 = vsel %vm478, %v509, %v513
        %v515 = vshrl.u32 %v477, 16
        %v517 = vor.u32 %v515, %v513
        %v519 = vsel %vm326, %v490, 0
        %v522 = vsel %vm326, %v498, 0
        %v525 = vsel %vm326, %v506, 0
        %v528 = vsel %vm326, %v514, 0
        %v531 = vsel %vm326, %v517, 0
        %v534 = vsel %vm342, %v445, 0
        %536 = vmatprep.subr.bf16.mxu0 0
        %537 = vmatpush1.bf16.msra.mxu0 %v534
        %538 = vmatprep.subr.bf16.mxu0 0
        %539 = vmatpush1.bf16.msra.mxu0 0
        %540 = vmatprep.subr.bf16.mxu0 0
        %541 = vmatpush1.bf16.msra.mxu0 0
        %542 = vmatprep.subr.bf16.mxu0 0
        %543 = vmatpush1.bf16.msra.mxu0 0
        %544 = vmatprep.subr.bf16.mxu0 0
        %545 = vmatpush1.bf16.msra.mxu0 0
        %546 = vmatprep.subr.bf16.mxu0 0
        %547 = vmatpush1.bf16.msra.mxu0 0
        %548 = vmatprep.subr.bf16.mxu0 0
        %549 = vmatpush1.bf16.msra.mxu0 0
        %550 = vmatprep.subr.bf16.mxu0 0
        %551 = vmatpush1.bf16.msra.mxu0 0
        %552 = vmatprep.subr.bf16.mxu0 0
        %553 = vmatpush1.bf16.msra.mxu0 0
        %554 = vmatprep.subr.bf16.mxu0 0
        %555 = vmatpush1.bf16.msra.mxu0 0
        %556 = vmatprep.subr.bf16.mxu0 0
        %557 = vmatpush1.bf16.msra.mxu0 0
        %558 = vmatprep.subr.bf16.mxu0 0
        %559 = vmatpush1.bf16.msra.mxu0 0
        %560 = vmatprep.subr.bf16.mxu0 0
        %561 = vmatpush1.bf16.msra.mxu0 0
        %562 = vmatprep.subr.bf16.mxu0 0
        %563 = vmatpush1.bf16.msra.mxu0 0
        %564 = vmatprep.subr.bf16.mxu0 0
        %565 = vmatpush1.bf16.msra.mxu0 0
        %566 = vmatprep.subr.bf16.mxu0 0
        %567 = vmatpush1.bf16.msra.mxu0 0
        %568 = vmatprep.mubr.bf16.mxu0 0
        %569 = vmatmul.mubr.bf16.gmra.mrb[0].mxu0 %v519
        %v570 = vpop.f32.mrb[0].mxu0
        %v571 = vadd.f32 0.0, %v570
        %v572 = vpop.f32.mrb[0].mxu0
        %v573 = vpop.f32.mrb[0].mxu0
        %v574 = vadd.f32 0.0, %v573
        %v575 = vpop.f32.mrb[0].mxu0
        %576 = vmatprep.mubr.bf16.mxu0 0
        %577 = vmatmul.mubr.bf16.gmra.mrb[0].mxu0 %v522
        %v578 = vpop.f32.mrb[0].mxu0
        %v579 = vadd.f32 0.0, %v578
        %v580 = vpop.f32.mrb[0].mxu0
        %v581 = vpop.f32.mrb[0].mxu0
        %v582 = vadd.f32 0.0, %v581
        %v583 = vpop.f32.mrb[0].mxu0
        %584 = vmatprep.mubr.bf16.mxu0 0
        %585 = vmatmul.mubr.bf16.gmra.mrb[0].mxu0 %v525
        %v586 = vpop.f32.mrb[0].mxu0
        %v587 = vadd.f32 0.0, %v586
        %v588 = vpop.f32.mrb[0].mxu0
        %v589 = vpop.f32.mrb[0].mxu0
        %v590 = vadd.f32 0.0, %v589
        %v591 = vpop.f32.mrb[0].mxu0
        %592 = vmatprep.mubr.bf16.mxu0 0
        %593 = vmatmul.mubr.bf16.gmra.mrb[0].mxu0 %v528
        %v594 = vpop.f32.mrb[0].mxu0
        %v595 = vadd.f32 0.0, %v594
        %v596 = vpop.f32.mrb[0].mxu0
        %v597 = vpop.f32.mrb[0].mxu0
        %v598 = vadd.f32 0.0, %v597
        %v599 = vpop.f32.mrb[0].mxu0
        %600 = vmatprep.mubr.bf16.mxu0 0
        %601 = vmatmul.mubr.bf16.gmra.mrb[0].mxu0 %v531
        %v602 = vpop.f32.mrb[0].mxu0
        %v603 = vadd.f32 0.0, %v602
        %v604 = vpop.f32.mrb[0].mxu0
        %v605 = vpop.f32.mrb[0].mxu0
        %v606 = vpop.f32.mrb[0].mxu0
        %607 = vdwg.mxu0
        %v608 = vadd.f32 %v446, %v571
        %v609 = vadd.f32 %v447, %v574
        %v610 = vadd.f32 %v448, %v579
        %v611 = vadd.f32 %v449, %v582
        %v612 = vadd.f32 %v450, %v587
        %v613 = vadd.f32 %v451, %v590
        %v614 = vadd.f32 %v452, %v595
        %v615 = vadd.f32 %v453, %v598
        %v616 = vadd.f32 %v454, %v603
        %617 = vst [vmem:[#allocation2] sm:$0xff] %v608
        %618 = vst [vmem:[#allocation2 + $0x8] sm:$0xff] %v609
        %619 = vst [vmem:[#allocation2 + $0x10] sm:$0xff] %v610
        %620 = vst [vmem:[#allocation2 + $0x18] sm:$0xff] %v611
        %621 = vst [vmem:[#allocation2 + $0x20] sm:$0xff] %v612
        %622 = vst [vmem:[#allocation2 + $0x28] sm:$0xff] %v613
        %623 = vst [vmem:[#allocation2 + $0x30] sm:$0xff] %v614
        %624 = vst [vmem:[#allocation2 + $0x38] sm:$0xff] %v615
        %625 = vst [vmem:[#allocation2 + $0x40] sm:$0x7] %v616
        %v626 = vld [vmem:[%s228] sm:$0xe]
        %v627 = vld [vmem:[%s228 + $0x4] sm:$0xf]
        %v628 = vld [vmem:[%s228 + $0x8] sm:$0xf]
        %v629 = vld [vmem:[%s228 + $0xc] sm:$0xf]
        %v630 = vld [vmem:[%s228 + $0x10] sm:$0xf]
        %v631 = vld [vmem:[%s228 + $0x14] sm:$0xf]
        %v632 = vld [vmem:[%s228 + $0x18] sm:$0xf]
        %v633 = vld [vmem:[%s228 + $0x1c] sm:$0xf]
        %v634 = vld [vmem:[%s228 + $0x20] sm:$0x7]
        %v635 = vld [vmem:[%s237 + $0x8] sm:$0xf]
        %v636 = vld [vmem:[#allocation2] sm:$0xff]
        %v637 = vld [vmem:[#allocation2 + $0x8] sm:$0xff]
        %v638 = vld [vmem:[#allocation2 + $0x10] sm:$0xff]
        %v639 = vld [vmem:[#allocation2 + $0x18] sm:$0xff]
        %v640 = vld [vmem:[#allocation2 + $0x20] sm:$0xff]
        %v641 = vld [vmem:[#allocation2 + $0x28] sm:$0xff]
        %v642 = vld [vmem:[#allocation2 + $0x30] sm:$0xff]
        %v643 = vld [vmem:[#allocation2 + $0x38] sm:$0xff]
        %v644 = vld [vmem:[#allocation2 + $0x40] sm:$0x7]
        %v654 = vunpack.c.l.b16 %v626
        %v655 = vunpack.c.l.b16 %v627
        %v656 = vunpack.c.l.b16 %v628
        %v657 = vunpack.c.l.b16 %v629
        %v658 = vunpack.c.l.b16 %v630
        %v659 = vunpack.c.l.b16 %v631
        %v660 = vunpack.c.l.b16 %v632
        %v661 = vunpack.c.l.b16 %v633
        %v662 = vunpack.c.l.b16 %v634
        %v663 = vpack.c.b16 %v655, %v654
        %v664 = vpack.c.b16 %v657, %v656
        %v665 = vpack.c.b16 %v659, %v658
        %v666 = vpack.c.b16 %v661, %v660
        %v667 = vpack.c.b16 %v662, %v662
        %vm668 = vcmask 1046528
        %v669 = vrot.slane %v663, 1
        %v670 = vrot.slane %v664, 1
        %v671 = vsel %vm668, %v669, %v670
        %v672 = vrot.slane %v665, 1
        %v673 = vsel %vm668, %v670, %v672
        %v674 = vrot.slane %v666, 1
        %v675 = vsel %vm668, %v672, %v674
        %v676 = vrot.slane %v667, 1
        %v677 = vsel %vm668, %v674, %v676
        %v679 = vsel %vm326, %v671, 0
        %v682 = vsel %vm326, %v673, 0
        %v685 = vsel %vm326, %v675, 0
        %v688 = vsel %vm326, %v677, 0
        %v691 = vsel %vm326, %v676, 0
        %v694 = vsel %vm342, %v635, 0
        %696 = vmatprep.subr.bf16.mxu0 0
        %697 = vmatpush1.bf16.msra.mxu0 %v694
        %698 = vmatprep.subr.bf16.mxu0 0
        %699 = vmatpush1.bf16.msra.mxu0 0
        %700 = vmatprep.subr.bf16.mxu0 0
        %701 = vmatpush1.bf16.msra.mxu0 0
        %702 = vmatprep.subr.bf16.mxu0 0
        %703 = vmatpush1.bf16.msra.mxu0 0
        %704 = vmatprep.subr.bf16.mxu0 0
        %705 = vmatpush1.bf16.msra.mxu0 0
        %706 = vmatprep.subr.bf16.mxu0 0
        %707 = vmatpush1.bf16.msra.mxu0 0
        %708 = vmatprep.subr.bf16.mxu0 0
        %709 = vmatpush1.bf16.msra.mxu0 0
        %710 = vmatprep.subr.bf16.mxu0 0
        %711 = vmatpush1.bf16.msra.mxu0 0
        %712 = vmatprep.subr.bf16.mxu0 0
        %713 = vmatpush1.bf16.msra.mxu0 0
        %714 = vmatprep.subr.bf16.mxu0 0
        %715 = vmatpush1.bf16.msra.mxu0 0
        %716 = vmatprep.subr.bf16.mxu0 0
        %717 = vmatpush1.bf16.msra.mxu0 0
        %718 = vmatprep.subr.bf16.mxu0 0
        %719 = vmatpush1.bf16.msra.mxu0 0
        %720 = vmatprep.subr.bf16.mxu0 0
        %721 = vmatpush1.bf16.msra.mxu0 0
        %722 = vmatprep.subr.bf16.mxu0 0
        %723 = vmatpush1.bf16.msra.mxu0 0
        %724 = vmatprep.subr.bf16.mxu0 0
        %725 = vmatpush1.bf16.msra.mxu0 0
        %726 = vmatprep.subr.bf16.mxu0 0
        %727 = vmatpush1.bf16.msra.mxu0 0
        %728 = vmatprep.mubr.bf16.mxu0 0
        %729 = vmatmul.mubr.bf16.gmra.mrb[0].mxu0 %v679
        %v730 = vpop.f32.mrb[0].mxu0
        %v731 = vadd.f32 0.0, %v730
        %v732 = vpop.f32.mrb[0].mxu0
        %v733 = vpop.f32.mrb[0].mxu0
        %v734 = vadd.f32 0.0, %v733
        %v735 = vpop.f32.mrb[0].mxu0
        %736 = vmatprep.mubr.bf16.mxu0 0
        %737 = vmatmul.mubr.bf16.gmra.mrb[0].mxu0 %v682
        %v738 = vpop.f32.mrb[0].mxu0
        %v739 = vadd.f32 0.0, %v738
        %v740 = vpop.f32.mrb[0].mxu0
        %v741 = vpop.f32.mrb[0].mxu0
        %v742 = vadd.f32 0.0, %v741
        %v743 = vpop.f32.mrb[0].mxu0
        %744 = vmatprep.mubr.bf16.mxu0 0
        %745 = vmatmul.mubr.bf16.gmra.mrb[0].mxu0 %v685
        %v746 = vpop.f32.mrb[0].mxu0
        %v747 = vadd.f32 0.0, %v746
        %v748 = vpop.f32.mrb[0].mxu0
        %v749 = vpop.f32.mrb[0].mxu0
        %v750 = vadd.f32 0.0, %v749
        %v751 = vpop.f32.mrb[0].mxu0
        %752 = vmatprep.mubr.bf16.mxu0 0
        %753 = vmatmul.mubr.bf16.gmra.mrb[0].mxu0 %v688
        %v754 = vpop.f32.mrb[0].mxu0
        %v755 = vadd.f32 0.0, %v754
        %v756 = vpop.f32.mrb[0].mxu0
        %v757 = vpop.f32.mrb[0].mxu0
        %v758 = vadd.f32 0.0, %v757
        %v759 = vpop.f32.mrb[0].mxu0
        %760 = vmatprep.mubr.bf16.mxu0 0
        %761 = vmatmul.mubr.bf16.gmra.mrb[0].mxu0 %v691
        %v762 = vpop.f32.mrb[0].mxu0
        %v763 = vadd.f32 0.0, %v762
        %v764 = vpop.f32.mrb[0].mxu0
        %v765 = vpop.f32.mrb[0].mxu0
        %v766 = vpop.f32.mrb[0].mxu0
        %767 = vdwg.mxu0
        %v768 = vadd.f32 %v636, %v731
        %v769 = vadd.f32 %v637, %v734
        %v770 = vadd.f32 %v638, %v739
        %v771 = vadd.f32 %v639, %v742
        %v772 = vadd.f32 %v640, %v747
        %v773 = vadd.f32 %v641, %v750
        %v774 = vadd.f32 %v642, %v755
        %v775 = vadd.f32 %v643, %v758
        %v776 = vadd.f32 %v644, %v763
        %777 = vst [vmem:[#allocation2] sm:$0xff] %v768
        %778 = vst [vmem:[#allocation2 + $0x8] sm:$0xff] %v769
        %779 = vst [vmem:[#allocation2 + $0x10] sm:$0xff] %v770
        %780 = vst [vmem:[#allocation2 + $0x18] sm:$0xff] %v771
        %781 = vst [vmem:[#allocation2 + $0x20] sm:$0xff] %v772
        %782 = vst [vmem:[#allocation2 + $0x28] sm:$0xff] %v773
        %783 = vst [vmem:[#allocation2 + $0x30] sm:$0xff] %v774
        %784 = vst [vmem:[#allocation2 + $0x38] sm:$0xff] %v775
        %785 = vst [vmem:[#allocation2 + $0x40] sm:$0x7] %v776
        %v786 = vld [vmem:[%s228] sm:$0xe]
        %v787 = vld [vmem:[%s228 + $0x4] sm:$0xf]
        %v788 = vld [vmem:[%s228 + $0x8] sm:$0xf]
        %v789 = vld [vmem:[%s228 + $0xc] sm:$0xf]
        %v790 = vld [vmem:[%s228 + $0x10] sm:$0xf]
        %v791 = vld [vmem:[%s228 + $0x14] sm:$0xf]
        %v792 = vld [vmem:[%s228 + $0x18] sm:$0xf]
        %v793 = vld [vmem:[%s228 + $0x1c] sm:$0xf]
        %v794 = vld [vmem:[%s228 + $0x20] sm:$0x7]
        %v795 = vld [vmem:[%s237 + $0xc] sm:$0xf]
        %v796 = vld [vmem:[#allocation2] sm:$0xff]
        %v797 = vld [vmem:[#allocation2 + $0x8] sm:$0xff]
        %v798 = vld [vmem:[#allocation2 + $0x10] sm:$0xff]
        %v799 = vld [vmem:[#allocation2 + $0x18] sm:$0xff]
        %v800 = vld [vmem:[#allocation2 + $0x20] sm:$0xff]
        %v801 = vld [vmem:[#allocation2 + $0x28] sm:$0xff]
        %v802 = vld [vmem:[#allocation2 + $0x30] sm:$0xff]
        %v803 = vld [vmem:[#allocation2 + $0x38] sm:$0xff]
        %v804 = vld [vmem:[#allocation2 + $0x40] sm:$0x7]
        %v814 = vunpack.c.l.b16 %v786
        %v815 = vunpack.c.l.b16 %v787
        %v816 = vunpack.c.l.b16 %v788
        %v817 = vunpack.c.l.b16 %v789
        %v818 = vunpack.c.l.b16 %v790
        %v819 = vunpack.c.l.b16 %v791
        %v820 = vunpack.c.l.b16 %v792
        %v821 = vunpack.c.l.b16 %v793
        %v822 = vunpack.c.l.b16 %v794
        %v823 = vpack.c.b16 %v815, %v814
        %v824 = vpack.c.b16 %v817, %v816
        %v825 = vpack.c.b16 %v819, %v818
        %v826 = vpack.c.b16 %v821, %v820
        %v827 = vpack.c.b16 %v822, %v822
        %vm828 = vsmask.f32 6400
        %v830 = vshrl.u32 %v823, 16
        %v832 = vrot.slane %v830, 1
        %v833 = vshll.u32 %v823, 16
        %v835 = vrot.slane %v833, 2
        %v836 = vor.u32 %v832, %v835
        %v838 = vshrl.u32 %v824, 16
        %v840 = vrot.slane %v838, 1
        %v841 = vshll.u32 %v824, 16
        %v843 = vrot.slane %v841, 2
        %v844 = vor.u32 %v840, %v843
        %v845 = vsel %vm828, %v836, %v844
        %v847 = vshrl.u32 %v825, 16
        %v849 = vrot.slane %v847, 1
        %v850 = vshll.u32 %v825, 16
        %v852 = vrot.slane %v850, 2
        %v853 = vor.u32 %v849, %v852
        %v854 = vsel %vm828, %v844, %v853
        %v856 = vshrl.u32 %v826, 16
        %v858 = vrot.slane %v856, 1
        %v859 = vshll.u32 %v826, 16
        %v861 = vrot.slane %v859, 2
        %v862 = vor.u32 %v858, %v861
        %v863 = vsel %vm828, %v853, %v862
        %v865 = vshrl.u32 %v827, 16
        %v867 = vrot.slane %v865, 1
        %v868 = vshll.u32 %v827, 16
        %v870 = vrot.slane %v868, 2
        %v871 = vor.u32 %v867, %v870
        %v872 = vsel %vm828, %v862, %v871
        %v874 = vsel %vm326, %v845, 0
        %v877 = vsel %vm326, %v854, 0
        %v880 = vsel %vm326, %v863, 0
        %v883 = vsel %vm326, %v872, 0
        %v886 = vsel %vm326, %v871, 0
        %v889 = vsel %vm342, %v795, 0
        %891 = vmatprep.subr.bf16.mxu0 0
        %892 = vmatpush1.bf16.msra.mxu0 %v889
        %893 = vmatprep.subr.bf16.mxu0 0
        %894 = vmatpush1.bf16.msra.mxu0 0
        %895 = vmatprep.subr.bf16.mxu0 0
        %896 = vmatpush1.bf16.msra.mxu0 0
        %897 = vmatprep.subr.bf16.mxu0 0
        %898 = vmatpush1.bf16.msra.mxu0 0
        %899 = vmatprep.subr.bf16.mxu0 0
        %900 = vmatpush1.bf16.msra.mxu0 0
        %901 = vmatprep.subr.bf16.mxu0 0
        %902 = vmatpush1.bf16.msra.mxu0 0
        %903 = vmatprep.subr.bf16.mxu0 0
        %904 = vmatpush1.bf16.msra.mxu0 0
        %905 = vmatprep.subr.bf16.mxu0 0
        %906 = vmatpush1.bf16.msra.mxu0 0
        %907 = vmatprep.subr.bf16.mxu0 0
        %908 = vmatpush1.bf16.msra.mxu0 0
        %909 = vmatprep.subr.bf16.mxu0 0
        %910 = vmatpush1.bf16.msra.mxu0 0
        %911 = vmatprep.subr.bf16.mxu0 0
        %912 = vmatpush1.bf16.msra.mxu0 0
        %913 = vmatprep.subr.bf16.mxu0 0
        %914 = vmatpush1.bf16.msra.mxu0 0
        %915 = vmatprep.subr.bf16.mxu0 0
        %916 = vmatpush1.bf16.msra.mxu0 0
        %917 = vmatprep.subr.bf16.mxu0 0
        %918 = vmatpush1.bf16.msra.mxu0 0
        %919 = vmatprep.subr.bf16.mxu0 0
        %920 = vmatpush1.bf16.msra.mxu0 0
        %921 = vmatprep.subr.bf16.mxu0 0
        %922 = vmatpush1.bf16.msra.mxu0 0
        %923 = vmatprep.mubr.bf16.mxu0 0
        %924 = vmatmul.mubr.bf16.gmra.mrb[0].mxu0 %v874
        %v925 = vpop.f32.mrb[0].mxu0
        %v926 = vadd.f32 0.0, %v925
        %v927 = vpop.f32.mrb[0].mxu0
        %v928 = vpop.f32.mrb[0].mxu0
        %v929 = vadd.f32 0.0, %v928
        %v930 = vpop.f32.mrb[0].mxu0
        %931 = vmatprep.mubr.bf16.mxu0 0
        %932 = vmatmul.mubr.bf16.gmra.mrb[0].mxu0 %v877
        %v933 = vpop.f32.mrb[0].mxu0
        %v934 = vadd.f32 0.0, %v933
        %v935 = vpop.f32.mrb[0].mxu0
        %v936 = vpop.f32.mrb[0].mxu0
        %v937 = vadd.f32 0.0, %v936
        %v938 = vpop.f32.mrb[0].mxu0
        %939 = vmatprep.mubr.bf16.mxu0 0
        %940 = vmatmul.mubr.bf16.gmra.mrb[0].mxu0 %v880
        %v941 = vpop.f32.mrb[0].mxu0
        %v942 = vadd.f32 0.0, %v941
        %v943 = vpop.f32.mrb[0].mxu0
        %v944 = vpop.f32.mrb[0].mxu0
        %v945 = vadd.f32 0.0, %v944
        %v946 = vpop.f32.mrb[0].mxu0
        %947 = vmatprep.mubr.bf16.mxu0 0
        %948 = vmatmul.mubr.bf16.gmra.mrb[0].mxu0 %v883
        %v949 = vpop.f32.mrb[0].mxu0
        %v950 = vadd.f32 0.0, %v949
        %v951 = vpop.f32.mrb[0].mxu0
        %v952 = vpop.f32.mrb[0].mxu0
        %v953 = vadd.f32 0.0, %v952
        %v954 = vpop.f32.mrb[0].mxu0
        %955 = vmatprep.mubr.bf16.mxu0 0
        %956 = vmatmul.mubr.bf16.gmra.mrb[0].mxu0 %v886
        %v957 = vpop.f32.mrb[0].mxu0
        %v958 = vadd.f32 0.0, %v957
        %v959 = vpop.f32.mrb[0].mxu0
        %v960 = vpop.f32.mrb[0].mxu0
        %v961 = vpop.f32.mrb[0].mxu0
        %962 = vdwg.mxu0
        %v963 = vadd.f32 %v796, %v926
        %v964 = vadd.f32 %v797, %v929
        %v965 = vadd.f32 %v798, %v934
        %v966 = vadd.f32 %v799, %v937
        %v967 = vadd.f32 %v800, %v942
        %v968 = vadd.f32 %v801, %v945
        %v969 = vadd.f32 %v802, %v950
        %v970 = vadd.f32 %v803, %v953
        %v971 = vadd.f32 %v804, %v958
        %972 = vst [vmem:[#allocation2] sm:$0xff] %v963
        %973 = vst [vmem:[#allocation2 + $0x8] sm:$0xff] %v964
        %974 = vst [vmem:[#allocation2 + $0x10] sm:$0xff] %v965
        %975 = vst [vmem:[#allocation2 + $0x18] sm:$0xff] %v966
        %976 = vst [vmem:[#allocation2 + $0x20] sm:$0xff] %v967
        %977 = vst [vmem:[#allocation2 + $0x28] sm:$0xff] %v968
        %978 = vst [vmem:[#allocation2 + $0x30] sm:$0xff] %v969
        %979 = vst [vmem:[#allocation2 + $0x38] sm:$0xff] %v970
        %980 = vst [vmem:[#allocation2 + $0x40] sm:$0x7] %v971
        %v981 = vld [vmem:[%s228 + $0x4] sm:$0xe]
        %v982 = vld [vmem:[%s228 + $0x8] sm:$0xf]
        %v983 = vld [vmem:[%s228 + $0xc] sm:$0xf]
        %v984 = vld [vmem:[%s228 + $0x10] sm:$0xf]
        %v985 = vld [vmem:[%s228 + $0x14] sm:$0xf]
        %v986 = vld [vmem:[%s228 + $0x18] sm:$0xf]
        %v987 = vld [vmem:[%s228 + $0x1c] sm:$0xf]
        %v988 = vld [vmem:[%s228 + $0x20] sm:$0xf]
        %v989 = vld [vmem:[%s228 + $0x24] sm:$0x7]
        %v990 = vld [vmem:[%s237 + $0x10] sm:$0xf]
        %v991 = vld [vmem:[#allocation2] sm:$0xff]
        %v992 = vld [vmem:[#allocation2 + $0x8] sm:$0xff]
        %v993 = vld [vmem:[#allocation2 + $0x10] sm:$0xff]
        %v994 = vld [vmem:[#allocation2 + $0x18] sm:$0xff]
        %v995 = vld [vmem:[#allocation2 + $0x20] sm:$0xff]
        %v996 = vld [vmem:[#allocation2 + $0x28] sm:$0xff]
        %v997 = vld [vmem:[#allocation2 + $0x30] sm:$0xff]
        %v998 = vld [vmem:[#allocation2 + $0x38] sm:$0xff]
        %v999 = vld [vmem:[#allocation2 + $0x40] sm:$0x7]
        %v1009 = vunpack.c.l.b16 %v981
        %v1010 = vunpack.c.l.b16 %v982
        %v1011 = vunpack.c.l.b16 %v983
        %v1012 = vunpack.c.l.b16 %v984
        %v1013 = vunpack.c.l.b16 %v985
        %v1014 = vunpack.c.l.b16 %v986
        %v1015 = vunpack.c.l.b16 %v987
        %v1016 = vunpack.c.l.b16 %v988
        %v1017 = vunpack.c.l.b16 %v989
        %v1018 = vpack.c.b16 %v1010, %v1009
        %v1019 = vpack.c.b16 %v1012, %v1011
        %v1020 = vpack.c.b16 %v1014, %v1013
        %v1021 = vpack.c.b16 %v1016, %v1015
        %v1022 = vpack.c.b16 %v1017, %v1017
        %v1023 = vrot.slane %v1018, 1
        %v1024 = vrot.slane %v1019, 1
        %v1025 = vsel %vm668, %v1023, %v1024
        %v1026 = vrot.slane %v1020, 1
        %v1027 = vsel %vm668, %v1024, %v1026
        %v1028 = vrot.slane %v1021, 1
        %v1029 = vsel %vm668, %v1026, %v1028
        %v1030 = vrot.slane %v1022, 1
        %v1031 = vsel %vm668, %v1028, %v1030
        %v1033 = vsel %vm326, %v1025, 0
        %v1036 = vsel %vm326, %v1027, 0
        %v1039 = vsel %vm326, %v1029, 0
        %v1042 = vsel %vm326, %v1031, 0
        %v1045 = vsel %vm326, %v1030, 0
        %v1048 = vsel %vm342, %v990, 0
        %1050 = vmatprep.subr.bf16.mxu0 0
        %1051 = vmatpush1.bf16.msra.mxu0 %v1048
        %1052 = vmatprep.subr.bf16.mxu0 0
        %1053 = vmatpush1.bf16.msra.mxu0 0
        %1054 = vmatprep.subr.bf16.mxu0 0
        %1055 = vmatpush1.bf16.msra.mxu0 0
        %1056 = vmatprep.subr.bf16.mxu0 0
        %1057 = vmatpush1.bf16.msra.mxu0 0
        %1058 = vmatprep.subr.bf16.mxu0 0
        %1059 = vmatpush1.bf16.msra.mxu0 0
        %1060 = vmatprep.subr.bf16.mxu0 0
        %1061 = vmatpush1.bf16.msra.mxu0 0
        %1062 = vmatprep.subr.bf16.mxu0 0
        %1063 = vmatpush1.bf16.msra.mxu0 0
        %1064 = vmatprep.subr.bf16.mxu0 0
        %1065 = vmatpush1.bf16.msra.mxu0 0
        %1066 = vmatprep.subr.bf16.mxu0 0
        %1067 = vmatpush1.bf16.msra.mxu0 0
        %1068 = vmatprep.subr.bf16.mxu0 0
        %1069 = vmatpush1.bf16.msra.mxu0 0
        %1070 = vmatprep.subr.bf16.mxu0 0
        %1071 = vmatpush1.bf16.msra.mxu0 0
        %1072 = vmatprep.subr.bf16.mxu0 0
        %1073 = vmatpush1.bf16.msra.mxu0 0
        %1074 = vmatprep.subr.bf16.mxu0 0
        %1075 = vmatpush1.bf16.msra.mxu0 0
        %1076 = vmatprep.subr.bf16.mxu0 0
        %1077 = vmatpush1.bf16.msra.mxu0 0
        %1078 = vmatprep.subr.bf16.mxu0 0
        %1079 = vmatpush1.bf16.msra.mxu0 0
        %1080 = vmatprep.subr.bf16.mxu0 0
        %1081 = vmatpush1.bf16.msra.mxu0 0
        %1082 = vmatprep.mubr.bf16.mxu0 0
        %1083 = vmatmul.mubr.bf16.gmra.mrb[0].mxu0 %v1033
        %v1084 = vpop.f32.mrb[0].mxu0
        %v1085 = vadd.f32 0.0, %v1084
        %v1086 = vpop.f32.mrb[0].mxu0
        %v1087 = vpop.f32.mrb[0].mxu0
        %v1088 = vadd.f32 0.0, %v1087
        %v1089 = vpop.f32.mrb[0].mxu0
        %1090 = vmatprep.mubr.bf16.mxu0 0
        %1091 = vmatmul.mubr.bf16.gmra.mrb[0].mxu0 %v1036
        %v1092 = vpop.f32.mrb[0].mxu0
        %v1093 = vadd.f32 0.0, %v1092
        %v1094 = vpop.f32.mrb[0].mxu0
        %v1095 = vpop.f32.mrb[0].mxu0
        %v1096 = vadd.f32 0.0, %v1095
        %v1097 = vpop.f32.mrb[0].mxu0
        %1098 = vmatprep.mubr.bf16.mxu0 0
        %1099 = vmatmul.mubr.bf16.gmra.mrb[0].mxu0 %v1039
        %v1100 = vpop.f32.mrb[0].mxu0
        %v1101 = vadd.f32 0.0, %v1100
        %v1102 = vpop.f32.mrb[0].mxu0
        %v1103 = vpop.f32.mrb[0].mxu0
        %v1104 = vadd.f32 0.0, %v1103
        %v1105 = vpop.f32.mrb[0].mxu0
        %1106 = vmatprep.mubr.bf16.mxu0 0
        %1107 = vmatmul.mubr.bf16.gmra.mrb[0].mxu0 %v1042
        %v1108 = vpop.f32.mrb[0].mxu0
        %v1109 = vadd.f32 0.0, %v1108
        %v1110 = vpop.f32.mrb[0].mxu0
        %v1111 = vpop.f32.mrb[0].mxu0
        %v1112 = vadd.f32 0.0, %v1111
        %v1113 = vpop.f32.mrb[0].mxu0
        %1114 = vmatprep.mubr.bf16.mxu0 0
        %1115 = vmatmul.mubr.bf16.gmra.mrb[0].mxu0 %v1045
        %v1116 = vpop.f32.mrb[0].mxu0
        %v1117 = vadd.f32 0.0, %v1116
        %v1118 = vpop.f32.mrb[0].mxu0
        %v1119 = vpop.f32.mrb[0].mxu0
        %v1120 = vpop.f32.mrb[0].mxu0
        %1121 = vdwg.mxu0
        %v1122 = vadd.f32 %v991, %v1085
        %v1123 = vadd.f32 %v992, %v1088
        %v1124 = vadd.f32 %v993, %v1093
        %v1125 = vadd.f32 %v994, %v1096
        %v1126 = vadd.f32 %v995, %v1101
        %v1127 = vadd.f32 %v996, %v1104
        %v1128 = vadd.f32 %v997, %v1109
        %v1129 = vadd.f32 %v998, %v1112
        %v1130 = vadd.f32 %v999, %v1117
        %1131 = vst [vmem:[#allocation2] sm:$0xff] %v1122
        %1132 = vst [vmem:[#allocation2 + $0x8] sm:$0xff] %v1123
        %1133 = vst [vmem:[#allocation2 + $0x10] sm:$0xff] %v1124
        %1134 = vst [vmem:[#allocation2 + $0x18] sm:$0xff] %v1125
        %1135 = vst [vmem:[#allocation2 + $0x20] sm:$0xff] %v1126
        %1136 = vst [vmem:[#allocation2 + $0x28] sm:$0xff] %v1127
        %1137 = vst [vmem:[#allocation2 + $0x30] sm:$0xff] %v1128
        %1138 = vst [vmem:[#allocation2 + $0x38] sm:$0xff] %v1129
        %1139 = vst [vmem:[#allocation2 + $0x40] sm:$0x7] %v1130
        %v1140 = vld [vmem:[%s228 + $0x4] sm:$0xe]
        %v1141 = vld [vmem:[%s228 + $0x8] sm:$0xf]
        %v1142 = vld [vmem:[%s228 + $0xc] sm:$0xf]
        %v1143 = vld [vmem:[%s228 + $0x10] sm:$0xf]
        %v1144 = vld [vmem:[%s228 + $0x14] sm:$0xf]
        %v1145 = vld [vmem:[%s228 + $0x18] sm:$0xf]
        %v1146 = vld [vmem:[%s228 + $0x1c] sm:$0xf]
        %v1147 = vld [vmem:[%s228 + $0x20] sm:$0xf]
        %v1148 = vld [vmem:[%s228 + $0x24] sm:$0x7]
        %v1149 = vld [vmem:[%s237 + $0x14] sm:$0xf]
        %v1150 = vld [vmem:[#allocation2] sm:$0xff]
        %v1151 = vld [vmem:[#allocation2 + $0x8] sm:$0xff]
        %v1152 = vld [vmem:[#allocation2 + $0x10] sm:$0xff]
        %v1153 = vld [vmem:[#allocation2 + $0x18] sm:$0xff]
        %v1154 = vld [vmem:[#allocation2 + $0x20] sm:$0xff]
        %v1155 = vld [vmem:[#allocation2 + $0x28] sm:$0xff]
        %v1156 = vld [vmem:[#allocation2 + $0x30] sm:$0xff]
        %v1157 = vld [vmem:[#allocation2 + $0x38] sm:$0xff]
        %v1158 = vld [vmem:[#allocation2 + $0x40] sm:$0x7]
        %v1168 = vunpack.c.l.b16 %v1140
        %v1169 = vunpack.c.l.b16 %v1141
        %v1170 = vunpack.c.l.b16 %v1142
        %v1171 = vunpack.c.l.b16 %v1143
        %v1172 = vunpack.c.l.b16 %v1144
        %v1173 = vunpack.c.l.b16 %v1145
        %v1174 = vunpack.c.l.b16 %v1146
        %v1175 = vunpack.c.l.b16 %v1147
        %v1176 = vunpack.c.l.b16 %v1148
        %v1177 = vpack.c.b16 %v1169, %v1168
        %v1178 = vpack.c.b16 %v1171, %v1170
        %v1179 = vpack.c.b16 %v1173, %v1172
        %v1180 = vpack.c.b16 %v1175, %v1174
        %v1181 = vpack.c.b16 %v1176, %v1176
        %v1183 = vshrl.u32 %v1177, 16
        %v1185 = vrot.slane %v1183, 1
        %v1186 = vshll.u32 %v1177, 16
        %v1188 = vrot.slane %v1186, 2
        %v1189 = vor.u32 %v1185, %v1188
        %v1191 = vshrl.u32 %v1178, 16
        %v1193 = vrot.slane %v1191, 1
        %v1194 = vshll.u32 %v1178, 16
        %v1196 = vrot.slane %v1194, 2
        %v1197 = vor.u32 %v1193, %v1196
        %v1198 = vsel %vm828, %v1189, %v1197
        %v1200 = vshrl.u32 %v1179, 16
        %v1202 = vrot.slane %v1200, 1
        %v1203 = vshll.u32 %v1179, 16
        %v1205 = vrot.slane %v1203, 2
        %v1206 = vor.u32 %v1202, %v1205
        %v1207 = vsel %vm828, %v1197, %v1206
        %v1209 = vshrl.u32 %v1180, 16
        %v1211 = vrot.slane %v1209, 1
        %v1212 = vshll.u32 %v1180, 16
        %v1214 = vrot.slane %v1212, 2
        %v1215 = vor.u32 %v1211, %v1214
        %v1216 = vsel %vm828, %v1206, %v1215
        %v1218 = vshrl.u32 %v1181, 16
        %v1220 = vrot.slane %v1218, 1
        %v1221 = vshll.u32 %v1181, 16
        %v1223 = vrot.slane %v1221, 2
        %v1224 = vor.u32 %v1220, %v1223
        %v1225 = vsel %vm828, %v1215, %v1224
        %v1227 = vsel %vm326, %v1198, 0
        %v1230 = vsel %vm326, %v1207, 0
        %v1233 = vsel %vm326, %v1216, 0
        %v1236 = vsel %vm326, %v1225, 0
        %v1239 = vsel %vm326, %v1224, 0
        %v1242 = vsel %vm342, %v1149, 0
        %1244 = vmatprep.subr.bf16.mxu0 0
        %1245 = vmatpush1.bf16.msra.mxu0 %v1242
        %1246 = vmatprep.subr.bf16.mxu0 0
        %1247 = vmatpush1.bf16.msra.mxu0 0
        %1248 = vmatprep.subr.bf16.mxu0 0
        %1249 = vmatpush1.bf16.msra.mxu0 0
        %1250 = vmatprep.subr.bf16.mxu0 0
        %1251 = vmatpush1.bf16.msra.mxu0 0
        %1252 = vmatprep.subr.bf16.mxu0 0
        %1253 = vmatpush1.bf16.msra.mxu0 0
        %1254 = vmatprep.subr.bf16.mxu0 0
        %1255 = vmatpush1.bf16.msra.mxu0 0
        %1256 = vmatprep.subr.bf16.mxu0 0
        %1257 = vmatpush1.bf16.msra.mxu0 0
        %1258 = vmatprep.subr.bf16.mxu0 0
        %1259 = vmatpush1.bf16.msra.mxu0 0
        %1260 = vmatprep.subr.bf16.mxu0 0
        %1261 = vmatpush1.bf16.msra.mxu0 0
        %1262 = vmatprep.subr.bf16.mxu0 0
        %1263 = vmatpush1.bf16.msra.mxu0 0
        %1264 = vmatprep.subr.bf16.mxu0 0
        %1265 = vmatpush1.bf16.msra.mxu0 0
        %1266 = vmatprep.subr.bf16.mxu0 0
        %1267 = vmatpush1.bf16.msra.mxu0 0
        %1268 = vmatprep.subr.bf16.mxu0 0
        %1269 = vmatpush1.bf16.msra.mxu0 0
        %1270 = vmatprep.subr.bf16.mxu0 0
        %1271 = vmatpush1.bf16.msra.mxu0 0
        %1272 = vmatprep.subr.bf16.mxu0 0
        %1273 = vmatpush1.bf16.msra.mxu0 0
        %1274 = vmatprep.subr.bf16.mxu0 0
        %1275 = vmatpush1.bf16.msra.mxu0 0
        %1276 = vmatprep.mubr.bf16.mxu0 0
        %1277 = vmatmul.mubr.bf16.gmra.mrb[0].mxu0 %v1227
        %v1278 = vpop.f32.mrb[0].mxu0
        %v1279 = vadd.f32 0.0, %v1278
        %v1280 = vpop.f32.mrb[0].mxu0
        %v1281 = vpop.f32.mrb[0].mxu0
        %v1282 = vadd.f32 0.0, %v1281
        %v1283 = vpop.f32.mrb[0].mxu0
        %1284 = vmatprep.mubr.bf16.mxu0 0
        %1285 = vmatmul.mubr.bf16.gmra.mrb[0].mxu0 %v1230
        %v1286 = vpop.f32.mrb[0].mxu0
        %v1287 = vadd.f32 0.0, %v1286
        %v1288 = vpop.f32.mrb[0].mxu0
        %v1289 = vpop.f32.mrb[0].mxu0
        %v1290 = vadd.f32 0.0, %v1289
        %v1291 = vpop.f32.mrb[0].mxu0
        %1292 = vmatprep.mubr.bf16.mxu0 0
        %1293 = vmatmul.mubr.bf16.gmra.mrb[0].mxu0 %v1233
        %v1294 = vpop.f32.mrb[0].mxu0
        %v1295 = vadd.f32 0.0, %v1294
        %v1296 = vpop.f32.mrb[0].mxu0
        %v1297 = vpop.f32.mrb[0].mxu0
        %v1298 = vadd.f32 0.0, %v1297
        %v1299 = vpop.f32.mrb[0].mxu0
        %1300 = vmatprep.mubr.bf16.mxu0 0
        %1301 = vmatmul.mubr.bf16.gmra.mrb[0].mxu0 %v1236
        %v1302 = vpop.f32.mrb[0].mxu0
        %v1303 = vadd.f32 0.0, %v1302
        %v1304 = vpop.f32.mrb[0].mxu0
        %v1305 = vpop.f32.mrb[0].mxu0
        %v1306 = vadd.f32 0.0, %v1305
        %v1307 = vpop.f32.mrb[0].mxu0
        %1308 = vmatprep.mubr.bf16.mxu0 0
        %1309 = vmatmul.mubr.bf16.gmra.mrb[0].mxu0 %v1239
        %v1310 = vpop.f32.mrb[0].mxu0
        %v1311 = vadd.f32 0.0, %v1310
        %v1312 = vpop.f32.mrb[0].mxu0
        %v1313 = vpop.f32.mrb[0].mxu0
        %v1314 = vpop.f32.mrb[0].mxu0
        %1315 = vdwg.mxu0
        %v1316 = vadd.f32 %v1150, %v1279
        %v1317 = vadd.f32 %v1151, %v1282
        %v1318 = vadd.f32 %v1152, %v1287
        %v1319 = vadd.f32 %v1153, %v1290
        %v1320 = vadd.f32 %v1154, %v1295
        %v1321 = vadd.f32 %v1155, %v1298
        %v1322 = vadd.f32 %v1156, %v1303
        %v1323 = vadd.f32 %v1157, %v1306
        %v1324 = vadd.f32 %v1158, %v1311
        %1325 = vst [vmem:[#allocation2] sm:$0xff] %v1316
        %1326 = vst [vmem:[#allocation2 + $0x8] sm:$0xff] %v1317
        %1327 = vst [vmem:[#allocation2 + $0x10] sm:$0xff] %v1318
        %1328 = vst [vmem:[#allocation2 + $0x18] sm:$0xff] %v1319
        %1329 = vst [vmem:[#allocation2 + $0x20] sm:$0xff] %v1320
        %1330 = vst [vmem:[#allocation2 + $0x28] sm:$0xff] %v1321
        %1331 = vst [vmem:[#allocation2 + $0x30] sm:$0xff] %v1322
        %1332 = vst [vmem:[#allocation2 + $0x38] sm:$0xff] %v1323
        %1333 = vst [vmem:[#allocation2 + $0x40] sm:$0x7] %v1324
        %v1334 = vld [vmem:[%s228 + $0x4] sm:$0xc]
        %v1335 = vld [vmem:[%s228 + $0x8] sm:$0xf]
        %v1336 = vld [vmem:[%s228 + $0xc] sm:$0xf]
        %v1337 = vld [vmem:[%s228 + $0x10] sm:$0xf]
        %v1338 = vld [vmem:[%s228 + $0x14] sm:$0xf]
        %v1339 = vld [vmem:[%s228 + $0x18] sm:$0xf]
        %v1340 = vld [vmem:[%s228 + $0x1c] sm:$0xf]
        %v1341 = vld [vmem:[%s228 + $0x20] sm:$0xf]
        %v1342 = vld [vmem:[%s228 + $0x24] sm:$0xf]
        %v1343 = vld [vmem:[%s237 + $0x18] sm:$0xf]
        %v1344 = vld [vmem:[#allocation2] sm:$0xff]
        %v1345 = vld [vmem:[#allocation2 + $0x8] sm:$0xff]
        %v1346 = vld [vmem:[#allocation2 + $0x10] sm:$0xff]
        %v1347 = vld [vmem:[#allocation2 + $0x18] sm:$0xff]
        %v1348 = vld [vmem:[#allocation2 + $0x20] sm:$0xff]
        %v1349 = vld [vmem:[#allocation2 + $0x28] sm:$0xff]
        %v1350 = vld [vmem:[#allocation2 + $0x30] sm:$0xff]
        %v1351 = vld [vmem:[#allocation2 + $0x38] sm:$0xff]
        %v1352 = vld [vmem:[#allocation2 + $0x40] sm:$0x7]
        %v1362 = vunpack.c.l.b16 %v1334
        %v1363 = vunpack.c.l.b16 %v1335
        %v1364 = vunpack.c.l.b16 %v1336
        %v1365 = vunpack.c.l.b16 %v1337
        %v1366 = vunpack.c.l.b16 %v1338
        %v1367 = vunpack.c.l.b16 %v1339
        %v1368 = vunpack.c.l.b16 %v1340
        %v1369 = vunpack.c.l.b16 %v1341
        %v1370 = vunpack.c.l.b16 %v1342
        %v1371 = vpack.c.b16 %v1363, %v1362
        %v1372 = vpack.c.b16 %v1365, %v1364
        %v1373 = vpack.c.b16 %v1367, %v1366
        %v1374 = vpack.c.b16 %v1369, %v1368
        %v1375 = vpack.c.b16 %v1370, %v1370
        %vm1376 = vcmask 1045504
        %v1377 = vrot.slane %v1371, 2
        %v1378 = vrot.slane %v1372, 2
        %v1379 = vsel %vm1376, %v1377, %v1378
        %v1380 = vrot.slane %v1373, 2
        %v1381 = vsel %vm1376, %v1378, %v1380
        %v1382 = vrot.slane %v1374, 2
        %v1383 = vsel %vm1376, %v1380, %v1382
        %v1384 = vrot.slane %v1375, 2
        %v1385 = vsel %vm1376, %v1382, %v1384
        %v1387 = vsel %vm326, %v1379, 0
        %v1390 = vsel %vm326, %v1381, 0
        %v1393 = vsel %vm326, %v1383, 0
        %v1396 = vsel %vm326, %v1385, 0
        %v1399 = vsel %vm326, %v1384, 0
        %v1402 = vsel %vm342, %v1343, 0
        %1404 = vmatprep.subr.bf16.mxu0 0
        %1405 = vmatpush1.bf16.msra.mxu0 %v1402
        %1406 = vmatprep.subr.bf16.mxu0 0
        %1407 = vmatpush1.bf16.msra.mxu0 0
        %1408 = vmatprep.subr.bf16.mxu0 0
        %1409 = vmatpush1.bf16.msra.mxu0 0
        %1410 = vmatprep.subr.bf16.mxu0 0
        %1411 = vmatpush1.bf16.msra.mxu0 0
        %1412 = vmatprep.subr.bf16.mxu0 0
        %1413 = vmatpush1.bf16.msra.mxu0 0
        %1414 = vmatprep.subr.bf16.mxu0 0
        %1415 = vmatpush1.bf16.msra.mxu0 0
        %1416 = vmatprep.subr.bf16.mxu0 0
        %1417 = vmatpush1.bf16.msra.mxu0 0
        %1418 = vmatprep.subr.bf16.mxu0 0
        %1419 = vmatpush1.bf16.msra.mxu0 0
        %1420 = vmatprep.subr.bf16.mxu0 0
        %1421 = vmatpush1.bf16.msra.mxu0 0
        %1422 = vmatprep.subr.bf16.mxu0 0
        %1423 = vmatpush1.bf16.msra.mxu0 0
        %1424 = vmatprep.subr.bf16.mxu0 0
        %1425 = vmatpush1.bf16.msra.mxu0 0
        %1426 = vmatprep.subr.bf16.mxu0 0
        %1427 = vmatpush1.bf16.msra.mxu0 0
        %1428 = vmatprep.subr.bf16.mxu0 0
        %1429 = vmatpush1.bf16.msra.mxu0 0
        %1430 = vmatprep.subr.bf16.mxu0 0
        %1431 = vmatpush1.bf16.msra.mxu0 0
        %1432 = vmatprep.subr.bf16.mxu0 0
        %1433 = vmatpush1.bf16.msra.mxu0 0
        %1434 = vmatprep.subr.bf16.mxu0 0
        %1435 = vmatpush1.bf16.msra.mxu0 0
        %1436 = vmatprep.mubr.bf16.mxu0 0
        %1437 = vmatmul.mubr.bf16.gmra.mrb[0].mxu0 %v1387
        %v1438 = vpop.f32.mrb[0].mxu0
        %v1439 = vadd.f32 0.0, %v1438
        %v1440 = vpop.f32.mrb[0].mxu0
        %v1441 = vpop.f32.mrb[0].mxu0
        %v1442 = vadd.f32 0.0, %v1441
        %v1443 = vpop.f32.mrb[0].mxu0
        %1444 = vmatprep.mubr.bf16.mxu0 0
        %1445 = vmatmul.mubr.bf16.gmra.mrb[0].mxu0 %v1390
        %v1446 = vpop.f32.mrb[0].mxu0
        %v1447 = vadd.f32 0.0, %v1446
        %v1448 = vpop.f32.mrb[0].mxu0
        %v1449 = vpop.f32.mrb[0].mxu0
        %v1450 = vadd.f32 0.0, %v1449
        %v1451 = vpop.f32.mrb[0].mxu0
        %1452 = vmatprep.mubr.bf16.mxu0 0
        %1453 = vmatmul.mubr.bf16.gmra.mrb[0].mxu0 %v1393
        %v1454 = vpop.f32.mrb[0].mxu0
        %v1455 = vadd.f32 0.0, %v1454
        %v1456 = vpop.f32.mrb[0].mxu0
        %v1457 = vpop.f32.mrb[0].mxu0
        %v1458 = vadd.f32 0.0, %v1457
        %v1459 = vpop.f32.mrb[0].mxu0
        %1460 = vmatprep.mubr.bf16.mxu0 0
        %1461 = vmatmul.mubr.bf16.gmra.mrb[0].mxu0 %v1396
        %v1462 = vpop.f32.mrb[0].mxu0
        %v1463 = vadd.f32 0.0, %v1462
        %v1464 = vpop.f32.mrb[0].mxu0
        %v1465 = vpop.f32.mrb[0].mxu0
        %v1466 = vadd.f32 0.0, %v1465
        %v1467 = vpop.f32.mrb[0].mxu0
        %1468 = vmatprep.mubr.bf16.mxu0 0
        %1469 = vmatmul.mubr.bf16.gmra.mrb[0].mxu0 %v1399
        %v1470 = vpop.f32.mrb[0].mxu0
        %v1471 = vadd.f32 0.0, %v1470
        %v1472 = vpop.f32.mrb[0].mxu0
        %v1473 = vpop.f32.mrb[0].mxu0
        %v1474 = vpop.f32.mrb[0].mxu0
        %1475 = vdwg.mxu0
        %v1476 = vadd.f32 %v1344, %v1439
        %v1477 = vadd.f32 %v1345, %v1442
        %v1478 = vadd.f32 %v1346, %v1447
        %v1479 = vadd.f32 %v1347, %v1450
        %v1480 = vadd.f32 %v1348, %v1455
        %v1481 = vadd.f32 %v1349, %v1458
        %v1482 = vadd.f32 %v1350, %v1463
        %v1483 = vadd.f32 %v1351, %v1466
        %v1484 = vadd.f32 %v1352, %v1471
        %1485 = vst [vmem:[#allocation2] sm:$0xff] %v1476
        %1486 = vst [vmem:[#allocation2 + $0x8] sm:$0xff] %v1477
        %1487 = vst [vmem:[#allocation2 + $0x10] sm:$0xff] %v1478
        %1488 = vst [vmem:[#allocation2 + $0x18] sm:$0xff] %v1479
        %1489 = vst [vmem:[#allocation2 + $0x20] sm:$0xff] %v1480
        %1490 = vst [vmem:[#allocation2 + $0x28] sm:$0xff] %v1481
        %1491 = vst [vmem:[#allocation2 + $0x30] sm:$0xff] %v1482
        %1492 = vst [vmem:[#allocation2 + $0x38] sm:$0xff] %v1483
        %1493 = vst [vmem:[#allocation2 + $0x40] sm:$0x7] %v1484
        %v1494 = vld [vmem:[%s228 + $0x4] sm:$0xc]
        %v1495 = vld [vmem:[%s228 + $0x8] sm:$0xf]
        %v1496 = vld [vmem:[%s228 + $0xc] sm:$0xf]
        %v1497 = vld [vmem:[%s228 + $0x10] sm:$0xf]
        %v1498 = vld [vmem:[%s228 + $0x14] sm:$0xf]
        %v1499 = vld [vmem:[%s228 + $0x18] sm:$0xf]
        %v1500 = vld [vmem:[%s228 + $0x1c] sm:$0xf]
        %v1501 = vld [vmem:[%s228 + $0x20] sm:$0xf]
        %v1502 = vld [vmem:[%s228 + $0x24] sm:$0xf]
        %v1503 = vld [vmem:[%s237 + $0x1c] sm:$0xf]
        %v1504 = vld [vmem:[#allocation2] sm:$0xff]
        %v1505 = vld [vmem:[#allocation2 + $0x8] sm:$0xff]
        %v1506 = vld [vmem:[#allocation2 + $0x10] sm:$0xff]
        %v1507 = vld [vmem:[#allocation2 + $0x18] sm:$0xff]
        %v1508 = vld [vmem:[#allocation2 + $0x20] sm:$0xff]
        %v1509 = vld [vmem:[#allocation2 + $0x28] sm:$0xff]
        %v1510 = vld [vmem:[#allocation2 + $0x30] sm:$0xff]
        %v1511 = vld [vmem:[#allocation2 + $0x38] sm:$0xff]
        %v1512 = vld [vmem:[#allocation2 + $0x40] sm:$0x7]
        %v1522 = vunpack.c.l.b16 %v1494
        %v1523 = vunpack.c.l.b16 %v1495
        %v1524 = vunpack.c.l.b16 %v1496
        %v1525 = vunpack.c.l.b16 %v1497
        %v1526 = vunpack.c.l.b16 %v1498
        %v1527 = vunpack.c.l.b16 %v1499
        %v1528 = vunpack.c.l.b16 %v1500
        %v1529 = vunpack.c.l.b16 %v1501
        %v1530 = vunpack.c.l.b16 %v1502
        %v1531 = vpack.c.b16 %v1523, %v1522
        %v1532 = vpack.c.b16 %v1525, %v1524
        %v1533 = vpack.c.b16 %v1527, %v1526
        %v1534 = vpack.c.b16 %v1529, %v1528
        %v1535 = vpack.c.b16 %v1530, %v1530
        %vm1536 = vsmask.f32 5376
        %v1538 = vshrl.u32 %v1531, 16
        %v1540 = vrot.slane %v1538, 2
        %v1541 = vshll.u32 %v1531, 16
        %v1543 = vrot.slane %v1541, 3
        %v1544 = vor.u32 %v1540, %v1543
        %v1546 = vshrl.u32 %v1532, 16
        %v1548 = vrot.slane %v1546, 2
        %v1549 = vshll.u32 %v1532, 16
        %v1551 = vrot.slane %v1549, 3
        %v1552 = vor.u32 %v1548, %v1551
        %v1553 = vsel %vm1536, %v1544, %v1552
        %v1555 = vshrl.u32 %v1533, 16
        %v1557 = vrot.slane %v1555, 2
        %v1558 = vshll.u32 %v1533, 16
        %v1560 = vrot.slane %v1558, 3
        %v1561 = vor.u32 %v1557, %v1560
        %v1562 = vsel %vm1536, %v1552, %v1561
        %v1564 = vshrl.u32 %v1534, 16
        %v1566 = vrot.slane %v1564, 2
        %v1567 = vshll.u32 %v1534, 16
        %v1569 = vrot.slane %v1567, 3
        %v1570 = vor.u32 %v1566, %v1569
        %v1571 = vsel %vm1536, %v1561, %v1570
        %v1573 = vshrl.u32 %v1535, 16
        %v1575 = vrot.slane %v1573, 2
        %v1576 = vshll.u32 %v1535, 16
        %v1578 = vrot.slane %v1576, 3
        %v1579 = vor.u32 %v1575, %v1578
        %v1580 = vsel %vm1536, %v1570, %v1579
        %v1582 = vsel %vm326, %v1553, 0
        %v1585 = vsel %vm326, %v1562, 0
        %v1588 = vsel %vm326, %v1571, 0
        %v1591 = vsel %vm326, %v1580, 0
        %v1594 = vsel %vm326, %v1579, 0
        %v1597 = vsel %vm342, %v1503, 0
        %1599 = vmatprep.subr.bf16.mxu0 0
        %1600 = vmatpush1.bf16.msra.mxu0 %v1597
        %1601 = vmatprep.subr.bf16.mxu0 0
        %1602 = vmatpush1.bf16.msra.mxu0 0
        %1603 = vmatprep.subr.bf16.mxu0 0
        %1604 = vmatpush1.bf16.msra.mxu0 0
        %1605 = vmatprep.subr.bf16.mxu0 0
        %1606 = vmatpush1.bf16.msra.mxu0 0
        %1607 = vmatprep.subr.bf16.mxu0 0
        %1608 = vmatpush1.bf16.msra.mxu0 0
        %1609 = vmatprep.subr.bf16.mxu0 0
        %1610 = vmatpush1.bf16.msra.mxu0 0
        %1611 = vmatprep.subr.bf16.mxu0 0
        %1612 = vmatpush1.bf16.msra.mxu0 0
        %1613 = vmatprep.subr.bf16.mxu0 0
        %1614 = vmatpush1.bf16.msra.mxu0 0
        %1615 = vmatprep.subr.bf16.mxu0 0
        %1616 = vmatpush1.bf16.msra.mxu0 0
        %1617 = vmatprep.subr.bf16.mxu0 0
        %1618 = vmatpush1.bf16.msra.mxu0 0
        %1619 = vmatprep.subr.bf16.mxu0 0
        %1620 = vmatpush1.bf16.msra.mxu0 0
        %1621 = vmatprep.subr.bf16.mxu0 0
        %1622 = vmatpush1.bf16.msra.mxu0 0
        %1623 = vmatprep.subr.bf16.mxu0 0
        %1624 = vmatpush1.bf16.msra.mxu0 0
        %1625 = vmatprep.subr.bf16.mxu0 0
        %1626 = vmatpush1.bf16.msra.mxu0 0
        %1627 = vmatprep.subr.bf16.mxu0 0
        %1628 = vmatpush1.bf16.msra.mxu0 0
        %1629 = vmatprep.subr.bf16.mxu0 0
        %1630 = vmatpush1.bf16.msra.mxu0 0
        %1631 = vmatprep.mubr.bf16.mxu0 0
        %1632 = vmatmul.mubr.bf16.gmra.mrb[0].mxu0 %v1582
        %v1633 = vpop.f32.mrb[0].mxu0
        %v1634 = vadd.f32 0.0, %v1633
        %v1635 = vpop.f32.mrb[0].mxu0
        %v1636 = vpop.f32.mrb[0].mxu0
        %v1637 = vadd.f32 0.0, %v1636
        %v1638 = vpop.f32.mrb[0].mxu0
        %1639 = vmatprep.mubr.bf16.mxu0 0
        %1640 = vmatmul.mubr.bf16.gmra.mrb[0].mxu0 %v1585
        %v1641 = vpop.f32.mrb[0].mxu0
        %v1642 = vadd.f32 0.0, %v1641
        %v1643 = vpop.f32.mrb[0].mxu0
        %v1644 = vpop.f32.mrb[0].mxu0
        %v1645 = vadd.f32 0.0, %v1644
        %v1646 = vpop.f32.mrb[0].mxu0
        %1647 = vmatprep.mubr.bf16.mxu0 0
        %1648 = vmatmul.mubr.bf16.gmra.mrb[0].mxu0 %v1588
        %v1649 = vpop.f32.mrb[0].mxu0
        %v1650 = vadd.f32 0.0, %v1649
        %v1651 = vpop.f32.mrb[0].mxu0
        %v1652 = vpop.f32.mrb[0].mxu0
        %v1653 = vadd.f32 0.0, %v1652
        %v1654 = vpop.f32.mrb[0].mxu0
        %1655 = vmatprep.mubr.bf16.mxu0 0
        %1656 = vmatmul.mubr.bf16.gmra.mrb[0].mxu0 %v1591
        %v1657 = vpop.f32.mrb[0].mxu0
        %v1658 = vadd.f32 0.0, %v1657
        %v1659 = vpop.f32.mrb[0].mxu0
        %v1660 = vpop.f32.mrb[0].mxu0
        %v1661 = vadd.f32 0.0, %v1660
        %v1662 = vpop.f32.mrb[0].mxu0
        %1663 = vmatprep.mubr.bf16.mxu0 0
        %1664 = vmatmul.mubr.bf16.gmra.mrb[0].mxu0 %v1594
        %v1665 = vpop.f32.mrb[0].mxu0
        %v1666 = vadd.f32 0.0, %v1665
        %v1667 = vpop.f32.mrb[0].mxu0
        %v1668 = vpop.f32.mrb[0].mxu0
        %v1669 = vpop.f32.mrb[0].mxu0
        %1670 = vdwg.mxu0
        %v1671 = vadd.f32 %v1504, %v1634
        %v1672 = vadd.f32 %v1505, %v1637
        %v1673 = vadd.f32 %v1506, %v1642
        %v1674 = vadd.f32 %v1507, %v1645
        %v1675 = vadd.f32 %v1508, %v1650
        %v1676 = vadd.f32 %v1509, %v1653
        %v1677 = vadd.f32 %v1510, %v1658
        %v1678 = vadd.f32 %v1511, %v1661
        %v1679 = vadd.f32 %v1512, %v1666
        %1680 = vst [vmem:[#allocation2] sm:$0xff] %v1671
        %1681 = vst [vmem:[#allocation2 + $0x8] sm:$0xff] %v1672
        %1682 = vst [vmem:[#allocation2 + $0x10] sm:$0xff] %v1673
        %1683 = vst [vmem:[#allocation2 + $0x18] sm:$0xff] %v1674
        %1684 = vst [vmem:[#allocation2 + $0x20] sm:$0xff] %v1675
        %1685 = vst [vmem:[#allocation2 + $0x28] sm:$0xff] %v1676
        %1686 = vst [vmem:[#allocation2 + $0x30] sm:$0xff] %v1677
        %1687 = vst [vmem:[#allocation2 + $0x38] sm:$0xff] %v1678
        %1688 = vst [vmem:[#allocation2 + $0x40] sm:$0x7] %v1679
        %v1689 = vld [vmem:[%s228 + $0x8] sm:$0xc]
        %v1690 = vld [vmem:[%s228 + $0xc] sm:$0xf]
        %v1691 = vld [vmem:[%s228 + $0x10] sm:$0xf]
        %v1692 = vld [vmem:[%s228 + $0x14] sm:$0xf]
        %v1693 = vld [vmem:[%s228 + $0x18] sm:$0xf]
        %v1694 = vld [vmem:[%s228 + $0x1c] sm:$0xf]
        %v1695 = vld [vmem:[%s228 + $0x20] sm:$0xf]
        %v1696 = vld [vmem:[%s228 + $0x24] sm:$0xf]
        %v1697 = vld [vmem:[%s228 + $0x28] sm:$0xf]
        %v1698 = vld [vmem:[%s237 + $0x20] sm:$0xf]
        %v1699 = vld [vmem:[#allocation2] sm:$0xff]
        %v1700 = vld [vmem:[#allocation2 + $0x8] sm:$0xff]
        %v1701 = vld [vmem:[#allocation2 + $0x10] sm:$0xff]
        %v1702 = vld [vmem:[#allocation2 + $0x18] sm:$0xff]
        %v1703 = vld [vmem:[#allocation2 + $0x20] sm:$0xff]
        %v1704 = vld [vmem:[#allocation2 + $0x28] sm:$0xff]
        %v1705 = vld [vmem:[#allocation2 + $0x30] sm:$0xff]
        %v1706 = vld [vmem:[#allocation2 + $0x38] sm:$0xff]
        %v1707 = vld [vmem:[#allocation2 + $0x40] sm:$0x7]
        %v1717 = vunpack.c.l.b16 %v1689
        %v1718 = vunpack.c.l.b16 %v1690
        %v1719 = vunpack.c.l.b16 %v1691
        %v1720 = vunpack.c.l.b16 %v1692
        %v1721 = vunpack.c.l.b16 %v1693
        %v1722 = vunpack.c.l.b16 %v1694
        %v1723 = vunpack.c.l.b16 %v1695
        %v1724 = vunpack.c.l.b16 %v1696
        %v1725 = vunpack.c.l.b16 %v1697
        %v1726 = vpack.c.b16 %v1718, %v1717
        %v1727 = vpack.c.b16 %v1720, %v1719
        %v1728 = vpack.c.b16 %v1722, %v1721
        %v1729 = vpack.c.b16 %v1724, %v1723
        %v1730 = vpack.c.b16 %v1725, %v1725
        %v1731 = vrot.slane %v1726, 2
        %v1732 = vrot.slane %v1727, 2
        %v1733 = vsel %vm1376, %v1731, %v1732
        %v1734 = vrot.slane %v1728, 2
        %v1735 = vsel %vm1376, %v1732, %v1734
        %v1736 = vrot.slane %v1729, 2
        %v1737 = vsel %vm1376, %v1734, %v1736
        %v1738 = vrot.slane %v1730, 2
        %v1739 = vsel %vm1376, %v1736, %v1738
        %v1741 = vsel %vm326, %v1733, 0
        %v1744 = vsel %vm326, %v1735, 0
        %v1747 = vsel %vm326, %v1737, 0
        %v1750 = vsel %vm326, %v1739, 0
        %v1753 = vsel %vm326, %v1738, 0
        %v1756 = vsel %vm342, %v1698, 0
        %1758 = vmatprep.subr.bf16.mxu0 0
        %1759 = vmatpush1.bf16.msra.mxu0 %v1756
        %1760 = vmatprep.subr.bf16.mxu0 0
        %1761 = vmatpush1.bf16.msra.mxu0 0
        %1762 = vmatprep.subr.bf16.mxu0 0
        %1763 = vmatpush1.bf16.msra.mxu0 0
        %1764 = vmatprep.subr.bf16.mxu0 0
        %1765 = vmatpush1.bf16.msra.mxu0 0
        %1766 = vmatprep.subr.bf16.mxu0 0
        %1767 = vmatpush1.bf16.msra.mxu0 0
        %1768 = vmatprep.subr.bf16.mxu0 0
        %1769 = vmatpush1.bf16.msra.mxu0 0
        %1770 = vmatprep.subr.bf16.mxu0 0
        %1771 = vmatpush1.bf16.msra.mxu0 0
        %1772 = vmatprep.subr.bf16.mxu0 0
        %1773 = vmatpush1.bf16.msra.mxu0 0
        %1774 = vmatprep.subr.bf16.mxu0 0
        %1775 = vmatpush1.bf16.msra.mxu0 0
        %1776 = vmatprep.subr.bf16.mxu0 0
        %1777 = vmatpush1.bf16.msra.mxu0 0
        %1778 = vmatprep.subr.bf16.mxu0 0
        %1779 = vmatpush1.bf16.msra.mxu0 0
        %1780 = vmatprep.subr.bf16.mxu0 0
        %1781 = vmatpush1.bf16.msra.mxu0 0
        %1782 = vmatprep.subr.bf16.mxu0 0
        %1783 = vmatpush1.bf16.msra.mxu0 0
        %1784 = vmatprep.subr.bf16.mxu0 0
        %1785 = vmatpush1.bf16.msra.mxu0 0
        %1786 = vmatprep.subr.bf16.mxu0 0
        %1787 = vmatpush1.bf16.msra.mxu0 0
        %1788 = vmatprep.subr.bf16.mxu0 0
        %1789 = vmatpush1.bf16.msra.mxu0 0
        %1790 = vmatprep.mubr.bf16.mxu0 0
        %1791 = vmatmul.mubr.bf16.gmra.mrb[0].mxu0 %v1741
        %v1792 = vpop.f32.mrb[0].mxu0
        %v1793 = vadd.f32 0.0, %v1792
        %v1794 = vpop.f32.mrb[0].mxu0
        %v1795 = vpop.f32.mrb[0].mxu0
        %v1796 = vadd.f32 0.0, %v1795
        %v1797 = vpop.f32.mrb[0].mxu0
        %1798 = vmatprep.mubr.bf16.mxu0 0
        %1799 = vmatmul.mubr.bf16.gmra.mrb[0].mxu0 %v1744
        %v1800 = vpop.f32.mrb[0].mxu0
        %v1801 = vadd.f32 0.0, %v1800
        %v1802 = vpop.f32.mrb[0].mxu0
        %v1803 = vpop.f32.mrb[0].mxu0
        %v1804 = vadd.f32 0.0, %v1803
        %v1805 = vpop.f32.mrb[0].mxu0
        %1806 = vmatprep.mubr.bf16.mxu0 0
        %1807 = vmatmul.mubr.bf16.gmra.mrb[0].mxu0 %v1747
        %v1808 = vpop.f32.mrb[0].mxu0
        %v1809 = vadd.f32 0.0, %v1808
        %v1810 = vpop.f32.mrb[0].mxu0
        %v1811 = vpop.f32.mrb[0].mxu0
        %v1812 = vadd.f32 0.0, %v1811
        %v1813 = vpop.f32.mrb[0].mxu0
        %1814 = vmatprep.mubr.bf16.mxu0 0
        %1815 = vmatmul.mubr.bf16.gmra.mrb[0].mxu0 %v1750
        %v1816 = vpop.f32.mrb[0].mxu0
        %v1817 = vadd.f32 0.0, %v1816
        %v1818 = vpop.f32.mrb[0].mxu0
        %v1819 = vpop.f32.mrb[0].mxu0
        %v1820 = vadd.f32 0.0, %v1819
        %v1821 = vpop.f32.mrb[0].mxu0
        %1822 = vmatprep.mubr.bf16.mxu0 0
        %1823 = vmatmul.mubr.bf16.gmra.mrb[0].mxu0 %v1753
        %v1824 = vpop.f32.mrb[0].mxu0
        %v1825 = vadd.f32 0.0, %v1824
        %v1826 = vpop.f32.mrb[0].mxu0
        %v1827 = vpop.f32.mrb[0].mxu0
        %v1828 = vpop.f32.mrb[0].mxu0
        %1829 = vdwg.mxu0
        %v1830 = vadd.f32 %v1699, %v1793
        %v1831 = vadd.f32 %v1700, %v1796
        %v1832 = vadd.f32 %v1701, %v1801
        %v1833 = vadd.f32 %v1702, %v1804
        %v1834 = vadd.f32 %v1703, %v1809
        %v1835 = vadd.f32 %v1704, %v1812
        %v1836 = vadd.f32 %v1705, %v1817
        %v1837 = vadd.f32 %v1706, %v1820
        %v1838 = vadd.f32 %v1707, %v1825
        %1839 = vst [vmem:[#allocation2] sm:$0xff] %v1830
        %1840 = vst [vmem:[#allocation2 + $0x8] sm:$0xff] %v1831
        %1841 = vst [vmem:[#allocation2 + $0x10] sm:$0xff] %v1832
        %1842 = vst [vmem:[#allocation2 + $0x18] sm:$0xff] %v1833
        %1843 = vst [vmem:[#allocation2 + $0x20] sm:$0xff] %v1834
        %1844 = vst [vmem:[#allocation2 + $0x28] sm:$0xff] %v1835
        %1845 = vst [vmem:[#allocation2 + $0x30] sm:$0xff] %v1836
        %1846 = vst [vmem:[#allocation2 + $0x38] sm:$0xff] %v1837
        %1847 = vst [vmem:[#allocation2 + $0x40] sm:$0x7] %v1838
        %v1848 = vld [vmem:[%s228 + $0x8] sm:$0xc]
        %v1849 = vld [vmem:[%s228 + $0xc] sm:$0xf]
        %v1850 = vld [vmem:[%s228 + $0x10] sm:$0xf]
        %v1851 = vld [vmem:[%s228 + $0x14] sm:$0xf]
        %v1852 = vld [vmem:[%s228 + $0x18] sm:$0xf]
        %v1853 = vld [vmem:[%s228 + $0x1c] sm:$0xf]
        %v1854 = vld [vmem:[%s228 + $0x20] sm:$0xf]
        %v1855 = vld [vmem:[%s228 + $0x24] sm:$0xf]
        %v1856 = vld [vmem:[%s228 + $0x28] sm:$0xf]
        %v1857 = vld [vmem:[%s237 + $0x24] sm:$0xf]
        %v1858 = vld [vmem:[#allocation2] sm:$0xff]
        %v1859 = vld [vmem:[#allocation2 + $0x8] sm:$0xff]
        %v1860 = vld [vmem:[#allocation2 + $0x10] sm:$0xff]
        %v1861 = vld [vmem:[#allocation2 + $0x18] sm:$0xff]
        %v1862 = vld [vmem:[#allocation2 + $0x20] sm:$0xff]
        %v1863 = vld [vmem:[#allocation2 + $0x28] sm:$0xff]
        %v1864 = vld [vmem:[#allocation2 + $0x30] sm:$0xff]
        %v1865 = vld [vmem:[#allocation2 + $0x38] sm:$0xff]
        %v1866 = vld [vmem:[#allocation2 + $0x40] sm:$0x7]
        %v1876 = vunpack.c.l.b16 %v1848
        %v1877 = vunpack.c.l.b16 %v1849
        %v1878 = vunpack.c.l.b16 %v1850
        %v1879 = vunpack.c.l.b16 %v1851
        %v1880 = vunpack.c.l.b16 %v1852
        %v1881 = vunpack.c.l.b16 %v1853
        %v1882 = vunpack.c.l.b16 %v1854
        %v1883 = vunpack.c.l.b16 %v1855
        %v1884 = vunpack.c.l.b16 %v1856
        %v1885 = vpack.c.b16 %v1877, %v1876
        %v1886 = vpack.c.b16 %v1879, %v1878
        %v1887 = vpack.c.b16 %v1881, %v1880
        %v1888 = vpack.c.b16 %v1883, %v1882
        %v1889 = vpack.c.b16 %v1884, %v1884
        %v1891 = vshrl.u32 %v1885, 16
        %v1893 = vrot.slane %v1891, 2
        %v1894 = vshll.u32 %v1885, 16
        %v1896 = vrot.slane %v1894, 3
        %v1897 = vor.u32 %v1893, %v1896
        %v1899 = vshrl.u32 %v1886, 16
        %v1901 = vrot.slane %v1899, 2
        %v1902 = vshll.u32 %v1886, 16
        %v1904 = vrot.slane %v1902, 3
        %v1905 = vor.u32 %v1901, %v1904
        %v1906 = vsel %vm1536, %v1897, %v1905
        %v1908 = vshrl.u32 %v1887, 16
        %v1910 = vrot.slane %v1908, 2
        %v1911 = vshll.u32 %v1887, 16
        %v1913 = vrot.slane %v1911, 3
        %v1914 = vor.u32 %v1910, %v1913
        %v1915 = vsel %vm1536, %v1905, %v1914
        %v1917 = vshrl.u32 %v1888, 16
        %v1919 = vrot.slane %v1917, 2
        %v1920 = vshll.u32 %v1888, 16
        %v1922 = vrot.slane %v1920, 3
        %v1923 = vor.u32 %v1919, %v1922
        %v1924 = vsel %vm1536, %v1914, %v1923
        %v1926 = vshrl.u32 %v1889, 16
        %v1928 = vrot.slane %v1926, 2
        %v1929 = vshll.u32 %v1889, 16
        %v1931 = vrot.slane %v1929, 3
        %v1932 = vor.u32 %v1928, %v1931
        %v1933 = vsel %vm1536, %v1923, %v1932
        %v1935 = vsel %vm326, %v1906, 0
        %v1938 = vsel %vm326, %v1915, 0
        %v1941 = vsel %vm326, %v1924, 0
        %v1944 = vsel %vm326, %v1933, 0
        %v1947 = vsel %vm326, %v1932, 0
        %v1950 = vsel %vm342, %v1857, 0
        %1952 = vmatprep.subr.bf16.mxu0 0
        %1953 = vmatpush1.bf16.msra.mxu0 %v1950
        %1954 = vmatprep.subr.bf16.mxu0 0
        %1955 = vmatpush1.bf16.msra.mxu0 0
        %1956 = vmatprep.subr.bf16.mxu0 0
        %1957 = vmatpush1.bf16.msra.mxu0 0
        %1958 = vmatprep.subr.bf16.mxu0 0
        %1959 = vmatpush1.bf16.msra.mxu0 0
        %1960 = vmatprep.subr.bf16.mxu0 0
        %1961 = vmatpush1.bf16.msra.mxu0 0
        %1962 = vmatprep.subr.bf16.mxu0 0
        %1963 = vmatpush1.bf16.msra.mxu0 0
        %1964 = vmatprep.subr.bf16.mxu0 0
        %1965 = vmatpush1.bf16.msra.mxu0 0
        %1966 = vmatprep.subr.bf16.mxu0 0
        %1967 = vmatpush1.bf16.msra.mxu0 0
        %1968 = vmatprep.subr.bf16.mxu0 0
        %1969 = vmatpush1.bf16.msra.mxu0 0
        %1970 = vmatprep.subr.bf16.mxu0 0
        %1971 = vmatpush1.bf16.msra.mxu0 0
        %1972 = vmatprep.subr.bf16.mxu0 0
        %1973 = vmatpush1.bf16.msra.mxu0 0
        %1974 = vmatprep.subr.bf16.mxu0 0
        %1975 = vmatpush1.bf16.msra.mxu0 0
        %1976 = vmatprep.subr.bf16.mxu0 0
        %1977 = vmatpush1.bf16.msra.mxu0 0
        %1978 = vmatprep.subr.bf16.mxu0 0
        %1979 = vmatpush1.bf16.msra.mxu0 0
        %1980 = vmatprep.subr.bf16.mxu0 0
        %1981 = vmatpush1.bf16.msra.mxu0 0
        %1982 = vmatprep.subr.bf16.mxu0 0
        %1983 = vmatpush1.bf16.msra.mxu0 0
        %1984 = vmatprep.mubr.bf16.mxu0 0
        %1985 = vmatmul.mubr.bf16.gmra.mrb[0].mxu0 %v1935
        %v1986 = vpop.f32.mrb[0].mxu0
        %v1987 = vadd.f32 0.0, %v1986
        %v1988 = vpop.f32.mrb[0].mxu0
        %v1989 = vpop.f32.mrb[0].mxu0
        %v1990 = vadd.f32 0.0, %v1989
        %v1991 = vpop.f32.mrb[0].mxu0
        %1992 = vmatprep.mubr.bf16.mxu0 0
        %1993 = vmatmul.mubr.bf16.gmra.mrb[0].mxu0 %v1938
        %v1994 = vpop.f32.mrb[0].mxu0
        %v1995 = vadd.f32 0.0, %v1994
        %v1996 = vpop.f32.mrb[0].mxu0
        %v1997 = vpop.f32.mrb[0].mxu0
        %v1998 = vadd.f32 0.0, %v1997
        %v1999 = vpop.f32.mrb[0].mxu0
        %2000 = vmatprep.mubr.bf16.mxu0 0
        %2001 = vmatmul.mubr.bf16.gmra.mrb[0].mxu0 %v1941
        %v2002 = vpop.f32.mrb[0].mxu0
        %v2003 = vadd.f32 0.0, %v2002
        %v2004 = vpop.f32.mrb[0].mxu0
        %v2005 = vpop.f32.mrb[0].mxu0
        %v2006 = vadd.f32 0.0, %v2005
        %v2007 = vpop.f32.mrb[0].mxu0
        %2008 = vmatprep.mubr.bf16.mxu0 0
        %2009 = vmatmul.mubr.bf16.gmra.mrb[0].mxu0 %v1944
        %v2010 = vpop.f32.mrb[0].mxu0
        %v2011 = vadd.f32 0.0, %v2010
        %v2012 = vpop.f32.mrb[0].mxu0
        %v2013 = vpop.f32.mrb[0].mxu0
        %v2014 = vadd.f32 0.0, %v2013
        %v2015 = vpop.f32.mrb[0].mxu0
        %2016 = vmatprep.mubr.bf16.mxu0 0
        %2017 = vmatmul.mubr.bf16.gmra.mrb[0].mxu0 %v1947
        %v2018 = vpop.f32.mrb[0].mxu0
        %v2019 = vadd.f32 0.0, %v2018
        %v2020 = vpop.f32.mrb[0].mxu0
        %v2021 = vpop.f32.mrb[0].mxu0
        %v2022 = vpop.f32.mrb[0].mxu0
        %2023 = vdwg.mxu0
        %v2024 = vadd.f32 %v1858, %v1987
        %v2025 = vadd.f32 %v1859, %v1990
        %v2026 = vadd.f32 %v1860, %v1995
        %v2027 = vadd.f32 %v1861, %v1998
        %v2028 = vadd.f32 %v1862, %v2003
        %v2029 = vadd.f32 %v1863, %v2006
        %v2030 = vadd.f32 %v1864, %v2011
        %v2031 = vadd.f32 %v1865, %v2014
        %v2032 = vadd.f32 %v1866, %v2019
        %2033 = vst [vmem:[#allocation2] sm:$0xff] %v2024
        %2034 = vst [vmem:[#allocation2 + $0x8] sm:$0xff] %v2025
        %2035 = vst [vmem:[#allocation2 + $0x10] sm:$0xff] %v2026
        %2036 = vst [vmem:[#allocation2 + $0x18] sm:$0xff] %v2027
        %2037 = vst [vmem:[#allocation2 + $0x20] sm:$0xff] %v2028
        %2038 = vst [vmem:[#allocation2 + $0x28] sm:$0xff] %v2029
        %2039 = vst [vmem:[#allocation2 + $0x30] sm:$0xff] %v2030
        %2040 = vst [vmem:[#allocation2 + $0x38] sm:$0xff] %v2031
        %2041 = vst [vmem:[#allocation2 + $0x40] sm:$0x7] %v2032
        %v2042 = vld [vmem:[%s228 + $0x8] sm:$0x8]
        %v2043 = vld [vmem:[%s228 + $0xc] sm:$0xf]
        %v2044 = vld [vmem:[%s228 + $0x10] sm:$0xf]
        %v2045 = vld [vmem:[%s228 + $0x14] sm:$0xf]
        %v2046 = vld [vmem:[%s228 + $0x18] sm:$0xf]
        %v2047 = vld [vmem:[%s228 + $0x1c] sm:$0xf]
        %v2048 = vld [vmem:[%s228 + $0x20] sm:$0xf]
        %v2049 = vld [vmem:[%s228 + $0x24] sm:$0xf]
        %v2050 = vld [vmem:[%s228 + $0x28] sm:$0xf]
        %v2051 = vld [vmem:[%s228 + $0x2c] sm:$0x1]
        %v2052 = vld [vmem:[%s237 + $0x28] sm:$0xf]
        %v2053 = vld [vmem:[#allocation2] sm:$0xff]
        %v2054 = vld [vmem:[#allocation2 + $0x8] sm:$0xff]
        %v2055 = vld [vmem:[#allocation2 + $0x10] sm:$0xff]
        %v2056 = vld [vmem:[#allocation2 + $0x18] sm:$0xff]
        %v2057 = vld [vmem:[#allocation2 + $0x20] sm:$0xff]
        %v2058 = vld [vmem:[#allocation2 + $0x28] sm:$0xff]
        %v2059 = vld [vmem:[#allocation2 + $0x30] sm:$0xff]
        %v2060 = vld [vmem:[#allocation2 + $0x38] sm:$0xff]
        %v2061 = vld [vmem:[#allocation2 + $0x40] sm:$0x7]
        %v2072 = vunpack.c.l.b16 %v2042
        %v2073 = vunpack.c.l.b16 %v2043
        %v2074 = vunpack.c.l.b16 %v2044
        %v2075 = vunpack.c.l.b16 %v2045
        %v2076 = vunpack.c.l.b16 %v2046
        %v2077 = vunpack.c.l.b16 %v2047
        %v2078 = vunpack.c.l.b16 %v2048
        %v2079 = vunpack.c.l.b16 %v2049
        %v2080 = vunpack.c.l.b16 %v2050
        %v2081 = vunpack.c.l.b16 %v2051
        %v2082 = vpack.c.b16 %v2073, %v2072
        %v2083 = vpack.c.b16 %v2075, %v2074
        %v2084 = vpack.c.b16 %v2077, %v2076
        %v2085 = vpack.c.b16 %v2079, %v2078
        %v2086 = vpack.c.b16 %v2081, %v2080
        %vm2087 = vcmask 1044480
        %v2088 = vrot.slane %v2082, 3
        %v2089 = vrot.slane %v2083, 3
        %v2090 = vsel %vm2087, %v2088, %v2089
        %v2091 = vrot.slane %v2084, 3
        %v2092 = vsel %vm2087, %v2089, %v2091
        %v2093 = vrot.slane %v2085, 3
        %v2094 = vsel %vm2087, %v2091, %v2093
        %v2095 = vrot.slane %v2086, 3
        %v2096 = vsel %vm2087, %v2093, %v2095
        %v2098 = vsel %vm326, %v2090, 0
        %v2101 = vsel %vm326, %v2092, 0
        %v2104 = vsel %vm326, %v2094, 0
        %v2107 = vsel %vm326, %v2096, 0
        %v2110 = vsel %vm326, %v2095, 0
        %v2113 = vsel %vm342, %v2052, 0
        %2115 = vmatprep.subr.bf16.mxu0 0
        %2116 = vmatpush1.bf16.msra.mxu0 %v2113
        %2117 = vmatprep.subr.bf16.mxu0 0
        %2118 = vmatpush1.bf16.msra.mxu0 0
        %2119 = vmatprep.subr.bf16.mxu0 0
        %2120 = vmatpush1.bf16.msra.mxu0 0
        %2121 = vmatprep.subr.bf16.mxu0 0
        %2122 = vmatpush1.bf16.msra.mxu0 0
        %2123 = vmatprep.subr.bf16.mxu0 0
        %2124 = vmatpush1.bf16.msra.mxu0 0
        %2125 = vmatprep.subr.bf16.mxu0 0
        %2126 = vmatpush1.bf16.msra.mxu0 0
        %2127 = vmatprep.subr.bf16.mxu0 0
        %2128 = vmatpush1.bf16.msra.mxu0 0
        %2129 = vmatprep.subr.bf16.mxu0 0
        %2130 = vmatpush1.bf16.msra.mxu0 0
        %2131 = vmatprep.subr.bf16.mxu0 0
        %2132 = vmatpush1.bf16.msra.mxu0 0
        %2133 = vmatprep.subr.bf16.mxu0 0
        %2134 = vmatpush1.bf16.msra.mxu0 0
        %2135 = vmatprep.subr.bf16.mxu0 0
        %2136 = vmatpush1.bf16.msra.mxu0 0
        %2137 = vmatprep.subr.bf16.mxu0 0
        %2138 = vmatpush1.bf16.msra.mxu0 0
        %2139 = vmatprep.subr.bf16.mxu0 0
        %2140 = vmatpush1.bf16.msra.mxu0 0
        %2141 = vmatprep.subr.bf16.mxu0 0
        %2142 = vmatpush1.bf16.msra.mxu0 0
        %2143 = vmatprep.subr.bf16.mxu0 0
        %2144 = vmatpush1.bf16.msra.mxu0 0
        %2145 = vmatprep.subr.bf16.mxu0 0
        %2146 = vmatpush1.bf16.msra.mxu0 0
        %2147 = vmatprep.mubr.bf16.mxu0 0
        %2148 = vmatmul.mubr.bf16.gmra.mrb[0].mxu0 %v2098
        %v2149 = vpop.f32.mrb[0].mxu0
        %v2150 = vadd.f32 0.0, %v2149
        %v2151 = vpop.f32.mrb[0].mxu0
        %v2152 = vpop.f32.mrb[0].mxu0
        %v2153 = vadd.f32 0.0, %v2152
        %v2154 = vpop.f32.mrb[0].mxu0
        %2155 = vmatprep.mubr.bf16.mxu0 0
        %2156 = vmatmul.mubr.bf16.gmra.mrb[0].mxu0 %v2101
        %v2157 = vpop.f32.mrb[0].mxu0
        %v2158 = vadd.f32 0.0, %v2157
        %v2159 = vpop.f32.mrb[0].mxu0
        %v2160 = vpop.f32.mrb[0].mxu0
        %v2161 = vadd.f32 0.0, %v2160
        %v2162 = vpop.f32.mrb[0].mxu0
        %2163 = vmatprep.mubr.bf16.mxu0 0
        %2164 = vmatmul.mubr.bf16.gmra.mrb[0].mxu0 %v2104
        %v2165 = vpop.f32.mrb[0].mxu0
        %v2166 = vadd.f32 0.0, %v2165
        %v2167 = vpop.f32.mrb[0].mxu0
        %v2168 = vpop.f32.mrb[0].mxu0
        %v2169 = vadd.f32 0.0, %v2168
        %v2170 = vpop.f32.mrb[0].mxu0
        %2171 = vmatprep.mubr.bf16.mxu0 0
        %2172 = vmatmul.mubr.bf16.gmra.mrb[0].mxu0 %v2107
        %v2173 = vpop.f32.mrb[0].mxu0
        %v2174 = vadd.f32 0.0, %v2173
        %v2175 = vpop.f32.mrb[0].mxu0
        %v2176 = vpop.f32.mrb[0].mxu0
        %v2177 = vadd.f32 0.0, %v2176
        %v2178 = vpop.f32.mrb[0].mxu0
        %2179 = vmatprep.mubr.bf16.mxu0 0
        %2180 = vmatmul.mubr.bf16.gmra.mrb[0].mxu0 %v2110
        %v2181 = vpop.f32.mrb[0].mxu0
        %v2182 = vadd.f32 0.0, %v2181
        %v2183 = vpop.f32.mrb[0].mxu0
        %v2184 = vpop.f32.mrb[0].mxu0
        %v2185 = vpop.f32.mrb[0].mxu0
        %2186 = vdwg.mxu0
        %v2187 = vadd.f32 %v2053, %v2150
        %v2188 = vadd.f32 %v2054, %v2153
        %v2189 = vadd.f32 %v2055, %v2158
        %v2190 = vadd.f32 %v2056, %v2161
        %v2191 = vadd.f32 %v2057, %v2166
        %v2192 = vadd.f32 %v2058, %v2169
        %v2193 = vadd.f32 %v2059, %v2174
        %v2194 = vadd.f32 %v2060, %v2177
        %v2195 = vadd.f32 %v2061, %v2182
        %2196 = vst [vmem:[#allocation2] sm:$0xff] %v2187
        %2197 = vst [vmem:[#allocation2 + $0x8] sm:$0xff] %v2188
        %2198 = vst [vmem:[#allocation2 + $0x10] sm:$0xff] %v2189
        %2199 = vst [vmem:[#allocation2 + $0x18] sm:$0xff] %v2190
        %2200 = vst [vmem:[#allocation2 + $0x20] sm:$0xff] %v2191
        %2201 = vst [vmem:[#allocation2 + $0x28] sm:$0xff] %v2192
        %2202 = vst [vmem:[#allocation2 + $0x30] sm:$0xff] %v2193
        %2203 = vst [vmem:[#allocation2 + $0x38] sm:$0xff] %v2194
        %2204 = vst [vmem:[#allocation2 + $0x40] sm:$0x7] %v2195
        %v2205 = vld [vmem:[%s228 + $0x8] sm:$0x8]
        %v2206 = vld [vmem:[%s228 + $0xc] sm:$0xf]
        %v2207 = vld [vmem:[%s228 + $0x10] sm:$0xf]
        %v2208 = vld [vmem:[%s228 + $0x14] sm:$0xf]
        %v2209 = vld [vmem:[%s228 + $0x18] sm:$0xf]
        %v2210 = vld [vmem:[%s228 + $0x1c] sm:$0xf]
        %v2211 = vld [vmem:[%s228 + $0x20] sm:$0xf]
        %v2212 = vld [vmem:[%s228 + $0x24] sm:$0xf]
        %v2213 = vld [vmem:[%s228 + $0x28] sm:$0xf]
        %v2214 = vld [vmem:[%s228 + $0x2c] sm:$0x1]
        %v2215 = vld [vmem:[%s237 + $0x2c] sm:$0xf]
        %v2216 = vld [vmem:[#allocation2] sm:$0xff]
        %v2217 = vld [vmem:[#allocation2 + $0x8] sm:$0xff]
        %v2218 = vld [vmem:[#allocation2 + $0x10] sm:$0xff]
        %v2219 = vld [vmem:[#allocation2 + $0x18] sm:$0xff]
        %v2220 = vld [vmem:[#allocation2 + $0x20] sm:$0xff]
        %v2221 = vld [vmem:[#allocation2 + $0x28] sm:$0xff]
        %v2222 = vld [vmem:[#allocation2 + $0x30] sm:$0xff]
        %v2223 = vld [vmem:[#allocation2 + $0x38] sm:$0xff]
        %v2224 = vld [vmem:[#allocation2 + $0x40] sm:$0x7]
        %v2235 = vunpack.c.l.b16 %v2205
        %v2236 = vunpack.c.l.b16 %v2206
        %v2237 = vunpack.c.l.b16 %v2207
        %v2238 = vunpack.c.l.b16 %v2208
        %v2239 = vunpack.c.l.b16 %v2209
        %v2240 = vunpack.c.l.b16 %v2210
        %v2241 = vunpack.c.l.b16 %v2211
        %v2242 = vunpack.c.l.b16 %v2212
        %v2243 = vunpack.c.l.b16 %v2213
        %v2244 = vunpack.c.l.b16 %v2214
        %v2245 = vpack.c.b16 %v2236, %v2235
        %v2246 = vpack.c.b16 %v2238, %v2237
        %v2247 = vpack.c.b16 %v2240, %v2239
        %v2248 = vpack.c.b16 %v2242, %v2241
        %v2249 = vpack.c.b16 %v2244, %v2243
        %vm2250 = vsmask.f32 4352
        %v2252 = vshrl.u32 %v2245, 16
        %v2254 = vrot.slane %v2252, 3
        %v2255 = vshll.u32 %v2245, 16
        %v2257 = vrot.slane %v2255, 4
        %v2258 = vor.u32 %v2254, %v2257
        %v2260 = vshrl.u32 %v2246, 16
        %v2262 = vrot.slane %v2260, 3
        %v2263 = vshll.u32 %v2246, 16
        %v2265 = vrot.slane %v2263, 4
        %v2266 = vor.u32 %v2262, %v2265
        %v2267 = vsel %vm2250, %v2258, %v2266
        %v2269 = vshrl.u32 %v2247, 16
        %v2271 = vrot.slane %v2269, 3
        %v2272 = vshll.u32 %v2247, 16
        %v2274 = vrot.slane %v2272, 4
        %v2275 = vor.u32 %v2271, %v2274
        %v2276 = vsel %vm2250, %v2266, %v2275
        %v2278 = vshrl.u32 %v2248, 16
        %v2280 = vrot.slane %v2278, 3
        %v2281 = vshll.u32 %v2248, 16
        %v2283 = vrot.slane %v2281, 4
        %v2284 = vor.u32 %v2280, %v2283
        %v2285 = vsel %vm2250, %v2275, %v2284
        %v2287 = vshrl.u32 %v2249, 16
        %v2289 = vrot.slane %v2287, 3
        %v2290 = vshll.u32 %v2249, 16
        %v2292 = vrot.slane %v2290, 4
        %v2293 = vor.u32 %v2289, %v2292
        %v2294 = vsel %vm2250, %v2284, %v2293
        %v2296 = vsel %vm326, %v2267, 0
        %v2299 = vsel %vm326, %v2276, 0
        %v2302 = vsel %vm326, %v2285, 0
        %v2305 = vsel %vm326, %v2294, 0
        %v2308 = vsel %vm326, %v2293, 0
        %v2311 = vsel %vm342, %v2215, 0
        %2313 = vmatprep.subr.bf16.mxu0 0
        %2314 = vmatpush1.bf16.msra.mxu0 %v2311
        %2315 = vmatprep.subr.bf16.mxu0 0
        %2316 = vmatpush1.bf16.msra.mxu0 0
        %2317 = vmatprep.subr.bf16.mxu0 0
        %2318 = vmatpush1.bf16.msra.mxu0 0
        %2319 = vmatprep.subr.bf16.mxu0 0
        %2320 = vmatpush1.bf16.msra.mxu0 0
        %2321 = vmatprep.subr.bf16.mxu0 0
        %2322 = vmatpush1.bf16.msra.mxu0 0
        %2323 = vmatprep.subr.bf16.mxu0 0
        %2324 = vmatpush1.bf16.msra.mxu0 0
        %2325 = vmatprep.subr.bf16.mxu0 0
        %2326 = vmatpush1.bf16.msra.mxu0 0
        %2327 = vmatprep.subr.bf16.mxu0 0
        %2328 = vmatpush1.bf16.msra.mxu0 0
        %2329 = vmatprep.subr.bf16.mxu0 0
        %2330 = vmatpush1.bf16.msra.mxu0 0
        %2331 = vmatprep.subr.bf16.mxu0 0
        %2332 = vmatpush1.bf16.msra.mxu0 0
        %2333 = vmatprep.subr.bf16.mxu0 0
        %2334 = vmatpush1.bf16.msra.mxu0 0
        %2335 = vmatprep.subr.bf16.mxu0 0
        %2336 = vmatpush1.bf16.msra.mxu0 0
        %2337 = vmatprep.subr.bf16.mxu0 0
        %2338 = vmatpush1.bf16.msra.mxu0 0
        %2339 = vmatprep.subr.bf16.mxu0 0
        %2340 = vmatpush1.bf16.msra.mxu0 0
        %2341 = vmatprep.subr.bf16.mxu0 0
        %2342 = vmatpush1.bf16.msra.mxu0 0
        %2343 = vmatprep.subr.bf16.mxu0 0
        %2344 = vmatpush1.bf16.msra.mxu0 0
        %2345 = vmatprep.mubr.bf16.mxu0 0
        %2346 = vmatmul.mubr.bf16.gmra.mrb[0].mxu0 %v2296
        %v2347 = vpop.f32.mrb[0].mxu0
        %v2348 = vadd.f32 0.0, %v2347
        %v2349 = vpop.f32.mrb[0].mxu0
        %v2350 = vpop.f32.mrb[0].mxu0
        %v2351 = vadd.f32 0.0, %v2350
        %v2352 = vpop.f32.mrb[0].mxu0
        %2353 = vmatprep.mubr.bf16.mxu0 0
        %2354 = vmatmul.mubr.bf16.gmra.mrb[0].mxu0 %v2299
        %v2355 = vpop.f32.mrb[0].mxu0
        %v2356 = vadd.f32 0.0, %v2355
        %v2357 = vpop.f32.mrb[0].mxu0
        %v2358 = vpop.f32.mrb[0].mxu0
        %v2359 = vadd.f32 0.0, %v2358
        %v2360 = vpop.f32.mrb[0].mxu0
        %2361 = vmatprep.mubr.bf16.mxu0 0
        %2362 = vmatmul.mubr.bf16.gmra.mrb[0].mxu0 %v2302
        %v2363 = vpop.f32.mrb[0].mxu0
        %v2364 = vadd.f32 0.0, %v2363
        %v2365 = vpop.f32.mrb[0].mxu0
        %v2366 = vpop.f32.mrb[0].mxu0
        %v2367 = vadd.f32 0.0, %v2366
        %v2368 = vpop.f32.mrb[0].mxu0
        %2369 = vmatprep.mubr.bf16.mxu0 0
        %2370 = vmatmul.mubr.bf16.gmra.mrb[0].mxu0 %v2305
        %v2371 = vpop.f32.mrb[0].mxu0
        %v2372 = vadd.f32 0.0, %v2371
        %v2373 = vpop.f32.mrb[0].mxu0
        %v2374 = vpop.f32.mrb[0].mxu0
        %v2375 = vadd.f32 0.0, %v2374
        %v2376 = vpop.f32.mrb[0].mxu0
        %2377 = vmatprep.mubr.bf16.mxu0 0
        %2378 = vmatmul.mubr.bf16.gmra.mrb[0].mxu0 %v2308
        %v2379 = vpop.f32.mrb[0].mxu0
        %v2380 = vadd.f32 0.0, %v2379
        %v2381 = vpop.f32.mrb[0].mxu0
        %v2382 = vpop.f32.mrb[0].mxu0
        %v2383 = vpop.f32.mrb[0].mxu0
        %2384 = vdwg.mxu0
        %v2385 = vadd.f32 %v2216, %v2348
        %v2386 = vadd.f32 %v2217, %v2351
        %v2387 = vadd.f32 %v2218, %v2356
        %v2388 = vadd.f32 %v2219, %v2359
        %v2389 = vadd.f32 %v2220, %v2364
        %v2390 = vadd.f32 %v2221, %v2367
        %v2391 = vadd.f32 %v2222, %v2372
        %v2392 = vadd.f32 %v2223, %v2375
        %v2393 = vadd.f32 %v2224, %v2380
        %2394 = vst [vmem:[#allocation2] sm:$0xff] %v2385
        %2395 = vst [vmem:[#allocation2 + $0x8] sm:$0xff] %v2386
        %2396 = vst [vmem:[#allocation2 + $0x10] sm:$0xff] %v2387
        %2397 = vst [vmem:[#allocation2 + $0x18] sm:$0xff] %v2388
        %2398 = vst [vmem:[#allocation2 + $0x20] sm:$0xff] %v2389
        %2399 = vst [vmem:[#allocation2 + $0x28] sm:$0xff] %v2390
        %2400 = vst [vmem:[#allocation2 + $0x30] sm:$0xff] %v2391
        %2401 = vst [vmem:[#allocation2 + $0x38] sm:$0xff] %v2392
        %2402 = vst [vmem:[#allocation2 + $0x40] sm:$0x7] %v2393
        %v2403 = vld [vmem:[%s228 + $0xc] sm:$0x8]
        %v2404 = vld [vmem:[%s228 + $0x10] sm:$0xf]
        %v2405 = vld [vmem:[%s228 + $0x14] sm:$0xf]
        %v2406 = vld [vmem:[%s228 + $0x18] sm:$0xf]
        %v2407 = vld [vmem:[%s228 + $0x1c] sm:$0xf]
        %v2408 = vld [vmem:[%s228 + $0x20] sm:$0xf]
        %v2409 = vld [vmem:[%s228 + $0x24] sm:$0xf]
        %v2410 = vld [vmem:[%s228 + $0x28] sm:$0xf]
        %v2411 = vld [vmem:[%s228 + $0x2c] sm:$0xf]
        %v2412 = vld [vmem:[%s228 + $0x30] sm:$0x1]
        %v2413 = vld [vmem:[%s237 + $0x30] sm:$0xf]
        %v2414 = vld [vmem:[#allocation2] sm:$0xff]
        %v2415 = vld [vmem:[#allocation2 + $0x8] sm:$0xff]
        %v2416 = vld [vmem:[#allocation2 + $0x10] sm:$0xff]
        %v2417 = vld [vmem:[#allocation2 + $0x18] sm:$0xff]
        %v2418 = vld [vmem:[#allocation2 + $0x20] sm:$0xff]
        %v2419 = vld [vmem:[#allocation2 + $0x28] sm:$0xff]
        %v2420 = vld [vmem:[#allocation2 + $0x30] sm:$0xff]
        %v2421 = vld [vmem:[#allocation2 + $0x38] sm:$0xff]
        %v2422 = vld [vmem:[#allocation2 + $0x40] sm:$0x7]
        %v2433 = vunpack.c.l.b16 %v2403
        %v2434 = vunpack.c.l.b16 %v2404
        %v2435 = vunpack.c.l.b16 %v2405
        %v2436 = vunpack.c.l.b16 %v2406
        %v2437 = vunpack.c.l.b16 %v2407
        %v2438 = vunpack.c.l.b16 %v2408
        %v2439 = vunpack.c.l.b16 %v2409
        %v2440 = vunpack.c.l.b16 %v2410
        %v2441 = vunpack.c.l.b16 %v2411
        %v2442 = vunpack.c.l.b16 %v2412
        %v2443 = vpack.c.b16 %v2434, %v2433
        %v2444 = vpack.c.b16 %v2436, %v2435
        %v2445 = vpack.c.b16 %v2438, %v2437
        %v2446 = vpack.c.b16 %v2440, %v2439
        %v2447 = vpack.c.b16 %v2442, %v2441
        %v2448 = vrot.slane %v2443, 3
        %v2449 = vrot.slane %v2444, 3
        %v2450 = vsel %vm2087, %v2448, %v2449
        %v2451 = vrot.slane %v2445, 3
        %v2452 = vsel %vm2087, %v2449, %v2451
        %v2453 = vrot.slane %v2446, 3
        %v2454 = vsel %vm2087, %v2451, %v2453
        %v2455 = vrot.slane %v2447, 3
        %v2456 = vsel %vm2087, %v2453, %v2455
        %v2458 = vsel %vm326, %v2450, 0
        %v2461 = vsel %vm326, %v2452, 0
        %v2464 = vsel %vm326, %v2454, 0
        %v2467 = vsel %vm326, %v2456, 0
        %v2470 = vsel %vm326, %v2455, 0
        %v2473 = vsel %vm342, %v2413, 0
        %2475 = vmatprep.subr.bf16.mxu0 0
        %2476 = vmatpush1.bf16.msra.mxu0 %v2473
        %2477 = vmatprep.subr.bf16.mxu0 0
        %2478 = vmatpush1.bf16.msra.mxu0 0
        %2479 = vmatprep.subr.bf16.mxu0 0
        %2480 = vmatpush1.bf16.msra.mxu0 0
        %2481 = vmatprep.subr.bf16.mxu0 0
        %2482 = vmatpush1.bf16.msra.mxu0 0
        %2483 = vmatprep.subr.bf16.mxu0 0
        %2484 = vmatpush1.bf16.msra.mxu0 0
        %2485 = vmatprep.subr.bf16.mxu0 0
        %2486 = vmatpush1.bf16.msra.mxu0 0
        %2487 = vmatprep.subr.bf16.mxu0 0
        %2488 = vmatpush1.bf16.msra.mxu0 0
        %2489 = vmatprep.subr.bf16.mxu0 0
        %2490 = vmatpush1.bf16.msra.mxu0 0
        %2491 = vmatprep.subr.bf16.mxu0 0
        %2492 = vmatpush1.bf16.msra.mxu0 0
        %2493 = vmatprep.subr.bf16.mxu0 0
        %2494 = vmatpush1.bf16.msra.mxu0 0
        %2495 = vmatprep.subr.bf16.mxu0 0
        %2496 = vmatpush1.bf16.msra.mxu0 0
        %2497 = vmatprep.subr.bf16.mxu0 0
        %2498 = vmatpush1.bf16.msra.mxu0 0
        %2499 = vmatprep.subr.bf16.mxu0 0
        %2500 = vmatpush1.bf16.msra.mxu0 0
        %2501 = vmatprep.subr.bf16.mxu0 0
        %2502 = vmatpush1.bf16.msra.mxu0 0
        %2503 = vmatprep.subr.bf16.mxu0 0
        %2504 = vmatpush1.bf16.msra.mxu0 0
        %2505 = vmatprep.subr.bf16.mxu0 0
        %2506 = vmatpush1.bf16.msra.mxu0 0
        %2507 = vmatprep.mubr.bf16.mxu0 0
        %2508 = vmatmul.mubr.bf16.gmra.mrb[0].mxu0 %v2458
        %v2509 = vpop.f32.mrb[0].mxu0
        %v2510 = vadd.f32 0.0, %v2509
        %v2511 = vpop.f32.mrb[0].mxu0
        %v2512 = vpop.f32.mrb[0].mxu0
        %v2513 = vadd.f32 0.0, %v2512
        %v2514 = vpop.f32.mrb[0].mxu0
        %2515 = vmatprep.mubr.bf16.mxu0 0
        %2516 = vmatmul.mubr.bf16.gmra.mrb[0].mxu0 %v2461
        %v2517 = vpop.f32.mrb[0].mxu0
        %v2518 = vadd.f32 0.0, %v2517
        %v2519 = vpop.f32.mrb[0].mxu0
        %v2520 = vpop.f32.mrb[0].mxu0
        %v2521 = vadd.f32 0.0, %v2520
        %v2522 = vpop.f32.mrb[0].mxu0
        %2523 = vmatprep.mubr.bf16.mxu0 0
        %2524 = vmatmul.mubr.bf16.gmra.mrb[0].mxu0 %v2464
        %v2525 = vpop.f32.mrb[0].mxu0
        %v2526 = vadd.f32 0.0, %v2525
        %v2527 = vpop.f32.mrb[0].mxu0
        %v2528 = vpop.f32.mrb[0].mxu0
        %v2529 = vadd.f32 0.0, %v2528
        %v2530 = vpop.f32.mrb[0].mxu0
        %2531 = vmatprep.mubr.bf16.mxu0 0
        %2532 = vmatmul.mubr.bf16.gmra.mrb[0].mxu0 %v2467
        %v2533 = vpop.f32.mrb[0].mxu0
        %v2534 = vadd.f32 0.0, %v2533
        %v2535 = vpop.f32.mrb[0].mxu0
        %v2536 = vpop.f32.mrb[0].mxu0
        %v2537 = vadd.f32 0.0, %v2536
        %v2538 = vpop.f32.mrb[0].mxu0
        %2539 = vmatprep.mubr.bf16.mxu0 0
        %2540 = vmatmul.mubr.bf16.gmra.mrb[0].mxu0 %v2470
        %v2541 = vpop.f32.mrb[0].mxu0
        %v2542 = vadd.f32 0.0, %v2541
        %v2543 = vpop.f32.mrb[0].mxu0
        %v2544 = vpop.f32.mrb[0].mxu0
        %v2545 = vpop.f32.mrb[0].mxu0
        %2546 = vdwg.mxu0
        %v2547 = vadd.f32 %v2414, %v2510
        %v2548 = vadd.f32 %v2415, %v2513
        %v2549 = vadd.f32 %v2416, %v2518
        %v2550 = vadd.f32 %v2417, %v2521
        %v2551 = vadd.f32 %v2418, %v2526
        %v2552 = vadd.f32 %v2419, %v2529
        %v2553 = vadd.f32 %v2420, %v2534
        %v2554 = vadd.f32 %v2421, %v2537
        %v2555 = vadd.f32 %v2422, %v2542
        %2556 = vst [vmem:[#allocation2] sm:$0xff] %v2547
        %2557 = vst [vmem:[#allocation2 + $0x8] sm:$0xff] %v2548
        %2558 = vst [vmem:[#allocation2 + $0x10] sm:$0xff] %v2549
        %2559 = vst [vmem:[#allocation2 + $0x18] sm:$0xff] %v2550
        %2560 = vst [vmem:[#allocation2 + $0x20] sm:$0xff] %v2551
        %2561 = vst [vmem:[#allocation2 + $0x28] sm:$0xff] %v2552
        %2562 = vst [vmem:[#allocation2 + $0x30] sm:$0xff] %v2553
        %2563 = vst [vmem:[#allocation2 + $0x38] sm:$0xff] %v2554
        %2564 = vst [vmem:[#allocation2 + $0x40] sm:$0x7] %v2555
        %v2565 = vld [vmem:[%s228 + $0xc] sm:$0x8]
        %v2566 = vld [vmem:[%s228 + $0x10] sm:$0xf]
        %v2567 = vld [vmem:[%s228 + $0x14] sm:$0xf]
        %v2568 = vld [vmem:[%s228 + $0x18] sm:$0xf]
        %v2569 = vld [vmem:[%s228 + $0x1c] sm:$0xf]
        %v2570 = vld [vmem:[%s228 + $0x20] sm:$0xf]
        %v2571 = vld [vmem:[%s228 + $0x24] sm:$0xf]
        %v2572 = vld [vmem:[%s228 + $0x28] sm:$0xf]
        %v2573 = vld [vmem:[%s228 + $0x2c] sm:$0xf]
        %v2574 = vld [vmem:[%s228 + $0x30] sm:$0x1]
        %v2575 = vld [vmem:[%s237 + $0x34] sm:$0xf]
        %v2576 = vld [vmem:[#allocation2] sm:$0xff]
        %v2577 = vld [vmem:[#allocation2 + $0x8] sm:$0xff]
        %v2578 = vld [vmem:[#allocation2 + $0x10] sm:$0xff]
        %v2579 = vld [vmem:[#allocation2 + $0x18] sm:$0xff]
        %v2580 = vld [vmem:[#allocation2 + $0x20] sm:$0xff]
        %v2581 = vld [vmem:[#allocation2 + $0x28] sm:$0xff]
        %v2582 = vld [vmem:[#allocation2 + $0x30] sm:$0xff]
        %v2583 = vld [vmem:[#allocation2 + $0x38] sm:$0xff]
        %v2584 = vld [vmem:[#allocation2 + $0x40] sm:$0x7]
        %v2595 = vunpack.c.l.b16 %v2565
        %v2596 = vunpack.c.l.b16 %v2566
        %v2597 = vunpack.c.l.b16 %v2567
        %v2598 = vunpack.c.l.b16 %v2568
        %v2599 = vunpack.c.l.b16 %v2569
        %v2600 = vunpack.c.l.b16 %v2570
        %v2601 = vunpack.c.l.b16 %v2571
        %v2602 = vunpack.c.l.b16 %v2572
        %v2603 = vunpack.c.l.b16 %v2573
        %v2604 = vunpack.c.l.b16 %v2574
        %v2605 = vpack.c.b16 %v2596, %v2595
        %v2606 = vpack.c.b16 %v2598, %v2597
        %v2607 = vpack.c.b16 %v2600, %v2599
        %v2608 = vpack.c.b16 %v2602, %v2601
        %v2609 = vpack.c.b16 %v2604, %v2603
        %v2611 = vshrl.u32 %v2605, 16
        %v2613 = vrot.slane %v2611, 3
        %v2614 = vshll.u32 %v2605, 16
        %v2616 = vrot.slane %v2614, 4
        %v2617 = vor.u32 %v2613, %v2616
        %v2619 = vshrl.u32 %v2606, 16
        %v2621 = vrot.slane %v2619, 3
        %v2622 = vshll.u32 %v2606, 16
        %v2624 = vrot.slane %v2622, 4
        %v2625 = vor.u32 %v2621, %v2624
        %v2626 = vsel %vm2250, %v2617, %v2625
        %v2628 = vshrl.u32 %v2607, 16
        %v2630 = vrot.slane %v2628, 3
        %v2631 = vshll.u32 %v2607, 16
        %v2633 = vrot.slane %v2631, 4
        %v2634 = vor.u32 %v2630, %v2633
        %v2635 = vsel %vm2250, %v2625, %v2634
        %v2637 = vshrl.u32 %v2608, 16
        %v2639 = vrot.slane %v2637, 3
        %v2640 = vshll.u32 %v2608, 16
        %v2642 = vrot.slane %v2640, 4
        %v2643 = vor.u32 %v2639, %v2642
        %v2644 = vsel %vm2250, %v2634, %v2643
        %v2646 = vshrl.u32 %v2609, 16
        %v2648 = vrot.slane %v2646, 3
        %v2649 = vshll.u32 %v2609, 16
        %v2651 = vrot.slane %v2649, 4
        %v2652 = vor.u32 %v2648, %v2651
        %v2653 = vsel %vm2250, %v2643, %v2652
        %v2655 = vsel %vm326, %v2626, 0
        %v2658 = vsel %vm326, %v2635, 0
        %v2661 = vsel %vm326, %v2644, 0
        %v2664 = vsel %vm326, %v2653, 0
        %v2667 = vsel %vm326, %v2652, 0
        %v2670 = vsel %vm342, %v2575, 0
        %2672 = vmatprep.subr.bf16.mxu0 0
        %2673 = vmatpush1.bf16.msra.mxu0 %v2670
        %2674 = vmatprep.subr.bf16.mxu0 0
        %2675 = vmatpush1.bf16.msra.mxu0 0
        %2676 = vmatprep.subr.bf16.mxu0 0
        %2677 = vmatpush1.bf16.msra.mxu0 0
        %2678 = vmatprep.subr.bf16.mxu0 0
        %2679 = vmatpush1.bf16.msra.mxu0 0
        %2680 = vmatprep.subr.bf16.mxu0 0
        %2681 = vmatpush1.bf16.msra.mxu0 0
        %2682 = vmatprep.subr.bf16.mxu0 0
        %2683 = vmatpush1.bf16.msra.mxu0 0
        %2684 = vmatprep.subr.bf16.mxu0 0
        %2685 = vmatpush1.bf16.msra.mxu0 0
        %2686 = vmatprep.subr.bf16.mxu0 0
        %2687 = vmatpush1.bf16.msra.mxu0 0
        %2688 = vmatprep.subr.bf16.mxu0 0
        %2689 = vmatpush1.bf16.msra.mxu0 0
        %2690 = vmatprep.subr.bf16.mxu0 0
        %2691 = vmatpush1.bf16.msra.mxu0 0
        %2692 = vmatprep.subr.bf16.mxu0 0
        %2693 = vmatpush1.bf16.msra.mxu0 0
        %2694 = vmatprep.subr.bf16.mxu0 0
        %2695 = vmatpush1.bf16.msra.mxu0 0
        %2696 = vmatprep.subr.bf16.mxu0 0
        %2697 = vmatpush1.bf16.msra.mxu0 0
        %2698 = vmatprep.subr.bf16.mxu0 0
        %2699 = vmatpush1.bf16.msra.mxu0 0
        %2700 = vmatprep.subr.bf16.mxu0 0
        %2701 = vmatpush1.bf16.msra.mxu0 0
        %2702 = vmatprep.subr.bf16.mxu0 0
        %2703 = vmatpush1.bf16.msra.mxu0 0
        %2704 = vmatprep.mubr.bf16.mxu0 0
        %2705 = vmatmul.mubr.bf16.gmra.mrb[0].mxu0 %v2655
        %v2706 = vpop.f32.mrb[0].mxu0
        %v2707 = vadd.f32 0.0, %v2706
        %v2708 = vpop.f32.mrb[0].mxu0
        %v2709 = vpop.f32.mrb[0].mxu0
        %v2710 = vadd.f32 0.0, %v2709
        %v2711 = vpop.f32.mrb[0].mxu0
        %2712 = vmatprep.mubr.bf16.mxu0 0
        %2713 = vmatmul.mubr.bf16.gmra.mrb[0].mxu0 %v2658
        %v2714 = vpop.f32.mrb[0].mxu0
        %v2715 = vadd.f32 0.0, %v2714
        %v2716 = vpop.f32.mrb[0].mxu0
        %v2717 = vpop.f32.mrb[0].mxu0
        %v2718 = vadd.f32 0.0, %v2717
        %v2719 = vpop.f32.mrb[0].mxu0
        %2720 = vmatprep.mubr.bf16.mxu0 0
        %2721 = vmatmul.mubr.bf16.gmra.mrb[0].mxu0 %v2661
        %v2722 = vpop.f32.mrb[0].mxu0
        %v2723 = vadd.f32 0.0, %v2722
        %v2724 = vpop.f32.mrb[0].mxu0
        %v2725 = vpop.f32.mrb[0].mxu0
        %v2726 = vadd.f32 0.0, %v2725
        %v2727 = vpop.f32.mrb[0].mxu0
        %2728 = vmatprep.mubr.bf16.mxu0 0
        %2729 = vmatmul.mubr.bf16.gmra.mrb[0].mxu0 %v2664
        %v2730 = vpop.f32.mrb[0].mxu0
        %v2731 = vadd.f32 0.0, %v2730
        %v2732 = vpop.f32.mrb[0].mxu0
        %v2733 = vpop.f32.mrb[0].mxu0
        %v2734 = vadd.f32 0.0, %v2733
        %v2735 = vpop.f32.mrb[0].mxu0
        %2736 = vmatprep.mubr.bf16.mxu0 0
        %2737 = vmatmul.mubr.bf16.gmra.mrb[0].mxu0 %v2667
        %v2738 = vpop.f32.mrb[0].mxu0
        %v2739 = vadd.f32 0.0, %v2738
        %v2740 = vpop.f32.mrb[0].mxu0
        %v2741 = vpop.f32.mrb[0].mxu0
        %v2742 = vpop.f32.mrb[0].mxu0
        %2743 = vdwg.mxu0
        %v2744 = vadd.f32 %v2576, %v2707
        %v2745 = vadd.f32 %v2577, %v2710
        %v2746 = vadd.f32 %v2578, %v2715
        %v2747 = vadd.f32 %v2579, %v2718
        %v2748 = vadd.f32 %v2580, %v2723
        %v2749 = vadd.f32 %v2581, %v2726
        %v2750 = vadd.f32 %v2582, %v2731
        %v2751 = vadd.f32 %v2583, %v2734
        %v2752 = vadd.f32 %v2584, %v2739
        %2753 = vst [vmem:[#allocation2] sm:$0xff] %v2744
        %2754 = vst [vmem:[#allocation2 + $0x8] sm:$0xff] %v2745
        %2755 = vst [vmem:[#allocation2 + $0x10] sm:$0xff] %v2746
        %2756 = vst [vmem:[#allocation2 + $0x18] sm:$0xff] %v2747
        %2757 = vst [vmem:[#allocation2 + $0x20] sm:$0xff] %v2748
        %2758 = vst [vmem:[#allocation2 + $0x28] sm:$0xff] %v2749
        %2759 = vst [vmem:[#allocation2 + $0x30] sm:$0xff] %v2750
        %2760 = vst [vmem:[#allocation2 + $0x38] sm:$0xff] %v2751
        %2761 = vst [vmem:[#allocation2 + $0x40] sm:$0x7] %v2752
        %v2762 = vld [vmem:[%s228 + $0x10] sm:$0xf]
        %v2763 = vld [vmem:[%s228 + $0x14] sm:$0xf]
        %v2764 = vld [vmem:[%s228 + $0x18] sm:$0xf]
        %v2765 = vld [vmem:[%s228 + $0x1c] sm:$0xf]
        %v2766 = vld [vmem:[%s228 + $0x20] sm:$0xf]
        %v2767 = vld [vmem:[%s228 + $0x24] sm:$0xf]
        %v2768 = vld [vmem:[%s228 + $0x28] sm:$0xf]
        %v2769 = vld [vmem:[%s228 + $0x2c] sm:$0xf]
        %v2770 = vld [vmem:[%s228 + $0x30] sm:$0x3]
        %v2771 = vld [vmem:[%s237 + $0x38] sm:$0xf]
        %v2772 = vld [vmem:[#allocation2] sm:$0xff]
        %v2773 = vld [vmem:[#allocation2 + $0x8] sm:$0xff]
        %v2774 = vld [vmem:[#allocation2 + $0x10] sm:$0xff]
        %v2775 = vld [vmem:[#allocation2 + $0x18] sm:$0xff]
        %v2776 = vld [vmem:[#allocation2 + $0x20] sm:$0xff]
        %v2777 = vld [vmem:[#allocation2 + $0x28] sm:$0xff]
        %v2778 = vld [vmem:[#allocation2 + $0x30] sm:$0xff]
        %v2779 = vld [vmem:[#allocation2 + $0x38] sm:$0xff]
        %v2780 = vld [vmem:[#allocation2 + $0x40] sm:$0x7]
        %v2790 = vunpack.c.l.b16 %v2762
        %v2791 = vunpack.c.l.b16 %v2763
        %v2792 = vunpack.c.l.b16 %v2764
        %v2793 = vunpack.c.l.b16 %v2765
        %v2794 = vunpack.c.l.b16 %v2766
        %v2795 = vunpack.c.l.b16 %v2767
        %v2796 = vunpack.c.l.b16 %v2768
        %v2797 = vunpack.c.l.b16 %v2769
        %v2798 = vunpack.c.l.b16 %v2770
        %v2799 = vpack.c.b16 %v2791, %v2790
        %v2800 = vpack.c.b16 %v2793, %v2792
        %v2801 = vpack.c.b16 %v2795, %v2794
        %v2802 = vpack.c.b16 %v2797, %v2796
        %v2803 = vpack.c.b16 %v2798, %v2798
        %v2805 = vsel %vm326, %v2799, 0
        %v2808 = vsel %vm326, %v2800, 0
        %v2811 = vsel %vm326, %v2801, 0
        %v2814 = vsel %vm326, %v2802, 0
        %v2817 = vsel %vm326, %v2803, 0
        %v2820 = vsel %vm342, %v2771, 0
        %2822 = vmatprep.subr.bf16.mxu0 0
        %2823 = vmatpush1.bf16.msra.mxu0 %v2820
        %2824 = vmatprep.subr.bf16.mxu0 0
        %2825 = vmatpush1.bf16.msra.mxu0 0
        %2826 = vmatprep.subr.bf16.mxu0 0
        %2827 = vmatpush1.bf16.msra.mxu0 0
        %2828 = vmatprep.subr.bf16.mxu0 0
        %2829 = vmatpush1.bf16.msra.mxu0 0
        %2830 = vmatprep.subr.bf16.mxu0 0
        %2831 = vmatpush1.bf16.msra.mxu0 0
        %2832 = vmatprep.subr.bf16.mxu0 0
        %2833 = vmatpush1.bf16.msra.mxu0 0
        %2834 = vmatprep.subr.bf16.mxu0 0
        %2835 = vmatpush1.bf16.msra.mxu0 0
        %2836 = vmatprep.subr.bf16.mxu0 0
        %2837 = vmatpush1.bf16.msra.mxu0 0
        %2838 = vmatprep.subr.bf16.mxu0 0
        %2839 = vmatpush1.bf16.msra.mxu0 0
        %2840 = vmatprep.subr.bf16.mxu0 0
        %2841 = vmatpush1.bf16.msra.mxu0 0
        %2842 = vmatprep.subr.bf16.mxu0 0
        %2843 = vmatpush1.bf16.msra.mxu0 0
        %2844 = vmatprep.subr.bf16.mxu0 0
        %2845 = vmatpush1.bf16.msra.mxu0 0
        %2846 = vmatprep.subr.bf16.mxu0 0
        %2847 = vmatpush1.bf16.msra.mxu0 0
        %2848 = vmatprep.subr.bf16.mxu0 0
        %2849 = vmatpush1.bf16.msra.mxu0 0
        %2850 = vmatprep.subr.bf16.mxu0 0
        %2851 = vmatpush1.bf16.msra.mxu0 0
        %2852 = vmatprep.subr.bf16.mxu0 0
        %2853 = vmatpush1.bf16.msra.mxu0 0
        %2854 = vmatprep.mubr.bf16.mxu0 0
        %2855 = vmatmul.mubr.bf16.gmra.mrb[0].mxu0 %v2805
        %v2856 = vpop.f32.mrb[0].mxu0
        %v2857 = vadd.f32 0.0, %v2856
        %v2858 = vpop.f32.mrb[0].mxu0
        %v2859 = vpop.f32.mrb[0].mxu0
        %v2860 = vadd.f32 0.0, %v2859
        %v2861 = vpop.f32.mrb[0].mxu0
        %2862 = vmatprep.mubr.bf16.mxu0 0
        %2863 = vmatmul.mubr.bf16.gmra.mrb[0].mxu0 %v2808
        %v2864 = vpop.f32.mrb[0].mxu0
        %v2865 = vadd.f32 0.0, %v2864
        %v2866 = vpop.f32.mrb[0].mxu0
        %v2867 = vpop.f32.mrb[0].mxu0
        %v2868 = vadd.f32 0.0, %v2867
        %v2869 = vpop.f32.mrb[0].mxu0
        %2870 = vmatprep.mubr.bf16.mxu0 0
        %2871 = vmatmul.mubr.bf16.gmra.mrb[0].mxu0 %v2811
        %v2872 = vpop.f32.mrb[0].mxu0
        %v2873 = vadd.f32 0.0, %v2872
        %v2874 = vpop.f32.mrb[0].mxu0
        %v2875 = vpop.f32.mrb[0].mxu0
        %v2876 = vadd.f32 0.0, %v2875
        %v2877 = vpop.f32.mrb[0].mxu0
        %2878 = vmatprep.mubr.bf16.mxu0 0
        %2879 = vmatmul.mubr.bf16.gmra.mrb[0].mxu0 %v2814
        %v2880 = vpop.f32.mrb[0].mxu0
        %v2881 = vadd.f32 0.0, %v2880
        %v2882 = vpop.f32.mrb[0].mxu0
        %v2883 = vpop.f32.mrb[0].mxu0
        %v2884 = vadd.f32 0.0, %v2883
        %v2885 = vpop.f32.mrb[0].mxu0
        %2886 = vmatprep.mubr.bf16.mxu0 0
        %2887 = vmatmul.mubr.bf16.gmra.mrb[0].mxu0 %v2817
        %v2888 = vpop.f32.mrb[0].mxu0
        %v2889 = vadd.f32 0.0, %v2888
        %v2890 = vpop.f32.mrb[0].mxu0
        %v2891 = vpop.f32.mrb[0].mxu0
        %v2892 = vpop.f32.mrb[0].mxu0
        %2893 = vdwg.mxu0
        %v2894 = vadd.f32 %v2772, %v2857
        %v2895 = vadd.f32 %v2773, %v2860
        %v2896 = vadd.f32 %v2774, %v2865
        %v2897 = vadd.f32 %v2775, %v2868
        %v2898 = vadd.f32 %v2776, %v2873
        %v2899 = vadd.f32 %v2777, %v2876
        %v2900 = vadd.f32 %v2778, %v2881
        %v2901 = vadd.f32 %v2779, %v2884
        %v2902 = vadd.f32 %v2780, %v2889
        %2903 = vst [vmem:[#allocation2] sm:$0xff] %v2894
        %2904 = vst [vmem:[#allocation2 + $0x8] sm:$0xff] %v2895
        %2905 = vst [vmem:[#allocation2 + $0x10] sm:$0xff] %v2896
        %2906 = vst [vmem:[#allocation2 + $0x18] sm:$0xff] %v2897
        %2907 = vst [vmem:[#allocation2 + $0x20] sm:$0xff] %v2898
        %2908 = vst [vmem:[#allocation2 + $0x28] sm:$0xff] %v2899
        %2909 = vst [vmem:[#allocation2 + $0x30] sm:$0xff] %v2900
        %2910 = vst [vmem:[#allocation2 + $0x38] sm:$0xff] %v2901
        %2911 = vst [vmem:[#allocation2 + $0x40] sm:$0x7] %v2902
        %v2912 = vld [vmem:[%s228 + $0x10] sm:$0xf]
        %v2913 = vld [vmem:[%s228 + $0x14] sm:$0xf]
        %v2914 = vld [vmem:[%s228 + $0x18] sm:$0xf]
        %v2915 = vld [vmem:[%s228 + $0x1c] sm:$0xf]
        %v2916 = vld [vmem:[%s228 + $0x20] sm:$0xf]
        %v2917 = vld [vmem:[%s228 + $0x24] sm:$0xf]
        %v2918 = vld [vmem:[%s228 + $0x28] sm:$0xf]
        %v2919 = vld [vmem:[%s228 + $0x2c] sm:$0xf]
        %v2920 = vld [vmem:[%s228 + $0x30] sm:$0x3]
        %v2921 = vld [vmem:[%s237 + $0x3c] sm:$0xf]
        %v2922 = vld [vmem:[#allocation2] sm:$0xff]
        %v2923 = vld [vmem:[#allocation2 + $0x8] sm:$0xff]
        %v2924 = vld [vmem:[#allocation2 + $0x10] sm:$0xff]
        %v2925 = vld [vmem:[#allocation2 + $0x18] sm:$0xff]
        %v2926 = vld [vmem:[#allocation2 + $0x20] sm:$0xff]
        %v2927 = vld [vmem:[#allocation2 + $0x28] sm:$0xff]
        %v2928 = vld [vmem:[#allocation2 + $0x30] sm:$0xff]
        %v2929 = vld [vmem:[#allocation2 + $0x38] sm:$0xff]
        %v2930 = vld [vmem:[#allocation2 + $0x40] sm:$0x7]
        %v2940 = vunpack.c.l.b16 %v2912
        %v2941 = vunpack.c.l.b16 %v2913
        %v2942 = vunpack.c.l.b16 %v2914
        %v2943 = vunpack.c.l.b16 %v2915
        %v2944 = vunpack.c.l.b16 %v2916
        %v2945 = vunpack.c.l.b16 %v2917
        %v2946 = vunpack.c.l.b16 %v2918
        %v2947 = vunpack.c.l.b16 %v2919
        %v2948 = vunpack.c.l.b16 %v2920
        %v2949 = vpack.c.b16 %v2941, %v2940
        %v2950 = vpack.c.b16 %v2943, %v2942
        %v2951 = vpack.c.b16 %v2945, %v2944
        %v2952 = vpack.c.b16 %v2947, %v2946
        %v2953 = vpack.c.b16 %v2948, %v2948
        %v2955 = vshrl.u32 %v2949, 16
        %v2957 = vshll.u32 %v2949, 16
        %v2959 = vrot.slane %v2957, 1
        %v2960 = vor.u32 %v2955, %v2959
        %v2962 = vshll.u32 %v2950, 16
        %v2964 = vrot.slane %v2962, 1
        %v2965 = vsel %vm478, %v2960, %v2964
        %v2966 = vshrl.u32 %v2950, 16
        %v2968 = vor.u32 %v2966, %v2964
        %v2970 = vshll.u32 %v2951, 16
        %v2972 = vrot.slane %v2970, 1
        %v2973 = vsel %vm478, %v2968, %v2972
        %v2974 = vshrl.u32 %v2951, 16
        %v2976 = vor.u32 %v2974, %v2972
        %v2978 = vshll.u32 %v2952, 16
        %v2980 = vrot.slane %v2978, 1
        %v2981 = vsel %vm478, %v2976, %v2980
        %v2982 = vshrl.u32 %v2952, 16
        %v2984 = vor.u32 %v2982, %v2980
        %v2986 = vshll.u32 %v2953, 16
        %v2988 = vrot.slane %v2986, 1
        %v2989 = vsel %vm478, %v2984, %v2988
        %v2990 = vshrl.u32 %v2953, 16
        %v2992 = vor.u32 %v2990, %v2988
        %v2994 = vsel %vm326, %v2965, 0
        %v2997 = vsel %vm326, %v2973, 0
        %v3000 = vsel %vm326, %v2981, 0
        %v3003 = vsel %vm326, %v2989, 0
        %v3006 = vsel %vm326, %v2992, 0
        %v3009 = vsel %vm342, %v2921, 0
        %3011 = vmatprep.subr.bf16.mxu0 0
        %3012 = vmatpush1.bf16.msra.mxu0 %v3009
        %3013 = vmatprep.subr.bf16.mxu0 0
        %3014 = vmatpush1.bf16.msra.mxu0 0
        %3015 = vmatprep.subr.bf16.mxu0 0
        %3016 = vmatpush1.bf16.msra.mxu0 0
        %3017 = vmatprep.subr.bf16.mxu0 0
        %3018 = vmatpush1.bf16.msra.mxu0 0
        %3019 = vmatprep.subr.bf16.mxu0 0
        %3020 = vmatpush1.bf16.msra.mxu0 0
        %3021 = vmatprep.subr.bf16.mxu0 0
        %3022 = vmatpush1.bf16.msra.mxu0 0
        %3023 = vmatprep.subr.bf16.mxu0 0
        %3024 = vmatpush1.bf16.msra.mxu0 0
        %3025 = vmatprep.subr.bf16.mxu0 0
        %3026 = vmatpush1.bf16.msra.mxu0 0
        %3027 = vmatprep.subr.bf16.mxu0 0
        %3028 = vmatpush1.bf16.msra.mxu0 0
        %3029 = vmatprep.subr.bf16.mxu0 0
        %3030 = vmatpush1.bf16.msra.mxu0 0
        %3031 = vmatprep.subr.bf16.mxu0 0
        %3032 = vmatpush1.bf16.msra.mxu0 0
        %3033 = vmatprep.subr.bf16.mxu0 0
        %3034 = vmatpush1.bf16.msra.mxu0 0
        %3035 = vmatprep.subr.bf16.mxu0 0
        %3036 = vmatpush1.bf16.msra.mxu0 0
        %3037 = vmatprep.subr.bf16.mxu0 0
        %3038 = vmatpush1.bf16.msra.mxu0 0
        %3039 = vmatprep.subr.bf16.mxu0 0
        %3040 = vmatpush1.bf16.msra.mxu0 0
        %3041 = vmatprep.subr.bf16.mxu0 0
        %3042 = vmatpush1.bf16.msra.mxu0 0
        %3043 = vmatprep.mubr.bf16.mxu0 0
        %3044 = vmatmul.mubr.bf16.gmra.mrb[0].mxu0 %v2994
        %v3045 = vpop.f32.mrb[0].mxu0
        %v3046 = vadd.f32 0.0, %v3045
        %v3047 = vpop.f32.mrb[0].mxu0
        %v3048 = vpop.f32.mrb[0].mxu0
        %v3049 = vadd.f32 0.0, %v3048
        %v3050 = vpop.f32.mrb[0].mxu0
        %3051 = vmatprep.mubr.bf16.mxu0 0
        %3052 = vmatmul.mubr.bf16.gmra.mrb[0].mxu0 %v2997
        %v3053 = vpop.f32.mrb[0].mxu0
        %v3054 = vadd.f32 0.0, %v3053
        %v3055 = vpop.f32.mrb[0].mxu0
        %v3056 = vpop.f32.mrb[0].mxu0
        %v3057 = vadd.f32 0.0, %v3056
        %v3058 = vpop.f32.mrb[0].mxu0
        %3059 = vmatprep.mubr.bf16.mxu0 0
        %3060 = vmatmul.mubr.bf16.gmra.mrb[0].mxu0 %v3000
        %v3061 = vpop.f32.mrb[0].mxu0
        %v3062 = vadd.f32 0.0, %v3061
        %v3063 = vpop.f32.mrb[0].mxu0
        %v3064 = vpop.f32.mrb[0].mxu0
        %v3065 = vadd.f32 0.0, %v3064
        %v3066 = vpop.f32.mrb[0].mxu0
        %3067 = vmatprep.mubr.bf16.mxu0 0
        %3068 = vmatmul.mubr.bf16.gmra.mrb[0].mxu0 %v3003
        %v3069 = vpop.f32.mrb[0].mxu0
        %v3070 = vadd.f32 0.0, %v3069
        %v3071 = vpop.f32.mrb[0].mxu0
        %v3072 = vpop.f32.mrb[0].mxu0
        %v3073 = vadd.f32 0.0, %v3072
        %v3074 = vpop.f32.mrb[0].mxu0
        %3075 = vmatprep.mubr.bf16.mxu0 0
        %3076 = vmatmul.mubr.bf16.gmra.mrb[0].mxu0 %v3006
        %v3077 = vpop.f32.mrb[0].mxu0
        %v3078 = vadd.f32 0.0, %v3077
        %v3079 = vpop.f32.mrb[0].mxu0
        %v3080 = vpop.f32.mrb[0].mxu0
        %v3081 = vpop.f32.mrb[0].mxu0
        %3082 = vdwg.mxu0
        %v3083 = vadd.f32 %v2922, %v3046
        %v3084 = vadd.f32 %v2923, %v3049
        %v3085 = vadd.f32 %v2924, %v3054
        %v3086 = vadd.f32 %v2925, %v3057
        %v3087 = vadd.f32 %v2926, %v3062
        %v3088 = vadd.f32 %v2927, %v3065
        %v3089 = vadd.f32 %v2928, %v3070
        %v3090 = vadd.f32 %v2929, %v3073
        %v3091 = vadd.f32 %v2930, %v3078
        %3092 = vst [vmem:[#allocation2] sm:$0xff] %v3083
        %3093 = vst [vmem:[#allocation2 + $0x8] sm:$0xff] %v3084
        %3094 = vst [vmem:[#allocation2 + $0x10] sm:$0xff] %v3085
        %3095 = vst [vmem:[#allocation2 + $0x18] sm:$0xff] %v3086
        %3096 = vst [vmem:[#allocation2 + $0x20] sm:$0xff] %v3087
        %3097 = vst [vmem:[#allocation2 + $0x28] sm:$0xff] %v3088
        %3098 = vst [vmem:[#allocation2 + $0x30] sm:$0xff] %v3089
        %3099 = vst [vmem:[#allocation2 + $0x38] sm:$0xff] %v3090
        %3100 = vst [vmem:[#allocation2 + $0x40] sm:$0x7] %v3091
        %p3101 = scmp.eq.s32.totalorder %s30, 3
        // Predicated region
        $region49: #{_lambda_.9} parent=31 // pred_check
          %p3102 = pneg %p3101
        $region50: #{_lambda_.9} parent=31 // pred_check_branch
          %3104 = sbr.rel (%p3102) target = $region52
        $region51: #{_lambda_.9} parent=31 // pred_region
          %v3105 = vld [vmem:[#allocation2] sm:$0xff]
          %v3106 = vld [vmem:[#allocation2 + $0x8] sm:$0xff]
          %v3107 = vld [vmem:[#allocation2 + $0x10] sm:$0xff]
          %v3108 = vld [vmem:[#allocation2 + $0x18] sm:$0xff]
          %v3109 = vld [vmem:[#allocation2 + $0x20] sm:$0xff]
          %v3110 = vld [vmem:[#allocation2 + $0x28] sm:$0xff]
          %v3111 = vld [vmem:[#allocation2 + $0x30] sm:$0xff]
          %v3112 = vld [vmem:[#allocation2 + $0x38] sm:$0xff]
          %v3113 = vld [vmem:[#allocation2 + $0x40] sm:$0x7]
          %v3114 = vld [vmem:[#allocation8] sm:$0x1]
          %v3116 = vlaneseq
          %v3117 = vshrl.u32 %v3116, 7
          %v3118 = vsub.s32 0, %v3117
          %v3119 = vrot.slane %v3114, %v3118
          %v3121 = vadd.f32 %v3105, %v3119
          %v3122 = vadd.f32 %v3106, %v3119
          %v3123 = vadd.f32 %v3107, %v3119
          %v3124 = vadd.f32 %v3108, %v3119
          %v3125 = vadd.f32 %v3109, %v3119
          %v3126 = vadd.f32 %v3110, %v3119
          %v3127 = vadd.f32 %v3111, %v3119
          %v3128 = vadd.f32 %v3112, %v3119
          %v3129 = vadd.f32 %v3113, %v3119
          %3130 = vst [vmem:[%s268] sm:$0xff] %v3121
          %3131 = vst [vmem:[%s268 + $0x8] sm:$0xff] %v3122
          %3132 = vst [vmem:[%s268 + $0x10] sm:$0xff] %v3123
          %3133 = vst [vmem:[%s268 + $0x18] sm:$0xff] %v3124
          %3134 = vst [vmem:[%s268 + $0x20] sm:$0xff] %v3125
          %3135 = vst [vmem:[%s268 + $0x28] sm:$0xff] %v3126
          %3136 = vst [vmem:[%s268 + $0x30] sm:$0xff] %v3127
          %3137 = vst [vmem:[%s268 + $0x38] sm:$0xff] %v3128
          %3138 = vst [vmem:[%s268 + $0x40] sm:$0x7] %v3129
        $region52: #{_lambda_.9} parent=31 // pred_fallthru
          _
        %s3139 = sand.u32 %s129, 1
        %s3140 = scalar_lea.sflag [#allocation5], %s3139
        %s3141 = sand.u32 %s129, 1
        %s3142 = smul.addr %s3141, 72
        %s3143 = scalar_lea.vmem [#allocation9], %s3142
        // Predicated region
        $region53: #{_lambda_.9} parent=31 // pred_check
          %p3144 = pneg %p139
        $region54: #{_lambda_.9} parent=31 // pred_check_branch
          %3146 = sbr.rel (%p3144) target = $region56
        $region55: #{_lambda_.9} parent=31 // pred_region
          %s3148 = ssub.s32 1152, 1152
          %3149 = vsyncadd %s3140, %s3148
          %s3150 = smul.addr %s29, 9
          %s3151 = smul.addr %s28, 27
          %s3152 = sadd.s32 %s3150, %s3151
          %s3153 = smul.addr %s3152, 128
          %s3154 = scalar_lea.hbm %s3, %s3153
          %s3155 = sshll.u32 %s3143, 4
          %s3156 = int_to_ptr.vmem [resolvable:$true] %s3155
          %3161 = dma.vmem_to_hbm [thread:$0]  %s3156, 1152, %s3154, %s3140, 128, 128, 8
        $region56: #{_lambda_.9} parent=31 // pred_fallthru
          _
      $region32: #{_lambda_.9} parent=5 // pred_fallthru
        _
      %p3162 = scmp.le.s32.totalorder 2, %s18
      // Predicated region
      $region57: #{_lambda_.9} parent=5 // pred_check
        %p3163 = pneg %p3162
      $region58: #{_lambda_.9} parent=5 // pred_check_branch
        %3165 = sbr.rel (%p3163) target = $region60
      $region59: #{_lambda_.9} parent=5 // pred_region
        %s3166 = ssub.s32 %s18, 2
        // Predicated region
        $region61: #{_lambda_.9} parent=59 // pred_check
          %p3167 = pneg %p145
        $region62: #{_lambda_.9} parent=59 // pred_check_branch
          %3169 = sbr.rel (%p3167) target = $region64
        $region63: #{_lambda_.9} parent=59 // pred_region
          %s3170 = sand.u32 %s130, 1
          %s3171 = scalar_lea.sflag [#allocation5], %s3170
          %s3172 = sand.u32 %s130, 1
          %s3173 = smul.addr %s3172, 72
          %s3174 = scalar_lea.vmem [#allocation9], %s3173
          %3175 = dma.done %s3171, 1152
        $region64: #{_lambda_.9} parent=59 // pred_fallthru
          _
      $region60: #{_lambda_.9} parent=5 // pred_fallthru
        _
    $region6: #{_lambda_.9} parent=1 // loop_footer
      %s22 = sadd.s32 1, %s18
    $region7: #{_lambda_.9} parent=1 // loop_footer_branch
      %17 = sbr.rel target = $region3
    $region8: #{_lambda_.9} parent=1 // loop_exit
      _
    %3176 = vsyncpa [#allocation4], 1
    %s3177 = scalar_lea.sflag [#allocation4], 1
    %3178 = vsyncpa %s3177, 1
    %3179 = vsyncpa [#allocation7], 1
    %s3180 = scalar_lea.sflag [#allocation7], 1
    %3181 = vsyncpa %s3180, 1
    %3182 = vsyncpa [#allocation5], 1
    %s3183 = scalar_lea.sflag [#allocation5], 1
    %3184 = vsyncpa %s3183, 1

// kernel: _lambda_.14
$region0: #{_lambda_.14}
  #allocation0 [shape = 'u32[]', space=smem, size = 0x4, offset = 0x4, fixed_abs, tag = 'smem constant byte address 0x4 - core index']
  #allocation1 [shape = 'u32[144,128]{1,0:T(1,128)}', space=vmem, size = 0x12000, scoped, tag = 'internal scratch']
  %s0 = inlined_call_operand.vmem [shape: f32[4,16,16], index: 0, kind: input, shape index: {}]
  %s1 = inlined_call_operand.vmem [shape: f32[4,16,16], index: 1, kind: input, shape index: {}]
  %s2 = inlined_call_operand.vmem [shape: f32[4,16,16], index: 2, kind: output, shape index: {}]
  %s3 = sld [smem:[#allocation0]]
  $region41: #{_lambda_.14} parent=0
    _
  %s5 = ssub.s32 1, %s3
  %s6 = scalar_select 0, %s5, %s3
  loop: start=0, step=1, limit=6
  $region2: #{_lambda_.14} parent=0 // loop_pre_header
    _
  $region3: #{_lambda_.14} parent=0 // loop_header
    %s8 = sphi 0, %s12
    %p9 = scmp.ge.s32.totalorder %s8, 6
    %s18 = sphi 0, %s20
    %s21 = sphi 0, %s18
    %s22 = sphi 0, %s21
    %s38 = sphi 0, %s22
    %s44 = sphi 0, %s46
    %s47 = sphi 0, %s44
    %s48 = sphi 0, %s47
    %s64 = sphi 0, %s48
    %s70 = sphi 0, %s72
    %s73 = sphi 0, %s70
    %s74 = sphi 0, %s73
    %s90 = sphi 0, %s74
  $region4: #{_lambda_.14} parent=0 // loop_header_branch
    %11 = sbr.rel (%p9) target = $region8
  $region5: #{_lambda_.14} parent=0 // loop_body
    %s13 = ssub.s32 %s8, 1
    %s14 = ssub.s32 %s8, 2
    %s15 = sadd.s32 %s8, 1
    %s16 = ssub.s32 %s8, %s15
    %p17 = scmp.eq.s32.totalorder %s16, 0
    %s19 = sadd.s32 %s18, 1
    %s20 = scalar_select %p17, %s18, %s19
    %p23 = pneg %p17
    %p24 = scmp.eq.s32.totalorder %s8, 3
    %p25 = por %p23, %p24
    %p26 = scmp.ne.s32.totalorder %s18, %s21
    %p27 = scmp.eq.s32.totalorder %s8, 0
    %p28 = por %p26, %p27
    %p29 = scmp.ne.s32.totalorder %s18, %s21
    %p30 = scmp.eq.s32.totalorder %s13, 3
    %p31 = por %p29, %p30
    %p32 = scmp.ne.s32.totalorder %s21, %s22
    %p33 = scmp.eq.s32.totalorder %s13, 0
    %p34 = por %p32, %p33
    %p35 = scmp.ne.s32.totalorder %s21, %s22
    %p36 = scmp.eq.s32.totalorder %s14, 3
    %p37 = por %p35, %p36
    %p39 = scmp.ne.s32.totalorder %s22, %s38
    %p40 = scmp.eq.s32.totalorder %s14, 0
    %p41 = por %p39, %p40
    %s42 = ssub.s32 %s8, %s15
    %p43 = scmp.eq.s32.totalorder %s42, 0
    %s45 = sadd.s32 %s44, 1
    %s46 = scalar_select %p43, %s44, %s45
    %p49 = pneg %p43
    %p50 = scmp.eq.s32.totalorder %s8, 3
    %p51 = por %p49, %p50
    %p52 = scmp.ne.s32.totalorder %s44, %s47
    %p53 = scmp.eq.s32.totalorder %s8, 0
    %p54 = por %p52, %p53
    %p55 = scmp.ne.s32.totalorder %s44, %s47
    %p56 = scmp.eq.s32.totalorder %s13, 3
    %p57 = por %p55, %p56
    %p58 = scmp.ne.s32.totalorder %s47, %s48
    %p59 = scmp.eq.s32.totalorder %s13, 0
    %p60 = por %p58, %p59
    %p61 = scmp.ne.s32.totalorder %s47, %s48
    %p62 = scmp.eq.s32.totalorder %s14, 3
    %p63 = por %p61, %p62
    %p65 = scmp.ne.s32.totalorder %s48, %s64
    %p66 = scmp.eq.s32.totalorder %s14, 0
    %p67 = por %p65, %p66
    %s68 = ssub.s32 %s8, %s15
    %p69 = scmp.eq.s32.totalorder %s68, 0
    %s71 = sadd.s32 %s70, 1
    %s72 = scalar_select %p69, %s70, %s71
    %p75 = pneg %p69
    %p76 = scmp.eq.s32.totalorder %s8, 3
    %p77 = por %p75, %p76
    %p78 = scmp.ne.s32.totalorder %s70, %s73
    %p79 = scmp.eq.s32.totalorder %s8, 0
    %p80 = por %p78, %p79
    %p81 = scmp.ne.s32.totalorder %s70, %s73
    %p82 = scmp.eq.s32.totalorder %s13, 3
    %p83 = por %p81, %p82
    %p84 = scmp.ne.s32.totalorder %s73, %s74
    %p85 = scmp.eq.s32.totalorder %s13, 0
    %p86 = por %p84, %p85
    %p87 = scmp.ne.s32.totalorder %s73, %s74
    %p88 = scmp.eq.s32.totalorder %s14, 3
    %p89 = por %p87, %p88
    %p91 = scmp.ne.s32.totalorder %s74, %s90
    %p92 = scmp.eq.s32.totalorder %s14, 0
    %p93 = por %p91, %p92
    %p94 = scmp.le.s32.totalorder 1, %s8
    %p95 = scmp.lt.s32.totalorder %s8, 5
    %p96 = pnand %p94, %p95
    %p97 = pneg %p96
    // Predicated region
    $region9: #{_lambda_.14} parent=5 // pred_check
      _
    $region10: #{_lambda_.14} parent=5 // pred_check_branch
      %99 = sbr.rel (%p96) target = $region12
    $region11: #{_lambda_.14} parent=5 // pred_region
      %s100 = ssub.s32 %s8, 1
    $region12: #{_lambda_.14} parent=5 // pred_fallthru
      _
    %p101 = scmp.lt.s32.totalorder %s8, 4
    // Predicated region
    $region13: #{_lambda_.14} parent=5 // pred_check
      %p102 = pneg %p101
    $region14: #{_lambda_.14} parent=5 // pred_check_branch
      %104 = sbr.rel (%p102) target = $region16
    $region15: #{_lambda_.14} parent=5 // pred_region
      // Predicated region
      $region17: #{_lambda_.14} parent=15 // pred_check
        %p105 = pneg %p28
      $region18: #{_lambda_.14} parent=15 // pred_check_branch
        %107 = sbr.rel (%p105) target = $region20
      $region19: #{_lambda_.14} parent=15 // pred_region
        %p108 = scmp.lt.s32.totalorder %s8, 3
        %s109 = scalar_select %p108, %s8, 3
        %s110 = smul.addr %s109, 2
        %s111 = smul.addr %s110, 8
        %s112 = scalar_lea.vmem %s0, %s111
      $region20: #{_lambda_.14} parent=15 // pred_fallthru
        _
      // Predicated region
      $region21: #{_lambda_.14} parent=15 // pred_check
        %p113 = pneg %p54
      $region22: #{_lambda_.14} parent=15 // pred_check_branch
        %115 = sbr.rel (%p113) target = $region24
      $region23: #{_lambda_.14} parent=15 // pred_region
        %p116 = scmp.lt.s32.totalorder %s8, 3
        %s117 = scalar_select %p116, %s8, 3
        %s118 = smul.addr %s117, 2
        %s119 = smul.addr %s118, 8
        %s120 = scalar_lea.vmem %s1, %s119
      $region24: #{_lambda_.14} parent=15 // pred_fallthru
        _
    $region16: #{_lambda_.14} parent=5 // pred_fallthru
      _
    %p121 = scmp.le.s32.totalorder 1, %s8
    %p122 = scmp.lt.s32.totalorder %s8, 5
    %p123 = pnand %p121, %p122
    %p124 = pneg %p123
    // Predicated region
    $region25: #{_lambda_.14} parent=5 // pred_check
      _
    $region26: #{_lambda_.14} parent=5 // pred_check_branch
      %126 = sbr.rel (%p123) target = $region28
    $region27: #{_lambda_.14} parent=5 // pred_region
      %s127 = ssub.s32 %s8, 1
      %p128 = scmp.lt.s32.totalorder %s13, 3
      %s129 = scalar_select %p128, %s13, 3
      %s130 = smul.addr %s129, 2
      %s131 = smul.addr %s130, 8
      %s132 = scalar_lea.vmem %s0, %s131
      %p133 = pneg %p34
      %p134 = pneg %p31
      %p135 = scmp.lt.s32.totalorder %s13, 3
      %s136 = scalar_select %p135, %s13, 3
      %s137 = smul.addr %s136, 2
      %s138 = smul.addr %s137, 8
      %s139 = scalar_lea.vmem %s1, %s138
      %p140 = pneg %p60
      %p141 = pneg %p57
      %p142 = pneg %p86
      %p143 = pneg %p83
      %p144 = scmp.lt.s32.totalorder %s13, 3
      %s145 = scalar_select %p144, %s13, 3
      %s146 = smul.addr %s145, 2
      %s147 = smul.addr %s146, 8
      %s148 = scalar_lea.vmem %s2, %s147
      %p149 = scmp.lt.s32.totalorder %s13, 3
      %s150 = scalar_select %p149, %s13, 3
      %s151 = smul.addr %s150, 2
      %s152 = smul.addr %s151, 8
      %s153 = scalar_lea.vmem %s0, %s152
      %p154 = scmp.lt.s32.totalorder %s13, 3
      %s155 = scalar_select %p154, %s13, 3
      %s156 = smul.addr %s155, 2
      %s157 = smul.addr %s156, 8
      %s158 = scalar_lea.vmem %s1, %s157
      %p159 = scmp.lt.s32.totalorder %s13, 3
      %s160 = scalar_select %p159, %s13, 3
      %s161 = smul.addr %s160, 2
      %s162 = smul.addr %s161, 8
      %s163 = scalar_lea.vmem %s2, %s162
      %v164 = vld [vmem:[%s153] sm:$0xff]
      %v165 = vld [vmem:[%s153 + $0x8] sm:$0xff]
      %v166 = vld [vmem:[%s158] sm:$0xff]
      %v167 = vld [vmem:[%s158 + $0x8] sm:$0xff]
      %v168 = vadd.f32 %v164, %v166
      %v169 = vadd.f32 %v165, %v167
      %vm170 = vcmask 130048
      %171 = vst.msk [vmem:[%s163] sm:$0xff] %vm170, %v168
      %172 = vst.msk [vmem:[%s163 + $0x8] sm:$0xff] %vm170, %v169
      %p173 = scmp.lt.s32.totalorder %s13, 3
      %s174 = scalar_select %p173, %s13, 3
      %s175 = smul.addr %s174, 2
      %s176 = smul.addr %s175, 8
      %s177 = scalar_lea.vmem %s2, %s176
      // Predicated region
      $region29: #{_lambda_.14} parent=27 // pred_check
        %p178 = pneg %p83
      $region30: #{_lambda_.14} parent=27 // pred_check_branch
        %180 = sbr.rel (%p178) target = $region32
      $region31: #{_lambda_.14} parent=27 // pred_region
        _
      $region32: #{_lambda_.14} parent=27 // pred_fallthru
        _
    $region28: #{_lambda_.14} parent=5 // pred_fallthru
      _
    %p181 = scmp.le.s32.totalorder 2, %s8
    // Predicated region
    $region33: #{_lambda_.14} parent=5 // pred_check
      %p182 = pneg %p181
    $region34: #{_lambda_.14} parent=5 // pred_check_branch
      %184 = sbr.rel (%p182) target = $region36
    $region35: #{_lambda_.14} parent=5 // pred_region
      %s185 = ssub.s32 %s8, 2
      // Predicated region
      $region37: #{_lambda_.14} parent=35 // pred_check
        %p186 = pneg %p89
      $region38: #{_lambda_.14} parent=35 // pred_check_branch
        %188 = sbr.rel (%p186) target = $region40
      $region39: #{_lambda_.14} parent=35 // pred_region
        %p189 = scmp.lt.s32.totalorder %s14, 3
        %s190 = scalar_select %p189, %s14, 3
        %s191 = smul.addr %s190, 2
        %s192 = smul.addr %s191, 8
        %s193 = scalar_lea.vmem %s2, %s192
      $region40: #{_lambda_.14} parent=35 // pred_fallthru
        _
    $region36: #{_lambda_.14} parent=5 // pred_fallthru
      _
  $region6: #{_lambda_.14} parent=0 // loop_footer
    %s12 = sadd.s32 1, %s8
  $region7: #{_lambda_.14} parent=0 // loop_footer_branch
    %7 = sbr.rel target = $region3
  $region8: #{_lambda_.14} parent=0 // loop_exit
    _

// kernel: _lambda_.11
$region0: #{_lambda_.11}
  #allocation0 [shape = 'u32[]', space=smem, size = 0x4, offset = 0x4, fixed_abs, tag = 'smem constant byte address 0x4 - core index']
  #allocation1 [shape = 'u32[144,128]{1,0:T(1,128)}', space=vmem, size = 0x12000, scoped, tag = 'internal scratch']
  #allocation2 [shape = 'f32[22,128]{1,0:T(8,128)}', space=vmem, size = 0x3000, scoped, tag = 'scratch operand']
  %s0 = inlined_call_operand.hbm [shape: bf16[2,4,36,16], index: 0, kind: input, shape index: {}]
  %s1 = inlined_call_operand.hbm [shape: bf16[3,144,128], index: 1, kind: input, shape index: {}]
  %s2 = inlined_call_operand.hbm [shape: f32[1,128], index: 2, kind: input, shape index: {}]
  %s3 = inlined_call_operand.hbm [shape: f32[2,2,24,128], index: 3, kind: output, shape index: {}]
  %s4 = sld [smem:[#allocation0]]
  $region65: #{_lambda_.11} parent=0
    _
  %s6 = ssub.s32 1, %s4
  %s7 = scalar_select 0, %s6, %s4
  $region1: #{_lambda_.11} parent=0
    #allocation3 [shape = 'u8[20480]{0}', space=vmem, size = 0x5000, scoped, tag = 'input window, operand 0']
    #allocation4 [shape = 's32[2]{0}', space=sflag, size = 0x8, scoped, tag = 'scoped memory for _lambda_.11']
    #allocation5 [shape = 's32[2]{0}', space=sflag, size = 0x8, scoped, tag = 'scoped memory for _lambda_.11']
    #allocation6 [shape = 'u8[73728]{0}', space=vmem, size = 0x12000, scoped, tag = 'input window, operand 1']
    #allocation7 [shape = 's32[2]{0}', space=sflag, size = 0x8, scoped, tag = 'scoped memory for _lambda_.11']
    #allocation8 [shape = 'u8[512]{0}', space=vmem, size = 0x400, scoped, tag = 'input window, operand 2, single buffered']
    #allocation9 [shape = 'u8[24576]{0}', space=vmem, size = 0x6000, scoped, tag = 'output window, operand 0']
    %8 = vsyncpa [#allocation4], 0
    %s9 = scalar_lea.sflag [#allocation4], 1
    %10 = vsyncpa %s9, 0
    %11 = vsyncpa [#allocation7], 0
    %s12 = scalar_lea.sflag [#allocation7], 1
    %13 = vsyncpa %s12, 0
    %14 = vsyncpa [#allocation5], 0
    %s15 = scalar_lea.sflag [#allocation5], 1
    %16 = vsyncpa %s15, 0
    loop: start=0, step=1, limit=14
    $region2: #{_lambda_.11} parent=1 // loop_pre_header
      _
    $region3: #{_lambda_.11} parent=1 // loop_header
      %s18 = sphi 0, %s22
      %p19 = scmp.ge.s32.totalorder %s18, 14
      %s25 = sphi 0, %s44
      %s26 = sphi 0, %s40
      %s27 = sphi 0, %s36
      %s28 = sphi 0, %s25
      %s29 = sphi 0, %s26
      %s30 = sphi 0, %s27
      %s31 = sphi 0, %s28
      %s32 = sphi 0, %s29
      %s33 = sphi 0, %s30
      %s51 = sphi 0, %s53
      %s54 = sphi 0, %s51
      %s55 = sphi 0, %s54
      %s71 = sphi 0, %s55
      %s77 = sphi 0, %s79
      %s80 = sphi 0, %s77
      %s81 = sphi 0, %s80
      %s97 = sphi 0, %s81
      %s101 = sphi 0, %s101
      %s103 = sphi 0, %s101
      %s104 = sphi 0, %s103
      %s118 = sphi 0, %s104
      %s126 = sphi 0, %s128
      %s129 = sphi 0, %s126
      %s130 = sphi 0, %s129
      %s146 = sphi 0, %s130
    $region4: #{_lambda_.11} parent=1 // loop_header_branch
      %21 = sbr.rel (%p19) target = $region8
    $region5: #{_lambda_.11} parent=1 // loop_body
      %s23 = ssub.s32 %s18, 1
      %s24 = ssub.s32 %s18, 2
      %s34 = sadd.s32 1, %s27
      %p35 = scmp.ge.s32.totalorder %s34, 3
      %s36 = scalar_select %p35, 0, %s34
      %s37 = sadd.s32 1, %s26
      %s38 = scalar_select %p35, %s37, %s26
      %p39 = scmp.ge.s32.totalorder %s38, 2
      %s40 = scalar_select %p39, 0, %s38
      %s41 = sadd.s32 1, %s25
      %s42 = scalar_select %p39, %s41, %s25
      %p43 = scmp.ge.s32.totalorder %s42, 2
      %s44 = scalar_select %p43, 0, %s42
      %s45 = sadd.s32 %s26, %s27
      %s46 = sadd.s32 %s40, %s36
      %s47 = ssub.s32 %s25, %s44
      %s48 = ssub.s32 %s45, %s46
      %s49 = sor.u32 %s47, %s48
      %p50 = scmp.eq.s32.totalorder %s49, 0
      %s52 = sadd.s32 %s51, 1
      %s53 = scalar_select %p50, %s51, %s52
      %p56 = pneg %p50
      %p57 = scmp.eq.s32.totalorder %s18, 11
      %p58 = por %p56, %p57
      %p59 = scmp.ne.s32.totalorder %s51, %s54
      %p60 = scmp.eq.s32.totalorder %s18, 0
      %p61 = por %p59, %p60
      %p62 = scmp.ne.s32.totalorder %s51, %s54
      %p63 = scmp.eq.s32.totalorder %s23, 11
      %p64 = por %p62, %p63
      %p65 = scmp.ne.s32.totalorder %s54, %s55
      %p66 = scmp.eq.s32.totalorder %s23, 0
      %p67 = por %p65, %p66
      %p68 = scmp.ne.s32.totalorder %s54, %s55
      %p69 = scmp.eq.s32.totalorder %s24, 11
      %p70 = por %p68, %p69
      %p72 = scmp.ne.s32.totalorder %s55, %s71
      %p73 = scmp.eq.s32.totalorder %s24, 0
      %p74 = por %p72, %p73
      %s75 = ssub.s32 %s27, %s36
      %p76 = scmp.eq.s32.totalorder %s75, 0
      %s78 = sadd.s32 %s77, 1
      %s79 = scalar_select %p76, %s77, %s78
      %p82 = pneg %p76
      %p83 = scmp.eq.s32.totalorder %s18, 11
      %p84 = por %p82, %p83
      %p85 = scmp.ne.s32.totalorder %s77, %s80
      %p86 = scmp.eq.s32.totalorder %s18, 0
      %p87 = por %p85, %p86
      %p88 = scmp.ne.s32.totalorder %s77, %s80
      %p89 = scmp.eq.s32.totalorder %s23, 11
      %p90 = por %p88, %p89
      %p91 = scmp.ne.s32.totalorder %s80, %s81
      %p92 = scmp.eq.s32.totalorder %s23, 0
      %p93 = por %p91, %p92
      %p94 = scmp.ne.s32.totalorder %s80, %s81
      %p95 = scmp.eq.s32.totalorder %s24, 11
      %p96 = por %p94, %p95
      %p98 = scmp.ne.s32.totalorder %s81, %s97
      %p99 = scmp.eq.s32.totalorder %s24, 0
      %p100 = por %p98, %p99
      %s102 = sadd.s32 %s101, 1
      %p105 = scmp.eq.s32.totalorder %s18, 11
      %p106 = scmp.ne.s32.totalorder %s101, %s103
      %p107 = scmp.eq.s32.totalorder %s18, 0
      %p108 = por %p106, %p107
      %p109 = scmp.ne.s32.totalorder %s101, %s103
      %p110 = scmp.eq.s32.totalorder %s23, 11
      %p111 = por %p109, %p110
      %p112 = scmp.ne.s32.totalorder %s103, %s104
      %p113 = scmp.eq.s32.totalorder %s23, 0
      %p114 = por %p112, %p113
      %p115 = scmp.ne.s32.totalorder %s103, %s104
      %p116 = scmp.eq.s32.totalorder %s24, 11
      %p117 = por %p115, %p116
      %p119 = scmp.ne.s32.totalorder %s104, %s118
      %p120 = scmp.eq.s32.totalorder %s24, 0
      %p121 = por %p119, %p120
      %s122 = ssub.s32 %s25, %s44
      %s123 = ssub.s32 %s26, %s40
      %s124 = sor.u32 %s122, %s123
      %p125 = scmp.eq.s32.totalorder %s124, 0
      %s127 = sadd.s32 %s126, 1
      %s128 = scalar_select %p125, %s126, %s127
      %p131 = pneg %p125
      %p132 = scmp.eq.s32.totalorder %s18, 11
      %p133 = por %p131, %p132
      %p134 = scmp.ne.s32.totalorder %s126, %s129
      %p135 = scmp.eq.s32.totalorder %s18, 0
      %p136 = por %p134, %p135
      %p137 = scmp.ne.s32.totalorder %s126, %s129
      %p138 = scmp.eq.s32.totalorder %s23, 11
      %p139 = por %p137, %p138
      %p140 = scmp.ne.s32.totalorder %s129, %s130
      %p141 = scmp.eq.s32.totalorder %s23, 0
      %p142 = por %p140, %p141
      %p143 = scmp.ne.s32.totalorder %s129, %s130
      %p144 = scmp.eq.s32.totalorder %s24, 11
      %p145 = por %p143, %p144
      %p147 = scmp.ne.s32.totalorder %s130, %s146
      %p148 = scmp.eq.s32.totalorder %s24, 0
      %p149 = por %p147, %p148
      %p150 = scmp.le.s32.totalorder 1, %s18
      %p151 = scmp.lt.s32.totalorder %s18, 13
      %p152 = pnand %p150, %p151
      %p153 = pneg %p152
      // Predicated region
      $region9: #{_lambda_.11} parent=5 // pred_check
        _
      $region10: #{_lambda_.11} parent=5 // pred_check_branch
        %155 = sbr.rel (%p152) target = $region12
      $region11: #{_lambda_.11} parent=5 // pred_region
        %s156 = ssub.s32 %s18, 1
        // Predicated region
        $region13: #{_lambda_.11} parent=11 // pred_check
          %p157 = pneg %p114
        $region14: #{_lambda_.11} parent=11 // pred_check_branch
          %159 = sbr.rel (%p157) target = $region16
        $region15: #{_lambda_.11} parent=11 // pred_region
          %s161 = ssub.s32 16, 16
          %162 = vsyncadd [#allocation7], %s161
          %s164 = sshll.u32 [#allocation8], 4
          %s165 = int_to_ptr.vmem [resolvable:$true] %s164
          %167 = dma.hbm_to_vmem [thread:$0]  %s2, 16, %s165, [#allocation7]
        $region16: #{_lambda_.11} parent=11 // pred_fallthru
          _
      $region12: #{_lambda_.11} parent=5 // pred_fallthru
        _
      %p168 = scmp.lt.s32.totalorder %s18, 12
      // Predicated region
      $region17: #{_lambda_.11} parent=5 // pred_check
        %p169 = pneg %p168
      $region18: #{_lambda_.11} parent=5 // pred_check_branch
        %171 = sbr.rel (%p169) target = $region20
      $region19: #{_lambda_.11} parent=5 // pred_region
        // Predicated region
        $region21: #{_lambda_.11} parent=19 // pred_check
          %p172 = pneg %p61
        $region22: #{_lambda_.11} parent=19 // pred_check_branch
          %174 = sbr.rel (%p172) target = $region24
        $region23: #{_lambda_.11} parent=19 // pred_region
          %s175 = sand.u32 %s51, 1
          %s176 = scalar_lea.sflag [#allocation4], %s175
          %s177 = sand.u32 %s51, 1
          %s178 = smul.addr %s177, 20
          %s179 = scalar_lea.vmem [#allocation3], %s178
          %s180 = sadd.s32 %s26, %s27
          %s182 = ssub.s32 320, 320
          %183 = vsyncadd %s176, %s182
          %s184 = smul.addr %s180, 5
          %s185 = smul.addr %s25, 20
          %s186 = sadd.s32 %s184, %s185
          %s187 = smul.addr %s186, 64
          %s188 = scalar_lea.hbm %s0, %s187
          %s189 = sshll.u32 %s179, 4
          %s190 = int_to_ptr.vmem [resolvable:$true] %s189
          %195 = dma.hbm_to_vmem [thread:$0]  %s188, 320, %s190, %s176, 64, 64, 4
        $region24: #{_lambda_.11} parent=19 // pred_fallthru
          _
        // Predicated region
        $region25: #{_lambda_.11} parent=19 // pred_check
          %p196 = pneg %p87
        $region26: #{_lambda_.11} parent=19 // pred_check_branch
          %198 = sbr.rel (%p196) target = $region28
        $region27: #{_lambda_.11} parent=19 // pred_region
          %s199 = sand.u32 %s18, 1
          %s200 = scalar_lea.sflag [#allocation7], %s199
          %s201 = sand.u32 %s77, 1
          %s202 = smul.addr %s201, 72
          %s203 = scalar_lea.vmem [#allocation6], %s202
          %s205 = ssub.s32 1152, 1152
          %206 = vsyncadd %s200, %s205
          %s207 = smul.addr %s27, 18
          %s208 = smul.addr %s207, 64
          %s209 = scalar_lea.hbm %s1, %s208
          %s210 = sshll.u32 %s203, 4
          %s211 = int_to_ptr.vmem [resolvable:$true] %s210
          %216 = dma.hbm_to_vmem [thread:$0]  %s209, 1152, %s211, %s200, 64, 64, 4
        $region28: #{_lambda_.11} parent=19 // pred_fallthru
          _
      $region20: #{_lambda_.11} parent=5 // pred_fallthru
        _
      %p217 = scmp.le.s32.totalorder 1, %s18
      %p218 = scmp.lt.s32.totalorder %s18, 13
      %p219 = pnand %p217, %p218
      %p220 = pneg %p219
      // Predicated region
      $region29: #{_lambda_.11} parent=5 // pred_check
        _
      $region30: #{_lambda_.11} parent=5 // pred_check_branch
        %222 = sbr.rel (%p219) target = $region32
      $region31: #{_lambda_.11} parent=5 // pred_region
        %s223 = ssub.s32 %s18, 1
        %s224 = sand.u32 %s54, 1
        %s225 = scalar_lea.sflag [#allocation4], %s224
        %s226 = sand.u32 %s54, 1
        %s227 = smul.addr %s226, 20
        %s228 = scalar_lea.vmem [#allocation3], %s227
        // Predicated region
        $region33: #{_lambda_.11} parent=31 // pred_check
          %p229 = pneg %p67
        $region34: #{_lambda_.11} parent=31 // pred_check_branch
          %231 = sbr.rel (%p229) target = $region36
        $region35: #{_lambda_.11} parent=31 // pred_region
          %232 = dma.done %s225, 320
        $region36: #{_lambda_.11} parent=31 // pred_fallthru
          _
        %s233 = sand.u32 %s23, 1
        %s234 = scalar_lea.sflag [#allocation7], %s233
        %s235 = sand.u32 %s80, 1
        %s236 = smul.addr %s235, 72
        %s237 = scalar_lea.vmem [#allocation6], %s236
        // Predicated region
        $region37: #{_lambda_.11} parent=31 // pred_check
          %p238 = pneg %p93
        $region38: #{_lambda_.11} parent=31 // pred_check_branch
          %240 = sbr.rel (%p238) target = $region40
        $region39: #{_lambda_.11} parent=31 // pred_region
          %241 = dma.done %s234, 1152
        $region40: #{_lambda_.11} parent=31 // pred_fallthru
          _
        // Predicated region
        $region41: #{_lambda_.11} parent=31 // pred_check
          %p242 = pneg %p114
        $region42: #{_lambda_.11} parent=31 // pred_check_branch
          %244 = sbr.rel (%p242) target = $region44
        $region43: #{_lambda_.11} parent=31 // pred_region
          %245 = dma.done [#allocation7], 16
        $region44: #{_lambda_.11} parent=31 // pred_fallthru
          _
        %s246 = sand.u32 %s54, 1
        %s247 = scalar_lea.sflag [#allocation4], %s246
        %s248 = sand.u32 %s54, 1
        %s249 = smul.addr %s248, 20
        %s250 = scalar_lea.vmem [#allocation3], %s249
        %p251 = pneg %p67
        %p252 = pneg %p64
        %s253 = sand.u32 %s23, 1
        %s254 = scalar_lea.sflag [#allocation7], %s253
        %s255 = sand.u32 %s80, 1
        %s256 = smul.addr %s255, 72
        %s257 = scalar_lea.vmem [#allocation6], %s256
        %p258 = pneg %p93
        %p259 = pneg %p90
        %p260 = pneg %p114
        %p261 = pneg %p111
        %p262 = pneg %p142
        %p263 = pneg %p139
        %s264 = sand.u32 %s129, 1
        %s265 = scalar_lea.sflag [#allocation5], %s264
        %s266 = sand.u32 %s129, 1
        %s267 = smul.addr %s266, 24
        %s268 = scalar_lea.vmem [#allocation9], %s267
        %s269 = sadd.s32 %s29, %s30
        %p271 = scmp.eq.s32.totalorder %s30, 0
        // Predicated region
        $region45: #{_lambda_.11} parent=31 // pred_check
          %p272 = pneg %p271
        $region46: #{_lambda_.11} parent=31 // pred_check_branch
          %274 = sbr.rel (%p272) target = $region48
        $region47: #{_lambda_.11} parent=31 // pred_region
          %275 = vst [vmem:[#allocation2] sm:$0xff] 0.0
          %276 = vst [vmem:[#allocation2 + $0x8] sm:$0xff] 0.0
          %277 = vst [vmem:[#allocation2 + $0x10] sm:$0x3f] 0.0
        $region48: #{_lambda_.11} parent=31 // pred_fallthru
          _
        %v278 = vld [vmem:[%s228] sm:$0xf]
        %v279 = vld [vmem:[%s228 + $0x4] sm:$0xf]
        %v280 = vld [vmem:[%s228 + $0x8] sm:$0x7]
        %v281 = vld [vmem:[%s237] sm:$0xf]
        %v282 = vld [vmem:[%s237 + $0x4] sm:$0xf]
        %v283 = vld [vmem:[#allocation2] sm:$0xff]
        %v284 = vld [vmem:[#allocation2 + $0x8] sm:$0xff]
        %v285 = vld [vmem:[#allocation2 + $0x10] sm:$0x3f]
        %v289 = vunpack.c.l.b16 %v278
        %v290 = vunpack.c.l.b16 %v279
        %v291 = vunpack.c.l.b16 %v280
        %v292 = vpack.c.b16 %v290, %v289
        %v293 = vpack.c.b16 %v291, %v291
        %v296 = vunpack.c.l.b16 %v281
        %v297 = vunpack.c.l.b16 %v282
        %v298 = vpack.c.b16 %v297, %v296
        %vm300 = vcmask 130048
        %v302 = vsel %vm300, %v292, 0
        %v305 = vsel %vm300, %v293, 0
        %307 = vmatprep.subr.bf16.mxu0 0
        %308 = vmatpush1.bf16.msra.mxu0 %v298
        %309 = vmatprep.subr.bf16.mxu0 0
        %310 = vmatpush1.bf16.msra.mxu0 0
        %311 = vmatprep.subr.bf16.mxu0 0
        %312 = vmatpush1.bf16.msra.mxu0 0
        %313 = vmatprep.subr.bf16.mxu0 0
        %314 = vmatpush1.bf16.msra.mxu0 0
        %315 = vmatprep.subr.bf16.mxu0 0
        %316 = vmatpush1.bf16.msra.mxu0 0
        %317 = vmatprep.subr.bf16.mxu0 0
        %318 = vmatpush1.bf16.msra.mxu0 0
        %319 = vmatprep.subr.bf16.mxu0 0
        %320 = vmatpush1.bf16.msra.mxu0 0
        %321 = vmatprep.subr.bf16.mxu0 0
        %322 = vmatpush1.bf16.msra.mxu0 0
        %323 = vmatprep.subr.bf16.mxu0 0
        %324 = vmatpush1.bf16.msra.mxu0 0
        %325 = vmatprep.subr.bf16.mxu0 0
        %326 = vmatpush1.bf16.msra.mxu0 0
        %327 = vmatprep.subr.bf16.mxu0 0
        %328 = vmatpush1.bf16.msra.mxu0 0
        %329 = vmatprep.subr.bf16.mxu0 0
        %330 = vmatpush1.bf16.msra.mxu0 0
        %331 = vmatprep.subr.bf16.mxu0 0
        %332 = vmatpush1.bf16.msra.mxu0 0
        %333 = vmatprep.subr.bf16.mxu0 0
        %334 = vmatpush1.bf16.msra.mxu0 0
        %335 = vmatprep.subr.bf16.mxu0 0
        %336 = vmatpush1.bf16.msra.mxu0 0
        %337 = vmatprep.subr.bf16.mxu0 0
        %338 = vmatpush1.bf16.msra.mxu0 0
        %339 = vmatprep.mubr.bf16.mxu0 0
        %340 = vmatmul.mubr.bf16.gmra.mrb[0].mxu0 %v302
        %v341 = vpop.f32.mrb[0].mxu0
        %v342 = vadd.f32 0.0, %v341
        %v343 = vpop.f32.mrb[0].mxu0
        %v344 = vpop.f32.mrb[0].mxu0
        %v345 = vadd.f32 0.0, %v344
        %v346 = vpop.f32.mrb[0].mxu0
        %347 = vmatprep.mubr.bf16.mxu0 0
        %348 = vmatmul.mubr.bf16.gmra.mrb[0].mxu0 %v305
        %v349 = vpop.f32.mrb[0].mxu0
        %v350 = vadd.f32 0.0, %v349
        %v351 = vpop.f32.mrb[0].mxu0
        %v352 = vpop.f32.mrb[0].mxu0
        %v353 = vpop.f32.mrb[0].mxu0
        %354 = vdwg.mxu0
        %v355 = vadd.f32 %v283, %v342
        %v356 = vadd.f32 %v284, %v345
        %v357 = vadd.f32 %v285, %v350
        %358 = vst [vmem:[#allocation2] sm:$0xff] %v355
        %359 = vst [vmem:[#allocation2 + $0x8] sm:$0xff] %v356
        %360 = vst [vmem:[#allocation2 + $0x10] sm:$0x3f] %v357
        %v361 = vld [vmem:[%s228] sm:$0xf]
        %v362 = vld [vmem:[%s228 + $0x4] sm:$0xf]
        %v363 = vld [vmem:[%s228 + $0x8] sm:$0xf]
        %v364 = vld [vmem:[%s237 + $0x8] sm:$0xf]
        %v365 = vld [vmem:[%s237 + $0xc] sm:$0xf]
        %v366 = vld [vmem:[#allocation2] sm:$0xff]
        %v367 = vld [vmem:[#allocation2 + $0x8] sm:$0xff]
        %v368 = vld [vmem:[#allocation2 + $0x10] sm:$0x3f]
        %v372 = vunpack.c.l.b16 %v361
        %v373 = vunpack.c.l.b16 %v362
        %v374 = vunpack.c.l.b16 %v363
        %v375 = vpack.c.b16 %v373, %v372
        %v376 = vpack.c.b16 %v374, %v374
        %vm377 = vsmask.f32 7424
        %v379 = vshrl.u32 %v375, 16
        %v381 = vshll.u32 %v375, 16
        %v383 = vrot.slane %v381, 1
        %v384 = vor.u32 %v379, %v383
        %v386 = vshll.u32 %v376, 16
        %v388 = vrot.slane %v386, 1
        %v389 = vsel %vm377, %v384, %v388
        %v390 = vshrl.u32 %v376, 16
        %v392 = vor.u32 %v390, %v388
        %v395 = vunpack.c.l.b16 %v364
        %v396 = vunpack.c.l.b16 %v365
        %v397 = vpack.c.b16 %v396, %v395
        %v400 = vsel %vm300, %v389, 0
        %v403 = vsel %vm300, %v392, 0
        %405 = vmatprep.subr.bf16.mxu0 0
        %406 = vmatpush1.bf16.msra.mxu0 %v397
        %407 = vmatprep.subr.bf16.mxu0 0
        %408 = vmatpush1.bf16.msra.mxu0 0
        %409 = vmatprep.subr.bf16.mxu0 0
        %410 = vmatpush1.bf16.msra.mxu0 0
        %411 = vmatprep.subr.bf16.mxu0 0
        %412 = vmatpush1.bf16.msra.mxu0 0
        %413 = vmatprep.subr.bf16.mxu0 0
        %414 = vmatpush1.bf16.msra.mxu0 0
        %415 = vmatprep.subr.bf16.mxu0 0
        %416 = vmatpush1.bf16.msra.mxu0 0
        %417 = vmatprep.subr.bf16.mxu0 0
        %418 = vmatpush1.bf16.msra.mxu0 0
        %419 = vmatprep.subr.bf16.mxu0 0
        %420 = vmatpush1.bf16.msra.mxu0 0
        %421 = vmatprep.subr.bf16.mxu0 0
        %422 = vmatpush1.bf16.msra.mxu0 0
        %423 = vmatprep.subr.bf16.mxu0 0
        %424 = vmatpush1.bf16.msra.mxu0 0
        %425 = vmatprep.subr.bf16.mxu0 0
        %426 = vmatpush1.bf16.msra.mxu0 0
        %427 = vmatprep.subr.bf16.mxu0 0
        %428 = vmatpush1.bf16.msra.mxu0 0
        %429 = vmatprep.subr.bf16.mxu0 0
        %430 = vmatpush1.bf16.msra.mxu0 0
        %431 = vmatprep.subr.bf16.mxu0 0
        %432 = vmatpush1.bf16.msra.mxu0 0
        %433 = vmatprep.subr.bf16.mxu0 0
        %434 = vmatpush1.bf16.msra.mxu0 0
        %435 = vmatprep.subr.bf16.mxu0 0
        %436 = vmatpush1.bf16.msra.mxu0 0
        %437 = vmatprep.mubr.bf16.mxu0 0
        %438 = vmatmul.mubr.bf16.gmra.mrb[0].mxu0 %v400
        %v439 = vpop.f32.mrb[0].mxu0
        %v440 = vadd.f32 0.0, %v439
        %v441 = vpop.f32.mrb[0].mxu0
        %v442 = vpop.f32.mrb[0].mxu0
        %v443 = vadd.f32 0.0, %v442
        %v444 = vpop.f32.mrb[0].mxu0
        %445 = vmatprep.mubr.bf16.mxu0 0
        %446 = vmatmul.mubr.bf16.gmra.mrb[0].mxu0 %v403
        %v447 = vpop.f32.mrb[0].mxu0
        %v448 = vadd.f32 0.0, %v447
        %v449 = vpop.f32.mrb[0].mxu0
        %v450 = vpop.f32.mrb[0].mxu0
        %v451 = vpop.f32.mrb[0].mxu0
        %452 = vdwg.mxu0
        %v453 = vadd.f32 %v366, %v440
        %v454 = vadd.f32 %v367, %v443
        %v455 = vadd.f32 %v368, %v448
        %456 = vst [vmem:[#allocation2] sm:$0xff] %v453
        %457 = vst [vmem:[#allocation2 + $0x8] sm:$0xff] %v454
        %458 = vst [vmem:[#allocation2 + $0x10] sm:$0x3f] %v455
        %v459 = vld [vmem:[%s228] sm:$0xe]
        %v460 = vld [vmem:[%s228 + $0x4] sm:$0xf]
        %v461 = vld [vmem:[%s228 + $0x8] sm:$0xf]
        %v462 = vld [vmem:[%s237 + $0x10] sm:$0xf]
        %v463 = vld [vmem:[%s237 + $0x14] sm:$0xf]
        %v464 = vld [vmem:[#allocation2] sm:$0xff]
        %v465 = vld [vmem:[#allocation2 + $0x8] sm:$0xff]
        %v466 = vld [vmem:[#allocation2 + $0x10] sm:$0x3f]
        %v470 = vunpack.c.l.b16 %v459
        %v471 = vunpack.c.l.b16 %v460
        %v472 = vunpack.c.l.b16 %v461
        %v473 = vpack.c.b16 %v471, %v470
        %v474 = vpack.c.b16 %v472, %v472
        %vm475 = vcmask 1046528
        %v476 = vrot.slane %v473, 1
        %v477 = vrot.slane %v474, 1
        %v478 = vsel %vm475, %v476, %v477
        %v481 = vunpack.c.l.b16 %v462
        %v482 = vunpack.c.l.b16 %v463
        %v483 = vpack.c.b16 %v482, %v481
        %v486 = vsel %vm300, %v478, 0
        %v489 = vsel %vm300, %v477, 0
        %491 = vmatprep.subr.bf16.mxu0 0
        %492 = vmatpush1.bf16.msra.mxu0 %v483
        %493 = vmatprep.subr.bf16.mxu0 0
        %494 = vmatpush1.bf16.msra.mxu0 0
        %495 = vmatprep.subr.bf16.mxu0 0
        %496 = vmatpush1.bf16.msra.mxu0 0
        %497 = vmatprep.subr.bf16.mxu0 0
        %498 = vmatpush1.bf16.msra.mxu0 0
        %499 = vmatprep.subr.bf16.mxu0 0
        %500 = vmatpush1.bf16.msra.mxu0 0
        %501 = vmatprep.subr.bf16.mxu0 0
        %502 = vmatpush1.bf16.msra.mxu0 0
        %503 = vmatprep.subr.bf16.mxu0 0
        %504 = vmatpush1.bf16.msra.mxu0 0
        %505 = vmatprep.subr.bf16.mxu0 0
        %506 = vmatpush1.bf16.msra.mxu0 0
        %507 = vmatprep.subr.bf16.mxu0 0
        %508 = vmatpush1.bf16.msra.mxu0 0
        %509 = vmatprep.subr.bf16.mxu0 0
        %510 = vmatpush1.bf16.msra.mxu0 0
        %511 = vmatprep.subr.bf16.mxu0 0
        %512 = vmatpush1.bf16.msra.mxu0 0
        %513 = vmatprep.subr.bf16.mxu0 0
        %514 = vmatpush1.bf16.msra.mxu0 0
        %515 = vmatprep.subr.bf16.mxu0 0
        %516 = vmatpush1.bf16.msra.mxu0 0
        %517 = vmatprep.subr.bf16.mxu0 0
        %518 = vmatpush1.bf16.msra.mxu0 0
        %519 = vmatprep.subr.bf16.mxu0 0
        %520 = vmatpush1.bf16.msra.mxu0 0
        %521 = vmatprep.subr.bf16.mxu0 0
        %522 = vmatpush1.bf16.msra.mxu0 0
        %523 = vmatprep.mubr.bf16.mxu0 0
        %524 = vmatmul.mubr.bf16.gmra.mrb[0].mxu0 %v486
        %v525 = vpop.f32.mrb[0].mxu0
        %v526 = vadd.f32 0.0, %v525
        %v527 = vpop.f32.mrb[0].mxu0
        %v528 = vpop.f32.mrb[0].mxu0
        %v529 = vadd.f32 0.0, %v528
        %v530 = vpop.f32.mrb[0].mxu0
        %531 = vmatprep.mubr.bf16.mxu0 0
        %532 = vmatmul.mubr.bf16.gmra.mrb[0].mxu0 %v489
        %v533 = vpop.f32.mrb[0].mxu0
        %v534 = vadd.f32 0.0, %v533
        %v535 = vpop.f32.mrb[0].mxu0
        %v536 = vpop.f32.mrb[0].mxu0
        %v537 = vpop.f32.mrb[0].mxu0
        %538 = vdwg.mxu0
        %v539 = vadd.f32 %v464, %v526
        %v540 = vadd.f32 %v465, %v529
        %v541 = vadd.f32 %v466, %v534
        %542 = vst [vmem:[#allocation2] sm:$0xff] %v539
        %543 = vst [vmem:[#allocation2 + $0x8] sm:$0xff] %v540
        %544 = vst [vmem:[#allocation2 + $0x10] sm:$0x3f] %v541
        %v545 = vld [vmem:[%s228] sm:$0x8]
        %v546 = vld [vmem:[%s228 + $0x4] sm:$0xf]
        %v547 = vld [vmem:[%s228 + $0x8] sm:$0xf]
        %v548 = vld [vmem:[%s228 + $0xc] sm:$0x3]
        %v549 = vld [vmem:[%s237 + $0x18] sm:$0xf]
        %v550 = vld [vmem:[%s237 + $0x1c] sm:$0xf]
        %v551 = vld [vmem:[#allocation2] sm:$0xff]
        %v552 = vld [vmem:[#allocation2 + $0x8] sm:$0xff]
        %v553 = vld [vmem:[#allocation2 + $0x10] sm:$0x3f]
        %v558 = vunpack.c.l.b16 %v545
        %v559 = vunpack.c.l.b16 %v546
        %v560 = vunpack.c.l.b16 %v547
        %v561 = vunpack.c.l.b16 %v548
        %v562 = vpack.c.b16 %v559, %v558
        %v563 = vpack.c.b16 %v561, %v560
        %vm564 = vcmask 1044480
        %v565 = vrot.slane %v562, 3
        %v566 = vrot.slane %v563, 3
        %v567 = vsel %vm564, %v565, %v566
        %v570 = vunpack.c.l.b16 %v549
        %v571 = vunpack.c.l.b16 %v550
        %v572 = vpack.c.b16 %v571, %v570
        %v575 = vsel %vm300, %v567, 0
        %v578 = vsel %vm300, %v566, 0
        %580 = vmatprep.subr.bf16.mxu0 0
        %581 = vmatpush1.bf16.msra.mxu0 %v572
        %582 = vmatprep.subr.bf16.mxu0 0
        %583 = vmatpush1.bf16.msra.mxu0 0
        %584 = vmatprep.subr.bf16.mxu0 0
        %585 = vmatpush1.bf16.msra.mxu0 0
        %586 = vmatprep.subr.bf16.mxu0 0
        %587 = vmatpush1.bf16.msra.mxu0 0
        %588 = vmatprep.subr.bf16.mxu0 0
        %589 = vmatpush1.bf16.msra.mxu0 0
        %590 = vmatprep.subr.bf16.mxu0 0
        %591 = vmatpush1.bf16.msra.mxu0 0
        %592 = vmatprep.subr.bf16.mxu0 0
        %593 = vmatpush1.bf16.msra.mxu0 0
        %594 = vmatprep.subr.bf16.mxu0 0
        %595 = vmatpush1.bf16.msra.mxu0 0
        %596 = vmatprep.subr.bf16.mxu0 0
        %597 = vmatpush1.bf16.msra.mxu0 0
        %598 = vmatprep.subr.bf16.mxu0 0
        %599 = vmatpush1.bf16.msra.mxu0 0
        %600 = vmatprep.subr.bf16.mxu0 0
        %601 = vmatpush1.bf16.msra.mxu0 0
        %602 = vmatprep.subr.bf16.mxu0 0
        %603 = vmatpush1.bf16.msra.mxu0 0
        %604 = vmatprep.subr.bf16.mxu0 0
        %605 = vmatpush1.bf16.msra.mxu0 0
        %606 = vmatprep.subr.bf16.mxu0 0
        %607 = vmatpush1.bf16.msra.mxu0 0
        %608 = vmatprep.subr.bf16.mxu0 0
        %609 = vmatpush1.bf16.msra.mxu0 0
        %610 = vmatprep.subr.bf16.mxu0 0
        %611 = vmatpush1.bf16.msra.mxu0 0
        %612 = vmatprep.mubr.bf16.mxu0 0
        %613 = vmatmul.mubr.bf16.gmra.mrb[0].mxu0 %v575
        %v614 = vpop.f32.mrb[0].mxu0
        %v615 = vadd.f32 0.0, %v614
        %v616 = vpop.f32.mrb[0].mxu0
        %v617 = vpop.f32.mrb[0].mxu0
        %v618 = vadd.f32 0.0, %v617
        %v619 = vpop.f32.mrb[0].mxu0
        %620 = vmatprep.mubr.bf16.mxu0 0
        %621 = vmatmul.mubr.bf16.gmra.mrb[0].mxu0 %v578
        %v622 = vpop.f32.mrb[0].mxu0
        %v623 = vadd.f32 0.0, %v622
        %v624 = vpop.f32.mrb[0].mxu0
        %v625 = vpop.f32.mrb[0].mxu0
        %v626 = vpop.f32.mrb[0].mxu0
        %627 = vdwg.mxu0
        %v628 = vadd.f32 %v551, %v615
        %v629 = vadd.f32 %v552, %v618
        %v630 = vadd.f32 %v553, %v623
        %631 = vst [vmem:[#allocation2] sm:$0xff] %v628
        %632 = vst [vmem:[#allocation2 + $0x8] sm:$0xff] %v629
        %633 = vst [vmem:[#allocation2 + $0x10] sm:$0x3f] %v630
        %v634 = vld [vmem:[%s228] sm:$0x8]
        %v635 = vld [vmem:[%s228 + $0x4] sm:$0xf]
        %v636 = vld [vmem:[%s228 + $0x8] sm:$0xf]
        %v637 = vld [vmem:[%s228 + $0xc] sm:$0x7]
        %v638 = vld [vmem:[%s237 + $0x20] sm:$0xf]
        %v639 = vld [vmem:[%s237 + $0x24] sm:$0xf]
        %v640 = vld [vmem:[#allocation2] sm:$0xff]
        %v641 = vld [vmem:[#allocation2 + $0x8] sm:$0xff]
        %v642 = vld [vmem:[#allocation2 + $0x10] sm:$0x3f]
        %v647 = vunpack.c.l.b16 %v634
        %v648 = vunpack.c.l.b16 %v635
        %v649 = vunpack.c.l.b16 %v636
        %v650 = vunpack.c.l.b16 %v637
        %v651 = vpack.c.b16 %v648, %v647
        %v652 = vpack.c.b16 %v650, %v649
        %vm653 = vsmask.f32 4352
        %v655 = vshrl.u32 %v651, 16
        %v657 = vrot.slane %v655, 3
        %v658 = vshll.u32 %v651, 16
        %v660 = vrot.slane %v658, 4
        %v661 = vor.u32 %v657, %v660
        %v663 = vshrl.u32 %v652, 16
        %v665 = vrot.slane %v663, 3
        %v666 = vshll.u32 %v652, 16
        %v668 = vrot.slane %v666, 4
        %v669 = vor.u32 %v665, %v668
        %v670 = vsel %vm653, %v661, %v669
        %v673 = vunpack.c.l.b16 %v638
        %v674 = vunpack.c.l.b16 %v639
        %v675 = vpack.c.b16 %v674, %v673
        %v678 = vsel %vm300, %v670, 0
        %v681 = vsel %vm300, %v669, 0
        %683 = vmatprep.subr.bf16.mxu0 0
        %684 = vmatpush1.bf16.msra.mxu0 %v675
        %685 = vmatprep.subr.bf16.mxu0 0
        %686 = vmatpush1.bf16.msra.mxu0 0
        %687 = vmatprep.subr.bf16.mxu0 0
        %688 = vmatpush1.bf16.msra.mxu0 0
        %689 = vmatprep.subr.bf16.mxu0 0
        %690 = vmatpush1.bf16.msra.mxu0 0
        %691 = vmatprep.subr.bf16.mxu0 0
        %692 = vmatpush1.bf16.msra.mxu0 0
        %693 = vmatprep.subr.bf16.mxu0 0
        %694 = vmatpush1.bf16.msra.mxu0 0
        %695 = vmatprep.subr.bf16.mxu0 0
        %696 = vmatpush1.bf16.msra.mxu0 0
        %697 = vmatprep.subr.bf16.mxu0 0
        %698 = vmatpush1.bf16.msra.mxu0 0
        %699 = vmatprep.subr.bf16.mxu0 0
        %700 = vmatpush1.bf16.msra.mxu0 0
        %701 = vmatprep.subr.bf16.mxu0 0
        %702 = vmatpush1.bf16.msra.mxu0 0
        %703 = vmatprep.subr.bf16.mxu0 0
        %704 = vmatpush1.bf16.msra.mxu0 0
        %705 = vmatprep.subr.bf16.mxu0 0
        %706 = vmatpush1.bf16.msra.mxu0 0
        %707 = vmatprep.subr.bf16.mxu0 0
        %708 = vmatpush1.bf16.msra.mxu0 0
        %709 = vmatprep.subr.bf16.mxu0 0
        %710 = vmatpush1.bf16.msra.mxu0 0
        %711 = vmatprep.subr.bf16.mxu0 0
        %712 = vmatpush1.bf16.msra.mxu0 0
        %713 = vmatprep.subr.bf16.mxu0 0
        %714 = vmatpush1.bf16.msra.mxu0 0
        %715 = vmatprep.mubr.bf16.mxu0 0
        %716 = vmatmul.mubr.bf16.gmra.mrb[0].mxu0 %v678
        %v717 = vpop.f32.mrb[0].mxu0
        %v718 = vadd.f32 0.0, %v717
        %v719 = vpop.f32.mrb[0].mxu0
        %v720 = vpop.f32.mrb[0].mxu0
        %v721 = vadd.f32 0.0, %v720
        %v722 = vpop.f32.mrb[0].mxu0
        %723 = vmatprep.mubr.bf16.mxu0 0
        %724 = vmatmul.mubr.bf16.gmra.mrb[0].mxu0 %v681
        %v725 = vpop.f32.mrb[0].mxu0
        %v726 = vadd.f32 0.0, %v725
        %v727 = vpop.f32.mrb[0].mxu0
        %v728 = vpop.f32.mrb[0].mxu0
        %v729 = vpop.f32.mrb[0].mxu0
        %730 = vdwg.mxu0
        %v731 = vadd.f32 %v640, %v718
        %v732 = vadd.f32 %v641, %v721
        %v733 = vadd.f32 %v642, %v726
        %734 = vst [vmem:[#allocation2] sm:$0xff] %v731
        %735 = vst [vmem:[#allocation2 + $0x8] sm:$0xff] %v732
        %736 = vst [vmem:[#allocation2 + $0x10] sm:$0x3f] %v733
        %v737 = vld [vmem:[%s228 + $0x4] sm:$0xf]
        %v738 = vld [vmem:[%s228 + $0x8] sm:$0xf]
        %v739 = vld [vmem:[%s228 + $0xc] sm:$0x7]
        %v740 = vld [vmem:[%s237 + $0x28] sm:$0xf]
        %v741 = vld [vmem:[%s237 + $0x2c] sm:$0xf]
        %v742 = vld [vmem:[#allocation2] sm:$0xff]
        %v743 = vld [vmem:[#allocation2 + $0x8] sm:$0xff]
        %v744 = vld [vmem:[#allocation2 + $0x10] sm:$0x3f]
        %v748 = vunpack.c.l.b16 %v737
        %v749 = vunpack.c.l.b16 %v738
        %v750 = vunpack.c.l.b16 %v739
        %v751 = vpack.c.b16 %v749, %v748
        %v752 = vpack.c.b16 %v750, %v750
        %v755 = vunpack.c.l.b16 %v740
        %v756 = vunpack.c.l.b16 %v741
        %v757 = vpack.c.b16 %v756, %v755
        %v760 = vsel %vm300, %v751, 0
        %v763 = vsel %vm300, %v752, 0
        %765 = vmatprep.subr.bf16.mxu0 0
        %766 = vmatpush1.bf16.msra.mxu0 %v757
        %767 = vmatprep.subr.bf16.mxu0 0
        %768 = vmatpush1.bf16.msra.mxu0 0
        %769 = vmatprep.subr.bf16.mxu0 0
        %770 = vmatpush1.bf16.msra.mxu0 0
        %771 = vmatprep.subr.bf16.mxu0 0
        %772 = vmatpush1.bf16.msra.mxu0 0
        %773 = vmatprep.subr.bf16.mxu0 0
        %774 = vmatpush1.bf16.msra.mxu0 0
        %775 = vmatprep.subr.bf16.mxu0 0
        %776 = vmatpush1.bf16.msra.mxu0 0
        %777 = vmatprep.subr.bf16.mxu0 0
        %778 = vmatpush1.bf16.msra.mxu0 0
        %779 = vmatprep.subr.bf16.mxu0 0
        %780 = vmatpush1.bf16.msra.mxu0 0
        %781 = vmatprep.subr.bf16.mxu0 0
        %782 = vmatpush1.bf16.msra.mxu0 0
        %783 = vmatprep.subr.bf16.mxu0 0
        %784 = vmatpush1.bf16.msra.mxu0 0
        %785 = vmatprep.subr.bf16.mxu0 0
        %786 = vmatpush1.bf16.msra.mxu0 0
        %787 = vmatprep.subr.bf16.mxu0 0
        %788 = vmatpush1.bf16.msra.mxu0 0
        %789 = vmatprep.subr.bf16.mxu0 0
        %790 = vmatpush1.bf16.msra.mxu0 0
        %791 = vmatprep.subr.bf16.mxu0 0
        %792 = vmatpush1.bf16.msra.mxu0 0
        %793 = vmatprep.subr.bf16.mxu0 0
        %794 = vmatpush1.bf16.msra.mxu0 0
        %795 = vmatprep.subr.bf16.mxu0 0
        %796 = vmatpush1.bf16.msra.mxu0 0
        %797 = vmatprep.mubr.bf16.mxu0 0
        %798 = vmatmul.mubr.bf16.gmra.mrb[0].mxu0 %v760
        %v799 = vpop.f32.mrb[0].mxu0
        %v800 = vadd.f32 0.0, %v799
        %v801 = vpop.f32.mrb[0].mxu0
        %v802 = vpop.f32.mrb[0].mxu0
        %v803 = vadd.f32 0.0, %v802
        %v804 = vpop.f32.mrb[0].mxu0
        %805 = vmatprep.mubr.bf16.mxu0 0
        %806 = vmatmul.mubr.bf16.gmra.mrb[0].mxu0 %v763
        %v807 = vpop.f32.mrb[0].mxu0
        %v808 = vadd.f32 0.0, %v807
        %v809 = vpop.f32.mrb[0].mxu0
        %v810 = vpop.f32.mrb[0].mxu0
        %v811 = vpop.f32.mrb[0].mxu0
        %812 = vdwg.mxu0
        %v813 = vadd.f32 %v742, %v800
        %v814 = vadd.f32 %v743, %v803
        %v815 = vadd.f32 %v744, %v808
        %816 = vst [vmem:[#allocation2] sm:$0xff] %v813
        %817 = vst [vmem:[#allocation2 + $0x8] sm:$0xff] %v814
        %818 = vst [vmem:[#allocation2 + $0x10] sm:$0x3f] %v815
        %v819 = vld [vmem:[%s228 + $0x4] sm:$0xc]
        %v820 = vld [vmem:[%s228 + $0x8] sm:$0xf]
        %v821 = vld [vmem:[%s228 + $0xc] sm:$0xf]
        %v822 = vld [vmem:[%s228 + $0x10] sm:$0x1]
        %v823 = vld [vmem:[%s237 + $0x30] sm:$0xf]
        %v824 = vld [vmem:[%s237 + $0x34] sm:$0xf]
        %v825 = vld [vmem:[#allocation2] sm:$0xff]
        %v826 = vld [vmem:[#allocation2 + $0x8] sm:$0xff]
        %v827 = vld [vmem:[#allocation2 + $0x10] sm:$0x3f]
        %v832 = vunpack.c.l.b16 %v819
        %v833 = vunpack.c.l.b16 %v820
        %v834 = vunpack.c.l.b16 %v821
        %v835 = vunpack.c.l.b16 %v822
        %v836 = vpack.c.b16 %v833, %v832
        %v837 = vpack.c.b16 %v835, %v834
        %vm838 = vcmask 1045504
        %v839 = vrot.slane %v836, 2
        %v840 = vrot.slane %v837, 2
        %v841 = vsel %vm838, %v839, %v840
        %v844 = vunpack.c.l.b16 %v823
        %v845 = vunpack.c.l.b16 %v824
        %v846 = vpack.c.b16 %v845, %v844
        %v849 = vsel %vm300, %v841, 0
        %v852 = vsel %vm300, %v840, 0
        %854 = vmatprep.subr.bf16.mxu0 0
        %855 = vmatpush1.bf16.msra.mxu0 %v846
        %856 = vmatprep.subr.bf16.mxu0 0
        %857 = vmatpush1.bf16.msra.mxu0 0
        %858 = vmatprep.subr.bf16.mxu0 0
        %859 = vmatpush1.bf16.msra.mxu0 0
        %860 = vmatprep.subr.bf16.mxu0 0
        %861 = vmatpush1.bf16.msra.mxu0 0
        %862 = vmatprep.subr.bf16.mxu0 0
        %863 = vmatpush1.bf16.msra.mxu0 0
        %864 = vmatprep.subr.bf16.mxu0 0
        %865 = vmatpush1.bf16.msra.mxu0 0
        %866 = vmatprep.subr.bf16.mxu0 0
        %867 = vmatpush1.bf16.msra.mxu0 0
        %868 = vmatprep.subr.bf16.mxu0 0
        %869 = vmatpush1.bf16.msra.mxu0 0
        %870 = vmatprep.subr.bf16.mxu0 0
        %871 = vmatpush1.bf16.msra.mxu0 0
        %872 = vmatprep.subr.bf16.mxu0 0
        %873 = vmatpush1.bf16.msra.mxu0 0
        %874 = vmatprep.subr.bf16.mxu0 0
        %875 = vmatpush1.bf16.msra.mxu0 0
        %876 = vmatprep.subr.bf16.mxu0 0
        %877 = vmatpush1.bf16.msra.mxu0 0
        %878 = vmatprep.subr.bf16.mxu0 0
        %879 = vmatpush1.bf16.msra.mxu0 0
        %880 = vmatprep.subr.bf16.mxu0 0
        %881 = vmatpush1.bf16.msra.mxu0 0
        %882 = vmatprep.subr.bf16.mxu0 0
        %883 = vmatpush1.bf16.msra.mxu0 0
        %884 = vmatprep.subr.bf16.mxu0 0
        %885 = vmatpush1.bf16.msra.mxu0 0
        %886 = vmatprep.mubr.bf16.mxu0 0
        %887 = vmatmul.mubr.bf16.gmra.mrb[0].mxu0 %v849
        %v888 = vpop.f32.mrb[0].mxu0
        %v889 = vadd.f32 0.0, %v888
        %v890 = vpop.f32.mrb[0].mxu0
        %v891 = vpop.f32.mrb[0].mxu0
        %v892 = vadd.f32 0.0, %v891
        %v893 = vpop.f32.mrb[0].mxu0
        %894 = vmatprep.mubr.bf16.mxu0 0
        %895 = vmatmul.mubr.bf16.gmra.mrb[0].mxu0 %v852
        %v896 = vpop.f32.mrb[0].mxu0
        %v897 = vadd.f32 0.0, %v896
        %v898 = vpop.f32.mrb[0].mxu0
        %v899 = vpop.f32.mrb[0].mxu0
        %v900 = vpop.f32.mrb[0].mxu0
        %901 = vdwg.mxu0
        %v902 = vadd.f32 %v825, %v889
        %v903 = vadd.f32 %v826, %v892
        %v904 = vadd.f32 %v827, %v897
        %905 = vst [vmem:[#allocation2] sm:$0xff] %v902
        %906 = vst [vmem:[#allocation2 + $0x8] sm:$0xff] %v903
        %907 = vst [vmem:[#allocation2 + $0x10] sm:$0x3f] %v904
        %v908 = vld [vmem:[%s228 + $0x4] sm:$0xc]
        %v909 = vld [vmem:[%s228 + $0x8] sm:$0xf]
        %v910 = vld [vmem:[%s228 + $0xc] sm:$0xf]
        %v911 = vld [vmem:[%s228 + $0x10] sm:$0x3]
        %v912 = vld [vmem:[%s237 + $0x38] sm:$0xf]
        %v913 = vld [vmem:[%s237 + $0x3c] sm:$0xf]
        %v914 = vld [vmem:[#allocation2] sm:$0xff]
        %v915 = vld [vmem:[#allocation2 + $0x8] sm:$0xff]
        %v916 = vld [vmem:[#allocation2 + $0x10] sm:$0x3f]
        %v921 = vunpack.c.l.b16 %v908
        %v922 = vunpack.c.l.b16 %v909
        %v923 = vunpack.c.l.b16 %v910
        %v924 = vunpack.c.l.b16 %v911
        %v925 = vpack.c.b16 %v922, %v921
        %v926 = vpack.c.b16 %v924, %v923
        %vm927 = vsmask.f32 5376
        %v929 = vshrl.u32 %v925, 16
        %v931 = vrot.slane %v929, 2
        %v932 = vshll.u32 %v925, 16
        %v934 = vrot.slane %v932, 3
        %v935 = vor.u32 %v931, %v934
        %v937 = vshrl.u32 %v926, 16
        %v939 = vrot.slane %v937, 2
        %v940 = vshll.u32 %v926, 16
        %v942 = vrot.slane %v940, 3
        %v943 = vor.u32 %v939, %v942
        %v944 = vsel %vm927, %v935, %v943
        %v947 = vunpack.c.l.b16 %v912
        %v948 = vunpack.c.l.b16 %v913
        %v949 = vpack.c.b16 %v948, %v947
        %v952 = vsel %vm300, %v944, 0
        %v955 = vsel %vm300, %v943, 0
        %957 = vmatprep.subr.bf16.mxu0 0
        %958 = vmatpush1.bf16.msra.mxu0 %v949
        %959 = vmatprep.subr.bf16.mxu0 0
        %960 = vmatpush1.bf16.msra.mxu0 0
        %961 = vmatprep.subr.bf16.mxu0 0
        %962 = vmatpush1.bf16.msra.mxu0 0
        %963 = vmatprep.subr.bf16.mxu0 0
        %964 = vmatpush1.bf16.msra.mxu0 0
        %965 = vmatprep.subr.bf16.mxu0 0
        %966 = vmatpush1.bf16.msra.mxu0 0
        %967 = vmatprep.subr.bf16.mxu0 0
        %968 = vmatpush1.bf16.msra.mxu0 0
        %969 = vmatprep.subr.bf16.mxu0 0
        %970 = vmatpush1.bf16.msra.mxu0 0
        %971 = vmatprep.subr.bf16.mxu0 0
        %972 = vmatpush1.bf16.msra.mxu0 0
        %973 = vmatprep.subr.bf16.mxu0 0
        %974 = vmatpush1.bf16.msra.mxu0 0
        %975 = vmatprep.subr.bf16.mxu0 0
        %976 = vmatpush1.bf16.msra.mxu0 0
        %977 = vmatprep.subr.bf16.mxu0 0
        %978 = vmatpush1.bf16.msra.mxu0 0
        %979 = vmatprep.subr.bf16.mxu0 0
        %980 = vmatpush1.bf16.msra.mxu0 0
        %981 = vmatprep.subr.bf16.mxu0 0
        %982 = vmatpush1.bf16.msra.mxu0 0
        %983 = vmatprep.subr.bf16.mxu0 0
        %984 = vmatpush1.bf16.msra.mxu0 0
        %985 = vmatprep.subr.bf16.mxu0 0
        %986 = vmatpush1.bf16.msra.mxu0 0
        %987 = vmatprep.subr.bf16.mxu0 0
        %988 = vmatpush1.bf16.msra.mxu0 0
        %989 = vmatprep.mubr.bf16.mxu0 0
        %990 = vmatmul.mubr.bf16.gmra.mrb[0].mxu0 %v952
        %v991 = vpop.f32.mrb[0].mxu0
        %v992 = vadd.f32 0.0, %v991
        %v993 = vpop.f32.mrb[0].mxu0
        %v994 = vpop.f32.mrb[0].mxu0
        %v995 = vadd.f32 0.0, %v994
        %v996 = vpop.f32.mrb[0].mxu0
        %997 = vmatprep.mubr.bf16.mxu0 0
        %998 = vmatmul.mubr.bf16.gmra.mrb[0].mxu0 %v955
        %v999 = vpop.f32.mrb[0].mxu0
        %v1000 = vadd.f32 0.0, %v999
        %v1001 = vpop.f32.mrb[0].mxu0
        %v1002 = vpop.f32.mrb[0].mxu0
        %v1003 = vpop.f32.mrb[0].mxu0
        %1004 = vdwg.mxu0
        %v1005 = vadd.f32 %v914, %v992
        %v1006 = vadd.f32 %v915, %v995
        %v1007 = vadd.f32 %v916, %v1000
        %1008 = vst [vmem:[#allocation2] sm:$0xff] %v1005
        %1009 = vst [vmem:[#allocation2 + $0x8] sm:$0xff] %v1006
        %1010 = vst [vmem:[#allocation2 + $0x10] sm:$0x3f] %v1007
        %v1011 = vld [vmem:[%s228 + $0x4] sm:$0x8]
        %v1012 = vld [vmem:[%s228 + $0x8] sm:$0xf]
        %v1013 = vld [vmem:[%s228 + $0xc] sm:$0xf]
        %v1014 = vld [vmem:[%s228 + $0x10] sm:$0x3]
        %v1015 = vld [vmem:[%s237 + $0x40] sm:$0xf]
        %v1016 = vld [vmem:[%s237 + $0x44] sm:$0xf]
        %v1017 = vld [vmem:[#allocation2] sm:$0xff]
        %v1018 = vld [vmem:[#allocation2 + $0x8] sm:$0xff]
        %v1019 = vld [vmem:[#allocation2 + $0x10] sm:$0x3f]
        %v1024 = vunpack.c.l.b16 %v1011
        %v1025 = vunpack.c.l.b16 %v1012
        %v1026 = vunpack.c.l.b16 %v1013
        %v1027 = vunpack.c.l.b16 %v1014
        %v1028 = vpack.c.b16 %v1025, %v1024
        %v1029 = vpack.c.b16 %v1027, %v1026
        %v1030 = vrot.slane %v1028, 3
        %v1031 = vrot.slane %v1029, 3
        %v1032 = vsel %vm564, %v1030, %v1031
        %v1035 = vunpack.c.l.b16 %v1015
        %v1036 = vunpack.c.l.b16 %v1016
        %v1037 = vpack.c.b16 %v1036, %v1035
        %v1040 = vsel %vm300, %v1032, 0
        %v1043 = vsel %vm300, %v1031, 0
        %1045 = vmatprep.subr.bf16.mxu0 0
        %1046 = vmatpush1.bf16.msra.mxu0 %v1037
        %1047 = vmatprep.subr.bf16.mxu0 0
        %1048 = vmatpush1.bf16.msra.mxu0 0
        %1049 = vmatprep.subr.bf16.mxu0 0
        %1050 = vmatpush1.bf16.msra.mxu0 0
        %1051 = vmatprep.subr.bf16.mxu0 0
        %1052 = vmatpush1.bf16.msra.mxu0 0
        %1053 = vmatprep.subr.bf16.mxu0 0
        %1054 = vmatpush1.bf16.msra.mxu0 0
        %1055 = vmatprep.subr.bf16.mxu0 0
        %1056 = vmatpush1.bf16.msra.mxu0 0
        %1057 = vmatprep.subr.bf16.mxu0 0
        %1058 = vmatpush1.bf16.msra.mxu0 0
        %1059 = vmatprep.subr.bf16.mxu0 0
        %1060 = vmatpush1.bf16.msra.mxu0 0
        %1061 = vmatprep.subr.bf16.mxu0 0
        %1062 = vmatpush1.bf16.msra.mxu0 0
        %1063 = vmatprep.subr.bf16.mxu0 0
        %1064 = vmatpush1.bf16.msra.mxu0 0
        %1065 = vmatprep.subr.bf16.mxu0 0
        %1066 = vmatpush1.bf16.msra.mxu0 0
        %1067 = vmatprep.subr.bf16.mxu0 0
        %1068 = vmatpush1.bf16.msra.mxu0 0
        %1069 = vmatprep.subr.bf16.mxu0 0
        %1070 = vmatpush1.bf16.msra.mxu0 0
        %1071 = vmatprep.subr.bf16.mxu0 0
        %1072 = vmatpush1.bf16.msra.mxu0 0
        %1073 = vmatprep.subr.bf16.mxu0 0
        %1074 = vmatpush1.bf16.msra.mxu0 0
        %1075 = vmatprep.subr.bf16.mxu0 0
        %1076 = vmatpush1.bf16.msra.mxu0 0
        %1077 = vmatprep.mubr.bf16.mxu0 0
        %1078 = vmatmul.mubr.bf16.gmra.mrb[0].mxu0 %v1040
        %v1079 = vpop.f32.mrb[0].mxu0
        %v1080 = vadd.f32 0.0, %v1079
        %v1081 = vpop.f32.mrb[0].mxu0
        %v1082 = vpop.f32.mrb[0].mxu0
        %v1083 = vadd.f32 0.0, %v1082
        %v1084 = vpop.f32.mrb[0].mxu0
        %1085 = vmatprep.mubr.bf16.mxu0 0
        %1086 = vmatmul.mubr.bf16.gmra.mrb[0].mxu0 %v1043
        %v1087 = vpop.f32.mrb[0].mxu0
        %v1088 = vadd.f32 0.0, %v1087
        %v1089 = vpop.f32.mrb[0].mxu0
        %v1090 = vpop.f32.mrb[0].mxu0
        %v1091 = vpop.f32.mrb[0].mxu0
        %1092 = vdwg.mxu0
        %v1093 = vadd.f32 %v1017, %v1080
        %v1094 = vadd.f32 %v1018, %v1083
        %v1095 = vadd.f32 %v1019, %v1088
        %1096 = vst [vmem:[#allocation2] sm:$0xff] %v1093
        %1097 = vst [vmem:[#allocation2 + $0x8] sm:$0xff] %v1094
        %1098 = vst [vmem:[#allocation2 + $0x10] sm:$0x3f] %v1095
        %p1099 = scmp.eq.s32.totalorder %s30, 2
        // Predicated region
        $region49: #{_lambda_.11} parent=31 // pred_check
          %p1100 = pneg %p1099
        $region50: #{_lambda_.11} parent=31 // pred_check_branch
          %1102 = sbr.rel (%p1100) target = $region52
        $region51: #{_lambda_.11} parent=31 // pred_region
          %v1103 = vld [vmem:[#allocation2] sm:$0xff]
          %v1104 = vld [vmem:[#allocation2 + $0x8] sm:$0xff]
          %v1105 = vld [vmem:[#allocation2 + $0x10] sm:$0x3f]
          %v1106 = vld [vmem:[#allocation8] sm:$0x1]
          %v1108 = vlaneseq
          %v1109 = vshrl.u32 %v1108, 7
          %v1110 = vsub.s32 0, %v1109
          %v1111 = vrot.slane %v1106, %v1110
          %v1113 = vadd.f32 %v1103, %v1111
          %v1114 = vadd.f32 %v1104, %v1111
          %v1115 = vadd.f32 %v1105, %v1111
          %1116 = vst [vmem:[%s268] sm:$0xff] %v1113
          %1117 = vst [vmem:[%s268 + $0x8] sm:$0xff] %v1114
          %1118 = vst [vmem:[%s268 + $0x10] sm:$0x3f] %v1115
        $region52: #{_lambda_.11} parent=31 // pred_fallthru
          _
        %s1119 = sand.u32 %s129, 1
        %s1120 = scalar_lea.sflag [#allocation5], %s1119
        %s1121 = sand.u32 %s129, 1
        %s1122 = smul.addr %s1121, 24
        %s1123 = scalar_lea.vmem [#allocation9], %s1122
        // Predicated region
        $region53: #{_lambda_.11} parent=31 // pred_check
          %p1124 = pneg %p139
        $region54: #{_lambda_.11} parent=31 // pred_check_branch
          %1126 = sbr.rel (%p1124) target = $region56
        $region55: #{_lambda_.11} parent=31 // pred_region
          %s1128 = ssub.s32 384, 384
          %1129 = vsyncadd %s1120, %s1128
          %s1130 = smul.addr %s29, 3
          %s1131 = smul.addr %s28, 6
          %s1132 = sadd.s32 %s1130, %s1131
          %s1133 = smul.addr %s1132, 128
          %s1134 = scalar_lea.hbm %s3, %s1133
          %s1135 = sshll.u32 %s1123, 4
          %s1136 = int_to_ptr.vmem [resolvable:$true] %s1135
          %1141 = dma.vmem_to_hbm [thread:$0]  %s1136, 384, %s1134, %s1120, 128, 128, 8
        $region56: #{_lambda_.11} parent=31 // pred_fallthru
          _
      $region32: #{_lambda_.11} parent=5 // pred_fallthru
        _
      %p1142 = scmp.le.s32.totalorder 2, %s18
      // Predicated region
      $region57: #{_lambda_.11} parent=5 // pred_check
        %p1143 = pneg %p1142
      $region58: #{_lambda_.11} parent=5 // pred_check_branch
        %1145 = sbr.rel (%p1143) target = $region60
      $region59: #{_lambda_.11} parent=5 // pred_region
        %s1146 = ssub.s32 %s18, 2
        // Predicated region
        $region61: #{_lambda_.11} parent=59 // pred_check
          %p1147 = pneg %p145
        $region62: #{_lambda_.11} parent=59 // pred_check_branch
          %1149 = sbr.rel (%p1147) target = $region64
        $region63: #{_lambda_.11} parent=59 // pred_region
          %s1150 = sand.u32 %s130, 1
          %s1151 = scalar_lea.sflag [#allocation5], %s1150
          %s1152 = sand.u32 %s130, 1
          %s1153 = smul.addr %s1152, 24
          %s1154 = scalar_lea.vmem [#allocation9], %s1153
          %1155 = dma.done %s1151, 384
        $region64: #{_lambda_.11} parent=59 // pred_fallthru
          _
      $region60: #{_lambda_.11} parent=5 // pred_fallthru
        _
    $region6: #{_lambda_.11} parent=1 // loop_footer
      %s22 = sadd.s32 1, %s18
    $region7: #{_lambda_.11} parent=1 // loop_footer_branch
      %17 = sbr.rel target = $region3
    $region8: #{_lambda_.11} parent=1 // loop_exit
      _
    %1156 = vsyncpa [#allocation4], 1
    %s1157 = scalar_lea.sflag [#allocation4], 1
    %1158 = vsyncpa %s1157, 1
    %1159 = vsyncpa [#allocation7], 1
    %s1160 = scalar_lea.sflag [#allocation7], 1
    %1161 = vsyncpa %s1160, 1
    %1162 = vsyncpa [#allocation5], 1
    %s1163 = scalar_lea.sflag [#allocation5], 1
    %1164 = vsyncpa %s1163, 1

// kernel: _lambda_.15
$region0: #{_lambda_.15}
  #allocation0 [shape = 'u32[]', space=smem, size = 0x4, offset = 0x4, fixed_abs, tag = 'smem constant byte address 0x4 - core index']
  #allocation1 [shape = 'u32[144,128]{1,0:T(1,128)}', space=vmem, size = 0x12000, scoped, tag = 'internal scratch']
  %s0 = inlined_call_operand.vmem [shape: f32[2,32,16], index: 0, kind: input, shape index: {}]
  %s1 = inlined_call_operand.vmem [shape: f32[1,16], index: 1, kind: input, shape index: {}]
  %s2 = inlined_call_operand.vmem [shape: f32[1,16], index: 2, kind: input, shape index: {}]
  %s3 = inlined_call_operand.vmem [shape: f32[16,4], index: 3, kind: input, shape index: {}]
  %s4 = inlined_call_operand.vmem [shape: f32[4,16], index: 4, kind: input, shape index: {}]
  %s5 = inlined_call_operand.hbm [shape: f32[2,32,16], index: 5, kind: output, shape index: {}]
  %s6 = sld [smem:[#allocation0]]
  $region53: #{_lambda_.15} parent=0
    _
  %s8 = ssub.s32 1, %s6
  %s9 = scalar_select 0, %s8, %s6
  $region1: #{_lambda_.15} parent=0
    #allocation2 [shape = 'u8[32768]{0}', space=vmem, size = 0x8000, scoped, tag = 'output window, operand 0']
    #allocation3 [shape = 's32[2]{0}', space=sflag, size = 0x8, scoped, tag = 'scoped memory for _lambda_.15']
    %10 = vsyncpa [#allocation3], 0
    %s11 = scalar_lea.sflag [#allocation3], 1
    %12 = vsyncpa %s11, 0
    loop: start=0, step=1, limit=4
    $region2: #{_lambda_.15} parent=1 // loop_pre_header
      _
    $region3: #{_lambda_.15} parent=1 // loop_header
      %s14 = sphi 0, %s18
      %p15 = scmp.ge.s32.totalorder %s14, 4
      %s24 = sphi 0, %s26
      %s27 = sphi 0, %s24
      %s28 = sphi 0, %s27
      %s44 = sphi 0, %s28
      %s48 = sphi 0, %s48
      %s50 = sphi 0, %s48
      %s51 = sphi 0, %s50
      %s65 = sphi 0, %s51
      %s69 = sphi 0, %s69
      %s71 = sphi 0, %s69
      %s72 = sphi 0, %s71
      %s86 = sphi 0, %s72
      %s90 = sphi 0, %s90
      %s92 = sphi 0, %s90
      %s93 = sphi 0, %s92
      %s107 = sphi 0, %s93
      %s111 = sphi 0, %s111
      %s113 = sphi 0, %s111
      %s114 = sphi 0, %s113
      %s128 = sphi 0, %s114
      %s134 = sphi 0, %s136
      %s137 = sphi 0, %s134
      %s138 = sphi 0, %s137
      %s154 = sphi 0, %s138
    $region4: #{_lambda_.15} parent=1 // loop_header_branch
      %17 = sbr.rel (%p15) target = $region8
    $region5: #{_lambda_.15} parent=1 // loop_body
      %s19 = ssub.s32 %s14, 1
      %s20 = ssub.s32 %s14, 2
      %s21 = sadd.s32 %s14, 1
      %s22 = ssub.s32 %s14, %s21
      %p23 = scmp.eq.s32.totalorder %s22, 0
      %s25 = sadd.s32 %s24, 1
      %s26 = scalar_select %p23, %s24, %s25
      %p29 = pneg %p23
      %p30 = scmp.eq.s32.totalorder %s14, 1
      %p31 = por %p29, %p30
      %p32 = scmp.ne.s32.totalorder %s24, %s27
      %p33 = scmp.eq.s32.totalorder %s14, 0
      %p34 = por %p32, %p33
      %p35 = scmp.ne.s32.totalorder %s24, %s27
      %p36 = scmp.eq.s32.totalorder %s19, 1
      %p37 = por %p35, %p36
      %p38 = scmp.ne.s32.totalorder %s27, %s28
      %p39 = scmp.eq.s32.totalorder %s19, 0
      %p40 = por %p38, %p39
      %p41 = scmp.ne.s32.totalorder %s27, %s28
      %p42 = scmp.eq.s32.totalorder %s20, 1
      %p43 = por %p41, %p42
      %p45 = scmp.ne.s32.totalorder %s28, %s44
      %p46 = scmp.eq.s32.totalorder %s20, 0
      %p47 = por %p45, %p46
      %s49 = sadd.s32 %s48, 1
      %p52 = scmp.eq.s32.totalorder %s14, 1
      %p53 = scmp.ne.s32.totalorder %s48, %s50
      %p54 = scmp.eq.s32.totalorder %s14, 0
      %p55 = por %p53, %p54
      %p56 = scmp.ne.s32.totalorder %s48, %s50
      %p57 = scmp.eq.s32.totalorder %s19, 1
      %p58 = por %p56, %p57
      %p59 = scmp.ne.s32.totalorder %s50, %s51
      %p60 = scmp.eq.s32.totalorder %s19, 0
      %p61 = por %p59, %p60
      %p62 = scmp.ne.s32.totalorder %s50, %s51
      %p63 = scmp.eq.s32.totalorder %s20, 1
      %p64 = por %p62, %p63
      %p66 = scmp.ne.s32.totalorder %s51, %s65
      %p67 = scmp.eq.s32.totalorder %s20, 0
      %p68 = por %p66, %p67
      %s70 = sadd.s32 %s69, 1
      %p73 = scmp.eq.s32.totalorder %s14, 1
      %p74 = scmp.ne.s32.totalorder %s69, %s71
      %p75 = scmp.eq.s32.totalorder %s14, 0
      %p76 = por %p74, %p75
      %p77 = scmp.ne.s32.totalorder %s69, %s71
      %p78 = scmp.eq.s32.totalorder %s19, 1
      %p79 = por %p77, %p78
      %p80 = scmp.ne.s32.totalorder %s71, %s72
      %p81 = scmp.eq.s32.totalorder %s19, 0
      %p82 = por %p80, %p81
      %p83 = scmp.ne.s32.totalorder %s71, %s72
      %p84 = scmp.eq.s32.totalorder %s20, 1
      %p85 = por %p83, %p84
      %p87 = scmp.ne.s32.totalorder %s72, %s86
      %p88 = scmp.eq.s32.totalorder %s20, 0
      %p89 = por %p87, %p88
      %s91 = sadd.s32 %s90, 1
      %p94 = scmp.eq.s32.totalorder %s14, 1
      %p95 = scmp.ne.s32.totalorder %s90, %s92
      %p96 = scmp.eq.s32.totalorder %s14, 0
      %p97 = por %p95, %p96
      %p98 = scmp.ne.s32.totalorder %s90, %s92
      %p99 = scmp.eq.s32.totalorder %s19, 1
      %p100 = por %p98, %p99
      %p101 = scmp.ne.s32.totalorder %s92, %s93
      %p102 = scmp.eq.s32.totalorder %s19, 0
      %p103 = por %p101, %p102
      %p104 = scmp.ne.s32.totalorder %s92, %s93
      %p105 = scmp.eq.s32.totalorder %s20, 1
      %p106 = por %p104, %p105
      %p108 = scmp.ne.s32.totalorder %s93, %s107
      %p109 = scmp.eq.s32.totalorder %s20, 0
      %p110 = por %p108, %p109
      %s112 = sadd.s32 %s111, 1
      %p115 = scmp.eq.s32.totalorder %s14, 1
      %p116 = scmp.ne.s32.totalorder %s111, %s113
      %p117 = scmp.eq.s32.totalorder %s14, 0
      %p118 = por %p116, %p117
      %p119 = scmp.ne.s32.totalorder %s111, %s113
      %p120 = scmp.eq.s32.totalorder %s19, 1
      %p121 = por %p119, %p120
      %p122 = scmp.ne.s32.totalorder %s113, %s114
      %p123 = scmp.eq.s32.totalorder %s19, 0
      %p124 = por %p122, %p123
      %p125 = scmp.ne.s32.totalorder %s113, %s114
      %p126 = scmp.eq.s32.totalorder %s20, 1
      %p127 = por %p125, %p126
      %p129 = scmp.ne.s32.totalorder %s114, %s128
      %p130 = scmp.eq.s32.totalorder %s20, 0
      %p131 = por %p129, %p130
      %s132 = ssub.s32 %s14, %s21
      %p133 = scmp.eq.s32.totalorder %s132, 0
      %s135 = sadd.s32 %s134, 1
      %s136 = scalar_select %p133, %s134, %s135
      %p139 = pneg %p133
      %p140 = scmp.eq.s32.totalorder %s14, 1
      %p141 = por %p139, %p140
      %p142 = scmp.ne.s32.totalorder %s134, %s137
      %p143 = scmp.eq.s32.totalorder %s14, 0
      %p144 = por %p142, %p143
      %p145 = scmp.ne.s32.totalorder %s134, %s137
      %p146 = scmp.eq.s32.totalorder %s19, 1
      %p147 = por %p145, %p146
      %p148 = scmp.ne.s32.totalorder %s137, %s138
      %p149 = scmp.eq.s32.totalorder %s19, 0
      %p150 = por %p148, %p149
      %p151 = scmp.ne.s32.totalorder %s137, %s138
      %p152 = scmp.eq.s32.totalorder %s20, 1
      %p153 = por %p151, %p152
      %p155 = scmp.ne.s32.totalorder %s138, %s154
      %p156 = scmp.eq.s32.totalorder %s20, 0
      %p157 = por %p155, %p156
      %p158 = scmp.le.s32.totalorder 1, %s14
      %p159 = scmp.lt.s32.totalorder %s14, 3
      %p160 = pnand %p158, %p159
      %p161 = pneg %p160
      // Predicated region
      $region9: #{_lambda_.15} parent=5 // pred_check
        _
      $region10: #{_lambda_.15} parent=5 // pred_check_branch
        %163 = sbr.rel (%p160) target = $region12
      $region11: #{_lambda_.15} parent=5 // pred_region
        %s164 = ssub.s32 %s14, 1
        // Predicated region
        $region13: #{_lambda_.15} parent=11 // pred_check
          %p165 = pneg %p61
        $region14: #{_lambda_.15} parent=11 // pred_check_branch
          %167 = sbr.rel (%p165) target = $region16
        $region15: #{_lambda_.15} parent=11 // pred_region
          _
        $region16: #{_lambda_.15} parent=11 // pred_fallthru
          _
        // Predicated region
        $region17: #{_lambda_.15} parent=11 // pred_check
          %p168 = pneg %p82
        $region18: #{_lambda_.15} parent=11 // pred_check_branch
          %170 = sbr.rel (%p168) target = $region20
        $region19: #{_lambda_.15} parent=11 // pred_region
          _
        $region20: #{_lambda_.15} parent=11 // pred_fallthru
          _
        // Predicated region
        $region21: #{_lambda_.15} parent=11 // pred_check
          %p171 = pneg %p103
        $region22: #{_lambda_.15} parent=11 // pred_check_branch
          %173 = sbr.rel (%p171) target = $region24
        $region23: #{_lambda_.15} parent=11 // pred_region
          _
        $region24: #{_lambda_.15} parent=11 // pred_fallthru
          _
        // Predicated region
        $region25: #{_lambda_.15} parent=11 // pred_check
          %p174 = pneg %p124
        $region26: #{_lambda_.15} parent=11 // pred_check_branch
          %176 = sbr.rel (%p174) target = $region28
        $region27: #{_lambda_.15} parent=11 // pred_region
          _
        $region28: #{_lambda_.15} parent=11 // pred_fallthru
          _
      $region12: #{_lambda_.15} parent=5 // pred_fallthru
        _
      %p177 = scmp.lt.s32.totalorder %s14, 2
      // Predicated region
      $region29: #{_lambda_.15} parent=5 // pred_check
        %p178 = pneg %p177
      $region30: #{_lambda_.15} parent=5 // pred_check_branch
        %180 = sbr.rel (%p178) target = $region32
      $region31: #{_lambda_.15} parent=5 // pred_region
        // Predicated region
        $region33: #{_lambda_.15} parent=31 // pred_check
          %p181 = pneg %p34
        $region34: #{_lambda_.15} parent=31 // pred_check_branch
          %183 = sbr.rel (%p181) target = $region36
        $region35: #{_lambda_.15} parent=31 // pred_region
          %p184 = scmp.lt.s32.totalorder %s14, 1
          %s185 = scalar_select %p184, %s14, 1
          %s186 = smul.addr %s185, 4
          %s187 = smul.addr %s186, 8
          %s188 = scalar_lea.vmem %s0, %s187
        $region36: #{_lambda_.15} parent=31 // pred_fallthru
          _
      $region32: #{_lambda_.15} parent=5 // pred_fallthru
        _
      %p189 = scmp.le.s32.totalorder 1, %s14
      %p190 = scmp.lt.s32.totalorder %s14, 3
      %p191 = pnand %p189, %p190
      %p192 = pneg %p191
      // Predicated region
      $region37: #{_lambda_.15} parent=5 // pred_check
        _
      $region38: #{_lambda_.15} parent=5 // pred_check_branch
        %194 = sbr.rel (%p191) target = $region40
      $region39: #{_lambda_.15} parent=5 // pred_region
        %s195 = ssub.s32 %s14, 1
        %p196 = scmp.lt.s32.totalorder %s19, 1
        %s197 = scalar_select %p196, %s19, 1
        %s198 = smul.addr %s197, 4
        %s199 = smul.addr %s198, 8
        %s200 = scalar_lea.vmem %s0, %s199
        %p201 = pneg %p40
        %p202 = pneg %p37
        %p203 = pneg %p61
        %p204 = pneg %p58
        %p205 = pneg %p82
        %p206 = pneg %p79
        %p207 = pneg %p103
        %p208 = pneg %p100
        %p209 = pneg %p124
        %p210 = pneg %p121
        %p211 = pneg %p150
        %p212 = pneg %p147
        %s213 = sand.u32 %s137, 1
        %s214 = scalar_lea.sflag [#allocation3], %s213
        %s215 = sand.u32 %s137, 1
        %s216 = smul.addr %s215, 32
        %s217 = scalar_lea.vmem [#allocation2], %s216
        %p218 = scmp.lt.s32.totalorder %s19, 1
        %s219 = scalar_select %p218, %s19, 1
        %s220 = smul.addr %s219, 4
        %s221 = smul.addr %s220, 8
        %s222 = scalar_lea.vmem %s0, %s221
        %v223 = vld [vmem:[%s222] sm:$0xff]
        %v224 = vld [vmem:[%s222 + $0x8] sm:$0xff]
        %v225 = vld [vmem:[%s222 + $0x10] sm:$0xff]
        %v226 = vld [vmem:[%s222 + $0x18] sm:$0xff]
        %vm227 = vcmask 130048
        %v228 = vsel %vm227, %v223, 0.0
        %v229 = vsel %vm227, %v224, 0.0
        %v230 = vadd.f32 %v228, %v229
        %v231 = vsel %vm227, %v225, 0.0
        %v232 = vadd.f32 %v230, %v231
        %v233 = vsel %vm227, %v226, 0.0
        %v234 = vadd.f32 %v232, %v233
        %v235 = vrot.slane %v234, 4
        %v236 = vadd.f32 %v234, %v235
        %v237 = vrot.slane %v236, 2
        %v238 = vadd.f32 %v236, %v237
        %v239 = vrot.slane %v238, 1
        %v240 = vadd.f32 %v238, %v239
        %v241 = vmul.f32 %v223, %v223
        %v242 = vmul.f32 %v224, %v224
        %v243 = vmul.f32 %v225, %v225
        %v244 = vmul.f32 %v226, %v226
        %v245 = vsel %vm227, %v241, 0.0
        %v246 = vsel %vm227, %v242, 0.0
        %v247 = vadd.f32 %v245, %v246
        %v248 = vsel %vm227, %v243, 0.0
        %v249 = vadd.f32 %v247, %v248
        %v250 = vsel %vm227, %v244, 0.0
        %v251 = vadd.f32 %v249, %v250
        %v252 = vrot.slane %v251, 4
        %v253 = vadd.f32 %v251, %v252
        %v254 = vrot.slane %v253, 2
        %v255 = vadd.f32 %v253, %v254
        %v256 = vrot.slane %v255, 1
        %v257 = vadd.f32 %v255, %v256
        %v258 = vld [vmem:[%s3] sm:$0xff]
        %v259 = vld [vmem:[%s3 + $0x8] sm:$0xff]
        %v261 = vsel %vm227, %v240, 0
        %263 = vmatprep.subr.mxu0 0.0
        %264 = vmatpush1.msra.mxu0 %v258
        %265 = vmatprep.subr.mxu0 0.0
        %266 = vmatpush1.msra.mxu0 %v259
        %267 = vmatprep.subr.mxu0 0.0
        %268 = vmatpush1.msra.mxu0 0.0
        %269 = vmatprep.subr.mxu0 0.0
        %270 = vmatpush1.msra.mxu0 0.0
        %271 = vmatprep.subr.mxu0 0.0
        %272 = vmatpush1.msra.mxu0 0.0
        %273 = vmatprep.subr.mxu0 0.0
        %274 = vmatpush1.msra.mxu0 0.0
        %275 = vmatprep.subr.mxu0 0.0
        %276 = vmatpush1.msra.mxu0 0.0
        %277 = vmatprep.subr.mxu0 0.0
        %278 = vmatpush1.msra.mxu0 0.0
        %279 = vmatprep.subr.mxu0 0.0
        %280 = vmatpush1.msra.mxu0 0.0
        %281 = vmatprep.subr.mxu0 0.0
        %282 = vmatpush1.msra.mxu0 0.0
        %283 = vmatprep.subr.mxu0 0.0
        %284 = vmatpush1.msra.mxu0 0.0
        %285 = vmatprep.subr.mxu0 0.0
        %286 = vmatpush1.msra.mxu0 0.0
        %287 = vmatprep.subr.mxu0 0.0
        %288 = vmatpush1.msra.mxu0 0.0
        %289 = vmatprep.subr.mxu0 0.0
        %290 = vmatpush1.msra.mxu0 0.0
        %291 = vmatprep.subr.mxu0 0.0
        %292 = vmatpush1.msra.mxu0 0.0
        %293 = vmatprep.subr.mxu0 0.0
        %294 = vmatpush1.msra.mxu0 0.0
        %295 = vmatprep.subr.mxu0 0.0
        %296 = vmatpush1.msra.mxu0 0.0
        %297 = vmatprep.subr.mxu0 0.0
        %298 = vmatpush1.msra.mxu0 0.0
        %299 = vmatprep.subr.mxu0 0.0
        %300 = vmatpush1.msra.mxu0 0.0
        %301 = vmatprep.subr.mxu0 0.0
        %302 = vmatpush1.msra.mxu0 0.0
        %303 = vmatprep.subr.mxu0 0.0
        %304 = vmatpush1.msra.mxu0 0.0
        %305 = vmatprep.subr.mxu0 0.0
        %306 = vmatpush1.msra.mxu0 0.0
        %307 = vmatprep.subr.mxu0 0.0
        %308 = vmatpush1.msra.mxu0 0.0
        %309 = vmatprep.subr.mxu0 0.0
        %310 = vmatpush1.msra.mxu0 0.0
        %311 = vmatprep.subr.mxu0 0.0
        %312 = vmatpush1.msra.mxu0 0.0
        %313 = vmatprep.subr.mxu0 0.0
        %314 = vmatpush1.msra.mxu0 0.0
        %315 = vmatprep.subr.mxu0 0.0
        %316 = vmatpush1.msra.mxu0 0.0
        %317 = vmatprep.subr.mxu0 0.0
        %318 = vmatpush1.msra.mxu0 0.0
        %319 = vmatprep.subr.mxu0 0.0
        %320 = vmatpush1.msra.mxu0 0.0
        %321 = vmatprep.subr.mxu0 0.0
        %322 = vmatpush1.msra.mxu0 0.0
        %323 = vmatprep.subr.mxu0 0.0
        %324 = vmatpush1.msra.mxu0 0.0
        %325 = vmatprep.subr.mxu0 0.0
        %326 = vmatpush1.msra.mxu0 0.0
        %327 = vmatprep.mubr.f32.mxu0 0.0
        %328 = vmatmul.mubr.f32.gmra.mrb[0].mxu0 %v261
        %v329 = vpop.f32.mrb[0].mxu0
        %v330 = vadd.f32 0.0, %v329
        %v331 = vpop.f32.mrb[0].mxu0
        %332 = vdwg.mxu0
        %v334 = vsel %vm227, %v257, 0
        %336 = vmatprep.subr.mxu0 0.0
        %337 = vmatpush1.msra.mxu0 %v258
        %338 = vmatprep.subr.mxu0 0.0
        %339 = vmatpush1.msra.mxu0 %v259
        %340 = vmatprep.subr.mxu0 0.0
        %341 = vmatpush1.msra.mxu0 0.0
        %342 = vmatprep.subr.mxu0 0.0
        %343 = vmatpush1.msra.mxu0 0.0
        %344 = vmatprep.subr.mxu0 0.0
        %345 = vmatpush1.msra.mxu0 0.0
        %346 = vmatprep.subr.mxu0 0.0
        %347 = vmatpush1.msra.mxu0 0.0
        %348 = vmatprep.subr.mxu0 0.0
        %349 = vmatpush1.msra.mxu0 0.0
        %350 = vmatprep.subr.mxu0 0.0
        %351 = vmatpush1.msra.mxu0 0.0
        %352 = vmatprep.subr.mxu0 0.0
        %353 = vmatpush1.msra.mxu0 0.0
        %354 = vmatprep.subr.mxu0 0.0
        %355 = vmatpush1.msra.mxu0 0.0
        %356 = vmatprep.subr.mxu0 0.0
        %357 = vmatpush1.msra.mxu0 0.0
        %358 = vmatprep.subr.mxu0 0.0
        %359 = vmatpush1.msra.mxu0 0.0
        %360 = vmatprep.subr.mxu0 0.0
        %361 = vmatpush1.msra.mxu0 0.0
        %362 = vmatprep.subr.mxu0 0.0
        %363 = vmatpush1.msra.mxu0 0.0
        %364 = vmatprep.subr.mxu0 0.0
        %365 = vmatpush1.msra.mxu0 0.0
        %366 = vmatprep.subr.mxu0 0.0
        %367 = vmatpush1.msra.mxu0 0.0
        %368 = vmatprep.subr.mxu0 0.0
        %369 = vmatpush1.msra.mxu0 0.0
        %370 = vmatprep.subr.mxu0 0.0
        %371 = vmatpush1.msra.mxu0 0.0
        %372 = vmatprep.subr.mxu0 0.0
        %373 = vmatpush1.msra.mxu0 0.0
        %374 = vmatprep.subr.mxu0 0.0
        %375 = vmatpush1.msra.mxu0 0.0
        %376 = vmatprep.subr.mxu0 0.0
        %377 = vmatpush1.msra.mxu0 0.0
        %378 = vmatprep.subr.mxu0 0.0
        %379 = vmatpush1.msra.mxu0 0.0
        %380 = vmatprep.subr.mxu0 0.0
        %381 = vmatpush1.msra.mxu0 0.0
        %382 = vmatprep.subr.mxu0 0.0
        %383 = vmatpush1.msra.mxu0 0.0
        %384 = vmatprep.subr.mxu0 0.0
        %385 = vmatpush1.msra.mxu0 0.0
        %386 = vmatprep.subr.mxu0 0.0
        %387 = vmatpush1.msra.mxu0 0.0
        %388 = vmatprep.subr.mxu0 0.0
        %389 = vmatpush1.msra.mxu0 0.0
        %390 = vmatprep.subr.mxu0 0.0
        %391 = vmatpush1.msra.mxu0 0.0
        %392 = vmatprep.subr.mxu0 0.0
        %393 = vmatpush1.msra.mxu0 0.0
        %394 = vmatprep.subr.mxu0 0.0
        %395 = vmatpush1.msra.mxu0 0.0
        %396 = vmatprep.subr.mxu0 0.0
        %397 = vmatpush1.msra.mxu0 0.0
        %398 = vmatprep.subr.mxu0 0.0
        %399 = vmatpush1.msra.mxu0 0.0
        %400 = vmatprep.mubr.f32.mxu0 0.0
        %401 = vmatmul.mubr.f32.gmra.mrb[0].mxu0 %v334
        %v402 = vpop.f32.mrb[0].mxu0
        %v403 = vadd.f32 0.0, %v402
        %v404 = vpop.f32.mrb[0].mxu0
        %405 = vdwg.mxu0
        %v406 = vmul.f32 %v330, 0.0078125
        %v407 = vmul.f32 %v403, 0.0078125
        %v408 = vmul.f32 %v406, %v406
        %v409 = vsub.f32 %v407, %v408
        %v410 = vmax.f32 %v409, 0.0
        %v411 = vadd.f32 %v410, 1e-06
        %v412 = vrsqrt.pop %v411
        %v413 = vld [vmem:[%s4] sm:$0xf]
        %vm414 = vcmask 31744
        %v416 = vsel %vm414, %v406, 0
        %vm418 = vcmask 1043456
        %v420 = vsel %vm418, %v413, 0
        %422 = vmatprep.subr.mxu0 0.0
        %423 = vmatpush1.msra.mxu0 %v420
        %424 = vmatprep.subr.mxu0 0.0
        %425 = vmatpush1.msra.mxu0 0.0
        %426 = vmatprep.subr.mxu0 0.0
        %427 = vmatpush1.msra.mxu0 0.0
        %428 = vmatprep.subr.mxu0 0.0
        %429 = vmatpush1.msra.mxu0 0.0
        %430 = vmatprep.subr.mxu0 0.0
        %431 = vmatpush1.msra.mxu0 0.0
        %432 = vmatprep.subr.mxu0 0.0
        %433 = vmatpush1.msra.mxu0 0.0
        %434 = vmatprep.subr.mxu0 0.0
        %435 = vmatpush1.msra.mxu0 0.0
        %436 = vmatprep.subr.mxu0 0.0
        %437 = vmatpush1.msra.mxu0 0.0
        %438 = vmatprep.subr.mxu0 0.0
        %439 = vmatpush1.msra.mxu0 0.0
        %440 = vmatprep.subr.mxu0 0.0
        %441 = vmatpush1.msra.mxu0 0.0
        %442 = vmatprep.subr.mxu0 0.0
        %443 = vmatpush1.msra.mxu0 0.0
        %444 = vmatprep.subr.mxu0 0.0
        %445 = vmatpush1.msra.mxu0 0.0
        %446 = vmatprep.subr.mxu0 0.0
        %447 = vmatpush1.msra.mxu0 0.0
        %448 = vmatprep.subr.mxu0 0.0
        %449 = vmatpush1.msra.mxu0 0.0
        %450 = vmatprep.subr.mxu0 0.0
        %451 = vmatpush1.msra.mxu0 0.0
        %452 = vmatprep.subr.mxu0 0.0
        %453 = vmatpush1.msra.mxu0 0.0
        %454 = vmatprep.subr.mxu0 0.0
        %455 = vmatpush1.msra.mxu0 0.0
        %456 = vmatprep.subr.mxu0 0.0
        %457 = vmatpush1.msra.mxu0 0.0
        %458 = vmatprep.subr.mxu0 0.0
        %459 = vmatpush1.msra.mxu0 0.0
        %460 = vmatprep.subr.mxu0 0.0
        %461 = vmatpush1.msra.mxu0 0.0
        %462 = vmatprep.subr.mxu0 0.0
        %463 = vmatpush1.msra.mxu0 0.0
        %464 = vmatprep.subr.mxu0 0.0
        %465 = vmatpush1.msra.mxu0 0.0
        %466 = vmatprep.subr.mxu0 0.0
        %467 = vmatpush1.msra.mxu0 0.0
        %468 = vmatprep.subr.mxu0 0.0
        %469 = vmatpush1.msra.mxu0 0.0
        %470 = vmatprep.subr.mxu0 0.0
        %471 = vmatpush1.msra.mxu0 0.0
        %472 = vmatprep.subr.mxu0 0.0
        %473 = vmatpush1.msra.mxu0 0.0
        %474 = vmatprep.subr.mxu0 0.0
        %475 = vmatpush1.msra.mxu0 0.0
        %476 = vmatprep.subr.mxu0 0.0
        %477 = vmatpush1.msra.mxu0 0.0
        %478 = vmatprep.subr.mxu0 0.0
        %479 = vmatpush1.msra.mxu0 0.0
        %480 = vmatprep.subr.mxu0 0.0
        %481 = vmatpush1.msra.mxu0 0.0
        %482 = vmatprep.subr.mxu0 0.0
        %483 = vmatpush1.msra.mxu0 0.0
        %484 = vmatprep.subr.mxu0 0.0
        %485 = vmatpush1.msra.mxu0 0.0
        %486 = vmatprep.mubr.f32.mxu0 0.0
        %487 = vmatmul.mubr.f32.gmra.mrb[0].mxu0 %v416
        %v488 = vpop.f32.mrb[0].mxu0
        %v489 = vadd.f32 0.0, %v488
        %v490 = vpop.f32.mrb[0].mxu0
        %491 = vdwg.mxu0
        %v493 = vsel %vm414, %v412, 0
        %495 = vmatprep.subr.mxu0 0.0
        %496 = vmatpush1.msra.mxu0 %v420
        %497 = vmatprep.subr.mxu0 0.0
        %498 = vmatpush1.msra.mxu0 0.0
        %499 = vmatprep.subr.mxu0 0.0
        %500 = vmatpush1.msra.mxu0 0.0
        %501 = vmatprep.subr.mxu0 0.0
        %502 = vmatpush1.msra.mxu0 0.0
        %503 = vmatprep.subr.mxu0 0.0
        %504 = vmatpush1.msra.mxu0 0.0
        %505 = vmatprep.subr.mxu0 0.0
        %506 = vmatpush1.msra.mxu0 0.0
        %507 = vmatprep.subr.mxu0 0.0
        %508 = vmatpush1.msra.mxu0 0.0
        %509 = vmatprep.subr.mxu0 0.0
        %510 = vmatpush1.msra.mxu0 0.0
        %511 = vmatprep.subr.mxu0 0.0
        %512 = vmatpush1.msra.mxu0 0.0
        %513 = vmatprep.subr.mxu0 0.0
        %514 = vmatpush1.msra.mxu0 0.0
        %515 = vmatprep.subr.mxu0 0.0
        %516 = vmatpush1.msra.mxu0 0.0
        %517 = vmatprep.subr.mxu0 0.0
        %518 = vmatpush1.msra.mxu0 0.0
        %519 = vmatprep.subr.mxu0 0.0
        %520 = vmatpush1.msra.mxu0 0.0
        %521 = vmatprep.subr.mxu0 0.0
        %522 = vmatpush1.msra.mxu0 0.0
        %523 = vmatprep.subr.mxu0 0.0
        %524 = vmatpush1.msra.mxu0 0.0
        %525 = vmatprep.subr.mxu0 0.0
        %526 = vmatpush1.msra.mxu0 0.0
        %527 = vmatprep.subr.mxu0 0.0
        %528 = vmatpush1.msra.mxu0 0.0
        %529 = vmatprep.subr.mxu0 0.0
        %530 = vmatpush1.msra.mxu0 0.0
        %531 = vmatprep.subr.mxu0 0.0
        %532 = vmatpush1.msra.mxu0 0.0
        %533 = vmatprep.subr.mxu0 0.0
        %534 = vmatpush1.msra.mxu0 0.0
        %535 = vmatprep.subr.mxu0 0.0
        %536 = vmatpush1.msra.mxu0 0.0
        %537 = vmatprep.subr.mxu0 0.0
        %538 = vmatpush1.msra.mxu0 0.0
        %539 = vmatprep.subr.mxu0 0.0
        %540 = vmatpush1.msra.mxu0 0.0
        %541 = vmatprep.subr.mxu0 0.0
        %542 = vmatpush1.msra.mxu0 0.0
        %543 = vmatprep.subr.mxu0 0.0
        %544 = vmatpush1.msra.mxu0 0.0
        %545 = vmatprep.subr.mxu0 0.0
        %546 = vmatpush1.msra.mxu0 0.0
        %547 = vmatprep.subr.mxu0 0.0
        %548 = vmatpush1.msra.mxu0 0.0
        %549 = vmatprep.subr.mxu0 0.0
        %550 = vmatpush1.msra.mxu0 0.0
        %551 = vmatprep.subr.mxu0 0.0
        %552 = vmatpush1.msra.mxu0 0.0
        %553 = vmatprep.subr.mxu0 0.0
        %554 = vmatpush1.msra.mxu0 0.0
        %555 = vmatprep.subr.mxu0 0.0
        %556 = vmatpush1.msra.mxu0 0.0
        %557 = vmatprep.subr.mxu0 0.0
        %558 = vmatpush1.msra.mxu0 0.0
        %559 = vmatprep.mubr.f32.mxu0 0.0
        %560 = vmatmul.mubr.f32.gmra.mrb[0].mxu0 %v493
        %v561 = vpop.f32.mrb[0].mxu0
        %v562 = vadd.f32 0.0, %v561
        %v563 = vpop.f32.mrb[0].mxu0
        %564 = vdwg.mxu0
        %v565 = vld [vmem:[%s1] sm:$0x1]
        %v566 = vmul.f32 %v565, %v562
        %v567 = vld [vmem:[%s2] sm:$0x1]
        %v568 = vmul.f32 %v489, %v566
        %v569 = vsub.f32 %v567, %v568
        %v571 = vlaneseq
        %v572 = vshrl.u32 %v571, 7
        %v573 = vsub.s32 0, %v572
        %v574 = vrot.slane %v566, %v573
        %v576 = vmul.f32 %v223, %v574
        %v577 = vmul.f32 %v224, %v574
        %v578 = vmul.f32 %v225, %v574
        %v579 = vmul.f32 %v226, %v574
        %v581 = vlaneseq
        %v582 = vshrl.u32 %v581, 7
        %v583 = vsub.s32 0, %v582
        %v584 = vrot.slane %v569, %v583
        %v586 = vadd.f32 %v576, %v584
        %v587 = vadd.f32 %v577, %v584
        %v588 = vadd.f32 %v578, %v584
        %v589 = vadd.f32 %v579, %v584
        %v590 = vxor.u32 %v586, 2147483648
        %v591 = vxor.u32 %v587, 2147483648
        %v592 = vxor.u32 %v588, 2147483648
        %v593 = vxor.u32 %v589, 2147483648
        %v594 = vmul.f32 %v590, 1.442695
        %v595 = vpow.pop %v594
        %v596 = vmul.f32 %v591, 1.442695
        %v597 = vpow.pop %v596
        %v598 = vmul.f32 %v592, 1.442695
        %v599 = vpow.pop %v598
        %v600 = vmul.f32 %v593, 1.442695
        %v601 = vpow.pop %v600
        %v602 = vadd.f32 %v595, 1.0
        %v603 = vadd.f32 %v597, 1.0
        %v604 = vadd.f32 %v599, 1.0
        %v605 = vadd.f32 %v601, 1.0
        %v606 = vrcp.pop %v602
        %v607 = vmul.f32 1.0, %v606
        %v608 = vrcp.pop %v603
        %v609 = vmul.f32 1.0, %v608
        %v610 = vrcp.pop %v604
        %v611 = vmul.f32 1.0, %v610
        %v612 = vrcp.pop %v605
        %v613 = vmul.f32 1.0, %v612
        %v614 = vmul.f32 %v586, %v607
        %v615 = vmul.f32 %v587, %v609
        %v616 = vmul.f32 %v588, %v611
        %v617 = vmul.f32 %v589, %v613
        %618 = vst.msk [vmem:[%s217] sm:$0xff] %vm227, %v614
        %619 = vst.msk [vmem:[%s217 + $0x8] sm:$0xff] %vm227, %v615
        %620 = vst.msk [vmem:[%s217 + $0x10] sm:$0xff] %vm227, %v616
        %621 = vst.msk [vmem:[%s217 + $0x18] sm:$0xff] %vm227, %v617
        %s622 = sand.u32 %s137, 1
        %s623 = scalar_lea.sflag [#allocation3], %s622
        %s624 = sand.u32 %s137, 1
        %s625 = smul.addr %s624, 32
        %s626 = scalar_lea.vmem [#allocation2], %s625
        // Predicated region
        $region41: #{_lambda_.15} parent=39 // pred_check
          %p627 = pneg %p147
        $region42: #{_lambda_.15} parent=39 // pred_check_branch
          %629 = sbr.rel (%p627) target = $region44
        $region43: #{_lambda_.15} parent=39 // pred_region
          %s631 = ssub.s32 512, 512
          %632 = vsyncadd %s623, %s631
          %s633 = smul.addr %s19, 4
          %s634 = smul.addr %s633, 128
          %s635 = scalar_lea.hbm %s5, %s634
          %s636 = sshll.u32 %s626, 4
          %s637 = int_to_ptr.vmem [resolvable:$true] %s636
          %642 = dma.vmem_to_hbm [thread:$0]  %s637, 512, %s635, %s623, 128, 128, 8
        $region44: #{_lambda_.15} parent=39 // pred_fallthru
          _
      $region40: #{_lambda_.15} parent=5 // pred_fallthru
        _
      %p643 = scmp.le.s32.totalorder 2, %s14
      // Predicated region
      $region45: #{_lambda_.15} parent=5 // pred_check
        %p644 = pneg %p643
      $region46: #{_lambda_.15} parent=5 // pred_check_branch
        %646 = sbr.rel (%p644) target = $region48
      $region47: #{_lambda_.15} parent=5 // pred_region
        %s647 = ssub.s32 %s14, 2
        // Predicated region
        $region49: #{_lambda_.15} parent=47 // pred_check
          %p648 = pneg %p153
        $region50: #{_lambda_.15} parent=47 // pred_check_branch
          %650 = sbr.rel (%p648) target = $region52
        $region51: #{_lambda_.15} parent=47 // pred_region
          %s651 = sand.u32 %s138, 1
          %s652 = scalar_lea.sflag [#allocation3], %s651
          %s653 = sand.u32 %s138, 1
          %s654 = smul.addr %s653, 32
          %s655 = scalar_lea.vmem [#allocation2], %s654
          %656 = dma.done %s652, 512
        $region52: #{_lambda_.15} parent=47 // pred_fallthru
          _
      $region48: #{_lambda_.15} parent=5 // pred_fallthru
        _
    $region6: #{_lambda_.15} parent=1 // loop_footer
      %s18 = sadd.s32 1, %s14
    $region7: #{_lambda_.15} parent=1 // loop_footer_branch
      %13 = sbr.rel target = $region3
    $region8: #{_lambda_.15} parent=1 // loop_exit
      _
    %657 = vsyncpa [#allocation3], 1
    %s658 = scalar_lea.sflag [#allocation3], 1
    %659 = vsyncpa %s658, 1

</llo_original>
